<compile_context>
chip_gen: v7x
topology: tpu7x:2x2x1
jax: 0.10.0
libtpu: 0.0.40
codegen_flags: <defaults>
</compile_context>

<pallas_src>
import functools

import jax
import jax.numpy as jnp
from jax.experimental import pallas as pl
from jax.experimental.pallas import tpu as pltpu


def tsgru_kernel(x_ref, len_ref,
                 wih0_ref, whh0_ref, bih0_ref, bhh0_ref,
                 wih1_ref, whh1_ref, bih1_ref, bhh1_ref,
                 wout_ref, bout_ref,
                 out_ref,
                 *, hidden, seq_len):
    H = hidden
    T = seq_len
    B = len_ref.shape[0]
    f32 = jnp.float32

    def dot(a, b):
        return jnp.dot(a, b, preferred_element_type=f32)

    lengths = len_ref[...]                                  # (B, 1) int32

    # ---- per-gate recurrent weights, loaded once (gate order: r, z, n) ----
    whh0_r, whh0_z, whh0_n = whh0_ref[0], whh0_ref[1], whh0_ref[2]   # (H, H)
    wih1_r, wih1_z, wih1_n = wih1_ref[0], wih1_ref[1], wih1_ref[2]   # (H, H)
    whh1_r, whh1_z, whh1_n = whh1_ref[0], whh1_ref[1], whh1_ref[2]   # (H, H)

    # ---- hoisted bias broadcasts (JAX does not CSE broadcast_in_dim) ------
    ones_bh = jnp.ones((B, H), f32)
    bhn0 = bhh0_ref[2] * ones_bh                 # b_hh0_n (inside r * (...))
    br1 = (bih1_ref[0] + bhh1_ref[0]) * ones_bh
    bz1 = (bih1_ref[1] + bhh1_ref[1]) * ones_bh
    bin1 = bih1_ref[2] * ones_bh
    bhn1 = bhh1_ref[2] * ones_bh

    # ---- layer-0 input projection hoisted out of the recurrence -----------
    # x_ref is (T*B, F), time-major; one MXU matmul per gate, biases folded in
    # (r/z gates can pre-add b_ih + b_hh; the n gate keeps b_hh_n separate).
    x_all = x_ref[...]
    gi0_r = dot(x_all, wih0_ref[0]) + bih0_ref[0] + bhh0_ref[0]     # (T*B, H)
    gi0_z = dot(x_all, wih0_ref[1]) + bih0_ref[1] + bhh0_ref[1]
    gi0_n = dot(x_all, wih0_ref[2]) + bih0_ref[2]

    h1 = jnp.zeros((B, H), f32)
    h2 = jnp.zeros((B, H), f32)
    acc = jnp.zeros((B, H), f32)

    # Fully unrolled time loop (T is small and static): per step only the
    # h-recurrent matmuls remain on the serial dependency chain.
    for t in range(T):
        maskf = (t < lengths).astype(f32)                   # (B, 1)
        s = slice(t * B, (t + 1) * B)

        # ---- layer 0 (PyTorch GRUCell math) ----
        r0 = jax.nn.sigmoid(gi0_r[s, :] + dot(h1, whh0_r))
        z0 = jax.nn.sigmoid(gi0_z[s, :] + dot(h1, whh0_z))
        n0 = jnp.tanh(gi0_n[s, :] + r0 * (dot(h1, whh0_n) + bhn0))
        h1n = (1.0 - z0) * n0 + z0 * h1

        # ---- layer 1 ----
        r1 = jax.nn.sigmoid(dot(h1n, wih1_r) + dot(h2, whh1_r) + br1)
        z1 = jax.nn.sigmoid(dot(h1n, wih1_z) + dot(h2, whh1_z) + bz1)
        n1 = jnp.tanh(dot(h1n, wih1_n) + bin1 + r1 * (dot(h2, whh1_n) + bhn1))
        h2n = (1.0 - z1) * n1 + z1 * h2

        # packed-sequence semantics: freeze hidden state and skip the mean
        # accumulation for t >= length[b]
        h1 = h1 + maskf * (h1n - h1)
        h2 = h2 + maskf * (h2n - h2)
        acc = acc + maskf * h2n

    denom = jnp.maximum(lengths, 1).astype(f32)             # guard length == 0
    mean_h = acc / denom                                    # (B, H)
    logits = dot(mean_h, wout_ref[...]) + bout_ref[...]     # (B, C)
    out_ref[...] = logits.astype(out_ref.dtype)


def _split_gates(w, hidden):
    """PyTorch packed (3H, In) -> per-gate, pre-transposed (3, In, H)."""
    return jnp.transpose(w.reshape(3, hidden, -1), (0, 2, 1))


def tsgru_forward(x, lengths, params):
    """x: (B, T, F) float32 batch-first (PyTorch layout); lengths: (B,) ints."""
    B, T, F = x.shape
    H = params["w_hh_l0"].shape[1]          # w_hh_l0 is (3H, H) -> H
    C = params["w_out"].shape[0]            # w_out is (C, H)

    # Time-major, flattened to (T*B, F): the layer-0 input projection becomes
    # one lane-dense MXU matmul per gate inside the kernel.
    x_tm = jnp.transpose(x, (1, 0, 2)).reshape(T * B, F)
    lens = lengths.astype(jnp.int32).reshape(B, 1)

    wih0 = _split_gates(params["w_ih_l0"], H)       # (3, F, H)
    whh0 = _split_gates(params["w_hh_l0"], H)       # (3, H, H)
    wih1 = _split_gates(params["w_ih_l1"], H)       # (3, H, H)
    whh1 = _split_gates(params["w_hh_l1"], H)       # (3, H, H)
    bih0 = params["b_ih_l0"].reshape(3, 1, H)
    bhh0 = params["b_hh_l0"].reshape(3, 1, H)
    bih1 = params["b_ih_l1"].reshape(3, 1, H)
    bhh1 = params["b_hh_l1"].reshape(3, 1, H)
    wout = params["w_out"].T                        # (H, C)
    bout = params["b_out"].reshape(1, C)

    vmem = pl.BlockSpec(memory_space=pltpu.MemorySpace.VMEM)
    kernel = functools.partial(tsgru_kernel, hidden=H, seq_len=T)

    return pl.pallas_call(
        kernel,
        out_shape=jax.ShapeDtypeStruct((B, C), jnp.float32),
        in_specs=[vmem] * 12,
        out_specs=vmem,
    )(x_tm, lens, wih0, whh0, bih0, bhh0, wih1, whh1, bih1, bhh1, wout, bout)


def init_params(key, feature_dim, hidden, num_classes):
    """PyTorch-layout params with U(-1/sqrt(H), 1/sqrt(H)) init.
    Gate order inside the packed (3H, .) weights is r, z, n (as in nn.GRU)."""
    k = 1.0 / jnp.sqrt(jnp.float32(hidden))
    keys = jax.random.split(key, 10)

    def u(kk, shape):
        return jax.random.uniform(kk, shape, jnp.float32, -k, k)

    return {
        "w_ih_l0": u(keys[0], (3 * hidden, feature_dim)),
        "w_hh_l0": u(keys[1], (3 * hidden, hidden)),
        "b_ih_l0": u(keys[2], (3 * hidden,)),
        "b_hh_l0": u(keys[3], (3 * hidden,)),
        "w_ih_l1": u(keys[4], (3 * hidden, hidden)),
        "w_hh_l1": u(keys[5], (3 * hidden, hidden)),
        "b_ih_l1": u(keys[6], (3 * hidden,)),
        "b_hh_l1": u(keys[7], (3 * hidden,)),
        "w_out":   u(keys[8], (num_classes, hidden)),
        "b_out":   u(keys[9], (num_classes,)),
    }


def _gru_cell_ref(x, h, w_ih, w_hh, b_ih, b_hh, H):
    """Reference PyTorch GRUCell math with packed (3H, In) weights."""
    gi = x @ w_ih.T + b_ih
    gh = h @ w_hh.T + b_hh
    r = jax.nn.sigmoid(gi[:, 0:H] + gh[:, 0:H])
    z = jax.nn.sigmoid(gi[:, H:2 * H] + gh[:, H:2 * H])
    n = jnp.tanh(gi[:, 2 * H:3 * H] + r * gh[:, 2 * H:3 * H])
    return (1.0 - z) * n + z * h


def tsgru_reference(x, lengths, params):
    """Pure-JAX reference of the same forward (sanity check)."""
    B, T, F = x.shape
    H = params["w_hh_l0"].shape[1]
    h1 = jnp.zeros((B, H), jnp.float32)
    h2 = jnp.zeros((B, H), jnp.float32)
    acc = jnp.zeros((B, H), jnp.float32)
    lens = lengths.astype(jnp.int32).reshape(B, 1)
    for t in range(T):
        mask = (t < lens)
        h1n = _gru_cell_ref(x[:, t, :], h1, params["w_ih_l0"], params["w_hh_l0"],
                            params["b_ih_l0"], params["b_hh_l0"], H)
        h2n = _gru_cell_ref(h1n, h2, params["w_ih_l1"], params["w_hh_l1"],
                            params["b_ih_l1"], params["b_hh_l1"], H)
        h1 = jnp.where(mask, h1n, h1)
        h2 = jnp.where(mask, h2n, h2)
        acc = acc + jnp.where(mask, h2n, 0.0)
    mean_h = acc / jnp.maximum(lens, 1).astype(jnp.float32)
    return mean_h @ params["w_out"].T + params["b_out"]


if __name__ == "__main__":
    feature_dim = 4
    num_classes = 3
    hidden = 32
    batch = 8
    seq_len = 8

    key = jax.random.PRNGKey(0)
    k_x, k_len, k_p = jax.random.split(key, 3)

    x = jax.random.normal(k_x, (batch, seq_len, feature_dim), jnp.float32)
    lengths = jax.random.randint(k_len, (batch,), 1, seq_len + 1, jnp.int32)
    params = init_params(k_p, feature_dim, hidden, num_classes)

    y = jax.jit(tsgru_forward)(x, lengths, params)
    y = jax.block_until_ready(y)

    y_ref = tsgru_reference(x, lengths, params)
    assert y.shape == (batch, num_classes)
    assert jnp.allclose(y, y_ref, atol=1e-3, rtol=1e-3), "mismatch vs reference"

    print("KERNEL_OK")
</pallas_src>

<mosaic_0001>
module attributes {stable_mosaic.version = 11 : i64} {
  func.func @tsgru_kernel(%arg0: memref<64x4xf32, #tpu.memory_space<vmem>>, %arg1: memref<8x1xi32, #tpu.memory_space<vmem>>, %arg2: memref<3x4x32xf32, #tpu.memory_space<vmem>>, %arg3: memref<3x32x32xf32, #tpu.memory_space<vmem>>, %arg4: memref<3x1x32xf32, #tpu.memory_space<vmem>>, %arg5: memref<3x1x32xf32, #tpu.memory_space<vmem>>, %arg6: memref<3x32x32xf32, #tpu.memory_space<vmem>>, %arg7: memref<3x32x32xf32, #tpu.memory_space<vmem>>, %arg8: memref<3x1x32xf32, #tpu.memory_space<vmem>>, %arg9: memref<3x1x32xf32, #tpu.memory_space<vmem>>, %arg10: memref<32x3xf32, #tpu.memory_space<vmem>>, %arg11: memref<1x3xf32, #tpu.memory_space<vmem>>, %arg12: memref<8x3xf32, #tpu.memory_space<vmem>>) attributes {dimension_semantics = [], scalar_prefetch = 0 : i64, scratch_operands = 0 : i64, tpu.core_type = #tpu.core_type<tc>} {
    %c0 = arith.constant 0 : index
    %c0_0 = arith.constant 0 : index
    %0 = vector.load %arg1[%c0, %c0_0] : memref<8x1xi32, #tpu.memory_space<vmem>>, vector<8x1xi32>
    %c0_1 = arith.constant 0 : index
    %c0_2 = arith.constant 0 : index
    %c0_3 = arith.constant 0 : index
    %1 = vector.load %arg3[%c0_1, %c0_2, %c0_3] : memref<3x32x32xf32, #tpu.memory_space<vmem>>, vector<1x32x32xf32>
    %2 = vector.shape_cast %1 : vector<1x32x32xf32> to vector<32x32xf32>
    %c1 = arith.constant 1 : index
    %c0_4 = arith.constant 0 : index
    %c0_5 = arith.constant 0 : index
    %3 = vector.load %arg3[%c1, %c0_4, %c0_5] : memref<3x32x32xf32, #tpu.memory_space<vmem>>, vector<1x32x32xf32>
    %4 = vector.shape_cast %3 : vector<1x32x32xf32> to vector<32x32xf32>
    %c2 = arith.constant 2 : index
    %c0_6 = arith.constant 0 : index
    %c0_7 = arith.constant 0 : index
    %5 = vector.load %arg3[%c2, %c0_6, %c0_7] : memref<3x32x32xf32, #tpu.memory_space<vmem>>, vector<1x32x32xf32>
    %6 = vector.shape_cast %5 : vector<1x32x32xf32> to vector<32x32xf32>
    %c0_8 = arith.constant 0 : index
    %c0_9 = arith.constant 0 : index
    %c0_10 = arith.constant 0 : index
    %7 = vector.load %arg6[%c0_8, %c0_9, %c0_10] : memref<3x32x32xf32, #tpu.memory_space<vmem>>, vector<1x32x32xf32>
    %8 = vector.shape_cast %7 : vector<1x32x32xf32> to vector<32x32xf32>
    %c1_11 = arith.constant 1 : index
    %c0_12 = arith.constant 0 : index
    %c0_13 = arith.constant 0 : index
    %9 = vector.load %arg6[%c1_11, %c0_12, %c0_13] : memref<3x32x32xf32, #tpu.memory_space<vmem>>, vector<1x32x32xf32>
    %10 = vector.shape_cast %9 : vector<1x32x32xf32> to vector<32x32xf32>
    %c2_14 = arith.constant 2 : index
    %c0_15 = arith.constant 0 : index
    %c0_16 = arith.constant 0 : index
    %11 = vector.load %arg6[%c2_14, %c0_15, %c0_16] : memref<3x32x32xf32, #tpu.memory_space<vmem>>, vector<1x32x32xf32>
    %12 = vector.shape_cast %11 : vector<1x32x32xf32> to vector<32x32xf32>
    %c0_17 = arith.constant 0 : index
    %c0_18 = arith.constant 0 : index
    %c0_19 = arith.constant 0 : index
    %13 = vector.load %arg7[%c0_17, %c0_18, %c0_19] : memref<3x32x32xf32, #tpu.memory_space<vmem>>, vector<1x32x32xf32>
    %14 = vector.shape_cast %13 : vector<1x32x32xf32> to vector<32x32xf32>
    %c1_20 = arith.constant 1 : index
    %c0_21 = arith.constant 0 : index
    %c0_22 = arith.constant 0 : index
    %15 = vector.load %arg7[%c1_20, %c0_21, %c0_22] : memref<3x32x32xf32, #tpu.memory_space<vmem>>, vector<1x32x32xf32>
    %16 = vector.shape_cast %15 : vector<1x32x32xf32> to vector<32x32xf32>
    %c2_23 = arith.constant 2 : index
    %c0_24 = arith.constant 0 : index
    %c0_25 = arith.constant 0 : index
    %17 = vector.load %arg7[%c2_23, %c0_24, %c0_25] : memref<3x32x32xf32, #tpu.memory_space<vmem>>, vector<1x32x32xf32>
    %18 = vector.shape_cast %17 : vector<1x32x32xf32> to vector<32x32xf32>
    %cst = arith.constant 1.000000e+00 : f32
    %19 = vector.broadcast %cst : f32 to vector<8x32xf32>
    %c2_26 = arith.constant 2 : index
    %c0_27 = arith.constant 0 : index
    %c0_28 = arith.constant 0 : index
    %20 = vector.load %arg5[%c2_26, %c0_27, %c0_28] : memref<3x1x32xf32, #tpu.memory_space<vmem>>, vector<1x1x32xf32>
    %21 = vector.shape_cast %20 : vector<1x1x32xf32> to vector<1x32xf32>
    %22 = vector.broadcast %21 : vector<1x32xf32> to vector<8x32xf32>
    %23 = arith.mulf %22, %19 : vector<8x32xf32>
    %c0_29 = arith.constant 0 : index
    %c0_30 = arith.constant 0 : index
    %c0_31 = arith.constant 0 : index
    %24 = vector.load %arg8[%c0_29, %c0_30, %c0_31] : memref<3x1x32xf32, #tpu.memory_space<vmem>>, vector<1x1x32xf32>
    %25 = vector.shape_cast %24 : vector<1x1x32xf32> to vector<1x32xf32>
    %c0_32 = arith.constant 0 : index
    %c0_33 = arith.constant 0 : index
    %c0_34 = arith.constant 0 : index
    %26 = vector.load %arg9[%c0_32, %c0_33, %c0_34] : memref<3x1x32xf32, #tpu.memory_space<vmem>>, vector<1x1x32xf32>
    %27 = vector.shape_cast %26 : vector<1x1x32xf32> to vector<1x32xf32>
    %28 = arith.addf %25, %27 : vector<1x32xf32>
    %29 = vector.broadcast %28 : vector<1x32xf32> to vector<8x32xf32>
    %30 = arith.mulf %29, %19 : vector<8x32xf32>
    %c1_35 = arith.constant 1 : index
    %c0_36 = arith.constant 0 : index
    %c0_37 = arith.constant 0 : index
    %31 = vector.load %arg8[%c1_35, %c0_36, %c0_37] : memref<3x1x32xf32, #tpu.memory_space<vmem>>, vector<1x1x32xf32>
    %32 = vector.shape_cast %31 : vector<1x1x32xf32> to vector<1x32xf32>
    %c1_38 = arith.constant 1 : index
    %c0_39 = arith.constant 0 : index
    %c0_40 = arith.constant 0 : index
    %33 = vector.load %arg9[%c1_38, %c0_39, %c0_40] : memref<3x1x32xf32, #tpu.memory_space<vmem>>, vector<1x1x32xf32>
    %34 = vector.shape_cast %33 : vector<1x1x32xf32> to vector<1x32xf32>
    %35 = arith.addf %32, %34 : vector<1x32xf32>
    %36 = vector.broadcast %35 : vector<1x32xf32> to vector<8x32xf32>
    %37 = arith.mulf %36, %19 : vector<8x32xf32>
    %c2_41 = arith.constant 2 : index
    %c0_42 = arith.constant 0 : index
    %c0_43 = arith.constant 0 : index
    %38 = vector.load %arg8[%c2_41, %c0_42, %c0_43] : memref<3x1x32xf32, #tpu.memory_space<vmem>>, vector<1x1x32xf32>
    %39 = vector.shape_cast %38 : vector<1x1x32xf32> to vector<1x32xf32>
    %40 = vector.broadcast %39 : vector<1x32xf32> to vector<8x32xf32>
    %41 = arith.mulf %40, %19 : vector<8x32xf32>
    %c2_44 = arith.constant 2 : index
    %c0_45 = arith.constant 0 : index
    %c0_46 = arith.constant 0 : index
    %42 = vector.load %arg9[%c2_44, %c0_45, %c0_46] : memref<3x1x32xf32, #tpu.memory_space<vmem>>, vector<1x1x32xf32>
    %43 = vector.shape_cast %42 : vector<1x1x32xf32> to vector<1x32xf32>
    %44 = vector.broadcast %43 : vector<1x32xf32> to vector<8x32xf32>
    %45 = arith.mulf %44, %19 : vector<8x32xf32>
    %c0_47 = arith.constant 0 : index
    %c0_48 = arith.constant 0 : index
    %46 = vector.load %arg0[%c0_47, %c0_48] : memref<64x4xf32, #tpu.memory_space<vmem>>, vector<64x4xf32>
    %c0_49 = arith.constant 0 : index
    %c0_50 = arith.constant 0 : index
    %c0_51 = arith.constant 0 : index
    %47 = vector.load %arg2[%c0_49, %c0_50, %c0_51] : memref<3x4x32xf32, #tpu.memory_space<vmem>>, vector<1x4x32xf32>
    %48 = vector.shape_cast %47 : vector<1x4x32xf32> to vector<4x32xf32>
    %cst_52 = arith.constant dense<0.000000e+00> : vector<64x32xf32>
    %49 = tpu.matmul %46, %48, %cst_52 {dimension_numbers = #tpu.dot_dimension_numbers<[1], [0], [0], [1], [0, 0, 1, 1], [], []>} : vector<64x4xf32>, vector<4x32xf32>, vector<64x32xf32> -> vector<64x32xf32>
    %c0_53 = arith.constant 0 : index
    %c0_54 = arith.constant 0 : index
    %c0_55 = arith.constant 0 : index
    %50 = vector.load %arg4[%c0_53, %c0_54, %c0_55] : memref<3x1x32xf32, #tpu.memory_space<vmem>>, vector<1x1x32xf32>
    %51 = vector.shape_cast %50 : vector<1x1x32xf32> to vector<1x32xf32>
    %52 = vector.broadcast %51 : vector<1x32xf32> to vector<64x32xf32>
    %53 = arith.addf %49, %52 : vector<64x32xf32>
    %c0_56 = arith.constant 0 : index
    %c0_57 = arith.constant 0 : index
    %c0_58 = arith.constant 0 : index
    %54 = vector.load %arg5[%c0_56, %c0_57, %c0_58] : memref<3x1x32xf32, #tpu.memory_space<vmem>>, vector<1x1x32xf32>
    %55 = vector.shape_cast %54 : vector<1x1x32xf32> to vector<1x32xf32>
    %56 = vector.broadcast %55 : vector<1x32xf32> to vector<64x32xf32>
    %57 = arith.addf %53, %56 : vector<64x32xf32>
    %c1_59 = arith.constant 1 : index
    %c0_60 = arith.constant 0 : index
    %c0_61 = arith.constant 0 : index
    %58 = vector.load %arg2[%c1_59, %c0_60, %c0_61] : memref<3x4x32xf32, #tpu.memory_space<vmem>>, vector<1x4x32xf32>
    %59 = vector.shape_cast %58 : vector<1x4x32xf32> to vector<4x32xf32>
    %cst_62 = arith.constant dense<0.000000e+00> : vector<64x32xf32>
    %60 = tpu.matmul %46, %59, %cst_62 {dimension_numbers = #tpu.dot_dimension_numbers<[1], [0], [0], [1], [0, 0, 1, 1], [], []>} : vector<64x4xf32>, vector<4x32xf32>, vector<64x32xf32> -> vector<64x32xf32>
    %c1_63 = arith.constant 1 : index
    %c0_64 = arith.constant 0 : index
    %c0_65 = arith.constant 0 : index
    %61 = vector.load %arg4[%c1_63, %c0_64, %c0_65] : memref<3x1x32xf32, #tpu.memory_space<vmem>>, vector<1x1x32xf32>
    %62 = vector.shape_cast %61 : vector<1x1x32xf32> to vector<1x32xf32>
    %63 = vector.broadcast %62 : vector<1x32xf32> to vector<64x32xf32>
    %64 = arith.addf %60, %63 : vector<64x32xf32>
    %c1_66 = arith.constant 1 : index
    %c0_67 = arith.constant 0 : index
    %c0_68 = arith.constant 0 : index
    %65 = vector.load %arg5[%c1_66, %c0_67, %c0_68] : memref<3x1x32xf32, #tpu.memory_space<vmem>>, vector<1x1x32xf32>
    %66 = vector.shape_cast %65 : vector<1x1x32xf32> to vector<1x32xf32>
    %67 = vector.broadcast %66 : vector<1x32xf32> to vector<64x32xf32>
    %68 = arith.addf %64, %67 : vector<64x32xf32>
    %c2_69 = arith.constant 2 : index
    %c0_70 = arith.constant 0 : index
    %c0_71 = arith.constant 0 : index
    %69 = vector.load %arg2[%c2_69, %c0_70, %c0_71] : memref<3x4x32xf32, #tpu.memory_space<vmem>>, vector<1x4x32xf32>
    %70 = vector.shape_cast %69 : vector<1x4x32xf32> to vector<4x32xf32>
    %cst_72 = arith.constant dense<0.000000e+00> : vector<64x32xf32>
    %71 = tpu.matmul %46, %70, %cst_72 {dimension_numbers = #tpu.dot_dimension_numbers<[1], [0], [0], [1], [0, 0, 1, 1], [], []>} : vector<64x4xf32>, vector<4x32xf32>, vector<64x32xf32> -> vector<64x32xf32>
    %c2_73 = arith.constant 2 : index
    %c0_74 = arith.constant 0 : index
    %c0_75 = arith.constant 0 : index
    %72 = vector.load %arg4[%c2_73, %c0_74, %c0_75] : memref<3x1x32xf32, #tpu.memory_space<vmem>>, vector<1x1x32xf32>
    %73 = vector.shape_cast %72 : vector<1x1x32xf32> to vector<1x32xf32>
    %74 = vector.broadcast %73 : vector<1x32xf32> to vector<64x32xf32>
    %75 = arith.addf %71, %74 : vector<64x32xf32>
    %cst_76 = arith.constant 0.000000e+00 : f32
    %76 = vector.broadcast %cst_76 : f32 to vector<8x32xf32>
    %cst_77 = arith.constant 0.000000e+00 : f32
    %77 = vector.broadcast %cst_77 : f32 to vector<8x32xf32>
    %cst_78 = arith.constant 0.000000e+00 : f32
    %78 = vector.broadcast %cst_78 : f32 to vector<8x32xf32>
    %c0_i32 = arith.constant 0 : i32
    %79 = vector.broadcast %c0_i32 : i32 to vector<8x1xi32>
    %80 = arith.cmpi sgt, %0, %79 : vector<8x1xi32>
    %81 = arith.extui %80 : vector<8x1xi1> to vector<8x1xi32>
    %82 = arith.sitofp %81 : vector<8x1xi32> to vector<8x1xf32>
    %83 = vector.extract_strided_slice %57 {offsets = [0, 0], sizes = [8, 32], strides = [1, 1]} : vector<64x32xf32> to vector<8x32xf32>
    %cst_79 = arith.constant dense<0.000000e+00> : vector<8x32xf32>
    %84 = tpu.matmul %76, %2, %cst_79 {dimension_numbers = #tpu.dot_dimension_numbers<[1], [0], [0], [1], [0, 0, 1, 1], [], []>} : vector<8x32xf32>, vector<32x32xf32>, vector<8x32xf32> -> vector<8x32xf32>
    %85 = arith.addf %83, %84 : vector<8x32xf32>
    %86 = arith.negf %85 : vector<8x32xf32>
    %87 = math.exp %86 : vector<8x32xf32>
    %cst_80 = arith.constant 1.000000e+00 : f32
    %88 = vector.broadcast %cst_80 : f32 to vector<8x32xf32>
    %89 = arith.addf %88, %87 : vector<8x32xf32>
    %90 = arith.divf %88, %89 : vector<8x32xf32>
    %91 = vector.extract_strided_slice %68 {offsets = [0, 0], sizes = [8, 32], strides = [1, 1]} : vector<64x32xf32> to vector<8x32xf32>
    %cst_81 = arith.constant dense<0.000000e+00> : vector<8x32xf32>
    %92 = tpu.matmul %76, %4, %cst_81 {dimension_numbers = #tpu.dot_dimension_numbers<[1], [0], [0], [1], [0, 0, 1, 1], [], []>} : vector<8x32xf32>, vector<32x32xf32>, vector<8x32xf32> -> vector<8x32xf32>
    %93 = arith.addf %91, %92 : vector<8x32xf32>
    %94 = arith.negf %93 : vector<8x32xf32>
    %95 = math.exp %94 : vector<8x32xf32>
    %cst_82 = arith.constant 1.000000e+00 : f32
    %96 = vector.broadcast %cst_82 : f32 to vector<8x32xf32>
    %97 = arith.addf %96, %95 : vector<8x32xf32>
    %98 = arith.divf %96, %97 : vector<8x32xf32>
    %99 = vector.extract_strided_slice %75 {offsets = [0, 0], sizes = [8, 32], strides = [1, 1]} : vector<64x32xf32> to vector<8x32xf32>
    %cst_83 = arith.constant dense<0.000000e+00> : vector<8x32xf32>
    %100 = tpu.matmul %76, %6, %cst_83 {dimension_numbers = #tpu.dot_dimension_numbers<[1], [0], [0], [1], [0, 0, 1, 1], [], []>} : vector<8x32xf32>, vector<32x32xf32>, vector<8x32xf32> -> vector<8x32xf32>
    %101 = arith.addf %100, %23 : vector<8x32xf32>
    %102 = arith.mulf %90, %101 : vector<8x32xf32>
    %103 = arith.addf %99, %102 : vector<8x32xf32>
    %104 = math.tanh %103 : vector<8x32xf32>
    %cst_84 = arith.constant 1.000000e+00 : f32
    %105 = vector.broadcast %cst_84 : f32 to vector<8x32xf32>
    %106 = arith.subf %105, %98 : vector<8x32xf32>
    %107 = arith.mulf %106, %104 : vector<8x32xf32>
    %108 = arith.mulf %98, %76 : vector<8x32xf32>
    %109 = arith.addf %107, %108 : vector<8x32xf32>
    %cst_85 = arith.constant dense<0.000000e+00> : vector<8x32xf32>
    %110 = tpu.matmul %109, %8, %cst_85 {dimension_numbers = #tpu.dot_dimension_numbers<[1], [0], [0], [1], [0, 0, 1, 1], [], []>} : vector<8x32xf32>, vector<32x32xf32>, vector<8x32xf32> -> vector<8x32xf32>
    %cst_86 = arith.constant dense<0.000000e+00> : vector<8x32xf32>
    %111 = tpu.matmul %77, %14, %cst_86 {dimension_numbers = #tpu.dot_dimension_numbers<[1], [0], [0], [1], [0, 0, 1, 1], [], []>} : vector<8x32xf32>, vector<32x32xf32>, vector<8x32xf32> -> vector<8x32xf32>
    %112 = arith.addf %110, %111 : vector<8x32xf32>
    %113 = arith.addf %112, %30 : vector<8x32xf32>
    %114 = arith.negf %113 : vector<8x32xf32>
    %115 = math.exp %114 : vector<8x32xf32>
    %cst_87 = arith.constant 1.000000e+00 : f32
    %116 = vector.broadcast %cst_87 : f32 to vector<8x32xf32>
    %117 = arith.addf %116, %115 : vector<8x32xf32>
    %118 = arith.divf %116, %117 : vector<8x32xf32>
    %cst_88 = arith.constant dense<0.000000e+00> : vector<8x32xf32>
    %119 = tpu.matmul %109, %10, %cst_88 {dimension_numbers = #tpu.dot_dimension_numbers<[1], [0], [0], [1], [0, 0, 1, 1], [], []>} : vector<8x32xf32>, vector<32x32xf32>, vector<8x32xf32> -> vector<8x32xf32>
    %cst_89 = arith.constant dense<0.000000e+00> : vector<8x32xf32>
    %120 = tpu.matmul %77, %16, %cst_89 {dimension_numbers = #tpu.dot_dimension_numbers<[1], [0], [0], [1], [0, 0, 1, 1], [], []>} : vector<8x32xf32>, vector<32x32xf32>, vector<8x32xf32> -> vector<8x32xf32>
    %121 = arith.addf %119, %120 : vector<8x32xf32>
    %122 = arith.addf %121, %37 : vector<8x32xf32>
    %123 = arith.negf %122 : vector<8x32xf32>
    %124 = math.exp %123 : vector<8x32xf32>
    %cst_90 = arith.constant 1.000000e+00 : f32
    %125 = vector.broadcast %cst_90 : f32 to vector<8x32xf32>
    %126 = arith.addf %125, %124 : vector<8x32xf32>
    %127 = arith.divf %125, %126 : vector<8x32xf32>
    %cst_91 = arith.constant dense<0.000000e+00> : vector<8x32xf32>
    %128 = tpu.matmul %109, %12, %cst_91 {dimension_numbers = #tpu.dot_dimension_numbers<[1], [0], [0], [1], [0, 0, 1, 1], [], []>} : vector<8x32xf32>, vector<32x32xf32>, vector<8x32xf32> -> vector<8x32xf32>
    %129 = arith.addf %128, %41 : vector<8x32xf32>
    %cst_92 = arith.constant dense<0.000000e+00> : vector<8x32xf32>
    %130 = tpu.matmul %77, %18, %cst_92 {dimension_numbers = #tpu.dot_dimension_numbers<[1], [0], [0], [1], [0, 0, 1, 1], [], []>} : vector<8x32xf32>, vector<32x32xf32>, vector<8x32xf32> -> vector<8x32xf32>
    %131 = arith.addf %130, %45 : vector<8x32xf32>
    %132 = arith.mulf %118, %131 : vector<8x32xf32>
    %133 = arith.addf %129, %132 : vector<8x32xf32>
    %134 = math.tanh %133 : vector<8x32xf32>
    %cst_93 = arith.constant 1.000000e+00 : f32
    %135 = vector.broadcast %cst_93 : f32 to vector<8x32xf32>
    %136 = arith.subf %135, %127 : vector<8x32xf32>
    %137 = arith.mulf %136, %134 : vector<8x32xf32>
    %138 = arith.mulf %127, %77 : vector<8x32xf32>
    %139 = arith.addf %137, %138 : vector<8x32xf32>
    %140 = arith.subf %109, %76 : vector<8x32xf32>
    %141 = vector.broadcast %82 : vector<8x1xf32> to vector<8x32xf32>
    %142 = arith.mulf %141, %140 : vector<8x32xf32>
    %143 = arith.addf %76, %142 : vector<8x32xf32>
    %144 = arith.subf %139, %77 : vector<8x32xf32>
    %145 = vector.broadcast %82 : vector<8x1xf32> to vector<8x32xf32>
    %146 = arith.mulf %145, %144 : vector<8x32xf32>
    %147 = arith.addf %77, %146 : vector<8x32xf32>
    %148 = vector.broadcast %82 : vector<8x1xf32> to vector<8x32xf32>
    %149 = arith.mulf %148, %139 : vector<8x32xf32>
    %150 = arith.addf %78, %149 : vector<8x32xf32>
    %c1_i32 = arith.constant 1 : i32
    %151 = vector.broadcast %c1_i32 : i32 to vector<8x1xi32>
    %152 = arith.cmpi sgt, %0, %151 : vector<8x1xi32>
    %153 = arith.extui %152 : vector<8x1xi1> to vector<8x1xi32>
    %154 = arith.sitofp %153 : vector<8x1xi32> to vector<8x1xf32>
    %155 = vector.extract_strided_slice %57 {offsets = [8, 0], sizes = [8, 32], strides = [1, 1]} : vector<64x32xf32> to vector<8x32xf32>
    %cst_94 = arith.constant dense<0.000000e+00> : vector<8x32xf32>
    %156 = tpu.matmul %143, %2, %cst_94 {dimension_numbers = #tpu.dot_dimension_numbers<[1], [0], [0], [1], [0, 0, 1, 1], [], []>} : vector<8x32xf32>, vector<32x32xf32>, vector<8x32xf32> -> vector<8x32xf32>
    %157 = arith.addf %155, %156 : vector<8x32xf32>
    %158 = arith.negf %157 : vector<8x32xf32>
    %159 = math.exp %158 : vector<8x32xf32>
    %cst_95 = arith.constant 1.000000e+00 : f32
    %160 = vector.broadcast %cst_95 : f32 to vector<8x32xf32>
    %161 = arith.addf %160, %159 : vector<8x32xf32>
    %162 = arith.divf %160, %161 : vector<8x32xf32>
    %163 = vector.extract_strided_slice %68 {offsets = [8, 0], sizes = [8, 32], strides = [1, 1]} : vector<64x32xf32> to vector<8x32xf32>
    %cst_96 = arith.constant dense<0.000000e+00> : vector<8x32xf32>
    %164 = tpu.matmul %143, %4, %cst_96 {dimension_numbers = #tpu.dot_dimension_numbers<[1], [0], [0], [1], [0, 0, 1, 1], [], []>} : vector<8x32xf32>, vector<32x32xf32>, vector<8x32xf32> -> vector<8x32xf32>
    %165 = arith.addf %163, %164 : vector<8x32xf32>
    %166 = arith.negf %165 : vector<8x32xf32>
    %167 = math.exp %166 : vector<8x32xf32>
    %cst_97 = arith.constant 1.000000e+00 : f32
    %168 = vector.broadcast %cst_97 : f32 to vector<8x32xf32>
    %169 = arith.addf %168, %167 : vector<8x32xf32>
    %170 = arith.divf %168, %169 : vector<8x32xf32>
    %171 = vector.extract_strided_slice %75 {offsets = [8, 0], sizes = [8, 32], strides = [1, 1]} : vector<64x32xf32> to vector<8x32xf32>
    %cst_98 = arith.constant dense<0.000000e+00> : vector<8x32xf32>
    %172 = tpu.matmul %143, %6, %cst_98 {dimension_numbers = #tpu.dot_dimension_numbers<[1], [0], [0], [1], [0, 0, 1, 1], [], []>} : vector<8x32xf32>, vector<32x32xf32>, vector<8x32xf32> -> vector<8x32xf32>
    %173 = arith.addf %172, %23 : vector<8x32xf32>
    %174 = arith.mulf %162, %173 : vector<8x32xf32>
    %175 = arith.addf %171, %174 : vector<8x32xf32>
    %176 = math.tanh %175 : vector<8x32xf32>
    %cst_99 = arith.constant 1.000000e+00 : f32
    %177 = vector.broadcast %cst_99 : f32 to vector<8x32xf32>
    %178 = arith.subf %177, %170 : vector<8x32xf32>
    %179 = arith.mulf %178, %176 : vector<8x32xf32>
    %180 = arith.mulf %170, %143 : vector<8x32xf32>
    %181 = arith.addf %179, %180 : vector<8x32xf32>
    %cst_100 = arith.constant dense<0.000000e+00> : vector<8x32xf32>
    %182 = tpu.matmul %181, %8, %cst_100 {dimension_numbers = #tpu.dot_dimension_numbers<[1], [0], [0], [1], [0, 0, 1, 1], [], []>} : vector<8x32xf32>, vector<32x32xf32>, vector<8x32xf32> -> vector<8x32xf32>
    %cst_101 = arith.constant dense<0.000000e+00> : vector<8x32xf32>
    %183 = tpu.matmul %147, %14, %cst_101 {dimension_numbers = #tpu.dot_dimension_numbers<[1], [0], [0], [1], [0, 0, 1, 1], [], []>} : vector<8x32xf32>, vector<32x32xf32>, vector<8x32xf32> -> vector<8x32xf32>
    %184 = arith.addf %182, %183 : vector<8x32xf32>
    %185 = arith.addf %184, %30 : vector<8x32xf32>
    %186 = arith.negf %185 : vector<8x32xf32>
    %187 = math.exp %186 : vector<8x32xf32>
    %cst_102 = arith.constant 1.000000e+00 : f32
    %188 = vector.broadcast %cst_102 : f32 to vector<8x32xf32>
    %189 = arith.addf %188, %187 : vector<8x32xf32>
    %190 = arith.divf %188, %189 : vector<8x32xf32>
    %cst_103 = arith.constant dense<0.000000e+00> : vector<8x32xf32>
    %191 = tpu.matmul %181, %10, %cst_103 {dimension_numbers = #tpu.dot_dimension_numbers<[1], [0], [0], [1], [0, 0, 1, 1], [], []>} : vector<8x32xf32>, vector<32x32xf32>, vector<8x32xf32> -> vector<8x32xf32>
    %cst_104 = arith.constant dense<0.000000e+00> : vector<8x32xf32>
    %192 = tpu.matmul %147, %16, %cst_104 {dimension_numbers = #tpu.dot_dimension_numbers<[1], [0], [0], [1], [0, 0, 1, 1], [], []>} : vector<8x32xf32>, vector<32x32xf32>, vector<8x32xf32> -> vector<8x32xf32>
    %193 = arith.addf %191, %192 : vector<8x32xf32>
    %194 = arith.addf %193, %37 : vector<8x32xf32>
    %195 = arith.negf %194 : vector<8x32xf32>
    %196 = math.exp %195 : vector<8x32xf32>
    %cst_105 = arith.constant 1.000000e+00 : f32
    %197 = vector.broadcast %cst_105 : f32 to vector<8x32xf32>
    %198 = arith.addf %197, %196 : vector<8x32xf32>
    %199 = arith.divf %197, %198 : vector<8x32xf32>
    %cst_106 = arith.constant dense<0.000000e+00> : vector<8x32xf32>
    %200 = tpu.matmul %181, %12, %cst_106 {dimension_numbers = #tpu.dot_dimension_numbers<[1], [0], [0], [1], [0, 0, 1, 1], [], []>} : vector<8x32xf32>, vector<32x32xf32>, vector<8x32xf32> -> vector<8x32xf32>
    %201 = arith.addf %200, %41 : vector<8x32xf32>
    %cst_107 = arith.constant dense<0.000000e+00> : vector<8x32xf32>
    %202 = tpu.matmul %147, %18, %cst_107 {dimension_numbers = #tpu.dot_dimension_numbers<[1], [0], [0], [1], [0, 0, 1, 1], [], []>} : vector<8x32xf32>, vector<32x32xf32>, vector<8x32xf32> -> vector<8x32xf32>
    %203 = arith.addf %202, %45 : vector<8x32xf32>
    %204 = arith.mulf %190, %203 : vector<8x32xf32>
    %205 = arith.addf %201, %204 : vector<8x32xf32>
    %206 = math.tanh %205 : vector<8x32xf32>
    %cst_108 = arith.constant 1.000000e+00 : f32
    %207 = vector.broadcast %cst_108 : f32 to vector<8x32xf32>
    %208 = arith.subf %207, %199 : vector<8x32xf32>
    %209 = arith.mulf %208, %206 : vector<8x32xf32>
    %210 = arith.mulf %199, %147 : vector<8x32xf32>
    %211 = arith.addf %209, %210 : vector<8x32xf32>
    %212 = arith.subf %181, %143 : vector<8x32xf32>
    %213 = vector.broadcast %154 : vector<8x1xf32> to vector<8x32xf32>
    %214 = arith.mulf %213, %212 : vector<8x32xf32>
    %215 = arith.addf %143, %214 : vector<8x32xf32>
    %216 = arith.subf %211, %147 : vector<8x32xf32>
    %217 = vector.broadcast %154 : vector<8x1xf32> to vector<8x32xf32>
    %218 = arith.mulf %217, %216 : vector<8x32xf32>
    %219 = arith.addf %147, %218 : vector<8x32xf32>
    %220 = vector.broadcast %154 : vector<8x1xf32> to vector<8x32xf32>
    %221 = arith.mulf %220, %211 : vector<8x32xf32>
    %222 = arith.addf %150, %221 : vector<8x32xf32>
    %c2_i32 = arith.constant 2 : i32
    %223 = vector.broadcast %c2_i32 : i32 to vector<8x1xi32>
    %224 = arith.cmpi sgt, %0, %223 : vector<8x1xi32>
    %225 = arith.extui %224 : vector<8x1xi1> to vector<8x1xi32>
    %226 = arith.sitofp %225 : vector<8x1xi32> to vector<8x1xf32>
    %227 = vector.extract_strided_slice %57 {offsets = [16, 0], sizes = [8, 32], strides = [1, 1]} : vector<64x32xf32> to vector<8x32xf32>
    %cst_109 = arith.constant dense<0.000000e+00> : vector<8x32xf32>
    %228 = tpu.matmul %215, %2, %cst_109 {dimension_numbers = #tpu.dot_dimension_numbers<[1], [0], [0], [1], [0, 0, 1, 1], [], []>} : vector<8x32xf32>, vector<32x32xf32>, vector<8x32xf32> -> vector<8x32xf32>
    %229 = arith.addf %227, %228 : vector<8x32xf32>
    %230 = arith.negf %229 : vector<8x32xf32>
    %231 = math.exp %230 : vector<8x32xf32>
    %cst_110 = arith.constant 1.000000e+00 : f32
    %232 = vector.broadcast %cst_110 : f32 to vector<8x32xf32>
    %233 = arith.addf %232, %231 : vector<8x32xf32>
    %234 = arith.divf %232, %233 : vector<8x32xf32>
    %235 = vector.extract_strided_slice %68 {offsets = [16, 0], sizes = [8, 32], strides = [1, 1]} : vector<64x32xf32> to vector<8x32xf32>
    %cst_111 = arith.constant dense<0.000000e+00> : vector<8x32xf32>
    %236 = tpu.matmul %215, %4, %cst_111 {dimension_numbers = #tpu.dot_dimension_numbers<[1], [0], [0], [1], [0, 0, 1, 1], [], []>} : vector<8x32xf32>, vector<32x32xf32>, vector<8x32xf32> -> vector<8x32xf32>
    %237 = arith.addf %235, %236 : vector<8x32xf32>
    %238 = arith.negf %237 : vector<8x32xf32>
    %239 = math.exp %238 : vector<8x32xf32>
    %cst_112 = arith.constant 1.000000e+00 : f32
    %240 = vector.broadcast %cst_112 : f32 to vector<8x32xf32>
    %241 = arith.addf %240, %239 : vector<8x32xf32>
    %242 = arith.divf %240, %241 : vector<8x32xf32>
    %243 = vector.extract_strided_slice %75 {offsets = [16, 0], sizes = [8, 32], strides = [1, 1]} : vector<64x32xf32> to vector<8x32xf32>
    %cst_113 = arith.constant dense<0.000000e+00> : vector<8x32xf32>
    %244 = tpu.matmul %215, %6, %cst_113 {dimension_numbers = #tpu.dot_dimension_numbers<[1], [0], [0], [1], [0, 0, 1, 1], [], []>} : vector<8x32xf32>, vector<32x32xf32>, vector<8x32xf32> -> vector<8x32xf32>
    %245 = arith.addf %244, %23 : vector<8x32xf32>
    %246 = arith.mulf %234, %245 : vector<8x32xf32>
    %247 = arith.addf %243, %246 : vector<8x32xf32>
    %248 = math.tanh %247 : vector<8x32xf32>
    %cst_114 = arith.constant 1.000000e+00 : f32
    %249 = vector.broadcast %cst_114 : f32 to vector<8x32xf32>
    %250 = arith.subf %249, %242 : vector<8x32xf32>
    %251 = arith.mulf %250, %248 : vector<8x32xf32>
    %252 = arith.mulf %242, %215 : vector<8x32xf32>
    %253 = arith.addf %251, %252 : vector<8x32xf32>
    %cst_115 = arith.constant dense<0.000000e+00> : vector<8x32xf32>
    %254 = tpu.matmul %253, %8, %cst_115 {dimension_numbers = #tpu.dot_dimension_numbers<[1], [0], [0], [1], [0, 0, 1, 1], [], []>} : vector<8x32xf32>, vector<32x32xf32>, vector<8x32xf32> -> vector<8x32xf32>
    %cst_116 = arith.constant dense<0.000000e+00> : vector<8x32xf32>
    %255 = tpu.matmul %219, %14, %cst_116 {dimension_numbers = #tpu.dot_dimension_numbers<[1], [0], [0], [1], [0, 0, 1, 1], [], []>} : vector<8x32xf32>, vector<32x32xf32>, vector<8x32xf32> -> vector<8x32xf32>
    %256 = arith.addf %254, %255 : vector<8x32xf32>
    %257 = arith.addf %256, %30 : vector<8x32xf32>
    %258 = arith.negf %257 : vector<8x32xf32>
    %259 = math.exp %258 : vector<8x32xf32>
    %cst_117 = arith.constant 1.000000e+00 : f32
    %260 = vector.broadcast %cst_117 : f32 to vector<8x32xf32>
    %261 = arith.addf %260, %259 : vector<8x32xf32>
    %262 = arith.divf %260, %261 : vector<8x32xf32>
    %cst_118 = arith.constant dense<0.000000e+00> : vector<8x32xf32>
    %263 = tpu.matmul %253, %10, %cst_118 {dimension_numbers = #tpu.dot_dimension_numbers<[1], [0], [0], [1], [0, 0, 1, 1], [], []>} : vector<8x32xf32>, vector<32x32xf32>, vector<8x32xf32> -> vector<8x32xf32>
    %cst_119 = arith.constant dense<0.000000e+00> : vector<8x32xf32>
    %264 = tpu.matmul %219, %16, %cst_119 {dimension_numbers = #tpu.dot_dimension_numbers<[1], [0], [0], [1], [0, 0, 1, 1], [], []>} : vector<8x32xf32>, vector<32x32xf32>, vector<8x32xf32> -> vector<8x32xf32>
    %265 = arith.addf %263, %264 : vector<8x32xf32>
    %266 = arith.addf %265, %37 : vector<8x32xf32>
    %267 = arith.negf %266 : vector<8x32xf32>
    %268 = math.exp %267 : vector<8x32xf32>
    %cst_120 = arith.constant 1.000000e+00 : f32
    %269 = vector.broadcast %cst_120 : f32 to vector<8x32xf32>
    %270 = arith.addf %269, %268 : vector<8x32xf32>
    %271 = arith.divf %269, %270 : vector<8x32xf32>
    %cst_121 = arith.constant dense<0.000000e+00> : vector<8x32xf32>
    %272 = tpu.matmul %253, %12, %cst_121 {dimension_numbers = #tpu.dot_dimension_numbers<[1], [0], [0], [1], [0, 0, 1, 1], [], []>} : vector<8x32xf32>, vector<32x32xf32>, vector<8x32xf32> -> vector<8x32xf32>
    %273 = arith.addf %272, %41 : vector<8x32xf32>
    %cst_122 = arith.constant dense<0.000000e+00> : vector<8x32xf32>
    %274 = tpu.matmul %219, %18, %cst_122 {dimension_numbers = #tpu.dot_dimension_numbers<[1], [0], [0], [1], [0, 0, 1, 1], [], []>} : vector<8x32xf32>, vector<32x32xf32>, vector<8x32xf32> -> vector<8x32xf32>
    %275 = arith.addf %274, %45 : vector<8x32xf32>
    %276 = arith.mulf %262, %275 : vector<8x32xf32>
    %277 = arith.addf %273, %276 : vector<8x32xf32>
    %278 = math.tanh %277 : vector<8x32xf32>
    %cst_123 = arith.constant 1.000000e+00 : f32
    %279 = vector.broadcast %cst_123 : f32 to vector<8x32xf32>
    %280 = arith.subf %279, %271 : vector<8x32xf32>
    %281 = arith.mulf %280, %278 : vector<8x32xf32>
    %282 = arith.mulf %271, %219 : vector<8x32xf32>
    %283 = arith.addf %281, %282 : vector<8x32xf32>
    %284 = arith.subf %253, %215 : vector<8x32xf32>
    %285 = vector.broadcast %226 : vector<8x1xf32> to vector<8x32xf32>
    %286 = arith.mulf %285, %284 : vector<8x32xf32>
    %287 = arith.addf %215, %286 : vector<8x32xf32>
    %288 = arith.subf %283, %219 : vector<8x32xf32>
    %289 = vector.broadcast %226 : vector<8x1xf32> to vector<8x32xf32>
    %290 = arith.mulf %289, %288 : vector<8x32xf32>
    %291 = arith.addf %219, %290 : vector<8x32xf32>
    %292 = vector.broadcast %226 : vector<8x1xf32> to vector<8x32xf32>
    %293 = arith.mulf %292, %283 : vector<8x32xf32>
    %294 = arith.addf %222, %293 : vector<8x32xf32>
    %c3_i32 = arith.constant 3 : i32
    %295 = vector.broadcast %c3_i32 : i32 to vector<8x1xi32>
    %296 = arith.cmpi sgt, %0, %295 : vector<8x1xi32>
    %297 = arith.extui %296 : vector<8x1xi1> to vector<8x1xi32>
    %298 = arith.sitofp %297 : vector<8x1xi32> to vector<8x1xf32>
    %299 = vector.extract_strided_slice %57 {offsets = [24, 0], sizes = [8, 32], strides = [1, 1]} : vector<64x32xf32> to vector<8x32xf32>
    %cst_124 = arith.constant dense<0.000000e+00> : vector<8x32xf32>
    %300 = tpu.matmul %287, %2, %cst_124 {dimension_numbers = #tpu.dot_dimension_numbers<[1], [0], [0], [1], [0, 0, 1, 1], [], []>} : vector<8x32xf32>, vector<32x32xf32>, vector<8x32xf32> -> vector<8x32xf32>
    %301 = arith.addf %299, %300 : vector<8x32xf32>
    %302 = arith.negf %301 : vector<8x32xf32>
    %303 = math.exp %302 : vector<8x32xf32>
    %cst_125 = arith.constant 1.000000e+00 : f32
    %304 = vector.broadcast %cst_125 : f32 to vector<8x32xf32>
    %305 = arith.addf %304, %303 : vector<8x32xf32>
    %306 = arith.divf %304, %305 : vector<8x32xf32>
    %307 = vector.extract_strided_slice %68 {offsets = [24, 0], sizes = [8, 32], strides = [1, 1]} : vector<64x32xf32> to vector<8x32xf32>
    %cst_126 = arith.constant dense<0.000000e+00> : vector<8x32xf32>
    %308 = tpu.matmul %287, %4, %cst_126 {dimension_numbers = #tpu.dot_dimension_numbers<[1], [0], [0], [1], [0, 0, 1, 1], [], []>} : vector<8x32xf32>, vector<32x32xf32>, vector<8x32xf32> -> vector<8x32xf32>
    %309 = arith.addf %307, %308 : vector<8x32xf32>
    %310 = arith.negf %309 : vector<8x32xf32>
    %311 = math.exp %310 : vector<8x32xf32>
    %cst_127 = arith.constant 1.000000e+00 : f32
    %312 = vector.broadcast %cst_127 : f32 to vector<8x32xf32>
    %313 = arith.addf %312, %311 : vector<8x32xf32>
    %314 = arith.divf %312, %313 : vector<8x32xf32>
    %315 = vector.extract_strided_slice %75 {offsets = [24, 0], sizes = [8, 32], strides = [1, 1]} : vector<64x32xf32> to vector<8x32xf32>
    %cst_128 = arith.constant dense<0.000000e+00> : vector<8x32xf32>
    %316 = tpu.matmul %287, %6, %cst_128 {dimension_numbers = #tpu.dot_dimension_numbers<[1], [0], [0], [1], [0, 0, 1, 1], [], []>} : vector<8x32xf32>, vector<32x32xf32>, vector<8x32xf32> -> vector<8x32xf32>
    %317 = arith.addf %316, %23 : vector<8x32xf32>
    %318 = arith.mulf %306, %317 : vector<8x32xf32>
    %319 = arith.addf %315, %318 : vector<8x32xf32>
    %320 = math.tanh %319 : vector<8x32xf32>
    %cst_129 = arith.constant 1.000000e+00 : f32
    %321 = vector.broadcast %cst_129 : f32 to vector<8x32xf32>
    %322 = arith.subf %321, %314 : vector<8x32xf32>
    %323 = arith.mulf %322, %320 : vector<8x32xf32>
    %324 = arith.mulf %314, %287 : vector<8x32xf32>
    %325 = arith.addf %323, %324 : vector<8x32xf32>
    %cst_130 = arith.constant dense<0.000000e+00> : vector<8x32xf32>
    %326 = tpu.matmul %325, %8, %cst_130 {dimension_numbers = #tpu.dot_dimension_numbers<[1], [0], [0], [1], [0, 0, 1, 1], [], []>} : vector<8x32xf32>, vector<32x32xf32>, vector<8x32xf32> -> vector<8x32xf32>
    %cst_131 = arith.constant dense<0.000000e+00> : vector<8x32xf32>
    %327 = tpu.matmul %291, %14, %cst_131 {dimension_numbers = #tpu.dot_dimension_numbers<[1], [0], [0], [1], [0, 0, 1, 1], [], []>} : vector<8x32xf32>, vector<32x32xf32>, vector<8x32xf32> -> vector<8x32xf32>
    %328 = arith.addf %326, %327 : vector<8x32xf32>
    %329 = arith.addf %328, %30 : vector<8x32xf32>
    %330 = arith.negf %329 : vector<8x32xf32>
    %331 = math.exp %330 : vector<8x32xf32>
    %cst_132 = arith.constant 1.000000e+00 : f32
    %332 = vector.broadcast %cst_132 : f32 to vector<8x32xf32>
    %333 = arith.addf %332, %331 : vector<8x32xf32>
    %334 = arith.divf %332, %333 : vector<8x32xf32>
    %cst_133 = arith.constant dense<0.000000e+00> : vector<8x32xf32>
    %335 = tpu.matmul %325, %10, %cst_133 {dimension_numbers = #tpu.dot_dimension_numbers<[1], [0], [0], [1], [0, 0, 1, 1], [], []>} : vector<8x32xf32>, vector<32x32xf32>, vector<8x32xf32> -> vector<8x32xf32>
    %cst_134 = arith.constant dense<0.000000e+00> : vector<8x32xf32>
    %336 = tpu.matmul %291, %16, %cst_134 {dimension_numbers = #tpu.dot_dimension_numbers<[1], [0], [0], [1], [0, 0, 1, 1], [], []>} : vector<8x32xf32>, vector<32x32xf32>, vector<8x32xf32> -> vector<8x32xf32>
    %337 = arith.addf %335, %336 : vector<8x32xf32>
    %338 = arith.addf %337, %37 : vector<8x32xf32>
    %339 = arith.negf %338 : vector<8x32xf32>
    %340 = math.exp %339 : vector<8x32xf32>
    %cst_135 = arith.constant 1.000000e+00 : f32
    %341 = vector.broadcast %cst_135 : f32 to vector<8x32xf32>
    %342 = arith.addf %341, %340 : vector<8x32xf32>
    %343 = arith.divf %341, %342 : vector<8x32xf32>
    %cst_136 = arith.constant dense<0.000000e+00> : vector<8x32xf32>
    %344 = tpu.matmul %325, %12, %cst_136 {dimension_numbers = #tpu.dot_dimension_numbers<[1], [0], [0], [1], [0, 0, 1, 1], [], []>} : vector<8x32xf32>, vector<32x32xf32>, vector<8x32xf32> -> vector<8x32xf32>
    %345 = arith.addf %344, %41 : vector<8x32xf32>
    %cst_137 = arith.constant dense<0.000000e+00> : vector<8x32xf32>
    %346 = tpu.matmul %291, %18, %cst_137 {dimension_numbers = #tpu.dot_dimension_numbers<[1], [0], [0], [1], [0, 0, 1, 1], [], []>} : vector<8x32xf32>, vector<32x32xf32>, vector<8x32xf32> -> vector<8x32xf32>
    %347 = arith.addf %346, %45 : vector<8x32xf32>
    %348 = arith.mulf %334, %347 : vector<8x32xf32>
    %349 = arith.addf %345, %348 : vector<8x32xf32>
    %350 = math.tanh %349 : vector<8x32xf32>
    %cst_138 = arith.constant 1.000000e+00 : f32
    %351 = vector.broadcast %cst_138 : f32 to vector<8x32xf32>
    %352 = arith.subf %351, %343 : vector<8x32xf32>
    %353 = arith.mulf %352, %350 : vector<8x32xf32>
    %354 = arith.mulf %343, %291 : vector<8x32xf32>
    %355 = arith.addf %353, %354 : vector<8x32xf32>
    %356 = arith.subf %325, %287 : vector<8x32xf32>
    %357 = vector.broadcast %298 : vector<8x1xf32> to vector<8x32xf32>
    %358 = arith.mulf %357, %356 : vector<8x32xf32>
    %359 = arith.addf %287, %358 : vector<8x32xf32>
    %360 = arith.subf %355, %291 : vector<8x32xf32>
    %361 = vector.broadcast %298 : vector<8x1xf32> to vector<8x32xf32>
    %362 = arith.mulf %361, %360 : vector<8x32xf32>
    %363 = arith.addf %291, %362 : vector<8x32xf32>
    %364 = vector.broadcast %298 : vector<8x1xf32> to vector<8x32xf32>
    %365 = arith.mulf %364, %355 : vector<8x32xf32>
    %366 = arith.addf %294, %365 : vector<8x32xf32>
    %c4_i32 = arith.constant 4 : i32
    %367 = vector.broadcast %c4_i32 : i32 to vector<8x1xi32>
    %368 = arith.cmpi sgt, %0, %367 : vector<8x1xi32>
    %369 = arith.extui %368 : vector<8x1xi1> to vector<8x1xi32>
    %370 = arith.sitofp %369 : vector<8x1xi32> to vector<8x1xf32>
    %371 = vector.extract_strided_slice %57 {offsets = [32, 0], sizes = [8, 32], strides = [1, 1]} : vector<64x32xf32> to vector<8x32xf32>
    %cst_139 = arith.constant dense<0.000000e+00> : vector<8x32xf32>
    %372 = tpu.matmul %359, %2, %cst_139 {dimension_numbers = #tpu.dot_dimension_numbers<[1], [0], [0], [1], [0, 0, 1, 1], [], []>} : vector<8x32xf32>, vector<32x32xf32>, vector<8x32xf32> -> vector<8x32xf32>
    %373 = arith.addf %371, %372 : vector<8x32xf32>
    %374 = arith.negf %373 : vector<8x32xf32>
    %375 = math.exp %374 : vector<8x32xf32>
    %cst_140 = arith.constant 1.000000e+00 : f32
    %376 = vector.broadcast %cst_140 : f32 to vector<8x32xf32>
    %377 = arith.addf %376, %375 : vector<8x32xf32>
    %378 = arith.divf %376, %377 : vector<8x32xf32>
    %379 = vector.extract_strided_slice %68 {offsets = [32, 0], sizes = [8, 32], strides = [1, 1]} : vector<64x32xf32> to vector<8x32xf32>
    %cst_141 = arith.constant dense<0.000000e+00> : vector<8x32xf32>
    %380 = tpu.matmul %359, %4, %cst_141 {dimension_numbers = #tpu.dot_dimension_numbers<[1], [0], [0], [1], [0, 0, 1, 1], [], []>} : vector<8x32xf32>, vector<32x32xf32>, vector<8x32xf32> -> vector<8x32xf32>
    %381 = arith.addf %379, %380 : vector<8x32xf32>
    %382 = arith.negf %381 : vector<8x32xf32>
    %383 = math.exp %382 : vector<8x32xf32>
    %cst_142 = arith.constant 1.000000e+00 : f32
    %384 = vector.broadcast %cst_142 : f32 to vector<8x32xf32>
    %385 = arith.addf %384, %383 : vector<8x32xf32>
    %386 = arith.divf %384, %385 : vector<8x32xf32>
    %387 = vector.extract_strided_slice %75 {offsets = [32, 0], sizes = [8, 32], strides = [1, 1]} : vector<64x32xf32> to vector<8x32xf32>
    %cst_143 = arith.constant dense<0.000000e+00> : vector<8x32xf32>
    %388 = tpu.matmul %359, %6, %cst_143 {dimension_numbers = #tpu.dot_dimension_numbers<[1], [0], [0], [1], [0, 0, 1, 1], [], []>} : vector<8x32xf32>, vector<32x32xf32>, vector<8x32xf32> -> vector<8x32xf32>
    %389 = arith.addf %388, %23 : vector<8x32xf32>
    %390 = arith.mulf %378, %389 : vector<8x32xf32>
    %391 = arith.addf %387, %390 : vector<8x32xf32>
    %392 = math.tanh %391 : vector<8x32xf32>
    %cst_144 = arith.constant 1.000000e+00 : f32
    %393 = vector.broadcast %cst_144 : f32 to vector<8x32xf32>
    %394 = arith.subf %393, %386 : vector<8x32xf32>
    %395 = arith.mulf %394, %392 : vector<8x32xf32>
    %396 = arith.mulf %386, %359 : vector<8x32xf32>
    %397 = arith.addf %395, %396 : vector<8x32xf32>
    %cst_145 = arith.constant dense<0.000000e+00> : vector<8x32xf32>
    %398 = tpu.matmul %397, %8, %cst_145 {dimension_numbers = #tpu.dot_dimension_numbers<[1], [0], [0], [1], [0, 0, 1, 1], [], []>} : vector<8x32xf32>, vector<32x32xf32>, vector<8x32xf32> -> vector<8x32xf32>
    %cst_146 = arith.constant dense<0.000000e+00> : vector<8x32xf32>
    %399 = tpu.matmul %363, %14, %cst_146 {dimension_numbers = #tpu.dot_dimension_numbers<[1], [0], [0], [1], [0, 0, 1, 1], [], []>} : vector<8x32xf32>, vector<32x32xf32>, vector<8x32xf32> -> vector<8x32xf32>
    %400 = arith.addf %398, %399 : vector<8x32xf32>
    %401 = arith.addf %400, %30 : vector<8x32xf32>
    %402 = arith.negf %401 : vector<8x32xf32>
    %403 = math.exp %402 : vector<8x32xf32>
    %cst_147 = arith.constant 1.000000e+00 : f32
    %404 = vector.broadcast %cst_147 : f32 to vector<8x32xf32>
    %405 = arith.addf %404, %403 : vector<8x32xf32>
    %406 = arith.divf %404, %405 : vector<8x32xf32>
    %cst_148 = arith.constant dense<0.000000e+00> : vector<8x32xf32>
    %407 = tpu.matmul %397, %10, %cst_148 {dimension_numbers = #tpu.dot_dimension_numbers<[1], [0], [0], [1], [0, 0, 1, 1], [], []>} : vector<8x32xf32>, vector<32x32xf32>, vector<8x32xf32> -> vector<8x32xf32>
    %cst_149 = arith.constant dense<0.000000e+00> : vector<8x32xf32>
    %408 = tpu.matmul %363, %16, %cst_149 {dimension_numbers = #tpu.dot_dimension_numbers<[1], [0], [0], [1], [0, 0, 1, 1], [], []>} : vector<8x32xf32>, vector<32x32xf32>, vector<8x32xf32> -> vector<8x32xf32>
    %409 = arith.addf %407, %408 : vector<8x32xf32>
    %410 = arith.addf %409, %37 : vector<8x32xf32>
    %411 = arith.negf %410 : vector<8x32xf32>
    %412 = math.exp %411 : vector<8x32xf32>
    %cst_150 = arith.constant 1.000000e+00 : f32
    %413 = vector.broadcast %cst_150 : f32 to vector<8x32xf32>
    %414 = arith.addf %413, %412 : vector<8x32xf32>
    %415 = arith.divf %413, %414 : vector<8x32xf32>
    %cst_151 = arith.constant dense<0.000000e+00> : vector<8x32xf32>
    %416 = tpu.matmul %397, %12, %cst_151 {dimension_numbers = #tpu.dot_dimension_numbers<[1], [0], [0], [1], [0, 0, 1, 1], [], []>} : vector<8x32xf32>, vector<32x32xf32>, vector<8x32xf32> -> vector<8x32xf32>
    %417 = arith.addf %416, %41 : vector<8x32xf32>
    %cst_152 = arith.constant dense<0.000000e+00> : vector<8x32xf32>
    %418 = tpu.matmul %363, %18, %cst_152 {dimension_numbers = #tpu.dot_dimension_numbers<[1], [0], [0], [1], [0, 0, 1, 1], [], []>} : vector<8x32xf32>, vector<32x32xf32>, vector<8x32xf32> -> vector<8x32xf32>
    %419 = arith.addf %418, %45 : vector<8x32xf32>
    %420 = arith.mulf %406, %419 : vector<8x32xf32>
    %421 = arith.addf %417, %420 : vector<8x32xf32>
    %422 = math.tanh %421 : vector<8x32xf32>
    %cst_153 = arith.constant 1.000000e+00 : f32
    %423 = vector.broadcast %cst_153 : f32 to vector<8x32xf32>
    %424 = arith.subf %423, %415 : vector<8x32xf32>
    %425 = arith.mulf %424, %422 : vector<8x32xf32>
    %426 = arith.mulf %415, %363 : vector<8x32xf32>
    %427 = arith.addf %425, %426 : vector<8x32xf32>
    %428 = arith.subf %397, %359 : vector<8x32xf32>
    %429 = vector.broadcast %370 : vector<8x1xf32> to vector<8x32xf32>
    %430 = arith.mulf %429, %428 : vector<8x32xf32>
    %431 = arith.addf %359, %430 : vector<8x32xf32>
    %432 = arith.subf %427, %363 : vector<8x32xf32>
    %433 = vector.broadcast %370 : vector<8x1xf32> to vector<8x32xf32>
    %434 = arith.mulf %433, %432 : vector<8x32xf32>
    %435 = arith.addf %363, %434 : vector<8x32xf32>
    %436 = vector.broadcast %370 : vector<8x1xf32> to vector<8x32xf32>
    %437 = arith.mulf %436, %427 : vector<8x32xf32>
    %438 = arith.addf %366, %437 : vector<8x32xf32>
    %c5_i32 = arith.constant 5 : i32
    %439 = vector.broadcast %c5_i32 : i32 to vector<8x1xi32>
    %440 = arith.cmpi sgt, %0, %439 : vector<8x1xi32>
    %441 = arith.extui %440 : vector<8x1xi1> to vector<8x1xi32>
    %442 = arith.sitofp %441 : vector<8x1xi32> to vector<8x1xf32>
    %443 = vector.extract_strided_slice %57 {offsets = [40, 0], sizes = [8, 32], strides = [1, 1]} : vector<64x32xf32> to vector<8x32xf32>
    %cst_154 = arith.constant dense<0.000000e+00> : vector<8x32xf32>
    %444 = tpu.matmul %431, %2, %cst_154 {dimension_numbers = #tpu.dot_dimension_numbers<[1], [0], [0], [1], [0, 0, 1, 1], [], []>} : vector<8x32xf32>, vector<32x32xf32>, vector<8x32xf32> -> vector<8x32xf32>
    %445 = arith.addf %443, %444 : vector<8x32xf32>
    %446 = arith.negf %445 : vector<8x32xf32>
    %447 = math.exp %446 : vector<8x32xf32>
    %cst_155 = arith.constant 1.000000e+00 : f32
    %448 = vector.broadcast %cst_155 : f32 to vector<8x32xf32>
    %449 = arith.addf %448, %447 : vector<8x32xf32>
    %450 = arith.divf %448, %449 : vector<8x32xf32>
    %451 = vector.extract_strided_slice %68 {offsets = [40, 0], sizes = [8, 32], strides = [1, 1]} : vector<64x32xf32> to vector<8x32xf32>
    %cst_156 = arith.constant dense<0.000000e+00> : vector<8x32xf32>
    %452 = tpu.matmul %431, %4, %cst_156 {dimension_numbers = #tpu.dot_dimension_numbers<[1], [0], [0], [1], [0, 0, 1, 1], [], []>} : vector<8x32xf32>, vector<32x32xf32>, vector<8x32xf32> -> vector<8x32xf32>
    %453 = arith.addf %451, %452 : vector<8x32xf32>
    %454 = arith.negf %453 : vector<8x32xf32>
    %455 = math.exp %454 : vector<8x32xf32>
    %cst_157 = arith.constant 1.000000e+00 : f32
    %456 = vector.broadcast %cst_157 : f32 to vector<8x32xf32>
    %457 = arith.addf %456, %455 : vector<8x32xf32>
    %458 = arith.divf %456, %457 : vector<8x32xf32>
    %459 = vector.extract_strided_slice %75 {offsets = [40, 0], sizes = [8, 32], strides = [1, 1]} : vector<64x32xf32> to vector<8x32xf32>
    %cst_158 = arith.constant dense<0.000000e+00> : vector<8x32xf32>
    %460 = tpu.matmul %431, %6, %cst_158 {dimension_numbers = #tpu.dot_dimension_numbers<[1], [0], [0], [1], [0, 0, 1, 1], [], []>} : vector<8x32xf32>, vector<32x32xf32>, vector<8x32xf32> -> vector<8x32xf32>
    %461 = arith.addf %460, %23 : vector<8x32xf32>
    %462 = arith.mulf %450, %461 : vector<8x32xf32>
    %463 = arith.addf %459, %462 : vector<8x32xf32>
    %464 = math.tanh %463 : vector<8x32xf32>
    %cst_159 = arith.constant 1.000000e+00 : f32
    %465 = vector.broadcast %cst_159 : f32 to vector<8x32xf32>
    %466 = arith.subf %465, %458 : vector<8x32xf32>
    %467 = arith.mulf %466, %464 : vector<8x32xf32>
    %468 = arith.mulf %458, %431 : vector<8x32xf32>
    %469 = arith.addf %467, %468 : vector<8x32xf32>
    %cst_160 = arith.constant dense<0.000000e+00> : vector<8x32xf32>
    %470 = tpu.matmul %469, %8, %cst_160 {dimension_numbers = #tpu.dot_dimension_numbers<[1], [0], [0], [1], [0, 0, 1, 1], [], []>} : vector<8x32xf32>, vector<32x32xf32>, vector<8x32xf32> -> vector<8x32xf32>
    %cst_161 = arith.constant dense<0.000000e+00> : vector<8x32xf32>
    %471 = tpu.matmul %435, %14, %cst_161 {dimension_numbers = #tpu.dot_dimension_numbers<[1], [0], [0], [1], [0, 0, 1, 1], [], []>} : vector<8x32xf32>, vector<32x32xf32>, vector<8x32xf32> -> vector<8x32xf32>
    %472 = arith.addf %470, %471 : vector<8x32xf32>
    %473 = arith.addf %472, %30 : vector<8x32xf32>
    %474 = arith.negf %473 : vector<8x32xf32>
    %475 = math.exp %474 : vector<8x32xf32>
    %cst_162 = arith.constant 1.000000e+00 : f32
    %476 = vector.broadcast %cst_162 : f32 to vector<8x32xf32>
    %477 = arith.addf %476, %475 : vector<8x32xf32>
    %478 = arith.divf %476, %477 : vector<8x32xf32>
    %cst_163 = arith.constant dense<0.000000e+00> : vector<8x32xf32>
    %479 = tpu.matmul %469, %10, %cst_163 {dimension_numbers = #tpu.dot_dimension_numbers<[1], [0], [0], [1], [0, 0, 1, 1], [], []>} : vector<8x32xf32>, vector<32x32xf32>, vector<8x32xf32> -> vector<8x32xf32>
    %cst_164 = arith.constant dense<0.000000e+00> : vector<8x32xf32>
    %480 = tpu.matmul %435, %16, %cst_164 {dimension_numbers = #tpu.dot_dimension_numbers<[1], [0], [0], [1], [0, 0, 1, 1], [], []>} : vector<8x32xf32>, vector<32x32xf32>, vector<8x32xf32> -> vector<8x32xf32>
    %481 = arith.addf %479, %480 : vector<8x32xf32>
    %482 = arith.addf %481, %37 : vector<8x32xf32>
    %483 = arith.negf %482 : vector<8x32xf32>
    %484 = math.exp %483 : vector<8x32xf32>
    %cst_165 = arith.constant 1.000000e+00 : f32
    %485 = vector.broadcast %cst_165 : f32 to vector<8x32xf32>
    %486 = arith.addf %485, %484 : vector<8x32xf32>
    %487 = arith.divf %485, %486 : vector<8x32xf32>
    %cst_166 = arith.constant dense<0.000000e+00> : vector<8x32xf32>
    %488 = tpu.matmul %469, %12, %cst_166 {dimension_numbers = #tpu.dot_dimension_numbers<[1], [0], [0], [1], [0, 0, 1, 1], [], []>} : vector<8x32xf32>, vector<32x32xf32>, vector<8x32xf32> -> vector<8x32xf32>
    %489 = arith.addf %488, %41 : vector<8x32xf32>
    %cst_167 = arith.constant dense<0.000000e+00> : vector<8x32xf32>
    %490 = tpu.matmul %435, %18, %cst_167 {dimension_numbers = #tpu.dot_dimension_numbers<[1], [0], [0], [1], [0, 0, 1, 1], [], []>} : vector<8x32xf32>, vector<32x32xf32>, vector<8x32xf32> -> vector<8x32xf32>
    %491 = arith.addf %490, %45 : vector<8x32xf32>
    %492 = arith.mulf %478, %491 : vector<8x32xf32>
    %493 = arith.addf %489, %492 : vector<8x32xf32>
    %494 = math.tanh %493 : vector<8x32xf32>
    %cst_168 = arith.constant 1.000000e+00 : f32
    %495 = vector.broadcast %cst_168 : f32 to vector<8x32xf32>
    %496 = arith.subf %495, %487 : vector<8x32xf32>
    %497 = arith.mulf %496, %494 : vector<8x32xf32>
    %498 = arith.mulf %487, %435 : vector<8x32xf32>
    %499 = arith.addf %497, %498 : vector<8x32xf32>
    %500 = arith.subf %469, %431 : vector<8x32xf32>
    %501 = vector.broadcast %442 : vector<8x1xf32> to vector<8x32xf32>
    %502 = arith.mulf %501, %500 : vector<8x32xf32>
    %503 = arith.addf %431, %502 : vector<8x32xf32>
    %504 = arith.subf %499, %435 : vector<8x32xf32>
    %505 = vector.broadcast %442 : vector<8x1xf32> to vector<8x32xf32>
    %506 = arith.mulf %505, %504 : vector<8x32xf32>
    %507 = arith.addf %435, %506 : vector<8x32xf32>
    %508 = vector.broadcast %442 : vector<8x1xf32> to vector<8x32xf32>
    %509 = arith.mulf %508, %499 : vector<8x32xf32>
    %510 = arith.addf %438, %509 : vector<8x32xf32>
    %c6_i32 = arith.constant 6 : i32
    %511 = vector.broadcast %c6_i32 : i32 to vector<8x1xi32>
    %512 = arith.cmpi sgt, %0, %511 : vector<8x1xi32>
    %513 = arith.extui %512 : vector<8x1xi1> to vector<8x1xi32>
    %514 = arith.sitofp %513 : vector<8x1xi32> to vector<8x1xf32>
    %515 = vector.extract_strided_slice %57 {offsets = [48, 0], sizes = [8, 32], strides = [1, 1]} : vector<64x32xf32> to vector<8x32xf32>
    %cst_169 = arith.constant dense<0.000000e+00> : vector<8x32xf32>
    %516 = tpu.matmul %503, %2, %cst_169 {dimension_numbers = #tpu.dot_dimension_numbers<[1], [0], [0], [1], [0, 0, 1, 1], [], []>} : vector<8x32xf32>, vector<32x32xf32>, vector<8x32xf32> -> vector<8x32xf32>
    %517 = arith.addf %515, %516 : vector<8x32xf32>
    %518 = arith.negf %517 : vector<8x32xf32>
    %519 = math.exp %518 : vector<8x32xf32>
    %cst_170 = arith.constant 1.000000e+00 : f32
    %520 = vector.broadcast %cst_170 : f32 to vector<8x32xf32>
    %521 = arith.addf %520, %519 : vector<8x32xf32>
    %522 = arith.divf %520, %521 : vector<8x32xf32>
    %523 = vector.extract_strided_slice %68 {offsets = [48, 0], sizes = [8, 32], strides = [1, 1]} : vector<64x32xf32> to vector<8x32xf32>
    %cst_171 = arith.constant dense<0.000000e+00> : vector<8x32xf32>
    %524 = tpu.matmul %503, %4, %cst_171 {dimension_numbers = #tpu.dot_dimension_numbers<[1], [0], [0], [1], [0, 0, 1, 1], [], []>} : vector<8x32xf32>, vector<32x32xf32>, vector<8x32xf32> -> vector<8x32xf32>
    %525 = arith.addf %523, %524 : vector<8x32xf32>
    %526 = arith.negf %525 : vector<8x32xf32>
    %527 = math.exp %526 : vector<8x32xf32>
    %cst_172 = arith.constant 1.000000e+00 : f32
    %528 = vector.broadcast %cst_172 : f32 to vector<8x32xf32>
    %529 = arith.addf %528, %527 : vector<8x32xf32>
    %530 = arith.divf %528, %529 : vector<8x32xf32>
    %531 = vector.extract_strided_slice %75 {offsets = [48, 0], sizes = [8, 32], strides = [1, 1]} : vector<64x32xf32> to vector<8x32xf32>
    %cst_173 = arith.constant dense<0.000000e+00> : vector<8x32xf32>
    %532 = tpu.matmul %503, %6, %cst_173 {dimension_numbers = #tpu.dot_dimension_numbers<[1], [0], [0], [1], [0, 0, 1, 1], [], []>} : vector<8x32xf32>, vector<32x32xf32>, vector<8x32xf32> -> vector<8x32xf32>
    %533 = arith.addf %532, %23 : vector<8x32xf32>
    %534 = arith.mulf %522, %533 : vector<8x32xf32>
    %535 = arith.addf %531, %534 : vector<8x32xf32>
    %536 = math.tanh %535 : vector<8x32xf32>
    %cst_174 = arith.constant 1.000000e+00 : f32
    %537 = vector.broadcast %cst_174 : f32 to vector<8x32xf32>
    %538 = arith.subf %537, %530 : vector<8x32xf32>
    %539 = arith.mulf %538, %536 : vector<8x32xf32>
    %540 = arith.mulf %530, %503 : vector<8x32xf32>
    %541 = arith.addf %539, %540 : vector<8x32xf32>
    %cst_175 = arith.constant dense<0.000000e+00> : vector<8x32xf32>
    %542 = tpu.matmul %541, %8, %cst_175 {dimension_numbers = #tpu.dot_dimension_numbers<[1], [0], [0], [1], [0, 0, 1, 1], [], []>} : vector<8x32xf32>, vector<32x32xf32>, vector<8x32xf32> -> vector<8x32xf32>
    %cst_176 = arith.constant dense<0.000000e+00> : vector<8x32xf32>
    %543 = tpu.matmul %507, %14, %cst_176 {dimension_numbers = #tpu.dot_dimension_numbers<[1], [0], [0], [1], [0, 0, 1, 1], [], []>} : vector<8x32xf32>, vector<32x32xf32>, vector<8x32xf32> -> vector<8x32xf32>
    %544 = arith.addf %542, %543 : vector<8x32xf32>
    %545 = arith.addf %544, %30 : vector<8x32xf32>
    %546 = arith.negf %545 : vector<8x32xf32>
    %547 = math.exp %546 : vector<8x32xf32>
    %cst_177 = arith.constant 1.000000e+00 : f32
    %548 = vector.broadcast %cst_177 : f32 to vector<8x32xf32>
    %549 = arith.addf %548, %547 : vector<8x32xf32>
    %550 = arith.divf %548, %549 : vector<8x32xf32>
    %cst_178 = arith.constant dense<0.000000e+00> : vector<8x32xf32>
    %551 = tpu.matmul %541, %10, %cst_178 {dimension_numbers = #tpu.dot_dimension_numbers<[1], [0], [0], [1], [0, 0, 1, 1], [], []>} : vector<8x32xf32>, vector<32x32xf32>, vector<8x32xf32> -> vector<8x32xf32>
    %cst_179 = arith.constant dense<0.000000e+00> : vector<8x32xf32>
    %552 = tpu.matmul %507, %16, %cst_179 {dimension_numbers = #tpu.dot_dimension_numbers<[1], [0], [0], [1], [0, 0, 1, 1], [], []>} : vector<8x32xf32>, vector<32x32xf32>, vector<8x32xf32> -> vector<8x32xf32>
    %553 = arith.addf %551, %552 : vector<8x32xf32>
    %554 = arith.addf %553, %37 : vector<8x32xf32>
    %555 = arith.negf %554 : vector<8x32xf32>
    %556 = math.exp %555 : vector<8x32xf32>
    %cst_180 = arith.constant 1.000000e+00 : f32
    %557 = vector.broadcast %cst_180 : f32 to vector<8x32xf32>
    %558 = arith.addf %557, %556 : vector<8x32xf32>
    %559 = arith.divf %557, %558 : vector<8x32xf32>
    %cst_181 = arith.constant dense<0.000000e+00> : vector<8x32xf32>
    %560 = tpu.matmul %541, %12, %cst_181 {dimension_numbers = #tpu.dot_dimension_numbers<[1], [0], [0], [1], [0, 0, 1, 1], [], []>} : vector<8x32xf32>, vector<32x32xf32>, vector<8x32xf32> -> vector<8x32xf32>
    %561 = arith.addf %560, %41 : vector<8x32xf32>
    %cst_182 = arith.constant dense<0.000000e+00> : vector<8x32xf32>
    %562 = tpu.matmul %507, %18, %cst_182 {dimension_numbers = #tpu.dot_dimension_numbers<[1], [0], [0], [1], [0, 0, 1, 1], [], []>} : vector<8x32xf32>, vector<32x32xf32>, vector<8x32xf32> -> vector<8x32xf32>
    %563 = arith.addf %562, %45 : vector<8x32xf32>
    %564 = arith.mulf %550, %563 : vector<8x32xf32>
    %565 = arith.addf %561, %564 : vector<8x32xf32>
    %566 = math.tanh %565 : vector<8x32xf32>
    %cst_183 = arith.constant 1.000000e+00 : f32
    %567 = vector.broadcast %cst_183 : f32 to vector<8x32xf32>
    %568 = arith.subf %567, %559 : vector<8x32xf32>
    %569 = arith.mulf %568, %566 : vector<8x32xf32>
    %570 = arith.mulf %559, %507 : vector<8x32xf32>
    %571 = arith.addf %569, %570 : vector<8x32xf32>
    %572 = arith.subf %541, %503 : vector<8x32xf32>
    %573 = vector.broadcast %514 : vector<8x1xf32> to vector<8x32xf32>
    %574 = arith.mulf %573, %572 : vector<8x32xf32>
    %575 = arith.addf %503, %574 : vector<8x32xf32>
    %576 = arith.subf %571, %507 : vector<8x32xf32>
    %577 = vector.broadcast %514 : vector<8x1xf32> to vector<8x32xf32>
    %578 = arith.mulf %577, %576 : vector<8x32xf32>
    %579 = arith.addf %507, %578 : vector<8x32xf32>
    %580 = vector.broadcast %514 : vector<8x1xf32> to vector<8x32xf32>
    %581 = arith.mulf %580, %571 : vector<8x32xf32>
    %582 = arith.addf %510, %581 : vector<8x32xf32>
    %c7_i32 = arith.constant 7 : i32
    %583 = vector.broadcast %c7_i32 : i32 to vector<8x1xi32>
    %584 = arith.cmpi sgt, %0, %583 : vector<8x1xi32>
    %585 = arith.extui %584 : vector<8x1xi1> to vector<8x1xi32>
    %586 = arith.sitofp %585 : vector<8x1xi32> to vector<8x1xf32>
    %587 = vector.extract_strided_slice %57 {offsets = [56, 0], sizes = [8, 32], strides = [1, 1]} : vector<64x32xf32> to vector<8x32xf32>
    %cst_184 = arith.constant dense<0.000000e+00> : vector<8x32xf32>
    %588 = tpu.matmul %575, %2, %cst_184 {dimension_numbers = #tpu.dot_dimension_numbers<[1], [0], [0], [1], [0, 0, 1, 1], [], []>} : vector<8x32xf32>, vector<32x32xf32>, vector<8x32xf32> -> vector<8x32xf32>
    %589 = arith.addf %587, %588 : vector<8x32xf32>
    %590 = arith.negf %589 : vector<8x32xf32>
    %591 = math.exp %590 : vector<8x32xf32>
    %cst_185 = arith.constant 1.000000e+00 : f32
    %592 = vector.broadcast %cst_185 : f32 to vector<8x32xf32>
    %593 = arith.addf %592, %591 : vector<8x32xf32>
    %594 = arith.divf %592, %593 : vector<8x32xf32>
    %595 = vector.extract_strided_slice %68 {offsets = [56, 0], sizes = [8, 32], strides = [1, 1]} : vector<64x32xf32> to vector<8x32xf32>
    %cst_186 = arith.constant dense<0.000000e+00> : vector<8x32xf32>
    %596 = tpu.matmul %575, %4, %cst_186 {dimension_numbers = #tpu.dot_dimension_numbers<[1], [0], [0], [1], [0, 0, 1, 1], [], []>} : vector<8x32xf32>, vector<32x32xf32>, vector<8x32xf32> -> vector<8x32xf32>
    %597 = arith.addf %595, %596 : vector<8x32xf32>
    %598 = arith.negf %597 : vector<8x32xf32>
    %599 = math.exp %598 : vector<8x32xf32>
    %cst_187 = arith.constant 1.000000e+00 : f32
    %600 = vector.broadcast %cst_187 : f32 to vector<8x32xf32>
    %601 = arith.addf %600, %599 : vector<8x32xf32>
    %602 = arith.divf %600, %601 : vector<8x32xf32>
    %603 = vector.extract_strided_slice %75 {offsets = [56, 0], sizes = [8, 32], strides = [1, 1]} : vector<64x32xf32> to vector<8x32xf32>
    %cst_188 = arith.constant dense<0.000000e+00> : vector<8x32xf32>
    %604 = tpu.matmul %575, %6, %cst_188 {dimension_numbers = #tpu.dot_dimension_numbers<[1], [0], [0], [1], [0, 0, 1, 1], [], []>} : vector<8x32xf32>, vector<32x32xf32>, vector<8x32xf32> -> vector<8x32xf32>
    %605 = arith.addf %604, %23 : vector<8x32xf32>
    %606 = arith.mulf %594, %605 : vector<8x32xf32>
    %607 = arith.addf %603, %606 : vector<8x32xf32>
    %608 = math.tanh %607 : vector<8x32xf32>
    %cst_189 = arith.constant 1.000000e+00 : f32
    %609 = vector.broadcast %cst_189 : f32 to vector<8x32xf32>
    %610 = arith.subf %609, %602 : vector<8x32xf32>
    %611 = arith.mulf %610, %608 : vector<8x32xf32>
    %612 = arith.mulf %602, %575 : vector<8x32xf32>
    %613 = arith.addf %611, %612 : vector<8x32xf32>
    %cst_190 = arith.constant dense<0.000000e+00> : vector<8x32xf32>
    %614 = tpu.matmul %613, %8, %cst_190 {dimension_numbers = #tpu.dot_dimension_numbers<[1], [0], [0], [1], [0, 0, 1, 1], [], []>} : vector<8x32xf32>, vector<32x32xf32>, vector<8x32xf32> -> vector<8x32xf32>
    %cst_191 = arith.constant dense<0.000000e+00> : vector<8x32xf32>
    %615 = tpu.matmul %579, %14, %cst_191 {dimension_numbers = #tpu.dot_dimension_numbers<[1], [0], [0], [1], [0, 0, 1, 1], [], []>} : vector<8x32xf32>, vector<32x32xf32>, vector<8x32xf32> -> vector<8x32xf32>
    %616 = arith.addf %614, %615 : vector<8x32xf32>
    %617 = arith.addf %616, %30 : vector<8x32xf32>
    %618 = arith.negf %617 : vector<8x32xf32>
    %619 = math.exp %618 : vector<8x32xf32>
    %cst_192 = arith.constant 1.000000e+00 : f32
    %620 = vector.broadcast %cst_192 : f32 to vector<8x32xf32>
    %621 = arith.addf %620, %619 : vector<8x32xf32>
    %622 = arith.divf %620, %621 : vector<8x32xf32>
    %cst_193 = arith.constant dense<0.000000e+00> : vector<8x32xf32>
    %623 = tpu.matmul %613, %10, %cst_193 {dimension_numbers = #tpu.dot_dimension_numbers<[1], [0], [0], [1], [0, 0, 1, 1], [], []>} : vector<8x32xf32>, vector<32x32xf32>, vector<8x32xf32> -> vector<8x32xf32>
    %cst_194 = arith.constant dense<0.000000e+00> : vector<8x32xf32>
    %624 = tpu.matmul %579, %16, %cst_194 {dimension_numbers = #tpu.dot_dimension_numbers<[1], [0], [0], [1], [0, 0, 1, 1], [], []>} : vector<8x32xf32>, vector<32x32xf32>, vector<8x32xf32> -> vector<8x32xf32>
    %625 = arith.addf %623, %624 : vector<8x32xf32>
    %626 = arith.addf %625, %37 : vector<8x32xf32>
    %627 = arith.negf %626 : vector<8x32xf32>
    %628 = math.exp %627 : vector<8x32xf32>
    %cst_195 = arith.constant 1.000000e+00 : f32
    %629 = vector.broadcast %cst_195 : f32 to vector<8x32xf32>
    %630 = arith.addf %629, %628 : vector<8x32xf32>
    %631 = arith.divf %629, %630 : vector<8x32xf32>
    %cst_196 = arith.constant dense<0.000000e+00> : vector<8x32xf32>
    %632 = tpu.matmul %613, %12, %cst_196 {dimension_numbers = #tpu.dot_dimension_numbers<[1], [0], [0], [1], [0, 0, 1, 1], [], []>} : vector<8x32xf32>, vector<32x32xf32>, vector<8x32xf32> -> vector<8x32xf32>
    %633 = arith.addf %632, %41 : vector<8x32xf32>
    %cst_197 = arith.constant dense<0.000000e+00> : vector<8x32xf32>
    %634 = tpu.matmul %579, %18, %cst_197 {dimension_numbers = #tpu.dot_dimension_numbers<[1], [0], [0], [1], [0, 0, 1, 1], [], []>} : vector<8x32xf32>, vector<32x32xf32>, vector<8x32xf32> -> vector<8x32xf32>
    %635 = arith.addf %634, %45 : vector<8x32xf32>
    %636 = arith.mulf %622, %635 : vector<8x32xf32>
    %637 = arith.addf %633, %636 : vector<8x32xf32>
    %638 = math.tanh %637 : vector<8x32xf32>
    %cst_198 = arith.constant 1.000000e+00 : f32
    %639 = vector.broadcast %cst_198 : f32 to vector<8x32xf32>
    %640 = arith.subf %639, %631 : vector<8x32xf32>
    %641 = arith.mulf %640, %638 : vector<8x32xf32>
    %642 = arith.mulf %631, %579 : vector<8x32xf32>
    %643 = arith.addf %641, %642 : vector<8x32xf32>
    %644 = vector.broadcast %586 : vector<8x1xf32> to vector<8x32xf32>
    %645 = arith.mulf %644, %643 : vector<8x32xf32>
    %646 = arith.addf %582, %645 : vector<8x32xf32>
    %c1_i32_199 = arith.constant 1 : i32
    %647 = vector.broadcast %c1_i32_199 : i32 to vector<8x1xi32>
    %648 = arith.maxsi %0, %647 : vector<8x1xi32>
    %649 = arith.sitofp %648 : vector<8x1xi32> to vector<8x1xf32>
    %650 = vector.broadcast %649 : vector<8x1xf32> to vector<8x32xf32>
    %651 = arith.divf %646, %650 : vector<8x32xf32>
    %c0_200 = arith.constant 0 : index
    %c0_201 = arith.constant 0 : index
    %652 = vector.load %arg10[%c0_200, %c0_201] : memref<32x3xf32, #tpu.memory_space<vmem>>, vector<32x3xf32>
    %cst_202 = arith.constant dense<0.000000e+00> : vector<8x3xf32>
    %653 = tpu.matmul %651, %652, %cst_202 {dimension_numbers = #tpu.dot_dimension_numbers<[1], [0], [0], [1], [0, 0, 1, 1], [], []>} : vector<8x32xf32>, vector<32x3xf32>, vector<8x3xf32> -> vector<8x3xf32>
    %c0_203 = arith.constant 0 : index
    %c0_204 = arith.constant 0 : index
    %654 = vector.load %arg11[%c0_203, %c0_204] : memref<1x3xf32, #tpu.memory_space<vmem>>, vector<1x3xf32>
    %655 = vector.broadcast %654 : vector<1x3xf32> to vector<8x3xf32>
    %656 = arith.addf %653, %655 : vector<8x3xf32>
    %c0_205 = arith.constant 0 : index
    %c0_206 = arith.constant 0 : index
    %657 = vector.load %arg12[%c0_205, %c0_206] : memref<8x3xf32, #tpu.memory_space<vmem>>, vector<8x3xf32>
    tpu.vector_store %arg12[%c0_205, %c0_206], %656 {strides = array<i32>} : memref<8x3xf32, #tpu.memory_space<vmem>>, vector<8x3xf32>,
    return
  }
}

</mosaic_0001>

<llo_original>
// kernel: tsgru_forward.1
$region0: #{tsgru_forward.1}
  #allocation0 [shape = 'u32[]', space=smem, size = 0x4, offset = 0x4, fixed_abs, tag = 'smem constant byte address 0x4 - core index']
  #allocation1 [shape = 'u32[144,128]{1,0:T(1,128)}', space=vmem, size = 0x12000, scoped, tag = 'internal scratch']
  %s0 = inlined_call_operand.vmem [shape: f32[64,4], index: 0, kind: input, shape index: {}]
  %s1 = inlined_call_operand.vmem [shape: s32[8,1], index: 1, kind: input, shape index: {}]
  %s2 = inlined_call_operand.vmem [shape: f32[3,4,32], index: 2, kind: input, shape index: {}]
  %s3 = inlined_call_operand.vmem [shape: f32[3,32,32], index: 3, kind: input, shape index: {}]
  %s4 = inlined_call_operand.vmem [shape: f32[3,1,32], index: 4, kind: input, shape index: {}]
  %s5 = inlined_call_operand.vmem [shape: f32[3,1,32], index: 5, kind: input, shape index: {}]
  %s6 = inlined_call_operand.vmem [shape: f32[3,32,32], index: 6, kind: input, shape index: {}]
  %s7 = inlined_call_operand.vmem [shape: f32[3,32,32], index: 7, kind: input, shape index: {}]
  %s8 = inlined_call_operand.vmem [shape: f32[3,1,32], index: 8, kind: input, shape index: {}]
  %s9 = inlined_call_operand.vmem [shape: f32[3,1,32], index: 9, kind: input, shape index: {}]
  %s10 = inlined_call_operand.vmem [shape: f32[32,3], index: 10, kind: input, shape index: {}]
  %s11 = inlined_call_operand.vmem [shape: f32[1,3], index: 11, kind: input, shape index: {}]
  %s12 = inlined_call_operand.vmem [shape: f32[8,3], index: 12, kind: output, shape index: {}]
  %s13 = sld [smem:[#allocation0]]
  $region58: #{tsgru_forward.1} parent=0
    _
  %s15 = ssub.s32 1, %s13
  %s16 = scalar_select 0, %s15, %s13
  // Predicated region
  $region2: #{tsgru_forward.1} parent=0 // pred_check
    _
  $region3: #{tsgru_forward.1} parent=0 // pred_check_branch
    %18 = sbr.rel (0) target = $region5
  $region4: #{tsgru_forward.1} parent=0 // pred_region
    _
  $region5: #{tsgru_forward.1} parent=0 // pred_fallthru
    _
  // Predicated region
  $region6: #{tsgru_forward.1} parent=0 // pred_check
    _
  $region7: #{tsgru_forward.1} parent=0 // pred_check_branch
    %20 = sbr.rel (0) target = $region9
  $region8: #{tsgru_forward.1} parent=0 // pred_region
    _
  $region9: #{tsgru_forward.1} parent=0 // pred_fallthru
    _
  // Predicated region
  $region10: #{tsgru_forward.1} parent=0 // pred_check
    _
  $region11: #{tsgru_forward.1} parent=0 // pred_check_branch
    %22 = sbr.rel (0) target = $region13
  $region12: #{tsgru_forward.1} parent=0 // pred_region
    _
  $region13: #{tsgru_forward.1} parent=0 // pred_fallthru
    _
  // Predicated region
  $region14: #{tsgru_forward.1} parent=0 // pred_check
    _
  $region15: #{tsgru_forward.1} parent=0 // pred_check_branch
    %24 = sbr.rel (0) target = $region17
  $region16: #{tsgru_forward.1} parent=0 // pred_region
    _
  $region17: #{tsgru_forward.1} parent=0 // pred_fallthru
    _
  // Predicated region
  $region18: #{tsgru_forward.1} parent=0 // pred_check
    _
  $region19: #{tsgru_forward.1} parent=0 // pred_check_branch
    %26 = sbr.rel (0) target = $region21
  $region20: #{tsgru_forward.1} parent=0 // pred_region
    _
  $region21: #{tsgru_forward.1} parent=0 // pred_fallthru
    _
  // Predicated region
  $region22: #{tsgru_forward.1} parent=0 // pred_check
    _
  $region23: #{tsgru_forward.1} parent=0 // pred_check_branch
    %28 = sbr.rel (0) target = $region25
  $region24: #{tsgru_forward.1} parent=0 // pred_region
    _
  $region25: #{tsgru_forward.1} parent=0 // pred_fallthru
    _
  // Predicated region
  $region26: #{tsgru_forward.1} parent=0 // pred_check
    _
  $region27: #{tsgru_forward.1} parent=0 // pred_check_branch
    %30 = sbr.rel (0) target = $region29
  $region28: #{tsgru_forward.1} parent=0 // pred_region
    _
  $region29: #{tsgru_forward.1} parent=0 // pred_fallthru
    _
  // Predicated region
  $region30: #{tsgru_forward.1} parent=0 // pred_check
    _
  $region31: #{tsgru_forward.1} parent=0 // pred_check_branch
    %32 = sbr.rel (0) target = $region33
  $region32: #{tsgru_forward.1} parent=0 // pred_region
    _
  $region33: #{tsgru_forward.1} parent=0 // pred_fallthru
    _
  // Predicated region
  $region34: #{tsgru_forward.1} parent=0 // pred_check
    _
  $region35: #{tsgru_forward.1} parent=0 // pred_check_branch
    %34 = sbr.rel (0) target = $region37
  $region36: #{tsgru_forward.1} parent=0 // pred_region
    _
  $region37: #{tsgru_forward.1} parent=0 // pred_fallthru
    _
  // Predicated region
  $region38: #{tsgru_forward.1} parent=0 // pred_check
    _
  $region39: #{tsgru_forward.1} parent=0 // pred_check_branch
    %36 = sbr.rel (0) target = $region41
  $region40: #{tsgru_forward.1} parent=0 // pred_region
    _
  $region41: #{tsgru_forward.1} parent=0 // pred_fallthru
    _
  // Predicated region
  $region42: #{tsgru_forward.1} parent=0 // pred_check
    _
  $region43: #{tsgru_forward.1} parent=0 // pred_check_branch
    %38 = sbr.rel (0) target = $region45
  $region44: #{tsgru_forward.1} parent=0 // pred_region
    _
  $region45: #{tsgru_forward.1} parent=0 // pred_fallthru
    _
  // Predicated region
  $region46: #{tsgru_forward.1} parent=0 // pred_check
    _
  $region47: #{tsgru_forward.1} parent=0 // pred_check_branch
    %40 = sbr.rel (0) target = $region49
  $region48: #{tsgru_forward.1} parent=0 // pred_region
    _
  $region49: #{tsgru_forward.1} parent=0 // pred_fallthru
    _
  %v41 = vld [vmem:[%s1] sm:$0xff]
  %v42 = vld [vmem:[%s3] sm:$0xff]
  %v43 = vld [vmem:[%s3 + $0x8] sm:$0xff]
  %v44 = vld [vmem:[%s3 + $0x10] sm:$0xff]
  %v45 = vld [vmem:[%s3 + $0x18] sm:$0xff]
  %s46 = scalar_lea.vmem %s3, 32
  %v47 = vld [vmem:[%s46] sm:$0xff]
  %v48 = vld [vmem:[%s46 + $0x8] sm:$0xff]
  %v49 = vld [vmem:[%s46 + $0x10] sm:$0xff]
  %v50 = vld [vmem:[%s46 + $0x18] sm:$0xff]
  %s51 = scalar_lea.vmem %s3, 64
  %v52 = vld [vmem:[%s51] sm:$0xff]
  %v53 = vld [vmem:[%s51 + $0x8] sm:$0xff]
  %v54 = vld [vmem:[%s51 + $0x10] sm:$0xff]
  %v55 = vld [vmem:[%s51 + $0x18] sm:$0xff]
  %v56 = vld [vmem:[%s6] sm:$0xff]
  %v57 = vld [vmem:[%s6 + $0x8] sm:$0xff]
  %v58 = vld [vmem:[%s6 + $0x10] sm:$0xff]
  %v59 = vld [vmem:[%s6 + $0x18] sm:$0xff]
  %s60 = scalar_lea.vmem %s6, 32
  %v61 = vld [vmem:[%s60] sm:$0xff]
  %v62 = vld [vmem:[%s60 + $0x8] sm:$0xff]
  %v63 = vld [vmem:[%s60 + $0x10] sm:$0xff]
  %v64 = vld [vmem:[%s60 + $0x18] sm:$0xff]
  %s65 = scalar_lea.vmem %s6, 64
  %v66 = vld [vmem:[%s65] sm:$0xff]
  %v67 = vld [vmem:[%s65 + $0x8] sm:$0xff]
  %v68 = vld [vmem:[%s65 + $0x10] sm:$0xff]
  %v69 = vld [vmem:[%s65 + $0x18] sm:$0xff]
  %v70 = vld [vmem:[%s7] sm:$0xff]
  %v71 = vld [vmem:[%s7 + $0x8] sm:$0xff]
  %v72 = vld [vmem:[%s7 + $0x10] sm:$0xff]
  %v73 = vld [vmem:[%s7 + $0x18] sm:$0xff]
  %s74 = scalar_lea.vmem %s7, 32
  %v75 = vld [vmem:[%s74] sm:$0xff]
  %v76 = vld [vmem:[%s74 + $0x8] sm:$0xff]
  %v77 = vld [vmem:[%s74 + $0x10] sm:$0xff]
  %v78 = vld [vmem:[%s74 + $0x18] sm:$0xff]
  %s79 = scalar_lea.vmem %s7, 64
  %v80 = vld [vmem:[%s79] sm:$0xff]
  %v81 = vld [vmem:[%s79 + $0x8] sm:$0xff]
  %v82 = vld [vmem:[%s79 + $0x10] sm:$0xff]
  %v83 = vld [vmem:[%s79 + $0x18] sm:$0xff]
  %s84 = scalar_lea.vmem %s5, 2
  %v85 = vld [vmem:[%s84] sm:$0x1]
  %v87 = vlaneseq
  %v88 = vshrl.u32 %v87, 7
  %v89 = vsub.s32 0, %v88
  %v90 = vrot.slane %v85, %v89
  %v92 = vld [vmem:[%s8] sm:$0x1]
  %v93 = vld [vmem:[%s9] sm:$0x1]
  %v94 = vadd.f32 %v92, %v93
  %v96 = vlaneseq
  %v97 = vshrl.u32 %v96, 7
  %v98 = vsub.s32 0, %v97
  %v99 = vrot.slane %v94, %v98
  %s101 = scalar_lea.vmem %s8, 1
  %v102 = vld [vmem:[%s101] sm:$0x1]
  %s103 = scalar_lea.vmem %s9, 1
  %v104 = vld [vmem:[%s103] sm:$0x1]
  %v105 = vadd.f32 %v102, %v104
  %v107 = vlaneseq
  %v108 = vshrl.u32 %v107, 7
  %v109 = vsub.s32 0, %v108
  %v110 = vrot.slane %v105, %v109
  %s112 = scalar_lea.vmem %s8, 2
  %v113 = vld [vmem:[%s112] sm:$0x1]
  %v115 = vlaneseq
  %v116 = vshrl.u32 %v115, 7
  %v117 = vsub.s32 0, %v116
  %v118 = vrot.slane %v113, %v117
  %s120 = scalar_lea.vmem %s9, 2
  %v121 = vld [vmem:[%s120] sm:$0x1]
  %v123 = vlaneseq
  %v124 = vshrl.u32 %v123, 7
  %v125 = vsub.s32 0, %v124
  %v126 = vrot.slane %v121, %v125
  %v128 = vld [vmem:[%s0] sm:$0xff]
  %v129 = vld [vmem:[%s0 + $0x8] sm:$0xff]
  %v130 = vld [vmem:[%s0 + $0x10] sm:$0xff]
  %v131 = vld [vmem:[%s0 + $0x18] sm:$0xff]
  %v132 = vld [vmem:[%s0 + $0x20] sm:$0xff]
  %v133 = vld [vmem:[%s0 + $0x28] sm:$0xff]
  %v134 = vld [vmem:[%s0 + $0x30] sm:$0xff]
  %v135 = vld [vmem:[%s0 + $0x38] sm:$0xff]
  %v136 = vld [vmem:[%s2] sm:$0xf]
  %v137 = vld [vmem:[%s4] sm:$0x1]
  %v139 = vlaneseq
  %v140 = vshrl.u32 %v139, 7
  %v141 = vsub.s32 0, %v140
  %v142 = vrot.slane %v137, %v141
  %vm144 = vcmask 31744
  %v146 = vsel %vm144, %v128, 0
  %v149 = vsel %vm144, %v129, 0
  %v152 = vsel %vm144, %v130, 0
  %v155 = vsel %vm144, %v131, 0
  %v158 = vsel %vm144, %v132, 0
  %v161 = vsel %vm144, %v133, 0
  %v164 = vsel %vm144, %v134, 0
  %v167 = vsel %vm144, %v135, 0
  %vm169 = vcmask 1043456
  %v171 = vsel %vm169, %v136, 0
  %173 = vmatprep.subr.mxu0 0.0
  %174 = vmatpush1.msra.mxu0 %v171
  %175 = vmatprep.subr.mxu0 0.0
  %176 = vmatpush1.msra.mxu0 0.0
  %177 = vmatprep.subr.mxu0 0.0
  %178 = vmatpush1.msra.mxu0 0.0
  %179 = vmatprep.subr.mxu0 0.0
  %180 = vmatpush1.msra.mxu0 0.0
  %181 = vmatprep.subr.mxu0 0.0
  %182 = vmatpush1.msra.mxu0 0.0
  %183 = vmatprep.subr.mxu0 0.0
  %184 = vmatpush1.msra.mxu0 0.0
  %185 = vmatprep.subr.mxu0 0.0
  %186 = vmatpush1.msra.mxu0 0.0
  %187 = vmatprep.subr.mxu0 0.0
  %188 = vmatpush1.msra.mxu0 0.0
  %189 = vmatprep.subr.mxu0 0.0
  %190 = vmatpush1.msra.mxu0 0.0
  %191 = vmatprep.subr.mxu0 0.0
  %192 = vmatpush1.msra.mxu0 0.0
  %193 = vmatprep.subr.mxu0 0.0
  %194 = vmatpush1.msra.mxu0 0.0
  %195 = vmatprep.subr.mxu0 0.0
  %196 = vmatpush1.msra.mxu0 0.0
  %197 = vmatprep.subr.mxu0 0.0
  %198 = vmatpush1.msra.mxu0 0.0
  %199 = vmatprep.subr.mxu0 0.0
  %200 = vmatpush1.msra.mxu0 0.0
  %201 = vmatprep.subr.mxu0 0.0
  %202 = vmatpush1.msra.mxu0 0.0
  %203 = vmatprep.subr.mxu0 0.0
  %204 = vmatpush1.msra.mxu0 0.0
  %205 = vmatprep.subr.mxu0 0.0
  %206 = vmatpush1.msra.mxu0 0.0
  %207 = vmatprep.subr.mxu0 0.0
  %208 = vmatpush1.msra.mxu0 0.0
  %209 = vmatprep.subr.mxu0 0.0
  %210 = vmatpush1.msra.mxu0 0.0
  %211 = vmatprep.subr.mxu0 0.0
  %212 = vmatpush1.msra.mxu0 0.0
  %213 = vmatprep.subr.mxu0 0.0
  %214 = vmatpush1.msra.mxu0 0.0
  %215 = vmatprep.subr.mxu0 0.0
  %216 = vmatpush1.msra.mxu0 0.0
  %217 = vmatprep.subr.mxu0 0.0
  %218 = vmatpush1.msra.mxu0 0.0
  %219 = vmatprep.subr.mxu0 0.0
  %220 = vmatpush1.msra.mxu0 0.0
  %221 = vmatprep.subr.mxu0 0.0
  %222 = vmatpush1.msra.mxu0 0.0
  %223 = vmatprep.subr.mxu0 0.0
  %224 = vmatpush1.msra.mxu0 0.0
  %225 = vmatprep.subr.mxu0 0.0
  %226 = vmatpush1.msra.mxu0 0.0
  %227 = vmatprep.subr.mxu0 0.0
  %228 = vmatpush1.msra.mxu0 0.0
  %229 = vmatprep.subr.mxu0 0.0
  %230 = vmatpush1.msra.mxu0 0.0
  %231 = vmatprep.subr.mxu0 0.0
  %232 = vmatpush1.msra.mxu0 0.0
  %233 = vmatprep.subr.mxu0 0.0
  %234 = vmatpush1.msra.mxu0 0.0
  %235 = vmatprep.subr.mxu0 0.0
  %236 = vmatpush1.msra.mxu0 0.0
  %237 = vmatprep.mubr.f32.mxu0 0.0
  %238 = vmatmul.mubr.f32.gmra.mrb[0].mxu0 %v146
  %v239 = vpop.f32.mrb[0].mxu0
  %v240 = vadd.f32 %v142, %v239
  %v241 = vpop.f32.mrb[0].mxu0
  %242 = vmatprep.mubr.f32.mxu0 0.0
  %243 = vmatmul.mubr.f32.gmra.mrb[0].mxu0 %v149
  %v244 = vpop.f32.mrb[0].mxu0
  %v245 = vadd.f32 %v142, %v244
  %v246 = vpop.f32.mrb[0].mxu0
  %247 = vmatprep.mubr.f32.mxu0 0.0
  %248 = vmatmul.mubr.f32.gmra.mrb[0].mxu0 %v152
  %v249 = vpop.f32.mrb[0].mxu0
  %v250 = vadd.f32 %v142, %v249
  %v251 = vpop.f32.mrb[0].mxu0
  %252 = vmatprep.mubr.f32.mxu0 0.0
  %253 = vmatmul.mubr.f32.gmra.mrb[0].mxu0 %v155
  %v254 = vpop.f32.mrb[0].mxu0
  %v255 = vadd.f32 %v142, %v254
  %v256 = vpop.f32.mrb[0].mxu0
  %257 = vmatprep.mubr.f32.mxu0 0.0
  %258 = vmatmul.mubr.f32.gmra.mrb[0].mxu0 %v158
  %v259 = vpop.f32.mrb[0].mxu0
  %v260 = vadd.f32 %v142, %v259
  %v261 = vpop.f32.mrb[0].mxu0
  %262 = vmatprep.mubr.f32.mxu0 0.0
  %263 = vmatmul.mubr.f32.gmra.mrb[0].mxu0 %v161
  %v264 = vpop.f32.mrb[0].mxu0
  %v265 = vadd.f32 %v142, %v264
  %v266 = vpop.f32.mrb[0].mxu0
  %267 = vmatprep.mubr.f32.mxu0 0.0
  %268 = vmatmul.mubr.f32.gmra.mrb[0].mxu0 %v164
  %v269 = vpop.f32.mrb[0].mxu0
  %v270 = vadd.f32 %v142, %v269
  %v271 = vpop.f32.mrb[0].mxu0
  %272 = vmatprep.mubr.f32.mxu0 0.0
  %273 = vmatmul.mubr.f32.gmra.mrb[0].mxu0 %v167
  %v274 = vpop.f32.mrb[0].mxu0
  %v275 = vadd.f32 %v142, %v274
  %v276 = vpop.f32.mrb[0].mxu0
  %277 = vdwg.mxu0
  %v278 = vld [vmem:[%s5] sm:$0x1]
  %v280 = vlaneseq
  %v281 = vshrl.u32 %v280, 7
  %v282 = vsub.s32 0, %v281
  %v283 = vrot.slane %v278, %v282
  %v285 = vadd.f32 %v240, %v283
  %v286 = vadd.f32 %v245, %v283
  %v287 = vadd.f32 %v250, %v283
  %v288 = vadd.f32 %v255, %v283
  %v289 = vadd.f32 %v260, %v283
  %v290 = vadd.f32 %v265, %v283
  %v291 = vadd.f32 %v270, %v283
  %v292 = vadd.f32 %v275, %v283
  %s293 = scalar_lea.vmem %s2, 4
  %v294 = vld [vmem:[%s293] sm:$0xf]
  %s295 = scalar_lea.vmem %s4, 1
  %v296 = vld [vmem:[%s295] sm:$0x1]
  %v298 = vlaneseq
  %v299 = vshrl.u32 %v298, 7
  %v300 = vsub.s32 0, %v299
  %v301 = vrot.slane %v296, %v300
  %v304 = vsel %vm169, %v294, 0
  %306 = vmatprep.subr.mxu0 0.0
  %307 = vmatpush1.msra.mxu0 %v304
  %308 = vmatprep.subr.mxu0 0.0
  %309 = vmatpush1.msra.mxu0 0.0
  %310 = vmatprep.subr.mxu0 0.0
  %311 = vmatpush1.msra.mxu0 0.0
  %312 = vmatprep.subr.mxu0 0.0
  %313 = vmatpush1.msra.mxu0 0.0
  %314 = vmatprep.subr.mxu0 0.0
  %315 = vmatpush1.msra.mxu0 0.0
  %316 = vmatprep.subr.mxu0 0.0
  %317 = vmatpush1.msra.mxu0 0.0
  %318 = vmatprep.subr.mxu0 0.0
  %319 = vmatpush1.msra.mxu0 0.0
  %320 = vmatprep.subr.mxu0 0.0
  %321 = vmatpush1.msra.mxu0 0.0
  %322 = vmatprep.subr.mxu0 0.0
  %323 = vmatpush1.msra.mxu0 0.0
  %324 = vmatprep.subr.mxu0 0.0
  %325 = vmatpush1.msra.mxu0 0.0
  %326 = vmatprep.subr.mxu0 0.0
  %327 = vmatpush1.msra.mxu0 0.0
  %328 = vmatprep.subr.mxu0 0.0
  %329 = vmatpush1.msra.mxu0 0.0
  %330 = vmatprep.subr.mxu0 0.0
  %331 = vmatpush1.msra.mxu0 0.0
  %332 = vmatprep.subr.mxu0 0.0
  %333 = vmatpush1.msra.mxu0 0.0
  %334 = vmatprep.subr.mxu0 0.0
  %335 = vmatpush1.msra.mxu0 0.0
  %336 = vmatprep.subr.mxu0 0.0
  %337 = vmatpush1.msra.mxu0 0.0
  %338 = vmatprep.subr.mxu0 0.0
  %339 = vmatpush1.msra.mxu0 0.0
  %340 = vmatprep.subr.mxu0 0.0
  %341 = vmatpush1.msra.mxu0 0.0
  %342 = vmatprep.subr.mxu0 0.0
  %343 = vmatpush1.msra.mxu0 0.0
  %344 = vmatprep.subr.mxu0 0.0
  %345 = vmatpush1.msra.mxu0 0.0
  %346 = vmatprep.subr.mxu0 0.0
  %347 = vmatpush1.msra.mxu0 0.0
  %348 = vmatprep.subr.mxu0 0.0
  %349 = vmatpush1.msra.mxu0 0.0
  %350 = vmatprep.subr.mxu0 0.0
  %351 = vmatpush1.msra.mxu0 0.0
  %352 = vmatprep.subr.mxu0 0.0
  %353 = vmatpush1.msra.mxu0 0.0
  %354 = vmatprep.subr.mxu0 0.0
  %355 = vmatpush1.msra.mxu0 0.0
  %356 = vmatprep.subr.mxu0 0.0
  %357 = vmatpush1.msra.mxu0 0.0
  %358 = vmatprep.subr.mxu0 0.0
  %359 = vmatpush1.msra.mxu0 0.0
  %360 = vmatprep.subr.mxu0 0.0
  %361 = vmatpush1.msra.mxu0 0.0
  %362 = vmatprep.subr.mxu0 0.0
  %363 = vmatpush1.msra.mxu0 0.0
  %364 = vmatprep.subr.mxu0 0.0
  %365 = vmatpush1.msra.mxu0 0.0
  %366 = vmatprep.subr.mxu0 0.0
  %367 = vmatpush1.msra.mxu0 0.0
  %368 = vmatprep.subr.mxu0 0.0
  %369 = vmatpush1.msra.mxu0 0.0
  %370 = vmatprep.mubr.f32.mxu0 0.0
  %371 = vmatmul.mubr.f32.gmra.mrb[0].mxu0 %v146
  %v372 = vpop.f32.mrb[0].mxu0
  %v373 = vadd.f32 %v301, %v372
  %v374 = vpop.f32.mrb[0].mxu0
  %375 = vmatprep.mubr.f32.mxu0 0.0
  %376 = vmatmul.mubr.f32.gmra.mrb[0].mxu0 %v149
  %v377 = vpop.f32.mrb[0].mxu0
  %v378 = vadd.f32 %v301, %v377
  %v379 = vpop.f32.mrb[0].mxu0
  %380 = vmatprep.mubr.f32.mxu0 0.0
  %381 = vmatmul.mubr.f32.gmra.mrb[0].mxu0 %v152
  %v382 = vpop.f32.mrb[0].mxu0
  %v383 = vadd.f32 %v301, %v382
  %v384 = vpop.f32.mrb[0].mxu0
  %385 = vmatprep.mubr.f32.mxu0 0.0
  %386 = vmatmul.mubr.f32.gmra.mrb[0].mxu0 %v155
  %v387 = vpop.f32.mrb[0].mxu0
  %v388 = vadd.f32 %v301, %v387
  %v389 = vpop.f32.mrb[0].mxu0
  %390 = vmatprep.mubr.f32.mxu0 0.0
  %391 = vmatmul.mubr.f32.gmra.mrb[0].mxu0 %v158
  %v392 = vpop.f32.mrb[0].mxu0
  %v393 = vadd.f32 %v301, %v392
  %v394 = vpop.f32.mrb[0].mxu0
  %395 = vmatprep.mubr.f32.mxu0 0.0
  %396 = vmatmul.mubr.f32.gmra.mrb[0].mxu0 %v161
  %v397 = vpop.f32.mrb[0].mxu0
  %v398 = vadd.f32 %v301, %v397
  %v399 = vpop.f32.mrb[0].mxu0
  %400 = vmatprep.mubr.f32.mxu0 0.0
  %401 = vmatmul.mubr.f32.gmra.mrb[0].mxu0 %v164
  %v402 = vpop.f32.mrb[0].mxu0
  %v403 = vadd.f32 %v301, %v402
  %v404 = vpop.f32.mrb[0].mxu0
  %405 = vmatprep.mubr.f32.mxu0 0.0
  %406 = vmatmul.mubr.f32.gmra.mrb[0].mxu0 %v167
  %v407 = vpop.f32.mrb[0].mxu0
  %v408 = vadd.f32 %v301, %v407
  %v409 = vpop.f32.mrb[0].mxu0
  %410 = vdwg.mxu0
  %s411 = scalar_lea.vmem %s5, 1
  %v412 = vld [vmem:[%s411] sm:$0x1]
  %v414 = vlaneseq
  %v415 = vshrl.u32 %v414, 7
  %v416 = vsub.s32 0, %v415
  %v417 = vrot.slane %v412, %v416
  %v419 = vadd.f32 %v373, %v417
  %v420 = vadd.f32 %v378, %v417
  %v421 = vadd.f32 %v383, %v417
  %v422 = vadd.f32 %v388, %v417
  %v423 = vadd.f32 %v393, %v417
  %v424 = vadd.f32 %v398, %v417
  %v425 = vadd.f32 %v403, %v417
  %v426 = vadd.f32 %v408, %v417
  %s427 = scalar_lea.vmem %s2, 8
  %v428 = vld [vmem:[%s427] sm:$0xf]
  %s429 = scalar_lea.vmem %s4, 2
  %v430 = vld [vmem:[%s429] sm:$0x1]
  %v432 = vlaneseq
  %v433 = vshrl.u32 %v432, 7
  %v434 = vsub.s32 0, %v433
  %v435 = vrot.slane %v430, %v434
  %v438 = vsel %vm169, %v428, 0
  %440 = vmatprep.subr.mxu0 0.0
  %441 = vmatpush1.msra.mxu0 %v438
  %442 = vmatprep.subr.mxu0 0.0
  %443 = vmatpush1.msra.mxu0 0.0
  %444 = vmatprep.subr.mxu0 0.0
  %445 = vmatpush1.msra.mxu0 0.0
  %446 = vmatprep.subr.mxu0 0.0
  %447 = vmatpush1.msra.mxu0 0.0
  %448 = vmatprep.subr.mxu0 0.0
  %449 = vmatpush1.msra.mxu0 0.0
  %450 = vmatprep.subr.mxu0 0.0
  %451 = vmatpush1.msra.mxu0 0.0
  %452 = vmatprep.subr.mxu0 0.0
  %453 = vmatpush1.msra.mxu0 0.0
  %454 = vmatprep.subr.mxu0 0.0
  %455 = vmatpush1.msra.mxu0 0.0
  %456 = vmatprep.subr.mxu0 0.0
  %457 = vmatpush1.msra.mxu0 0.0
  %458 = vmatprep.subr.mxu0 0.0
  %459 = vmatpush1.msra.mxu0 0.0
  %460 = vmatprep.subr.mxu0 0.0
  %461 = vmatpush1.msra.mxu0 0.0
  %462 = vmatprep.subr.mxu0 0.0
  %463 = vmatpush1.msra.mxu0 0.0
  %464 = vmatprep.subr.mxu0 0.0
  %465 = vmatpush1.msra.mxu0 0.0
  %466 = vmatprep.subr.mxu0 0.0
  %467 = vmatpush1.msra.mxu0 0.0
  %468 = vmatprep.subr.mxu0 0.0
  %469 = vmatpush1.msra.mxu0 0.0
  %470 = vmatprep.subr.mxu0 0.0
  %471 = vmatpush1.msra.mxu0 0.0
  %472 = vmatprep.subr.mxu0 0.0
  %473 = vmatpush1.msra.mxu0 0.0
  %474 = vmatprep.subr.mxu0 0.0
  %475 = vmatpush1.msra.mxu0 0.0
  %476 = vmatprep.subr.mxu0 0.0
  %477 = vmatpush1.msra.mxu0 0.0
  %478 = vmatprep.subr.mxu0 0.0
  %479 = vmatpush1.msra.mxu0 0.0
  %480 = vmatprep.subr.mxu0 0.0
  %481 = vmatpush1.msra.mxu0 0.0
  %482 = vmatprep.subr.mxu0 0.0
  %483 = vmatpush1.msra.mxu0 0.0
  %484 = vmatprep.subr.mxu0 0.0
  %485 = vmatpush1.msra.mxu0 0.0
  %486 = vmatprep.subr.mxu0 0.0
  %487 = vmatpush1.msra.mxu0 0.0
  %488 = vmatprep.subr.mxu0 0.0
  %489 = vmatpush1.msra.mxu0 0.0
  %490 = vmatprep.subr.mxu0 0.0
  %491 = vmatpush1.msra.mxu0 0.0
  %492 = vmatprep.subr.mxu0 0.0
  %493 = vmatpush1.msra.mxu0 0.0
  %494 = vmatprep.subr.mxu0 0.0
  %495 = vmatpush1.msra.mxu0 0.0
  %496 = vmatprep.subr.mxu0 0.0
  %497 = vmatpush1.msra.mxu0 0.0
  %498 = vmatprep.subr.mxu0 0.0
  %499 = vmatpush1.msra.mxu0 0.0
  %500 = vmatprep.subr.mxu0 0.0
  %501 = vmatpush1.msra.mxu0 0.0
  %502 = vmatprep.subr.mxu0 0.0
  %503 = vmatpush1.msra.mxu0 0.0
  %504 = vmatprep.mubr.f32.mxu0 0.0
  %505 = vmatmul.mubr.f32.gmra.mrb[0].mxu0 %v146
  %v506 = vpop.f32.mrb[0].mxu0
  %v507 = vadd.f32 %v435, %v506
  %v508 = vpop.f32.mrb[0].mxu0
  %509 = vmatprep.mubr.f32.mxu0 0.0
  %510 = vmatmul.mubr.f32.gmra.mrb[0].mxu0 %v149
  %v511 = vpop.f32.mrb[0].mxu0
  %v512 = vadd.f32 %v435, %v511
  %v513 = vpop.f32.mrb[0].mxu0
  %514 = vmatprep.mubr.f32.mxu0 0.0
  %515 = vmatmul.mubr.f32.gmra.mrb[0].mxu0 %v152
  %v516 = vpop.f32.mrb[0].mxu0
  %v517 = vadd.f32 %v435, %v516
  %v518 = vpop.f32.mrb[0].mxu0
  %519 = vmatprep.mubr.f32.mxu0 0.0
  %520 = vmatmul.mubr.f32.gmra.mrb[0].mxu0 %v155
  %v521 = vpop.f32.mrb[0].mxu0
  %v522 = vadd.f32 %v435, %v521
  %v523 = vpop.f32.mrb[0].mxu0
  %524 = vmatprep.mubr.f32.mxu0 0.0
  %525 = vmatmul.mubr.f32.gmra.mrb[0].mxu0 %v158
  %v526 = vpop.f32.mrb[0].mxu0
  %v527 = vadd.f32 %v435, %v526
  %v528 = vpop.f32.mrb[0].mxu0
  %529 = vmatprep.mubr.f32.mxu0 0.0
  %530 = vmatmul.mubr.f32.gmra.mrb[0].mxu0 %v161
  %v531 = vpop.f32.mrb[0].mxu0
  %v532 = vadd.f32 %v435, %v531
  %v533 = vpop.f32.mrb[0].mxu0
  %534 = vmatprep.mubr.f32.mxu0 0.0
  %535 = vmatmul.mubr.f32.gmra.mrb[0].mxu0 %v164
  %v536 = vpop.f32.mrb[0].mxu0
  %v537 = vadd.f32 %v435, %v536
  %v538 = vpop.f32.mrb[0].mxu0
  %539 = vmatprep.mubr.f32.mxu0 0.0
  %540 = vmatmul.mubr.f32.gmra.mrb[0].mxu0 %v167
  %v541 = vpop.f32.mrb[0].mxu0
  %v542 = vadd.f32 %v435, %v541
  %v543 = vpop.f32.mrb[0].mxu0
  %544 = vdwg.mxu0
  %vm545 = vcmp.gt.s32.totalorder %v41, 0
  %v546 = vsel %vm545, 1, 0
  %v547 = vcvt.s32.f32 %v546
  %vm548 = vcmask 261120
  %v550 = vsel %vm548, 0.0, 0
  %552 = vmatprep.subr.mxu0 0.0
  %553 = vmatpush1.msra.mxu0 %v42
  %554 = vmatprep.subr.mxu0 0.0
  %555 = vmatpush1.msra.mxu0 %v43
  %556 = vmatprep.subr.mxu0 0.0
  %557 = vmatpush1.msra.mxu0 %v44
  %558 = vmatprep.subr.mxu0 0.0
  %559 = vmatpush1.msra.mxu0 %v45
  %560 = vmatprep.subr.mxu0 0.0
  %561 = vmatpush1.msra.mxu0 0.0
  %562 = vmatprep.subr.mxu0 0.0
  %563 = vmatpush1.msra.mxu0 0.0
  %564 = vmatprep.subr.mxu0 0.0
  %565 = vmatpush1.msra.mxu0 0.0
  %566 = vmatprep.subr.mxu0 0.0
  %567 = vmatpush1.msra.mxu0 0.0
  %568 = vmatprep.subr.mxu0 0.0
  %569 = vmatpush1.msra.mxu0 0.0
  %570 = vmatprep.subr.mxu0 0.0
  %571 = vmatpush1.msra.mxu0 0.0
  %572 = vmatprep.subr.mxu0 0.0
  %573 = vmatpush1.msra.mxu0 0.0
  %574 = vmatprep.subr.mxu0 0.0
  %575 = vmatpush1.msra.mxu0 0.0
  %576 = vmatprep.subr.mxu0 0.0
  %577 = vmatpush1.msra.mxu0 0.0
  %578 = vmatprep.subr.mxu0 0.0
  %579 = vmatpush1.msra.mxu0 0.0
  %580 = vmatprep.subr.mxu0 0.0
  %581 = vmatpush1.msra.mxu0 0.0
  %582 = vmatprep.subr.mxu0 0.0
  %583 = vmatpush1.msra.mxu0 0.0
  %584 = vmatprep.subr.mxu0 0.0
  %585 = vmatpush1.msra.mxu0 0.0
  %586 = vmatprep.subr.mxu0 0.0
  %587 = vmatpush1.msra.mxu0 0.0
  %588 = vmatprep.subr.mxu0 0.0
  %589 = vmatpush1.msra.mxu0 0.0
  %590 = vmatprep.subr.mxu0 0.0
  %591 = vmatpush1.msra.mxu0 0.0
  %592 = vmatprep.subr.mxu0 0.0
  %593 = vmatpush1.msra.mxu0 0.0
  %594 = vmatprep.subr.mxu0 0.0
  %595 = vmatpush1.msra.mxu0 0.0
  %596 = vmatprep.subr.mxu0 0.0
  %597 = vmatpush1.msra.mxu0 0.0
  %598 = vmatprep.subr.mxu0 0.0
  %599 = vmatpush1.msra.mxu0 0.0
  %600 = vmatprep.subr.mxu0 0.0
  %601 = vmatpush1.msra.mxu0 0.0
  %602 = vmatprep.subr.mxu0 0.0
  %603 = vmatpush1.msra.mxu0 0.0
  %604 = vmatprep.subr.mxu0 0.0
  %605 = vmatpush1.msra.mxu0 0.0
  %606 = vmatprep.subr.mxu0 0.0
  %607 = vmatpush1.msra.mxu0 0.0
  %608 = vmatprep.subr.mxu0 0.0
  %609 = vmatpush1.msra.mxu0 0.0
  %610 = vmatprep.subr.mxu0 0.0
  %611 = vmatpush1.msra.mxu0 0.0
  %612 = vmatprep.subr.mxu0 0.0
  %613 = vmatpush1.msra.mxu0 0.0
  %614 = vmatprep.subr.mxu0 0.0
  %615 = vmatpush1.msra.mxu0 0.0
  %616 = vmatprep.mubr.f32.mxu0 0.0
  %617 = vmatmul.mubr.f32.gmra.mrb[0].mxu0 %v550
  %v618 = vpop.f32.mrb[0].mxu0
  %v619 = vadd.f32 0.0, %v618
  %v620 = vpop.f32.mrb[0].mxu0
  %621 = vdwg.mxu0
  %v622 = vadd.f32 %v285, %v619
  %v623 = vxor.u32 %v622, 2147483648
  %v624 = vmul.f32 %v623, 1.442695
  %v625 = vpow.pop %v624
  %v626 = vadd.f32 %v625, 1.0
  %v627 = vrcp.pop %v626
  %v628 = vmul.f32 1.0, %v627
  %629 = vmatprep.subr.mxu0 0.0
  %630 = vmatpush1.msra.mxu0 %v47
  %631 = vmatprep.subr.mxu0 0.0
  %632 = vmatpush1.msra.mxu0 %v48
  %633 = vmatprep.subr.mxu0 0.0
  %634 = vmatpush1.msra.mxu0 %v49
  %635 = vmatprep.subr.mxu0 0.0
  %636 = vmatpush1.msra.mxu0 %v50
  %637 = vmatprep.subr.mxu0 0.0
  %638 = vmatpush1.msra.mxu0 0.0
  %639 = vmatprep.subr.mxu0 0.0
  %640 = vmatpush1.msra.mxu0 0.0
  %641 = vmatprep.subr.mxu0 0.0
  %642 = vmatpush1.msra.mxu0 0.0
  %643 = vmatprep.subr.mxu0 0.0
  %644 = vmatpush1.msra.mxu0 0.0
  %645 = vmatprep.subr.mxu0 0.0
  %646 = vmatpush1.msra.mxu0 0.0
  %647 = vmatprep.subr.mxu0 0.0
  %648 = vmatpush1.msra.mxu0 0.0
  %649 = vmatprep.subr.mxu0 0.0
  %650 = vmatpush1.msra.mxu0 0.0
  %651 = vmatprep.subr.mxu0 0.0
  %652 = vmatpush1.msra.mxu0 0.0
  %653 = vmatprep.subr.mxu0 0.0
  %654 = vmatpush1.msra.mxu0 0.0
  %655 = vmatprep.subr.mxu0 0.0
  %656 = vmatpush1.msra.mxu0 0.0
  %657 = vmatprep.subr.mxu0 0.0
  %658 = vmatpush1.msra.mxu0 0.0
  %659 = vmatprep.subr.mxu0 0.0
  %660 = vmatpush1.msra.mxu0 0.0
  %661 = vmatprep.subr.mxu0 0.0
  %662 = vmatpush1.msra.mxu0 0.0
  %663 = vmatprep.subr.mxu0 0.0
  %664 = vmatpush1.msra.mxu0 0.0
  %665 = vmatprep.subr.mxu0 0.0
  %666 = vmatpush1.msra.mxu0 0.0
  %667 = vmatprep.subr.mxu0 0.0
  %668 = vmatpush1.msra.mxu0 0.0
  %669 = vmatprep.subr.mxu0 0.0
  %670 = vmatpush1.msra.mxu0 0.0
  %671 = vmatprep.subr.mxu0 0.0
  %672 = vmatpush1.msra.mxu0 0.0
  %673 = vmatprep.subr.mxu0 0.0
  %674 = vmatpush1.msra.mxu0 0.0
  %675 = vmatprep.subr.mxu0 0.0
  %676 = vmatpush1.msra.mxu0 0.0
  %677 = vmatprep.subr.mxu0 0.0
  %678 = vmatpush1.msra.mxu0 0.0
  %679 = vmatprep.subr.mxu0 0.0
  %680 = vmatpush1.msra.mxu0 0.0
  %681 = vmatprep.subr.mxu0 0.0
  %682 = vmatpush1.msra.mxu0 0.0
  %683 = vmatprep.subr.mxu0 0.0
  %684 = vmatpush1.msra.mxu0 0.0
  %685 = vmatprep.subr.mxu0 0.0
  %686 = vmatpush1.msra.mxu0 0.0
  %687 = vmatprep.subr.mxu0 0.0
  %688 = vmatpush1.msra.mxu0 0.0
  %689 = vmatprep.subr.mxu0 0.0
  %690 = vmatpush1.msra.mxu0 0.0
  %691 = vmatprep.subr.mxu0 0.0
  %692 = vmatpush1.msra.mxu0 0.0
  %693 = vmatprep.mubr.f32.mxu0 0.0
  %694 = vmatmul.mubr.f32.gmra.mrb[0].mxu0 %v550
  %v695 = vpop.f32.mrb[0].mxu0
  %v696 = vadd.f32 0.0, %v695
  %v697 = vpop.f32.mrb[0].mxu0
  %698 = vdwg.mxu0
  %v699 = vadd.f32 %v419, %v696
  %v700 = vxor.u32 %v699, 2147483648
  %v701 = vmul.f32 %v700, 1.442695
  %v702 = vpow.pop %v701
  %v703 = vadd.f32 %v702, 1.0
  %v704 = vrcp.pop %v703
  %v705 = vmul.f32 1.0, %v704
  %706 = vmatprep.subr.mxu0 0.0
  %707 = vmatpush1.msra.mxu0 %v52
  %708 = vmatprep.subr.mxu0 0.0
  %709 = vmatpush1.msra.mxu0 %v53
  %710 = vmatprep.subr.mxu0 0.0
  %711 = vmatpush1.msra.mxu0 %v54
  %712 = vmatprep.subr.mxu0 0.0
  %713 = vmatpush1.msra.mxu0 %v55
  %714 = vmatprep.subr.mxu0 0.0
  %715 = vmatpush1.msra.mxu0 0.0
  %716 = vmatprep.subr.mxu0 0.0
  %717 = vmatpush1.msra.mxu0 0.0
  %718 = vmatprep.subr.mxu0 0.0
  %719 = vmatpush1.msra.mxu0 0.0
  %720 = vmatprep.subr.mxu0 0.0
  %721 = vmatpush1.msra.mxu0 0.0
  %722 = vmatprep.subr.mxu0 0.0
  %723 = vmatpush1.msra.mxu0 0.0
  %724 = vmatprep.subr.mxu0 0.0
  %725 = vmatpush1.msra.mxu0 0.0
  %726 = vmatprep.subr.mxu0 0.0
  %727 = vmatpush1.msra.mxu0 0.0
  %728 = vmatprep.subr.mxu0 0.0
  %729 = vmatpush1.msra.mxu0 0.0
  %730 = vmatprep.subr.mxu0 0.0
  %731 = vmatpush1.msra.mxu0 0.0
  %732 = vmatprep.subr.mxu0 0.0
  %733 = vmatpush1.msra.mxu0 0.0
  %734 = vmatprep.subr.mxu0 0.0
  %735 = vmatpush1.msra.mxu0 0.0
  %736 = vmatprep.subr.mxu0 0.0
  %737 = vmatpush1.msra.mxu0 0.0
  %738 = vmatprep.subr.mxu0 0.0
  %739 = vmatpush1.msra.mxu0 0.0
  %740 = vmatprep.subr.mxu0 0.0
  %741 = vmatpush1.msra.mxu0 0.0
  %742 = vmatprep.subr.mxu0 0.0
  %743 = vmatpush1.msra.mxu0 0.0
  %744 = vmatprep.subr.mxu0 0.0
  %745 = vmatpush1.msra.mxu0 0.0
  %746 = vmatprep.subr.mxu0 0.0
  %747 = vmatpush1.msra.mxu0 0.0
  %748 = vmatprep.subr.mxu0 0.0
  %749 = vmatpush1.msra.mxu0 0.0
  %750 = vmatprep.subr.mxu0 0.0
  %751 = vmatpush1.msra.mxu0 0.0
  %752 = vmatprep.subr.mxu0 0.0
  %753 = vmatpush1.msra.mxu0 0.0
  %754 = vmatprep.subr.mxu0 0.0
  %755 = vmatpush1.msra.mxu0 0.0
  %756 = vmatprep.subr.mxu0 0.0
  %757 = vmatpush1.msra.mxu0 0.0
  %758 = vmatprep.subr.mxu0 0.0
  %759 = vmatpush1.msra.mxu0 0.0
  %760 = vmatprep.subr.mxu0 0.0
  %761 = vmatpush1.msra.mxu0 0.0
  %762 = vmatprep.subr.mxu0 0.0
  %763 = vmatpush1.msra.mxu0 0.0
  %764 = vmatprep.subr.mxu0 0.0
  %765 = vmatpush1.msra.mxu0 0.0
  %766 = vmatprep.subr.mxu0 0.0
  %767 = vmatpush1.msra.mxu0 0.0
  %768 = vmatprep.subr.mxu0 0.0
  %769 = vmatpush1.msra.mxu0 0.0
  %770 = vmatprep.mubr.f32.mxu0 0.0
  %771 = vmatmul.mubr.f32.gmra.mrb[0].mxu0 %v550
  %v772 = vpop.f32.mrb[0].mxu0
  %v773 = vadd.f32 %v90, %v772
  %v774 = vpop.f32.mrb[0].mxu0
  %775 = vdwg.mxu0
  %v776 = vmul.f32 %v628, %v773
  %v777 = vadd.f32 %v507, %v776
  %v778 = vtanh.pop %v777
  %v779 = vsub.f32 1.0, %v705
  %v780 = vmul.f32 %v779, %v778
  %v781 = vmul.f32 %v705, 0.0
  %v782 = vadd.f32 %v780, %v781
  %783 = vmatprep.subr.mxu0 0.0
  %784 = vmatpush1.msra.mxu0 %v70
  %785 = vmatprep.subr.mxu0 0.0
  %786 = vmatpush1.msra.mxu0 %v71
  %787 = vmatprep.subr.mxu0 0.0
  %788 = vmatpush1.msra.mxu0 %v72
  %789 = vmatprep.subr.mxu0 0.0
  %790 = vmatpush1.msra.mxu0 %v73
  %791 = vmatprep.subr.mxu0 0.0
  %792 = vmatpush1.msra.mxu0 0.0
  %793 = vmatprep.subr.mxu0 0.0
  %794 = vmatpush1.msra.mxu0 0.0
  %795 = vmatprep.subr.mxu0 0.0
  %796 = vmatpush1.msra.mxu0 0.0
  %797 = vmatprep.subr.mxu0 0.0
  %798 = vmatpush1.msra.mxu0 0.0
  %799 = vmatprep.subr.mxu0 0.0
  %800 = vmatpush1.msra.mxu0 0.0
  %801 = vmatprep.subr.mxu0 0.0
  %802 = vmatpush1.msra.mxu0 0.0
  %803 = vmatprep.subr.mxu0 0.0
  %804 = vmatpush1.msra.mxu0 0.0
  %805 = vmatprep.subr.mxu0 0.0
  %806 = vmatpush1.msra.mxu0 0.0
  %807 = vmatprep.subr.mxu0 0.0
  %808 = vmatpush1.msra.mxu0 0.0
  %809 = vmatprep.subr.mxu0 0.0
  %810 = vmatpush1.msra.mxu0 0.0
  %811 = vmatprep.subr.mxu0 0.0
  %812 = vmatpush1.msra.mxu0 0.0
  %813 = vmatprep.subr.mxu0 0.0
  %814 = vmatpush1.msra.mxu0 0.0
  %815 = vmatprep.subr.mxu0 0.0
  %816 = vmatpush1.msra.mxu0 0.0
  %817 = vmatprep.subr.mxu0 0.0
  %818 = vmatpush1.msra.mxu0 0.0
  %819 = vmatprep.subr.mxu0 0.0
  %820 = vmatpush1.msra.mxu0 0.0
  %821 = vmatprep.subr.mxu0 0.0
  %822 = vmatpush1.msra.mxu0 0.0
  %823 = vmatprep.subr.mxu0 0.0
  %824 = vmatpush1.msra.mxu0 0.0
  %825 = vmatprep.subr.mxu0 0.0
  %826 = vmatpush1.msra.mxu0 0.0
  %827 = vmatprep.subr.mxu0 0.0
  %828 = vmatpush1.msra.mxu0 0.0
  %829 = vmatprep.subr.mxu0 0.0
  %830 = vmatpush1.msra.mxu0 0.0
  %831 = vmatprep.subr.mxu0 0.0
  %832 = vmatpush1.msra.mxu0 0.0
  %833 = vmatprep.subr.mxu0 0.0
  %834 = vmatpush1.msra.mxu0 0.0
  %835 = vmatprep.subr.mxu0 0.0
  %836 = vmatpush1.msra.mxu0 0.0
  %837 = vmatprep.subr.mxu0 0.0
  %838 = vmatpush1.msra.mxu0 0.0
  %839 = vmatprep.subr.mxu0 0.0
  %840 = vmatpush1.msra.mxu0 0.0
  %841 = vmatprep.subr.mxu0 0.0
  %842 = vmatpush1.msra.mxu0 0.0
  %843 = vmatprep.subr.mxu0 0.0
  %844 = vmatpush1.msra.mxu0 0.0
  %845 = vmatprep.subr.mxu0 0.0
  %846 = vmatpush1.msra.mxu0 0.0
  %847 = vmatprep.mubr.f32.mxu0 0.0
  %848 = vmatmul.mubr.f32.gmra.mrb[0].mxu0 %v550
  %v849 = vpop.f32.mrb[0].mxu0
  %v850 = vadd.f32 0.0, %v849
  %v851 = vpop.f32.mrb[0].mxu0
  %852 = vdwg.mxu0
  %v854 = vsel %vm548, %v782, 0
  %856 = vmatprep.subr.mxu0 0.0
  %857 = vmatpush1.msra.mxu0 %v56
  %858 = vmatprep.subr.mxu0 0.0
  %859 = vmatpush1.msra.mxu0 %v57
  %860 = vmatprep.subr.mxu0 0.0
  %861 = vmatpush1.msra.mxu0 %v58
  %862 = vmatprep.subr.mxu0 0.0
  %863 = vmatpush1.msra.mxu0 %v59
  %864 = vmatprep.subr.mxu0 0.0
  %865 = vmatpush1.msra.mxu0 0.0
  %866 = vmatprep.subr.mxu0 0.0
  %867 = vmatpush1.msra.mxu0 0.0
  %868 = vmatprep.subr.mxu0 0.0
  %869 = vmatpush1.msra.mxu0 0.0
  %870 = vmatprep.subr.mxu0 0.0
  %871 = vmatpush1.msra.mxu0 0.0
  %872 = vmatprep.subr.mxu0 0.0
  %873 = vmatpush1.msra.mxu0 0.0
  %874 = vmatprep.subr.mxu0 0.0
  %875 = vmatpush1.msra.mxu0 0.0
  %876 = vmatprep.subr.mxu0 0.0
  %877 = vmatpush1.msra.mxu0 0.0
  %878 = vmatprep.subr.mxu0 0.0
  %879 = vmatpush1.msra.mxu0 0.0
  %880 = vmatprep.subr.mxu0 0.0
  %881 = vmatpush1.msra.mxu0 0.0
  %882 = vmatprep.subr.mxu0 0.0
  %883 = vmatpush1.msra.mxu0 0.0
  %884 = vmatprep.subr.mxu0 0.0
  %885 = vmatpush1.msra.mxu0 0.0
  %886 = vmatprep.subr.mxu0 0.0
  %887 = vmatpush1.msra.mxu0 0.0
  %888 = vmatprep.subr.mxu0 0.0
  %889 = vmatpush1.msra.mxu0 0.0
  %890 = vmatprep.subr.mxu0 0.0
  %891 = vmatpush1.msra.mxu0 0.0
  %892 = vmatprep.subr.mxu0 0.0
  %893 = vmatpush1.msra.mxu0 0.0
  %894 = vmatprep.subr.mxu0 0.0
  %895 = vmatpush1.msra.mxu0 0.0
  %896 = vmatprep.subr.mxu0 0.0
  %897 = vmatpush1.msra.mxu0 0.0
  %898 = vmatprep.subr.mxu0 0.0
  %899 = vmatpush1.msra.mxu0 0.0
  %900 = vmatprep.subr.mxu0 0.0
  %901 = vmatpush1.msra.mxu0 0.0
  %902 = vmatprep.subr.mxu0 0.0
  %903 = vmatpush1.msra.mxu0 0.0
  %904 = vmatprep.subr.mxu0 0.0
  %905 = vmatpush1.msra.mxu0 0.0
  %906 = vmatprep.subr.mxu0 0.0
  %907 = vmatpush1.msra.mxu0 0.0
  %908 = vmatprep.subr.mxu0 0.0
  %909 = vmatpush1.msra.mxu0 0.0
  %910 = vmatprep.subr.mxu0 0.0
  %911 = vmatpush1.msra.mxu0 0.0
  %912 = vmatprep.subr.mxu0 0.0
  %913 = vmatpush1.msra.mxu0 0.0
  %914 = vmatprep.subr.mxu0 0.0
  %915 = vmatpush1.msra.mxu0 0.0
  %916 = vmatprep.subr.mxu0 0.0
  %917 = vmatpush1.msra.mxu0 0.0
  %918 = vmatprep.subr.mxu0 0.0
  %919 = vmatpush1.msra.mxu0 0.0
  %920 = vmatprep.mubr.f32.mxu0 0.0
  %921 = vmatmul.mubr.f32.gmra.mrb[0].mxu0 %v854
  %v922 = vpop.f32.mrb[0].mxu0
  %v923 = vadd.f32 %v850, %v922
  %v924 = vpop.f32.mrb[0].mxu0
  %925 = vdwg.mxu0
  %v926 = vadd.f32 %v923, %v99
  %v927 = vxor.u32 %v926, 2147483648
  %v928 = vmul.f32 %v927, 1.442695
  %v929 = vpow.pop %v928
  %v930 = vadd.f32 %v929, 1.0
  %v931 = vrcp.pop %v930
  %v932 = vmul.f32 1.0, %v931
  %933 = vmatprep.subr.mxu0 0.0
  %934 = vmatpush1.msra.mxu0 %v75
  %935 = vmatprep.subr.mxu0 0.0
  %936 = vmatpush1.msra.mxu0 %v76
  %937 = vmatprep.subr.mxu0 0.0
  %938 = vmatpush1.msra.mxu0 %v77
  %939 = vmatprep.subr.mxu0 0.0
  %940 = vmatpush1.msra.mxu0 %v78
  %941 = vmatprep.subr.mxu0 0.0
  %942 = vmatpush1.msra.mxu0 0.0
  %943 = vmatprep.subr.mxu0 0.0
  %944 = vmatpush1.msra.mxu0 0.0
  %945 = vmatprep.subr.mxu0 0.0
  %946 = vmatpush1.msra.mxu0 0.0
  %947 = vmatprep.subr.mxu0 0.0
  %948 = vmatpush1.msra.mxu0 0.0
  %949 = vmatprep.subr.mxu0 0.0
  %950 = vmatpush1.msra.mxu0 0.0
  %951 = vmatprep.subr.mxu0 0.0
  %952 = vmatpush1.msra.mxu0 0.0
  %953 = vmatprep.subr.mxu0 0.0
  %954 = vmatpush1.msra.mxu0 0.0
  %955 = vmatprep.subr.mxu0 0.0
  %956 = vmatpush1.msra.mxu0 0.0
  %957 = vmatprep.subr.mxu0 0.0
  %958 = vmatpush1.msra.mxu0 0.0
  %959 = vmatprep.subr.mxu0 0.0
  %960 = vmatpush1.msra.mxu0 0.0
  %961 = vmatprep.subr.mxu0 0.0
  %962 = vmatpush1.msra.mxu0 0.0
  %963 = vmatprep.subr.mxu0 0.0
  %964 = vmatpush1.msra.mxu0 0.0
  %965 = vmatprep.subr.mxu0 0.0
  %966 = vmatpush1.msra.mxu0 0.0
  %967 = vmatprep.subr.mxu0 0.0
  %968 = vmatpush1.msra.mxu0 0.0
  %969 = vmatprep.subr.mxu0 0.0
  %970 = vmatpush1.msra.mxu0 0.0
  %971 = vmatprep.subr.mxu0 0.0
  %972 = vmatpush1.msra.mxu0 0.0
  %973 = vmatprep.subr.mxu0 0.0
  %974 = vmatpush1.msra.mxu0 0.0
  %975 = vmatprep.subr.mxu0 0.0
  %976 = vmatpush1.msra.mxu0 0.0
  %977 = vmatprep.subr.mxu0 0.0
  %978 = vmatpush1.msra.mxu0 0.0
  %979 = vmatprep.subr.mxu0 0.0
  %980 = vmatpush1.msra.mxu0 0.0
  %981 = vmatprep.subr.mxu0 0.0
  %982 = vmatpush1.msra.mxu0 0.0
  %983 = vmatprep.subr.mxu0 0.0
  %984 = vmatpush1.msra.mxu0 0.0
  %985 = vmatprep.subr.mxu0 0.0
  %986 = vmatpush1.msra.mxu0 0.0
  %987 = vmatprep.subr.mxu0 0.0
  %988 = vmatpush1.msra.mxu0 0.0
  %989 = vmatprep.subr.mxu0 0.0
  %990 = vmatpush1.msra.mxu0 0.0
  %991 = vmatprep.subr.mxu0 0.0
  %992 = vmatpush1.msra.mxu0 0.0
  %993 = vmatprep.subr.mxu0 0.0
  %994 = vmatpush1.msra.mxu0 0.0
  %995 = vmatprep.subr.mxu0 0.0
  %996 = vmatpush1.msra.mxu0 0.0
  %997 = vmatprep.mubr.f32.mxu0 0.0
  %998 = vmatmul.mubr.f32.gmra.mrb[0].mxu0 %v550
  %v999 = vpop.f32.mrb[0].mxu0
  %v1000 = vadd.f32 0.0, %v999
  %v1001 = vpop.f32.mrb[0].mxu0
  %1002 = vdwg.mxu0
  %1003 = vmatprep.subr.mxu0 0.0
  %1004 = vmatpush1.msra.mxu0 %v61
  %1005 = vmatprep.subr.mxu0 0.0
  %1006 = vmatpush1.msra.mxu0 %v62
  %1007 = vmatprep.subr.mxu0 0.0
  %1008 = vmatpush1.msra.mxu0 %v63
  %1009 = vmatprep.subr.mxu0 0.0
  %1010 = vmatpush1.msra.mxu0 %v64
  %1011 = vmatprep.subr.mxu0 0.0
  %1012 = vmatpush1.msra.mxu0 0.0
  %1013 = vmatprep.subr.mxu0 0.0
  %1014 = vmatpush1.msra.mxu0 0.0
  %1015 = vmatprep.subr.mxu0 0.0
  %1016 = vmatpush1.msra.mxu0 0.0
  %1017 = vmatprep.subr.mxu0 0.0
  %1018 = vmatpush1.msra.mxu0 0.0
  %1019 = vmatprep.subr.mxu0 0.0
  %1020 = vmatpush1.msra.mxu0 0.0
  %1021 = vmatprep.subr.mxu0 0.0
  %1022 = vmatpush1.msra.mxu0 0.0
  %1023 = vmatprep.subr.mxu0 0.0
  %1024 = vmatpush1.msra.mxu0 0.0
  %1025 = vmatprep.subr.mxu0 0.0
  %1026 = vmatpush1.msra.mxu0 0.0
  %1027 = vmatprep.subr.mxu0 0.0
  %1028 = vmatpush1.msra.mxu0 0.0
  %1029 = vmatprep.subr.mxu0 0.0
  %1030 = vmatpush1.msra.mxu0 0.0
  %1031 = vmatprep.subr.mxu0 0.0
  %1032 = vmatpush1.msra.mxu0 0.0
  %1033 = vmatprep.subr.mxu0 0.0
  %1034 = vmatpush1.msra.mxu0 0.0
  %1035 = vmatprep.subr.mxu0 0.0
  %1036 = vmatpush1.msra.mxu0 0.0
  %1037 = vmatprep.subr.mxu0 0.0
  %1038 = vmatpush1.msra.mxu0 0.0
  %1039 = vmatprep.subr.mxu0 0.0
  %1040 = vmatpush1.msra.mxu0 0.0
  %1041 = vmatprep.subr.mxu0 0.0
  %1042 = vmatpush1.msra.mxu0 0.0
  %1043 = vmatprep.subr.mxu0 0.0
  %1044 = vmatpush1.msra.mxu0 0.0
  %1045 = vmatprep.subr.mxu0 0.0
  %1046 = vmatpush1.msra.mxu0 0.0
  %1047 = vmatprep.subr.mxu0 0.0
  %1048 = vmatpush1.msra.mxu0 0.0
  %1049 = vmatprep.subr.mxu0 0.0
  %1050 = vmatpush1.msra.mxu0 0.0
  %1051 = vmatprep.subr.mxu0 0.0
  %1052 = vmatpush1.msra.mxu0 0.0
  %1053 = vmatprep.subr.mxu0 0.0
  %1054 = vmatpush1.msra.mxu0 0.0
  %1055 = vmatprep.subr.mxu0 0.0
  %1056 = vmatpush1.msra.mxu0 0.0
  %1057 = vmatprep.subr.mxu0 0.0
  %1058 = vmatpush1.msra.mxu0 0.0
  %1059 = vmatprep.subr.mxu0 0.0
  %1060 = vmatpush1.msra.mxu0 0.0
  %1061 = vmatprep.subr.mxu0 0.0
  %1062 = vmatpush1.msra.mxu0 0.0
  %1063 = vmatprep.subr.mxu0 0.0
  %1064 = vmatpush1.msra.mxu0 0.0
  %1065 = vmatprep.subr.mxu0 0.0
  %1066 = vmatpush1.msra.mxu0 0.0
  %1067 = vmatprep.mubr.f32.mxu0 0.0
  %1068 = vmatmul.mubr.f32.gmra.mrb[0].mxu0 %v854
  %v1069 = vpop.f32.mrb[0].mxu0
  %v1070 = vadd.f32 %v1000, %v1069
  %v1071 = vpop.f32.mrb[0].mxu0
  %1072 = vdwg.mxu0
  %v1073 = vadd.f32 %v1070, %v110
  %v1074 = vxor.u32 %v1073, 2147483648
  %v1075 = vmul.f32 %v1074, 1.442695
  %v1076 = vpow.pop %v1075
  %v1077 = vadd.f32 %v1076, 1.0
  %v1078 = vrcp.pop %v1077
  %v1079 = vmul.f32 1.0, %v1078
  %1080 = vmatprep.subr.mxu0 0.0
  %1081 = vmatpush1.msra.mxu0 %v66
  %1082 = vmatprep.subr.mxu0 0.0
  %1083 = vmatpush1.msra.mxu0 %v67
  %1084 = vmatprep.subr.mxu0 0.0
  %1085 = vmatpush1.msra.mxu0 %v68
  %1086 = vmatprep.subr.mxu0 0.0
  %1087 = vmatpush1.msra.mxu0 %v69
  %1088 = vmatprep.subr.mxu0 0.0
  %1089 = vmatpush1.msra.mxu0 0.0
  %1090 = vmatprep.subr.mxu0 0.0
  %1091 = vmatpush1.msra.mxu0 0.0
  %1092 = vmatprep.subr.mxu0 0.0
  %1093 = vmatpush1.msra.mxu0 0.0
  %1094 = vmatprep.subr.mxu0 0.0
  %1095 = vmatpush1.msra.mxu0 0.0
  %1096 = vmatprep.subr.mxu0 0.0
  %1097 = vmatpush1.msra.mxu0 0.0
  %1098 = vmatprep.subr.mxu0 0.0
  %1099 = vmatpush1.msra.mxu0 0.0
  %1100 = vmatprep.subr.mxu0 0.0
  %1101 = vmatpush1.msra.mxu0 0.0
  %1102 = vmatprep.subr.mxu0 0.0
  %1103 = vmatpush1.msra.mxu0 0.0
  %1104 = vmatprep.subr.mxu0 0.0
  %1105 = vmatpush1.msra.mxu0 0.0
  %1106 = vmatprep.subr.mxu0 0.0
  %1107 = vmatpush1.msra.mxu0 0.0
  %1108 = vmatprep.subr.mxu0 0.0
  %1109 = vmatpush1.msra.mxu0 0.0
  %1110 = vmatprep.subr.mxu0 0.0
  %1111 = vmatpush1.msra.mxu0 0.0
  %1112 = vmatprep.subr.mxu0 0.0
  %1113 = vmatpush1.msra.mxu0 0.0
  %1114 = vmatprep.subr.mxu0 0.0
  %1115 = vmatpush1.msra.mxu0 0.0
  %1116 = vmatprep.subr.mxu0 0.0
  %1117 = vmatpush1.msra.mxu0 0.0
  %1118 = vmatprep.subr.mxu0 0.0
  %1119 = vmatpush1.msra.mxu0 0.0
  %1120 = vmatprep.subr.mxu0 0.0
  %1121 = vmatpush1.msra.mxu0 0.0
  %1122 = vmatprep.subr.mxu0 0.0
  %1123 = vmatpush1.msra.mxu0 0.0
  %1124 = vmatprep.subr.mxu0 0.0
  %1125 = vmatpush1.msra.mxu0 0.0
  %1126 = vmatprep.subr.mxu0 0.0
  %1127 = vmatpush1.msra.mxu0 0.0
  %1128 = vmatprep.subr.mxu0 0.0
  %1129 = vmatpush1.msra.mxu0 0.0
  %1130 = vmatprep.subr.mxu0 0.0
  %1131 = vmatpush1.msra.mxu0 0.0
  %1132 = vmatprep.subr.mxu0 0.0
  %1133 = vmatpush1.msra.mxu0 0.0
  %1134 = vmatprep.subr.mxu0 0.0
  %1135 = vmatpush1.msra.mxu0 0.0
  %1136 = vmatprep.subr.mxu0 0.0
  %1137 = vmatpush1.msra.mxu0 0.0
  %1138 = vmatprep.subr.mxu0 0.0
  %1139 = vmatpush1.msra.mxu0 0.0
  %1140 = vmatprep.subr.mxu0 0.0
  %1141 = vmatpush1.msra.mxu0 0.0
  %1142 = vmatprep.subr.mxu0 0.0
  %1143 = vmatpush1.msra.mxu0 0.0
  %1144 = vmatprep.mubr.f32.mxu0 0.0
  %1145 = vmatmul.mubr.f32.gmra.mrb[0].mxu0 %v854
  %v1146 = vpop.f32.mrb[0].mxu0
  %v1147 = vadd.f32 %v118, %v1146
  %v1148 = vpop.f32.mrb[0].mxu0
  %1149 = vdwg.mxu0
  %1150 = vmatprep.subr.mxu0 0.0
  %1151 = vmatpush1.msra.mxu0 %v80
  %1152 = vmatprep.subr.mxu0 0.0
  %1153 = vmatpush1.msra.mxu0 %v81
  %1154 = vmatprep.subr.mxu0 0.0
  %1155 = vmatpush1.msra.mxu0 %v82
  %1156 = vmatprep.subr.mxu0 0.0
  %1157 = vmatpush1.msra.mxu0 %v83
  %1158 = vmatprep.subr.mxu0 0.0
  %1159 = vmatpush1.msra.mxu0 0.0
  %1160 = vmatprep.subr.mxu0 0.0
  %1161 = vmatpush1.msra.mxu0 0.0
  %1162 = vmatprep.subr.mxu0 0.0
  %1163 = vmatpush1.msra.mxu0 0.0
  %1164 = vmatprep.subr.mxu0 0.0
  %1165 = vmatpush1.msra.mxu0 0.0
  %1166 = vmatprep.subr.mxu0 0.0
  %1167 = vmatpush1.msra.mxu0 0.0
  %1168 = vmatprep.subr.mxu0 0.0
  %1169 = vmatpush1.msra.mxu0 0.0
  %1170 = vmatprep.subr.mxu0 0.0
  %1171 = vmatpush1.msra.mxu0 0.0
  %1172 = vmatprep.subr.mxu0 0.0
  %1173 = vmatpush1.msra.mxu0 0.0
  %1174 = vmatprep.subr.mxu0 0.0
  %1175 = vmatpush1.msra.mxu0 0.0
  %1176 = vmatprep.subr.mxu0 0.0
  %1177 = vmatpush1.msra.mxu0 0.0
  %1178 = vmatprep.subr.mxu0 0.0
  %1179 = vmatpush1.msra.mxu0 0.0
  %1180 = vmatprep.subr.mxu0 0.0
  %1181 = vmatpush1.msra.mxu0 0.0
  %1182 = vmatprep.subr.mxu0 0.0
  %1183 = vmatpush1.msra.mxu0 0.0
  %1184 = vmatprep.subr.mxu0 0.0
  %1185 = vmatpush1.msra.mxu0 0.0
  %1186 = vmatprep.subr.mxu0 0.0
  %1187 = vmatpush1.msra.mxu0 0.0
  %1188 = vmatprep.subr.mxu0 0.0
  %1189 = vmatpush1.msra.mxu0 0.0
  %1190 = vmatprep.subr.mxu0 0.0
  %1191 = vmatpush1.msra.mxu0 0.0
  %1192 = vmatprep.subr.mxu0 0.0
  %1193 = vmatpush1.msra.mxu0 0.0
  %1194 = vmatprep.subr.mxu0 0.0
  %1195 = vmatpush1.msra.mxu0 0.0
  %1196 = vmatprep.subr.mxu0 0.0
  %1197 = vmatpush1.msra.mxu0 0.0
  %1198 = vmatprep.subr.mxu0 0.0
  %1199 = vmatpush1.msra.mxu0 0.0
  %1200 = vmatprep.subr.mxu0 0.0
  %1201 = vmatpush1.msra.mxu0 0.0
  %1202 = vmatprep.subr.mxu0 0.0
  %1203 = vmatpush1.msra.mxu0 0.0
  %1204 = vmatprep.subr.mxu0 0.0
  %1205 = vmatpush1.msra.mxu0 0.0
  %1206 = vmatprep.subr.mxu0 0.0
  %1207 = vmatpush1.msra.mxu0 0.0
  %1208 = vmatprep.subr.mxu0 0.0
  %1209 = vmatpush1.msra.mxu0 0.0
  %1210 = vmatprep.subr.mxu0 0.0
  %1211 = vmatpush1.msra.mxu0 0.0
  %1212 = vmatprep.subr.mxu0 0.0
  %1213 = vmatpush1.msra.mxu0 0.0
  %1214 = vmatprep.mubr.f32.mxu0 0.0
  %1215 = vmatmul.mubr.f32.gmra.mrb[0].mxu0 %v550
  %v1216 = vpop.f32.mrb[0].mxu0
  %v1217 = vadd.f32 %v126, %v1216
  %v1218 = vpop.f32.mrb[0].mxu0
  %1219 = vdwg.mxu0
  %v1220 = vmul.f32 %v932, %v1217
  %v1221 = vadd.f32 %v1147, %v1220
  %v1222 = vtanh.pop %v1221
  %v1223 = vsub.f32 1.0, %v1079
  %v1224 = vmul.f32 %v1223, %v1222
  %v1225 = vmul.f32 %v1079, 0.0
  %v1226 = vadd.f32 %v1224, %v1225
  %1228 = vset.pattern.permute.xlu0 0
  %1229 = vperm.xlu0 %1228, %v547
  %v1230 = vpop.permute.xlu0 %1229
  %v1232 = vmul.f32 %v1230, %v782
  %v1233 = vadd.f32 %v1232, 0.0
  %v1234 = vmul.f32 %v1230, %v1226
  %v1235 = vadd.f32 %v1234, 0.0
  %vm1236 = vcmp.gt.s32.totalorder %v41, 1
  %v1237 = vsel %vm1236, 1, 0
  %v1238 = vcvt.s32.f32 %v1237
  %v1240 = vsel %vm548, %v1233, 0
  %1242 = vmatprep.subr.mxu0 0.0
  %1243 = vmatpush1.msra.mxu0 %v42
  %1244 = vmatprep.subr.mxu0 0.0
  %1245 = vmatpush1.msra.mxu0 %v43
  %1246 = vmatprep.subr.mxu0 0.0
  %1247 = vmatpush1.msra.mxu0 %v44
  %1248 = vmatprep.subr.mxu0 0.0
  %1249 = vmatpush1.msra.mxu0 %v45
  %1250 = vmatprep.subr.mxu0 0.0
  %1251 = vmatpush1.msra.mxu0 0.0
  %1252 = vmatprep.subr.mxu0 0.0
  %1253 = vmatpush1.msra.mxu0 0.0
  %1254 = vmatprep.subr.mxu0 0.0
  %1255 = vmatpush1.msra.mxu0 0.0
  %1256 = vmatprep.subr.mxu0 0.0
  %1257 = vmatpush1.msra.mxu0 0.0
  %1258 = vmatprep.subr.mxu0 0.0
  %1259 = vmatpush1.msra.mxu0 0.0
  %1260 = vmatprep.subr.mxu0 0.0
  %1261 = vmatpush1.msra.mxu0 0.0
  %1262 = vmatprep.subr.mxu0 0.0
  %1263 = vmatpush1.msra.mxu0 0.0
  %1264 = vmatprep.subr.mxu0 0.0
  %1265 = vmatpush1.msra.mxu0 0.0
  %1266 = vmatprep.subr.mxu0 0.0
  %1267 = vmatpush1.msra.mxu0 0.0
  %1268 = vmatprep.subr.mxu0 0.0
  %1269 = vmatpush1.msra.mxu0 0.0
  %1270 = vmatprep.subr.mxu0 0.0
  %1271 = vmatpush1.msra.mxu0 0.0
  %1272 = vmatprep.subr.mxu0 0.0
  %1273 = vmatpush1.msra.mxu0 0.0
  %1274 = vmatprep.subr.mxu0 0.0
  %1275 = vmatpush1.msra.mxu0 0.0
  %1276 = vmatprep.subr.mxu0 0.0
  %1277 = vmatpush1.msra.mxu0 0.0
  %1278 = vmatprep.subr.mxu0 0.0
  %1279 = vmatpush1.msra.mxu0 0.0
  %1280 = vmatprep.subr.mxu0 0.0
  %1281 = vmatpush1.msra.mxu0 0.0
  %1282 = vmatprep.subr.mxu0 0.0
  %1283 = vmatpush1.msra.mxu0 0.0
  %1284 = vmatprep.subr.mxu0 0.0
  %1285 = vmatpush1.msra.mxu0 0.0
  %1286 = vmatprep.subr.mxu0 0.0
  %1287 = vmatpush1.msra.mxu0 0.0
  %1288 = vmatprep.subr.mxu0 0.0
  %1289 = vmatpush1.msra.mxu0 0.0
  %1290 = vmatprep.subr.mxu0 0.0
  %1291 = vmatpush1.msra.mxu0 0.0
  %1292 = vmatprep.subr.mxu0 0.0
  %1293 = vmatpush1.msra.mxu0 0.0
  %1294 = vmatprep.subr.mxu0 0.0
  %1295 = vmatpush1.msra.mxu0 0.0
  %1296 = vmatprep.subr.mxu0 0.0
  %1297 = vmatpush1.msra.mxu0 0.0
  %1298 = vmatprep.subr.mxu0 0.0
  %1299 = vmatpush1.msra.mxu0 0.0
  %1300 = vmatprep.subr.mxu0 0.0
  %1301 = vmatpush1.msra.mxu0 0.0
  %1302 = vmatprep.subr.mxu0 0.0
  %1303 = vmatpush1.msra.mxu0 0.0
  %1304 = vmatprep.subr.mxu0 0.0
  %1305 = vmatpush1.msra.mxu0 0.0
  %1306 = vmatprep.mubr.f32.mxu0 0.0
  %1307 = vmatmul.mubr.f32.gmra.mrb[0].mxu0 %v1240
  %v1308 = vpop.f32.mrb[0].mxu0
  %v1309 = vadd.f32 0.0, %v1308
  %v1310 = vpop.f32.mrb[0].mxu0
  %1311 = vdwg.mxu0
  %v1312 = vadd.f32 %v286, %v1309
  %v1313 = vxor.u32 %v1312, 2147483648
  %v1314 = vmul.f32 %v1313, 1.442695
  %v1315 = vpow.pop %v1314
  %v1316 = vadd.f32 %v1315, 1.0
  %v1317 = vrcp.pop %v1316
  %v1318 = vmul.f32 1.0, %v1317
  %1319 = vmatprep.subr.mxu0 0.0
  %1320 = vmatpush1.msra.mxu0 %v47
  %1321 = vmatprep.subr.mxu0 0.0
  %1322 = vmatpush1.msra.mxu0 %v48
  %1323 = vmatprep.subr.mxu0 0.0
  %1324 = vmatpush1.msra.mxu0 %v49
  %1325 = vmatprep.subr.mxu0 0.0
  %1326 = vmatpush1.msra.mxu0 %v50
  %1327 = vmatprep.subr.mxu0 0.0
  %1328 = vmatpush1.msra.mxu0 0.0
  %1329 = vmatprep.subr.mxu0 0.0
  %1330 = vmatpush1.msra.mxu0 0.0
  %1331 = vmatprep.subr.mxu0 0.0
  %1332 = vmatpush1.msra.mxu0 0.0
  %1333 = vmatprep.subr.mxu0 0.0
  %1334 = vmatpush1.msra.mxu0 0.0
  %1335 = vmatprep.subr.mxu0 0.0
  %1336 = vmatpush1.msra.mxu0 0.0
  %1337 = vmatprep.subr.mxu0 0.0
  %1338 = vmatpush1.msra.mxu0 0.0
  %1339 = vmatprep.subr.mxu0 0.0
  %1340 = vmatpush1.msra.mxu0 0.0
  %1341 = vmatprep.subr.mxu0 0.0
  %1342 = vmatpush1.msra.mxu0 0.0
  %1343 = vmatprep.subr.mxu0 0.0
  %1344 = vmatpush1.msra.mxu0 0.0
  %1345 = vmatprep.subr.mxu0 0.0
  %1346 = vmatpush1.msra.mxu0 0.0
  %1347 = vmatprep.subr.mxu0 0.0
  %1348 = vmatpush1.msra.mxu0 0.0
  %1349 = vmatprep.subr.mxu0 0.0
  %1350 = vmatpush1.msra.mxu0 0.0
  %1351 = vmatprep.subr.mxu0 0.0
  %1352 = vmatpush1.msra.mxu0 0.0
  %1353 = vmatprep.subr.mxu0 0.0
  %1354 = vmatpush1.msra.mxu0 0.0
  %1355 = vmatprep.subr.mxu0 0.0
  %1356 = vmatpush1.msra.mxu0 0.0
  %1357 = vmatprep.subr.mxu0 0.0
  %1358 = vmatpush1.msra.mxu0 0.0
  %1359 = vmatprep.subr.mxu0 0.0
  %1360 = vmatpush1.msra.mxu0 0.0
  %1361 = vmatprep.subr.mxu0 0.0
  %1362 = vmatpush1.msra.mxu0 0.0
  %1363 = vmatprep.subr.mxu0 0.0
  %1364 = vmatpush1.msra.mxu0 0.0
  %1365 = vmatprep.subr.mxu0 0.0
  %1366 = vmatpush1.msra.mxu0 0.0
  %1367 = vmatprep.subr.mxu0 0.0
  %1368 = vmatpush1.msra.mxu0 0.0
  %1369 = vmatprep.subr.mxu0 0.0
  %1370 = vmatpush1.msra.mxu0 0.0
  %1371 = vmatprep.subr.mxu0 0.0
  %1372 = vmatpush1.msra.mxu0 0.0
  %1373 = vmatprep.subr.mxu0 0.0
  %1374 = vmatpush1.msra.mxu0 0.0
  %1375 = vmatprep.subr.mxu0 0.0
  %1376 = vmatpush1.msra.mxu0 0.0
  %1377 = vmatprep.subr.mxu0 0.0
  %1378 = vmatpush1.msra.mxu0 0.0
  %1379 = vmatprep.subr.mxu0 0.0
  %1380 = vmatpush1.msra.mxu0 0.0
  %1381 = vmatprep.subr.mxu0 0.0
  %1382 = vmatpush1.msra.mxu0 0.0
  %1383 = vmatprep.mubr.f32.mxu0 0.0
  %1384 = vmatmul.mubr.f32.gmra.mrb[0].mxu0 %v1240
  %v1385 = vpop.f32.mrb[0].mxu0
  %v1386 = vadd.f32 0.0, %v1385
  %v1387 = vpop.f32.mrb[0].mxu0
  %1388 = vdwg.mxu0
  %v1389 = vadd.f32 %v420, %v1386
  %v1390 = vxor.u32 %v1389, 2147483648
  %v1391 = vmul.f32 %v1390, 1.442695
  %v1392 = vpow.pop %v1391
  %v1393 = vadd.f32 %v1392, 1.0
  %v1394 = vrcp.pop %v1393
  %v1395 = vmul.f32 1.0, %v1394
  %1396 = vmatprep.subr.mxu0 0.0
  %1397 = vmatpush1.msra.mxu0 %v52
  %1398 = vmatprep.subr.mxu0 0.0
  %1399 = vmatpush1.msra.mxu0 %v53
  %1400 = vmatprep.subr.mxu0 0.0
  %1401 = vmatpush1.msra.mxu0 %v54
  %1402 = vmatprep.subr.mxu0 0.0
  %1403 = vmatpush1.msra.mxu0 %v55
  %1404 = vmatprep.subr.mxu0 0.0
  %1405 = vmatpush1.msra.mxu0 0.0
  %1406 = vmatprep.subr.mxu0 0.0
  %1407 = vmatpush1.msra.mxu0 0.0
  %1408 = vmatprep.subr.mxu0 0.0
  %1409 = vmatpush1.msra.mxu0 0.0
  %1410 = vmatprep.subr.mxu0 0.0
  %1411 = vmatpush1.msra.mxu0 0.0
  %1412 = vmatprep.subr.mxu0 0.0
  %1413 = vmatpush1.msra.mxu0 0.0
  %1414 = vmatprep.subr.mxu0 0.0
  %1415 = vmatpush1.msra.mxu0 0.0
  %1416 = vmatprep.subr.mxu0 0.0
  %1417 = vmatpush1.msra.mxu0 0.0
  %1418 = vmatprep.subr.mxu0 0.0
  %1419 = vmatpush1.msra.mxu0 0.0
  %1420 = vmatprep.subr.mxu0 0.0
  %1421 = vmatpush1.msra.mxu0 0.0
  %1422 = vmatprep.subr.mxu0 0.0
  %1423 = vmatpush1.msra.mxu0 0.0
  %1424 = vmatprep.subr.mxu0 0.0
  %1425 = vmatpush1.msra.mxu0 0.0
  %1426 = vmatprep.subr.mxu0 0.0
  %1427 = vmatpush1.msra.mxu0 0.0
  %1428 = vmatprep.subr.mxu0 0.0
  %1429 = vmatpush1.msra.mxu0 0.0
  %1430 = vmatprep.subr.mxu0 0.0
  %1431 = vmatpush1.msra.mxu0 0.0
  %1432 = vmatprep.subr.mxu0 0.0
  %1433 = vmatpush1.msra.mxu0 0.0
  %1434 = vmatprep.subr.mxu0 0.0
  %1435 = vmatpush1.msra.mxu0 0.0
  %1436 = vmatprep.subr.mxu0 0.0
  %1437 = vmatpush1.msra.mxu0 0.0
  %1438 = vmatprep.subr.mxu0 0.0
  %1439 = vmatpush1.msra.mxu0 0.0
  %1440 = vmatprep.subr.mxu0 0.0
  %1441 = vmatpush1.msra.mxu0 0.0
  %1442 = vmatprep.subr.mxu0 0.0
  %1443 = vmatpush1.msra.mxu0 0.0
  %1444 = vmatprep.subr.mxu0 0.0
  %1445 = vmatpush1.msra.mxu0 0.0
  %1446 = vmatprep.subr.mxu0 0.0
  %1447 = vmatpush1.msra.mxu0 0.0
  %1448 = vmatprep.subr.mxu0 0.0
  %1449 = vmatpush1.msra.mxu0 0.0
  %1450 = vmatprep.subr.mxu0 0.0
  %1451 = vmatpush1.msra.mxu0 0.0
  %1452 = vmatprep.subr.mxu0 0.0
  %1453 = vmatpush1.msra.mxu0 0.0
  %1454 = vmatprep.subr.mxu0 0.0
  %1455 = vmatpush1.msra.mxu0 0.0
  %1456 = vmatprep.subr.mxu0 0.0
  %1457 = vmatpush1.msra.mxu0 0.0
  %1458 = vmatprep.subr.mxu0 0.0
  %1459 = vmatpush1.msra.mxu0 0.0
  %1460 = vmatprep.mubr.f32.mxu0 0.0
  %1461 = vmatmul.mubr.f32.gmra.mrb[0].mxu0 %v1240
  %v1462 = vpop.f32.mrb[0].mxu0
  %v1463 = vadd.f32 %v90, %v1462
  %v1464 = vpop.f32.mrb[0].mxu0
  %1465 = vdwg.mxu0
  %v1466 = vmul.f32 %v1318, %v1463
  %v1467 = vadd.f32 %v512, %v1466
  %v1468 = vtanh.pop %v1467
  %v1469 = vsub.f32 1.0, %v1395
  %v1470 = vmul.f32 %v1469, %v1468
  %v1471 = vmul.f32 %v1395, %v1233
  %v1472 = vadd.f32 %v1470, %v1471
  %v1474 = vsel %vm548, %v1235, 0
  %1476 = vmatprep.subr.mxu0 0.0
  %1477 = vmatpush1.msra.mxu0 %v70
  %1478 = vmatprep.subr.mxu0 0.0
  %1479 = vmatpush1.msra.mxu0 %v71
  %1480 = vmatprep.subr.mxu0 0.0
  %1481 = vmatpush1.msra.mxu0 %v72
  %1482 = vmatprep.subr.mxu0 0.0
  %1483 = vmatpush1.msra.mxu0 %v73
  %1484 = vmatprep.subr.mxu0 0.0
  %1485 = vmatpush1.msra.mxu0 0.0
  %1486 = vmatprep.subr.mxu0 0.0
  %1487 = vmatpush1.msra.mxu0 0.0
  %1488 = vmatprep.subr.mxu0 0.0
  %1489 = vmatpush1.msra.mxu0 0.0
  %1490 = vmatprep.subr.mxu0 0.0
  %1491 = vmatpush1.msra.mxu0 0.0
  %1492 = vmatprep.subr.mxu0 0.0
  %1493 = vmatpush1.msra.mxu0 0.0
  %1494 = vmatprep.subr.mxu0 0.0
  %1495 = vmatpush1.msra.mxu0 0.0
  %1496 = vmatprep.subr.mxu0 0.0
  %1497 = vmatpush1.msra.mxu0 0.0
  %1498 = vmatprep.subr.mxu0 0.0
  %1499 = vmatpush1.msra.mxu0 0.0
  %1500 = vmatprep.subr.mxu0 0.0
  %1501 = vmatpush1.msra.mxu0 0.0
  %1502 = vmatprep.subr.mxu0 0.0
  %1503 = vmatpush1.msra.mxu0 0.0
  %1504 = vmatprep.subr.mxu0 0.0
  %1505 = vmatpush1.msra.mxu0 0.0
  %1506 = vmatprep.subr.mxu0 0.0
  %1507 = vmatpush1.msra.mxu0 0.0
  %1508 = vmatprep.subr.mxu0 0.0
  %1509 = vmatpush1.msra.mxu0 0.0
  %1510 = vmatprep.subr.mxu0 0.0
  %1511 = vmatpush1.msra.mxu0 0.0
  %1512 = vmatprep.subr.mxu0 0.0
  %1513 = vmatpush1.msra.mxu0 0.0
  %1514 = vmatprep.subr.mxu0 0.0
  %1515 = vmatpush1.msra.mxu0 0.0
  %1516 = vmatprep.subr.mxu0 0.0
  %1517 = vmatpush1.msra.mxu0 0.0
  %1518 = vmatprep.subr.mxu0 0.0
  %1519 = vmatpush1.msra.mxu0 0.0
  %1520 = vmatprep.subr.mxu0 0.0
  %1521 = vmatpush1.msra.mxu0 0.0
  %1522 = vmatprep.subr.mxu0 0.0
  %1523 = vmatpush1.msra.mxu0 0.0
  %1524 = vmatprep.subr.mxu0 0.0
  %1525 = vmatpush1.msra.mxu0 0.0
  %1526 = vmatprep.subr.mxu0 0.0
  %1527 = vmatpush1.msra.mxu0 0.0
  %1528 = vmatprep.subr.mxu0 0.0
  %1529 = vmatpush1.msra.mxu0 0.0
  %1530 = vmatprep.subr.mxu0 0.0
  %1531 = vmatpush1.msra.mxu0 0.0
  %1532 = vmatprep.subr.mxu0 0.0
  %1533 = vmatpush1.msra.mxu0 0.0
  %1534 = vmatprep.subr.mxu0 0.0
  %1535 = vmatpush1.msra.mxu0 0.0
  %1536 = vmatprep.subr.mxu0 0.0
  %1537 = vmatpush1.msra.mxu0 0.0
  %1538 = vmatprep.subr.mxu0 0.0
  %1539 = vmatpush1.msra.mxu0 0.0
  %1540 = vmatprep.mubr.f32.mxu0 0.0
  %1541 = vmatmul.mubr.f32.gmra.mrb[0].mxu0 %v1474
  %v1542 = vpop.f32.mrb[0].mxu0
  %v1543 = vadd.f32 0.0, %v1542
  %v1544 = vpop.f32.mrb[0].mxu0
  %1545 = vdwg.mxu0
  %v1547 = vsel %vm548, %v1472, 0
  %1549 = vmatprep.subr.mxu0 0.0
  %1550 = vmatpush1.msra.mxu0 %v56
  %1551 = vmatprep.subr.mxu0 0.0
  %1552 = vmatpush1.msra.mxu0 %v57
  %1553 = vmatprep.subr.mxu0 0.0
  %1554 = vmatpush1.msra.mxu0 %v58
  %1555 = vmatprep.subr.mxu0 0.0
  %1556 = vmatpush1.msra.mxu0 %v59
  %1557 = vmatprep.subr.mxu0 0.0
  %1558 = vmatpush1.msra.mxu0 0.0
  %1559 = vmatprep.subr.mxu0 0.0
  %1560 = vmatpush1.msra.mxu0 0.0
  %1561 = vmatprep.subr.mxu0 0.0
  %1562 = vmatpush1.msra.mxu0 0.0
  %1563 = vmatprep.subr.mxu0 0.0
  %1564 = vmatpush1.msra.mxu0 0.0
  %1565 = vmatprep.subr.mxu0 0.0
  %1566 = vmatpush1.msra.mxu0 0.0
  %1567 = vmatprep.subr.mxu0 0.0
  %1568 = vmatpush1.msra.mxu0 0.0
  %1569 = vmatprep.subr.mxu0 0.0
  %1570 = vmatpush1.msra.mxu0 0.0
  %1571 = vmatprep.subr.mxu0 0.0
  %1572 = vmatpush1.msra.mxu0 0.0
  %1573 = vmatprep.subr.mxu0 0.0
  %1574 = vmatpush1.msra.mxu0 0.0
  %1575 = vmatprep.subr.mxu0 0.0
  %1576 = vmatpush1.msra.mxu0 0.0
  %1577 = vmatprep.subr.mxu0 0.0
  %1578 = vmatpush1.msra.mxu0 0.0
  %1579 = vmatprep.subr.mxu0 0.0
  %1580 = vmatpush1.msra.mxu0 0.0
  %1581 = vmatprep.subr.mxu0 0.0
  %1582 = vmatpush1.msra.mxu0 0.0
  %1583 = vmatprep.subr.mxu0 0.0
  %1584 = vmatpush1.msra.mxu0 0.0
  %1585 = vmatprep.subr.mxu0 0.0
  %1586 = vmatpush1.msra.mxu0 0.0
  %1587 = vmatprep.subr.mxu0 0.0
  %1588 = vmatpush1.msra.mxu0 0.0
  %1589 = vmatprep.subr.mxu0 0.0
  %1590 = vmatpush1.msra.mxu0 0.0
  %1591 = vmatprep.subr.mxu0 0.0
  %1592 = vmatpush1.msra.mxu0 0.0
  %1593 = vmatprep.subr.mxu0 0.0
  %1594 = vmatpush1.msra.mxu0 0.0
  %1595 = vmatprep.subr.mxu0 0.0
  %1596 = vmatpush1.msra.mxu0 0.0
  %1597 = vmatprep.subr.mxu0 0.0
  %1598 = vmatpush1.msra.mxu0 0.0
  %1599 = vmatprep.subr.mxu0 0.0
  %1600 = vmatpush1.msra.mxu0 0.0
  %1601 = vmatprep.subr.mxu0 0.0
  %1602 = vmatpush1.msra.mxu0 0.0
  %1603 = vmatprep.subr.mxu0 0.0
  %1604 = vmatpush1.msra.mxu0 0.0
  %1605 = vmatprep.subr.mxu0 0.0
  %1606 = vmatpush1.msra.mxu0 0.0
  %1607 = vmatprep.subr.mxu0 0.0
  %1608 = vmatpush1.msra.mxu0 0.0
  %1609 = vmatprep.subr.mxu0 0.0
  %1610 = vmatpush1.msra.mxu0 0.0
  %1611 = vmatprep.subr.mxu0 0.0
  %1612 = vmatpush1.msra.mxu0 0.0
  %1613 = vmatprep.mubr.f32.mxu0 0.0
  %1614 = vmatmul.mubr.f32.gmra.mrb[0].mxu0 %v1547
  %v1615 = vpop.f32.mrb[0].mxu0
  %v1616 = vadd.f32 %v1543, %v1615
  %v1617 = vpop.f32.mrb[0].mxu0
  %1618 = vdwg.mxu0
  %v1619 = vadd.f32 %v1616, %v99
  %v1620 = vxor.u32 %v1619, 2147483648
  %v1621 = vmul.f32 %v1620, 1.442695
  %v1622 = vpow.pop %v1621
  %v1623 = vadd.f32 %v1622, 1.0
  %v1624 = vrcp.pop %v1623
  %v1625 = vmul.f32 1.0, %v1624
  %1626 = vmatprep.subr.mxu0 0.0
  %1627 = vmatpush1.msra.mxu0 %v75
  %1628 = vmatprep.subr.mxu0 0.0
  %1629 = vmatpush1.msra.mxu0 %v76
  %1630 = vmatprep.subr.mxu0 0.0
  %1631 = vmatpush1.msra.mxu0 %v77
  %1632 = vmatprep.subr.mxu0 0.0
  %1633 = vmatpush1.msra.mxu0 %v78
  %1634 = vmatprep.subr.mxu0 0.0
  %1635 = vmatpush1.msra.mxu0 0.0
  %1636 = vmatprep.subr.mxu0 0.0
  %1637 = vmatpush1.msra.mxu0 0.0
  %1638 = vmatprep.subr.mxu0 0.0
  %1639 = vmatpush1.msra.mxu0 0.0
  %1640 = vmatprep.subr.mxu0 0.0
  %1641 = vmatpush1.msra.mxu0 0.0
  %1642 = vmatprep.subr.mxu0 0.0
  %1643 = vmatpush1.msra.mxu0 0.0
  %1644 = vmatprep.subr.mxu0 0.0
  %1645 = vmatpush1.msra.mxu0 0.0
  %1646 = vmatprep.subr.mxu0 0.0
  %1647 = vmatpush1.msra.mxu0 0.0
  %1648 = vmatprep.subr.mxu0 0.0
  %1649 = vmatpush1.msra.mxu0 0.0
  %1650 = vmatprep.subr.mxu0 0.0
  %1651 = vmatpush1.msra.mxu0 0.0
  %1652 = vmatprep.subr.mxu0 0.0
  %1653 = vmatpush1.msra.mxu0 0.0
  %1654 = vmatprep.subr.mxu0 0.0
  %1655 = vmatpush1.msra.mxu0 0.0
  %1656 = vmatprep.subr.mxu0 0.0
  %1657 = vmatpush1.msra.mxu0 0.0
  %1658 = vmatprep.subr.mxu0 0.0
  %1659 = vmatpush1.msra.mxu0 0.0
  %1660 = vmatprep.subr.mxu0 0.0
  %1661 = vmatpush1.msra.mxu0 0.0
  %1662 = vmatprep.subr.mxu0 0.0
  %1663 = vmatpush1.msra.mxu0 0.0
  %1664 = vmatprep.subr.mxu0 0.0
  %1665 = vmatpush1.msra.mxu0 0.0
  %1666 = vmatprep.subr.mxu0 0.0
  %1667 = vmatpush1.msra.mxu0 0.0
  %1668 = vmatprep.subr.mxu0 0.0
  %1669 = vmatpush1.msra.mxu0 0.0
  %1670 = vmatprep.subr.mxu0 0.0
  %1671 = vmatpush1.msra.mxu0 0.0
  %1672 = vmatprep.subr.mxu0 0.0
  %1673 = vmatpush1.msra.mxu0 0.0
  %1674 = vmatprep.subr.mxu0 0.0
  %1675 = vmatpush1.msra.mxu0 0.0
  %1676 = vmatprep.subr.mxu0 0.0
  %1677 = vmatpush1.msra.mxu0 0.0
  %1678 = vmatprep.subr.mxu0 0.0
  %1679 = vmatpush1.msra.mxu0 0.0
  %1680 = vmatprep.subr.mxu0 0.0
  %1681 = vmatpush1.msra.mxu0 0.0
  %1682 = vmatprep.subr.mxu0 0.0
  %1683 = vmatpush1.msra.mxu0 0.0
  %1684 = vmatprep.subr.mxu0 0.0
  %1685 = vmatpush1.msra.mxu0 0.0
  %1686 = vmatprep.subr.mxu0 0.0
  %1687 = vmatpush1.msra.mxu0 0.0
  %1688 = vmatprep.subr.mxu0 0.0
  %1689 = vmatpush1.msra.mxu0 0.0
  %1690 = vmatprep.mubr.f32.mxu0 0.0
  %1691 = vmatmul.mubr.f32.gmra.mrb[0].mxu0 %v1474
  %v1692 = vpop.f32.mrb[0].mxu0
  %v1693 = vadd.f32 0.0, %v1692
  %v1694 = vpop.f32.mrb[0].mxu0
  %1695 = vdwg.mxu0
  %1696 = vmatprep.subr.mxu0 0.0
  %1697 = vmatpush1.msra.mxu0 %v61
  %1698 = vmatprep.subr.mxu0 0.0
  %1699 = vmatpush1.msra.mxu0 %v62
  %1700 = vmatprep.subr.mxu0 0.0
  %1701 = vmatpush1.msra.mxu0 %v63
  %1702 = vmatprep.subr.mxu0 0.0
  %1703 = vmatpush1.msra.mxu0 %v64
  %1704 = vmatprep.subr.mxu0 0.0
  %1705 = vmatpush1.msra.mxu0 0.0
  %1706 = vmatprep.subr.mxu0 0.0
  %1707 = vmatpush1.msra.mxu0 0.0
  %1708 = vmatprep.subr.mxu0 0.0
  %1709 = vmatpush1.msra.mxu0 0.0
  %1710 = vmatprep.subr.mxu0 0.0
  %1711 = vmatpush1.msra.mxu0 0.0
  %1712 = vmatprep.subr.mxu0 0.0
  %1713 = vmatpush1.msra.mxu0 0.0
  %1714 = vmatprep.subr.mxu0 0.0
  %1715 = vmatpush1.msra.mxu0 0.0
  %1716 = vmatprep.subr.mxu0 0.0
  %1717 = vmatpush1.msra.mxu0 0.0
  %1718 = vmatprep.subr.mxu0 0.0
  %1719 = vmatpush1.msra.mxu0 0.0
  %1720 = vmatprep.subr.mxu0 0.0
  %1721 = vmatpush1.msra.mxu0 0.0
  %1722 = vmatprep.subr.mxu0 0.0
  %1723 = vmatpush1.msra.mxu0 0.0
  %1724 = vmatprep.subr.mxu0 0.0
  %1725 = vmatpush1.msra.mxu0 0.0
  %1726 = vmatprep.subr.mxu0 0.0
  %1727 = vmatpush1.msra.mxu0 0.0
  %1728 = vmatprep.subr.mxu0 0.0
  %1729 = vmatpush1.msra.mxu0 0.0
  %1730 = vmatprep.subr.mxu0 0.0
  %1731 = vmatpush1.msra.mxu0 0.0
  %1732 = vmatprep.subr.mxu0 0.0
  %1733 = vmatpush1.msra.mxu0 0.0
  %1734 = vmatprep.subr.mxu0 0.0
  %1735 = vmatpush1.msra.mxu0 0.0
  %1736 = vmatprep.subr.mxu0 0.0
  %1737 = vmatpush1.msra.mxu0 0.0
  %1738 = vmatprep.subr.mxu0 0.0
  %1739 = vmatpush1.msra.mxu0 0.0
  %1740 = vmatprep.subr.mxu0 0.0
  %1741 = vmatpush1.msra.mxu0 0.0
  %1742 = vmatprep.subr.mxu0 0.0
  %1743 = vmatpush1.msra.mxu0 0.0
  %1744 = vmatprep.subr.mxu0 0.0
  %1745 = vmatpush1.msra.mxu0 0.0
  %1746 = vmatprep.subr.mxu0 0.0
  %1747 = vmatpush1.msra.mxu0 0.0
  %1748 = vmatprep.subr.mxu0 0.0
  %1749 = vmatpush1.msra.mxu0 0.0
  %1750 = vmatprep.subr.mxu0 0.0
  %1751 = vmatpush1.msra.mxu0 0.0
  %1752 = vmatprep.subr.mxu0 0.0
  %1753 = vmatpush1.msra.mxu0 0.0
  %1754 = vmatprep.subr.mxu0 0.0
  %1755 = vmatpush1.msra.mxu0 0.0
  %1756 = vmatprep.subr.mxu0 0.0
  %1757 = vmatpush1.msra.mxu0 0.0
  %1758 = vmatprep.subr.mxu0 0.0
  %1759 = vmatpush1.msra.mxu0 0.0
  %1760 = vmatprep.mubr.f32.mxu0 0.0
  %1761 = vmatmul.mubr.f32.gmra.mrb[0].mxu0 %v1547
  %v1762 = vpop.f32.mrb[0].mxu0
  %v1763 = vadd.f32 %v1693, %v1762
  %v1764 = vpop.f32.mrb[0].mxu0
  %1765 = vdwg.mxu0
  %v1766 = vadd.f32 %v1763, %v110
  %v1767 = vxor.u32 %v1766, 2147483648
  %v1768 = vmul.f32 %v1767, 1.442695
  %v1769 = vpow.pop %v1768
  %v1770 = vadd.f32 %v1769, 1.0
  %v1771 = vrcp.pop %v1770
  %v1772 = vmul.f32 1.0, %v1771
  %1773 = vmatprep.subr.mxu0 0.0
  %1774 = vmatpush1.msra.mxu0 %v66
  %1775 = vmatprep.subr.mxu0 0.0
  %1776 = vmatpush1.msra.mxu0 %v67
  %1777 = vmatprep.subr.mxu0 0.0
  %1778 = vmatpush1.msra.mxu0 %v68
  %1779 = vmatprep.subr.mxu0 0.0
  %1780 = vmatpush1.msra.mxu0 %v69
  %1781 = vmatprep.subr.mxu0 0.0
  %1782 = vmatpush1.msra.mxu0 0.0
  %1783 = vmatprep.subr.mxu0 0.0
  %1784 = vmatpush1.msra.mxu0 0.0
  %1785 = vmatprep.subr.mxu0 0.0
  %1786 = vmatpush1.msra.mxu0 0.0
  %1787 = vmatprep.subr.mxu0 0.0
  %1788 = vmatpush1.msra.mxu0 0.0
  %1789 = vmatprep.subr.mxu0 0.0
  %1790 = vmatpush1.msra.mxu0 0.0
  %1791 = vmatprep.subr.mxu0 0.0
  %1792 = vmatpush1.msra.mxu0 0.0
  %1793 = vmatprep.subr.mxu0 0.0
  %1794 = vmatpush1.msra.mxu0 0.0
  %1795 = vmatprep.subr.mxu0 0.0
  %1796 = vmatpush1.msra.mxu0 0.0
  %1797 = vmatprep.subr.mxu0 0.0
  %1798 = vmatpush1.msra.mxu0 0.0
  %1799 = vmatprep.subr.mxu0 0.0
  %1800 = vmatpush1.msra.mxu0 0.0
  %1801 = vmatprep.subr.mxu0 0.0
  %1802 = vmatpush1.msra.mxu0 0.0
  %1803 = vmatprep.subr.mxu0 0.0
  %1804 = vmatpush1.msra.mxu0 0.0
  %1805 = vmatprep.subr.mxu0 0.0
  %1806 = vmatpush1.msra.mxu0 0.0
  %1807 = vmatprep.subr.mxu0 0.0
  %1808 = vmatpush1.msra.mxu0 0.0
  %1809 = vmatprep.subr.mxu0 0.0
  %1810 = vmatpush1.msra.mxu0 0.0
  %1811 = vmatprep.subr.mxu0 0.0
  %1812 = vmatpush1.msra.mxu0 0.0
  %1813 = vmatprep.subr.mxu0 0.0
  %1814 = vmatpush1.msra.mxu0 0.0
  %1815 = vmatprep.subr.mxu0 0.0
  %1816 = vmatpush1.msra.mxu0 0.0
  %1817 = vmatprep.subr.mxu0 0.0
  %1818 = vmatpush1.msra.mxu0 0.0
  %1819 = vmatprep.subr.mxu0 0.0
  %1820 = vmatpush1.msra.mxu0 0.0
  %1821 = vmatprep.subr.mxu0 0.0
  %1822 = vmatpush1.msra.mxu0 0.0
  %1823 = vmatprep.subr.mxu0 0.0
  %1824 = vmatpush1.msra.mxu0 0.0
  %1825 = vmatprep.subr.mxu0 0.0
  %1826 = vmatpush1.msra.mxu0 0.0
  %1827 = vmatprep.subr.mxu0 0.0
  %1828 = vmatpush1.msra.mxu0 0.0
  %1829 = vmatprep.subr.mxu0 0.0
  %1830 = vmatpush1.msra.mxu0 0.0
  %1831 = vmatprep.subr.mxu0 0.0
  %1832 = vmatpush1.msra.mxu0 0.0
  %1833 = vmatprep.subr.mxu0 0.0
  %1834 = vmatpush1.msra.mxu0 0.0
  %1835 = vmatprep.subr.mxu0 0.0
  %1836 = vmatpush1.msra.mxu0 0.0
  %1837 = vmatprep.mubr.f32.mxu0 0.0
  %1838 = vmatmul.mubr.f32.gmra.mrb[0].mxu0 %v1547
  %v1839 = vpop.f32.mrb[0].mxu0
  %v1840 = vadd.f32 %v118, %v1839
  %v1841 = vpop.f32.mrb[0].mxu0
  %1842 = vdwg.mxu0
  %1843 = vmatprep.subr.mxu0 0.0
  %1844 = vmatpush1.msra.mxu0 %v80
  %1845 = vmatprep.subr.mxu0 0.0
  %1846 = vmatpush1.msra.mxu0 %v81
  %1847 = vmatprep.subr.mxu0 0.0
  %1848 = vmatpush1.msra.mxu0 %v82
  %1849 = vmatprep.subr.mxu0 0.0
  %1850 = vmatpush1.msra.mxu0 %v83
  %1851 = vmatprep.subr.mxu0 0.0
  %1852 = vmatpush1.msra.mxu0 0.0
  %1853 = vmatprep.subr.mxu0 0.0
  %1854 = vmatpush1.msra.mxu0 0.0
  %1855 = vmatprep.subr.mxu0 0.0
  %1856 = vmatpush1.msra.mxu0 0.0
  %1857 = vmatprep.subr.mxu0 0.0
  %1858 = vmatpush1.msra.mxu0 0.0
  %1859 = vmatprep.subr.mxu0 0.0
  %1860 = vmatpush1.msra.mxu0 0.0
  %1861 = vmatprep.subr.mxu0 0.0
  %1862 = vmatpush1.msra.mxu0 0.0
  %1863 = vmatprep.subr.mxu0 0.0
  %1864 = vmatpush1.msra.mxu0 0.0
  %1865 = vmatprep.subr.mxu0 0.0
  %1866 = vmatpush1.msra.mxu0 0.0
  %1867 = vmatprep.subr.mxu0 0.0
  %1868 = vmatpush1.msra.mxu0 0.0
  %1869 = vmatprep.subr.mxu0 0.0
  %1870 = vmatpush1.msra.mxu0 0.0
  %1871 = vmatprep.subr.mxu0 0.0
  %1872 = vmatpush1.msra.mxu0 0.0
  %1873 = vmatprep.subr.mxu0 0.0
  %1874 = vmatpush1.msra.mxu0 0.0
  %1875 = vmatprep.subr.mxu0 0.0
  %1876 = vmatpush1.msra.mxu0 0.0
  %1877 = vmatprep.subr.mxu0 0.0
  %1878 = vmatpush1.msra.mxu0 0.0
  %1879 = vmatprep.subr.mxu0 0.0
  %1880 = vmatpush1.msra.mxu0 0.0
  %1881 = vmatprep.subr.mxu0 0.0
  %1882 = vmatpush1.msra.mxu0 0.0
  %1883 = vmatprep.subr.mxu0 0.0
  %1884 = vmatpush1.msra.mxu0 0.0
  %1885 = vmatprep.subr.mxu0 0.0
  %1886 = vmatpush1.msra.mxu0 0.0
  %1887 = vmatprep.subr.mxu0 0.0
  %1888 = vmatpush1.msra.mxu0 0.0
  %1889 = vmatprep.subr.mxu0 0.0
  %1890 = vmatpush1.msra.mxu0 0.0
  %1891 = vmatprep.subr.mxu0 0.0
  %1892 = vmatpush1.msra.mxu0 0.0
  %1893 = vmatprep.subr.mxu0 0.0
  %1894 = vmatpush1.msra.mxu0 0.0
  %1895 = vmatprep.subr.mxu0 0.0
  %1896 = vmatpush1.msra.mxu0 0.0
  %1897 = vmatprep.subr.mxu0 0.0
  %1898 = vmatpush1.msra.mxu0 0.0
  %1899 = vmatprep.subr.mxu0 0.0
  %1900 = vmatpush1.msra.mxu0 0.0
  %1901 = vmatprep.subr.mxu0 0.0
  %1902 = vmatpush1.msra.mxu0 0.0
  %1903 = vmatprep.subr.mxu0 0.0
  %1904 = vmatpush1.msra.mxu0 0.0
  %1905 = vmatprep.subr.mxu0 0.0
  %1906 = vmatpush1.msra.mxu0 0.0
  %1907 = vmatprep.mubr.f32.mxu0 0.0
  %1908 = vmatmul.mubr.f32.gmra.mrb[0].mxu0 %v1474
  %v1909 = vpop.f32.mrb[0].mxu0
  %v1910 = vadd.f32 %v126, %v1909
  %v1911 = vpop.f32.mrb[0].mxu0
  %1912 = vdwg.mxu0
  %v1913 = vmul.f32 %v1625, %v1910
  %v1914 = vadd.f32 %v1840, %v1913
  %v1915 = vtanh.pop %v1914
  %v1916 = vsub.f32 1.0, %v1772
  %v1917 = vmul.f32 %v1916, %v1915
  %v1918 = vmul.f32 %v1772, %v1235
  %v1919 = vadd.f32 %v1917, %v1918
  %v1920 = vsub.f32 %v1472, %v1233
  %1922 = vset.pattern.permute.xlu0 0
  %1923 = vperm.xlu0 %1922, %v1238
  %v1924 = vpop.permute.xlu0 %1923
  %v1926 = vmul.f32 %v1924, %v1920
  %v1927 = vadd.f32 %v1233, %v1926
  %v1928 = vsub.f32 %v1919, %v1235
  %v1929 = vmul.f32 %v1924, %v1928
  %v1930 = vadd.f32 %v1235, %v1929
  %v1931 = vmul.f32 %v1924, %v1919
  %v1932 = vadd.f32 %v1235, %v1931
  %vm1933 = vcmp.gt.s32.totalorder %v41, 2
  %v1934 = vsel %vm1933, 1, 0
  %v1935 = vcvt.s32.f32 %v1934
  %v1937 = vsel %vm548, %v1927, 0
  %1939 = vmatprep.subr.mxu0 0.0
  %1940 = vmatpush1.msra.mxu0 %v42
  %1941 = vmatprep.subr.mxu0 0.0
  %1942 = vmatpush1.msra.mxu0 %v43
  %1943 = vmatprep.subr.mxu0 0.0
  %1944 = vmatpush1.msra.mxu0 %v44
  %1945 = vmatprep.subr.mxu0 0.0
  %1946 = vmatpush1.msra.mxu0 %v45
  %1947 = vmatprep.subr.mxu0 0.0
  %1948 = vmatpush1.msra.mxu0 0.0
  %1949 = vmatprep.subr.mxu0 0.0
  %1950 = vmatpush1.msra.mxu0 0.0
  %1951 = vmatprep.subr.mxu0 0.0
  %1952 = vmatpush1.msra.mxu0 0.0
  %1953 = vmatprep.subr.mxu0 0.0
  %1954 = vmatpush1.msra.mxu0 0.0
  %1955 = vmatprep.subr.mxu0 0.0
  %1956 = vmatpush1.msra.mxu0 0.0
  %1957 = vmatprep.subr.mxu0 0.0
  %1958 = vmatpush1.msra.mxu0 0.0
  %1959 = vmatprep.subr.mxu0 0.0
  %1960 = vmatpush1.msra.mxu0 0.0
  %1961 = vmatprep.subr.mxu0 0.0
  %1962 = vmatpush1.msra.mxu0 0.0
  %1963 = vmatprep.subr.mxu0 0.0
  %1964 = vmatpush1.msra.mxu0 0.0
  %1965 = vmatprep.subr.mxu0 0.0
  %1966 = vmatpush1.msra.mxu0 0.0
  %1967 = vmatprep.subr.mxu0 0.0
  %1968 = vmatpush1.msra.mxu0 0.0
  %1969 = vmatprep.subr.mxu0 0.0
  %1970 = vmatpush1.msra.mxu0 0.0
  %1971 = vmatprep.subr.mxu0 0.0
  %1972 = vmatpush1.msra.mxu0 0.0
  %1973 = vmatprep.subr.mxu0 0.0
  %1974 = vmatpush1.msra.mxu0 0.0
  %1975 = vmatprep.subr.mxu0 0.0
  %1976 = vmatpush1.msra.mxu0 0.0
  %1977 = vmatprep.subr.mxu0 0.0
  %1978 = vmatpush1.msra.mxu0 0.0
  %1979 = vmatprep.subr.mxu0 0.0
  %1980 = vmatpush1.msra.mxu0 0.0
  %1981 = vmatprep.subr.mxu0 0.0
  %1982 = vmatpush1.msra.mxu0 0.0
  %1983 = vmatprep.subr.mxu0 0.0
  %1984 = vmatpush1.msra.mxu0 0.0
  %1985 = vmatprep.subr.mxu0 0.0
  %1986 = vmatpush1.msra.mxu0 0.0
  %1987 = vmatprep.subr.mxu0 0.0
  %1988 = vmatpush1.msra.mxu0 0.0
  %1989 = vmatprep.subr.mxu0 0.0
  %1990 = vmatpush1.msra.mxu0 0.0
  %1991 = vmatprep.subr.mxu0 0.0
  %1992 = vmatpush1.msra.mxu0 0.0
  %1993 = vmatprep.subr.mxu0 0.0
  %1994 = vmatpush1.msra.mxu0 0.0
  %1995 = vmatprep.subr.mxu0 0.0
  %1996 = vmatpush1.msra.mxu0 0.0
  %1997 = vmatprep.subr.mxu0 0.0
  %1998 = vmatpush1.msra.mxu0 0.0
  %1999 = vmatprep.subr.mxu0 0.0
  %2000 = vmatpush1.msra.mxu0 0.0
  %2001 = vmatprep.subr.mxu0 0.0
  %2002 = vmatpush1.msra.mxu0 0.0
  %2003 = vmatprep.mubr.f32.mxu0 0.0
  %2004 = vmatmul.mubr.f32.gmra.mrb[0].mxu0 %v1937
  %v2005 = vpop.f32.mrb[0].mxu0
  %v2006 = vadd.f32 0.0, %v2005
  %v2007 = vpop.f32.mrb[0].mxu0
  %2008 = vdwg.mxu0
  %v2009 = vadd.f32 %v287, %v2006
  %v2010 = vxor.u32 %v2009, 2147483648
  %v2011 = vmul.f32 %v2010, 1.442695
  %v2012 = vpow.pop %v2011
  %v2013 = vadd.f32 %v2012, 1.0
  %v2014 = vrcp.pop %v2013
  %v2015 = vmul.f32 1.0, %v2014
  %2016 = vmatprep.subr.mxu0 0.0
  %2017 = vmatpush1.msra.mxu0 %v47
  %2018 = vmatprep.subr.mxu0 0.0
  %2019 = vmatpush1.msra.mxu0 %v48
  %2020 = vmatprep.subr.mxu0 0.0
  %2021 = vmatpush1.msra.mxu0 %v49
  %2022 = vmatprep.subr.mxu0 0.0
  %2023 = vmatpush1.msra.mxu0 %v50
  %2024 = vmatprep.subr.mxu0 0.0
  %2025 = vmatpush1.msra.mxu0 0.0
  %2026 = vmatprep.subr.mxu0 0.0
  %2027 = vmatpush1.msra.mxu0 0.0
  %2028 = vmatprep.subr.mxu0 0.0
  %2029 = vmatpush1.msra.mxu0 0.0
  %2030 = vmatprep.subr.mxu0 0.0
  %2031 = vmatpush1.msra.mxu0 0.0
  %2032 = vmatprep.subr.mxu0 0.0
  %2033 = vmatpush1.msra.mxu0 0.0
  %2034 = vmatprep.subr.mxu0 0.0
  %2035 = vmatpush1.msra.mxu0 0.0
  %2036 = vmatprep.subr.mxu0 0.0
  %2037 = vmatpush1.msra.mxu0 0.0
  %2038 = vmatprep.subr.mxu0 0.0
  %2039 = vmatpush1.msra.mxu0 0.0
  %2040 = vmatprep.subr.mxu0 0.0
  %2041 = vmatpush1.msra.mxu0 0.0
  %2042 = vmatprep.subr.mxu0 0.0
  %2043 = vmatpush1.msra.mxu0 0.0
  %2044 = vmatprep.subr.mxu0 0.0
  %2045 = vmatpush1.msra.mxu0 0.0
  %2046 = vmatprep.subr.mxu0 0.0
  %2047 = vmatpush1.msra.mxu0 0.0
  %2048 = vmatprep.subr.mxu0 0.0
  %2049 = vmatpush1.msra.mxu0 0.0
  %2050 = vmatprep.subr.mxu0 0.0
  %2051 = vmatpush1.msra.mxu0 0.0
  %2052 = vmatprep.subr.mxu0 0.0
  %2053 = vmatpush1.msra.mxu0 0.0
  %2054 = vmatprep.subr.mxu0 0.0
  %2055 = vmatpush1.msra.mxu0 0.0
  %2056 = vmatprep.subr.mxu0 0.0
  %2057 = vmatpush1.msra.mxu0 0.0
  %2058 = vmatprep.subr.mxu0 0.0
  %2059 = vmatpush1.msra.mxu0 0.0
  %2060 = vmatprep.subr.mxu0 0.0
  %2061 = vmatpush1.msra.mxu0 0.0
  %2062 = vmatprep.subr.mxu0 0.0
  %2063 = vmatpush1.msra.mxu0 0.0
  %2064 = vmatprep.subr.mxu0 0.0
  %2065 = vmatpush1.msra.mxu0 0.0
  %2066 = vmatprep.subr.mxu0 0.0
  %2067 = vmatpush1.msra.mxu0 0.0
  %2068 = vmatprep.subr.mxu0 0.0
  %2069 = vmatpush1.msra.mxu0 0.0
  %2070 = vmatprep.subr.mxu0 0.0
  %2071 = vmatpush1.msra.mxu0 0.0
  %2072 = vmatprep.subr.mxu0 0.0
  %2073 = vmatpush1.msra.mxu0 0.0
  %2074 = vmatprep.subr.mxu0 0.0
  %2075 = vmatpush1.msra.mxu0 0.0
  %2076 = vmatprep.subr.mxu0 0.0
  %2077 = vmatpush1.msra.mxu0 0.0
  %2078 = vmatprep.subr.mxu0 0.0
  %2079 = vmatpush1.msra.mxu0 0.0
  %2080 = vmatprep.mubr.f32.mxu0 0.0
  %2081 = vmatmul.mubr.f32.gmra.mrb[0].mxu0 %v1937
  %v2082 = vpop.f32.mrb[0].mxu0
  %v2083 = vadd.f32 0.0, %v2082
  %v2084 = vpop.f32.mrb[0].mxu0
  %2085 = vdwg.mxu0
  %v2086 = vadd.f32 %v421, %v2083
  %v2087 = vxor.u32 %v2086, 2147483648
  %v2088 = vmul.f32 %v2087, 1.442695
  %v2089 = vpow.pop %v2088
  %v2090 = vadd.f32 %v2089, 1.0
  %v2091 = vrcp.pop %v2090
  %v2092 = vmul.f32 1.0, %v2091
  %2093 = vmatprep.subr.mxu0 0.0
  %2094 = vmatpush1.msra.mxu0 %v52
  %2095 = vmatprep.subr.mxu0 0.0
  %2096 = vmatpush1.msra.mxu0 %v53
  %2097 = vmatprep.subr.mxu0 0.0
  %2098 = vmatpush1.msra.mxu0 %v54
  %2099 = vmatprep.subr.mxu0 0.0
  %2100 = vmatpush1.msra.mxu0 %v55
  %2101 = vmatprep.subr.mxu0 0.0
  %2102 = vmatpush1.msra.mxu0 0.0
  %2103 = vmatprep.subr.mxu0 0.0
  %2104 = vmatpush1.msra.mxu0 0.0
  %2105 = vmatprep.subr.mxu0 0.0
  %2106 = vmatpush1.msra.mxu0 0.0
  %2107 = vmatprep.subr.mxu0 0.0
  %2108 = vmatpush1.msra.mxu0 0.0
  %2109 = vmatprep.subr.mxu0 0.0
  %2110 = vmatpush1.msra.mxu0 0.0
  %2111 = vmatprep.subr.mxu0 0.0
  %2112 = vmatpush1.msra.mxu0 0.0
  %2113 = vmatprep.subr.mxu0 0.0
  %2114 = vmatpush1.msra.mxu0 0.0
  %2115 = vmatprep.subr.mxu0 0.0
  %2116 = vmatpush1.msra.mxu0 0.0
  %2117 = vmatprep.subr.mxu0 0.0
  %2118 = vmatpush1.msra.mxu0 0.0
  %2119 = vmatprep.subr.mxu0 0.0
  %2120 = vmatpush1.msra.mxu0 0.0
  %2121 = vmatprep.subr.mxu0 0.0
  %2122 = vmatpush1.msra.mxu0 0.0
  %2123 = vmatprep.subr.mxu0 0.0
  %2124 = vmatpush1.msra.mxu0 0.0
  %2125 = vmatprep.subr.mxu0 0.0
  %2126 = vmatpush1.msra.mxu0 0.0
  %2127 = vmatprep.subr.mxu0 0.0
  %2128 = vmatpush1.msra.mxu0 0.0
  %2129 = vmatprep.subr.mxu0 0.0
  %2130 = vmatpush1.msra.mxu0 0.0
  %2131 = vmatprep.subr.mxu0 0.0
  %2132 = vmatpush1.msra.mxu0 0.0
  %2133 = vmatprep.subr.mxu0 0.0
  %2134 = vmatpush1.msra.mxu0 0.0
  %2135 = vmatprep.subr.mxu0 0.0
  %2136 = vmatpush1.msra.mxu0 0.0
  %2137 = vmatprep.subr.mxu0 0.0
  %2138 = vmatpush1.msra.mxu0 0.0
  %2139 = vmatprep.subr.mxu0 0.0
  %2140 = vmatpush1.msra.mxu0 0.0
  %2141 = vmatprep.subr.mxu0 0.0
  %2142 = vmatpush1.msra.mxu0 0.0
  %2143 = vmatprep.subr.mxu0 0.0
  %2144 = vmatpush1.msra.mxu0 0.0
  %2145 = vmatprep.subr.mxu0 0.0
  %2146 = vmatpush1.msra.mxu0 0.0
  %2147 = vmatprep.subr.mxu0 0.0
  %2148 = vmatpush1.msra.mxu0 0.0
  %2149 = vmatprep.subr.mxu0 0.0
  %2150 = vmatpush1.msra.mxu0 0.0
  %2151 = vmatprep.subr.mxu0 0.0
  %2152 = vmatpush1.msra.mxu0 0.0
  %2153 = vmatprep.subr.mxu0 0.0
  %2154 = vmatpush1.msra.mxu0 0.0
  %2155 = vmatprep.subr.mxu0 0.0
  %2156 = vmatpush1.msra.mxu0 0.0
  %2157 = vmatprep.mubr.f32.mxu0 0.0
  %2158 = vmatmul.mubr.f32.gmra.mrb[0].mxu0 %v1937
  %v2159 = vpop.f32.mrb[0].mxu0
  %v2160 = vadd.f32 %v90, %v2159
  %v2161 = vpop.f32.mrb[0].mxu0
  %2162 = vdwg.mxu0
  %v2163 = vmul.f32 %v2015, %v2160
  %v2164 = vadd.f32 %v517, %v2163
  %v2165 = vtanh.pop %v2164
  %v2166 = vsub.f32 1.0, %v2092
  %v2167 = vmul.f32 %v2166, %v2165
  %v2168 = vmul.f32 %v2092, %v1927
  %v2169 = vadd.f32 %v2167, %v2168
  %v2171 = vsel %vm548, %v1930, 0
  %2173 = vmatprep.subr.mxu0 0.0
  %2174 = vmatpush1.msra.mxu0 %v70
  %2175 = vmatprep.subr.mxu0 0.0
  %2176 = vmatpush1.msra.mxu0 %v71
  %2177 = vmatprep.subr.mxu0 0.0
  %2178 = vmatpush1.msra.mxu0 %v72
  %2179 = vmatprep.subr.mxu0 0.0
  %2180 = vmatpush1.msra.mxu0 %v73
  %2181 = vmatprep.subr.mxu0 0.0
  %2182 = vmatpush1.msra.mxu0 0.0
  %2183 = vmatprep.subr.mxu0 0.0
  %2184 = vmatpush1.msra.mxu0 0.0
  %2185 = vmatprep.subr.mxu0 0.0
  %2186 = vmatpush1.msra.mxu0 0.0
  %2187 = vmatprep.subr.mxu0 0.0
  %2188 = vmatpush1.msra.mxu0 0.0
  %2189 = vmatprep.subr.mxu0 0.0
  %2190 = vmatpush1.msra.mxu0 0.0
  %2191 = vmatprep.subr.mxu0 0.0
  %2192 = vmatpush1.msra.mxu0 0.0
  %2193 = vmatprep.subr.mxu0 0.0
  %2194 = vmatpush1.msra.mxu0 0.0
  %2195 = vmatprep.subr.mxu0 0.0
  %2196 = vmatpush1.msra.mxu0 0.0
  %2197 = vmatprep.subr.mxu0 0.0
  %2198 = vmatpush1.msra.mxu0 0.0
  %2199 = vmatprep.subr.mxu0 0.0
  %2200 = vmatpush1.msra.mxu0 0.0
  %2201 = vmatprep.subr.mxu0 0.0
  %2202 = vmatpush1.msra.mxu0 0.0
  %2203 = vmatprep.subr.mxu0 0.0
  %2204 = vmatpush1.msra.mxu0 0.0
  %2205 = vmatprep.subr.mxu0 0.0
  %2206 = vmatpush1.msra.mxu0 0.0
  %2207 = vmatprep.subr.mxu0 0.0
  %2208 = vmatpush1.msra.mxu0 0.0
  %2209 = vmatprep.subr.mxu0 0.0
  %2210 = vmatpush1.msra.mxu0 0.0
  %2211 = vmatprep.subr.mxu0 0.0
  %2212 = vmatpush1.msra.mxu0 0.0
  %2213 = vmatprep.subr.mxu0 0.0
  %2214 = vmatpush1.msra.mxu0 0.0
  %2215 = vmatprep.subr.mxu0 0.0
  %2216 = vmatpush1.msra.mxu0 0.0
  %2217 = vmatprep.subr.mxu0 0.0
  %2218 = vmatpush1.msra.mxu0 0.0
  %2219 = vmatprep.subr.mxu0 0.0
  %2220 = vmatpush1.msra.mxu0 0.0
  %2221 = vmatprep.subr.mxu0 0.0
  %2222 = vmatpush1.msra.mxu0 0.0
  %2223 = vmatprep.subr.mxu0 0.0
  %2224 = vmatpush1.msra.mxu0 0.0
  %2225 = vmatprep.subr.mxu0 0.0
  %2226 = vmatpush1.msra.mxu0 0.0
  %2227 = vmatprep.subr.mxu0 0.0
  %2228 = vmatpush1.msra.mxu0 0.0
  %2229 = vmatprep.subr.mxu0 0.0
  %2230 = vmatpush1.msra.mxu0 0.0
  %2231 = vmatprep.subr.mxu0 0.0
  %2232 = vmatpush1.msra.mxu0 0.0
  %2233 = vmatprep.subr.mxu0 0.0
  %2234 = vmatpush1.msra.mxu0 0.0
  %2235 = vmatprep.subr.mxu0 0.0
  %2236 = vmatpush1.msra.mxu0 0.0
  %2237 = vmatprep.mubr.f32.mxu0 0.0
  %2238 = vmatmul.mubr.f32.gmra.mrb[0].mxu0 %v2171
  %v2239 = vpop.f32.mrb[0].mxu0
  %v2240 = vadd.f32 0.0, %v2239
  %v2241 = vpop.f32.mrb[0].mxu0
  %2242 = vdwg.mxu0
  %v2244 = vsel %vm548, %v2169, 0
  %2246 = vmatprep.subr.mxu0 0.0
  %2247 = vmatpush1.msra.mxu0 %v56
  %2248 = vmatprep.subr.mxu0 0.0
  %2249 = vmatpush1.msra.mxu0 %v57
  %2250 = vmatprep.subr.mxu0 0.0
  %2251 = vmatpush1.msra.mxu0 %v58
  %2252 = vmatprep.subr.mxu0 0.0
  %2253 = vmatpush1.msra.mxu0 %v59
  %2254 = vmatprep.subr.mxu0 0.0
  %2255 = vmatpush1.msra.mxu0 0.0
  %2256 = vmatprep.subr.mxu0 0.0
  %2257 = vmatpush1.msra.mxu0 0.0
  %2258 = vmatprep.subr.mxu0 0.0
  %2259 = vmatpush1.msra.mxu0 0.0
  %2260 = vmatprep.subr.mxu0 0.0
  %2261 = vmatpush1.msra.mxu0 0.0
  %2262 = vmatprep.subr.mxu0 0.0
  %2263 = vmatpush1.msra.mxu0 0.0
  %2264 = vmatprep.subr.mxu0 0.0
  %2265 = vmatpush1.msra.mxu0 0.0
  %2266 = vmatprep.subr.mxu0 0.0
  %2267 = vmatpush1.msra.mxu0 0.0
  %2268 = vmatprep.subr.mxu0 0.0
  %2269 = vmatpush1.msra.mxu0 0.0
  %2270 = vmatprep.subr.mxu0 0.0
  %2271 = vmatpush1.msra.mxu0 0.0
  %2272 = vmatprep.subr.mxu0 0.0
  %2273 = vmatpush1.msra.mxu0 0.0
  %2274 = vmatprep.subr.mxu0 0.0
  %2275 = vmatpush1.msra.mxu0 0.0
  %2276 = vmatprep.subr.mxu0 0.0
  %2277 = vmatpush1.msra.mxu0 0.0
  %2278 = vmatprep.subr.mxu0 0.0
  %2279 = vmatpush1.msra.mxu0 0.0
  %2280 = vmatprep.subr.mxu0 0.0
  %2281 = vmatpush1.msra.mxu0 0.0
  %2282 = vmatprep.subr.mxu0 0.0
  %2283 = vmatpush1.msra.mxu0 0.0
  %2284 = vmatprep.subr.mxu0 0.0
  %2285 = vmatpush1.msra.mxu0 0.0
  %2286 = vmatprep.subr.mxu0 0.0
  %2287 = vmatpush1.msra.mxu0 0.0
  %2288 = vmatprep.subr.mxu0 0.0
  %2289 = vmatpush1.msra.mxu0 0.0
  %2290 = vmatprep.subr.mxu0 0.0
  %2291 = vmatpush1.msra.mxu0 0.0
  %2292 = vmatprep.subr.mxu0 0.0
  %2293 = vmatpush1.msra.mxu0 0.0
  %2294 = vmatprep.subr.mxu0 0.0
  %2295 = vmatpush1.msra.mxu0 0.0
  %2296 = vmatprep.subr.mxu0 0.0
  %2297 = vmatpush1.msra.mxu0 0.0
  %2298 = vmatprep.subr.mxu0 0.0
  %2299 = vmatpush1.msra.mxu0 0.0
  %2300 = vmatprep.subr.mxu0 0.0
  %2301 = vmatpush1.msra.mxu0 0.0
  %2302 = vmatprep.subr.mxu0 0.0
  %2303 = vmatpush1.msra.mxu0 0.0
  %2304 = vmatprep.subr.mxu0 0.0
  %2305 = vmatpush1.msra.mxu0 0.0
  %2306 = vmatprep.subr.mxu0 0.0
  %2307 = vmatpush1.msra.mxu0 0.0
  %2308 = vmatprep.subr.mxu0 0.0
  %2309 = vmatpush1.msra.mxu0 0.0
  %2310 = vmatprep.mubr.f32.mxu0 0.0
  %2311 = vmatmul.mubr.f32.gmra.mrb[0].mxu0 %v2244
  %v2312 = vpop.f32.mrb[0].mxu0
  %v2313 = vadd.f32 %v2240, %v2312
  %v2314 = vpop.f32.mrb[0].mxu0
  %2315 = vdwg.mxu0
  %v2316 = vadd.f32 %v2313, %v99
  %v2317 = vxor.u32 %v2316, 2147483648
  %v2318 = vmul.f32 %v2317, 1.442695
  %v2319 = vpow.pop %v2318
  %v2320 = vadd.f32 %v2319, 1.0
  %v2321 = vrcp.pop %v2320
  %v2322 = vmul.f32 1.0, %v2321
  %2323 = vmatprep.subr.mxu0 0.0
  %2324 = vmatpush1.msra.mxu0 %v75
  %2325 = vmatprep.subr.mxu0 0.0
  %2326 = vmatpush1.msra.mxu0 %v76
  %2327 = vmatprep.subr.mxu0 0.0
  %2328 = vmatpush1.msra.mxu0 %v77
  %2329 = vmatprep.subr.mxu0 0.0
  %2330 = vmatpush1.msra.mxu0 %v78
  %2331 = vmatprep.subr.mxu0 0.0
  %2332 = vmatpush1.msra.mxu0 0.0
  %2333 = vmatprep.subr.mxu0 0.0
  %2334 = vmatpush1.msra.mxu0 0.0
  %2335 = vmatprep.subr.mxu0 0.0
  %2336 = vmatpush1.msra.mxu0 0.0
  %2337 = vmatprep.subr.mxu0 0.0
  %2338 = vmatpush1.msra.mxu0 0.0
  %2339 = vmatprep.subr.mxu0 0.0
  %2340 = vmatpush1.msra.mxu0 0.0
  %2341 = vmatprep.subr.mxu0 0.0
  %2342 = vmatpush1.msra.mxu0 0.0
  %2343 = vmatprep.subr.mxu0 0.0
  %2344 = vmatpush1.msra.mxu0 0.0
  %2345 = vmatprep.subr.mxu0 0.0
  %2346 = vmatpush1.msra.mxu0 0.0
  %2347 = vmatprep.subr.mxu0 0.0
  %2348 = vmatpush1.msra.mxu0 0.0
  %2349 = vmatprep.subr.mxu0 0.0
  %2350 = vmatpush1.msra.mxu0 0.0
  %2351 = vmatprep.subr.mxu0 0.0
  %2352 = vmatpush1.msra.mxu0 0.0
  %2353 = vmatprep.subr.mxu0 0.0
  %2354 = vmatpush1.msra.mxu0 0.0
  %2355 = vmatprep.subr.mxu0 0.0
  %2356 = vmatpush1.msra.mxu0 0.0
  %2357 = vmatprep.subr.mxu0 0.0
  %2358 = vmatpush1.msra.mxu0 0.0
  %2359 = vmatprep.subr.mxu0 0.0
  %2360 = vmatpush1.msra.mxu0 0.0
  %2361 = vmatprep.subr.mxu0 0.0
  %2362 = vmatpush1.msra.mxu0 0.0
  %2363 = vmatprep.subr.mxu0 0.0
  %2364 = vmatpush1.msra.mxu0 0.0
  %2365 = vmatprep.subr.mxu0 0.0
  %2366 = vmatpush1.msra.mxu0 0.0
  %2367 = vmatprep.subr.mxu0 0.0
  %2368 = vmatpush1.msra.mxu0 0.0
  %2369 = vmatprep.subr.mxu0 0.0
  %2370 = vmatpush1.msra.mxu0 0.0
  %2371 = vmatprep.subr.mxu0 0.0
  %2372 = vmatpush1.msra.mxu0 0.0
  %2373 = vmatprep.subr.mxu0 0.0
  %2374 = vmatpush1.msra.mxu0 0.0
  %2375 = vmatprep.subr.mxu0 0.0
  %2376 = vmatpush1.msra.mxu0 0.0
  %2377 = vmatprep.subr.mxu0 0.0
  %2378 = vmatpush1.msra.mxu0 0.0
  %2379 = vmatprep.subr.mxu0 0.0
  %2380 = vmatpush1.msra.mxu0 0.0
  %2381 = vmatprep.subr.mxu0 0.0
  %2382 = vmatpush1.msra.mxu0 0.0
  %2383 = vmatprep.subr.mxu0 0.0
  %2384 = vmatpush1.msra.mxu0 0.0
  %2385 = vmatprep.subr.mxu0 0.0
  %2386 = vmatpush1.msra.mxu0 0.0
  %2387 = vmatprep.mubr.f32.mxu0 0.0
  %2388 = vmatmul.mubr.f32.gmra.mrb[0].mxu0 %v2171
  %v2389 = vpop.f32.mrb[0].mxu0
  %v2390 = vadd.f32 0.0, %v2389
  %v2391 = vpop.f32.mrb[0].mxu0
  %2392 = vdwg.mxu0
  %2393 = vmatprep.subr.mxu0 0.0
  %2394 = vmatpush1.msra.mxu0 %v61
  %2395 = vmatprep.subr.mxu0 0.0
  %2396 = vmatpush1.msra.mxu0 %v62
  %2397 = vmatprep.subr.mxu0 0.0
  %2398 = vmatpush1.msra.mxu0 %v63
  %2399 = vmatprep.subr.mxu0 0.0
  %2400 = vmatpush1.msra.mxu0 %v64
  %2401 = vmatprep.subr.mxu0 0.0
  %2402 = vmatpush1.msra.mxu0 0.0
  %2403 = vmatprep.subr.mxu0 0.0
  %2404 = vmatpush1.msra.mxu0 0.0
  %2405 = vmatprep.subr.mxu0 0.0
  %2406 = vmatpush1.msra.mxu0 0.0
  %2407 = vmatprep.subr.mxu0 0.0
  %2408 = vmatpush1.msra.mxu0 0.0
  %2409 = vmatprep.subr.mxu0 0.0
  %2410 = vmatpush1.msra.mxu0 0.0
  %2411 = vmatprep.subr.mxu0 0.0
  %2412 = vmatpush1.msra.mxu0 0.0
  %2413 = vmatprep.subr.mxu0 0.0
  %2414 = vmatpush1.msra.mxu0 0.0
  %2415 = vmatprep.subr.mxu0 0.0
  %2416 = vmatpush1.msra.mxu0 0.0
  %2417 = vmatprep.subr.mxu0 0.0
  %2418 = vmatpush1.msra.mxu0 0.0
  %2419 = vmatprep.subr.mxu0 0.0
  %2420 = vmatpush1.msra.mxu0 0.0
  %2421 = vmatprep.subr.mxu0 0.0
  %2422 = vmatpush1.msra.mxu0 0.0
  %2423 = vmatprep.subr.mxu0 0.0
  %2424 = vmatpush1.msra.mxu0 0.0
  %2425 = vmatprep.subr.mxu0 0.0
  %2426 = vmatpush1.msra.mxu0 0.0
  %2427 = vmatprep.subr.mxu0 0.0
  %2428 = vmatpush1.msra.mxu0 0.0
  %2429 = vmatprep.subr.mxu0 0.0
  %2430 = vmatpush1.msra.mxu0 0.0
  %2431 = vmatprep.subr.mxu0 0.0
  %2432 = vmatpush1.msra.mxu0 0.0
  %2433 = vmatprep.subr.mxu0 0.0
  %2434 = vmatpush1.msra.mxu0 0.0
  %2435 = vmatprep.subr.mxu0 0.0
  %2436 = vmatpush1.msra.mxu0 0.0
  %2437 = vmatprep.subr.mxu0 0.0
  %2438 = vmatpush1.msra.mxu0 0.0
  %2439 = vmatprep.subr.mxu0 0.0
  %2440 = vmatpush1.msra.mxu0 0.0
  %2441 = vmatprep.subr.mxu0 0.0
  %2442 = vmatpush1.msra.mxu0 0.0
  %2443 = vmatprep.subr.mxu0 0.0
  %2444 = vmatpush1.msra.mxu0 0.0
  %2445 = vmatprep.subr.mxu0 0.0
  %2446 = vmatpush1.msra.mxu0 0.0
  %2447 = vmatprep.subr.mxu0 0.0
  %2448 = vmatpush1.msra.mxu0 0.0
  %2449 = vmatprep.subr.mxu0 0.0
  %2450 = vmatpush1.msra.mxu0 0.0
  %2451 = vmatprep.subr.mxu0 0.0
  %2452 = vmatpush1.msra.mxu0 0.0
  %2453 = vmatprep.subr.mxu0 0.0
  %2454 = vmatpush1.msra.mxu0 0.0
  %2455 = vmatprep.subr.mxu0 0.0
  %2456 = vmatpush1.msra.mxu0 0.0
  %2457 = vmatprep.mubr.f32.mxu0 0.0
  %2458 = vmatmul.mubr.f32.gmra.mrb[0].mxu0 %v2244
  %v2459 = vpop.f32.mrb[0].mxu0
  %v2460 = vadd.f32 %v2390, %v2459
  %v2461 = vpop.f32.mrb[0].mxu0
  %2462 = vdwg.mxu0
  %v2463 = vadd.f32 %v2460, %v110
  %v2464 = vxor.u32 %v2463, 2147483648
  %v2465 = vmul.f32 %v2464, 1.442695
  %v2466 = vpow.pop %v2465
  %v2467 = vadd.f32 %v2466, 1.0
  %v2468 = vrcp.pop %v2467
  %v2469 = vmul.f32 1.0, %v2468
  %2470 = vmatprep.subr.mxu0 0.0
  %2471 = vmatpush1.msra.mxu0 %v66
  %2472 = vmatprep.subr.mxu0 0.0
  %2473 = vmatpush1.msra.mxu0 %v67
  %2474 = vmatprep.subr.mxu0 0.0
  %2475 = vmatpush1.msra.mxu0 %v68
  %2476 = vmatprep.subr.mxu0 0.0
  %2477 = vmatpush1.msra.mxu0 %v69
  %2478 = vmatprep.subr.mxu0 0.0
  %2479 = vmatpush1.msra.mxu0 0.0
  %2480 = vmatprep.subr.mxu0 0.0
  %2481 = vmatpush1.msra.mxu0 0.0
  %2482 = vmatprep.subr.mxu0 0.0
  %2483 = vmatpush1.msra.mxu0 0.0
  %2484 = vmatprep.subr.mxu0 0.0
  %2485 = vmatpush1.msra.mxu0 0.0
  %2486 = vmatprep.subr.mxu0 0.0
  %2487 = vmatpush1.msra.mxu0 0.0
  %2488 = vmatprep.subr.mxu0 0.0
  %2489 = vmatpush1.msra.mxu0 0.0
  %2490 = vmatprep.subr.mxu0 0.0
  %2491 = vmatpush1.msra.mxu0 0.0
  %2492 = vmatprep.subr.mxu0 0.0
  %2493 = vmatpush1.msra.mxu0 0.0
  %2494 = vmatprep.subr.mxu0 0.0
  %2495 = vmatpush1.msra.mxu0 0.0
  %2496 = vmatprep.subr.mxu0 0.0
  %2497 = vmatpush1.msra.mxu0 0.0
  %2498 = vmatprep.subr.mxu0 0.0
  %2499 = vmatpush1.msra.mxu0 0.0
  %2500 = vmatprep.subr.mxu0 0.0
  %2501 = vmatpush1.msra.mxu0 0.0
  %2502 = vmatprep.subr.mxu0 0.0
  %2503 = vmatpush1.msra.mxu0 0.0
  %2504 = vmatprep.subr.mxu0 0.0
  %2505 = vmatpush1.msra.mxu0 0.0
  %2506 = vmatprep.subr.mxu0 0.0
  %2507 = vmatpush1.msra.mxu0 0.0
  %2508 = vmatprep.subr.mxu0 0.0
  %2509 = vmatpush1.msra.mxu0 0.0
  %2510 = vmatprep.subr.mxu0 0.0
  %2511 = vmatpush1.msra.mxu0 0.0
  %2512 = vmatprep.subr.mxu0 0.0
  %2513 = vmatpush1.msra.mxu0 0.0
  %2514 = vmatprep.subr.mxu0 0.0
  %2515 = vmatpush1.msra.mxu0 0.0
  %2516 = vmatprep.subr.mxu0 0.0
  %2517 = vmatpush1.msra.mxu0 0.0
  %2518 = vmatprep.subr.mxu0 0.0
  %2519 = vmatpush1.msra.mxu0 0.0
  %2520 = vmatprep.subr.mxu0 0.0
  %2521 = vmatpush1.msra.mxu0 0.0
  %2522 = vmatprep.subr.mxu0 0.0
  %2523 = vmatpush1.msra.mxu0 0.0
  %2524 = vmatprep.subr.mxu0 0.0
  %2525 = vmatpush1.msra.mxu0 0.0
  %2526 = vmatprep.subr.mxu0 0.0
  %2527 = vmatpush1.msra.mxu0 0.0
  %2528 = vmatprep.subr.mxu0 0.0
  %2529 = vmatpush1.msra.mxu0 0.0
  %2530 = vmatprep.subr.mxu0 0.0
  %2531 = vmatpush1.msra.mxu0 0.0
  %2532 = vmatprep.subr.mxu0 0.0
  %2533 = vmatpush1.msra.mxu0 0.0
  %2534 = vmatprep.mubr.f32.mxu0 0.0
  %2535 = vmatmul.mubr.f32.gmra.mrb[0].mxu0 %v2244
  %v2536 = vpop.f32.mrb[0].mxu0
  %v2537 = vadd.f32 %v118, %v2536
  %v2538 = vpop.f32.mrb[0].mxu0
  %2539 = vdwg.mxu0
  %2540 = vmatprep.subr.mxu0 0.0
  %2541 = vmatpush1.msra.mxu0 %v80
  %2542 = vmatprep.subr.mxu0 0.0
  %2543 = vmatpush1.msra.mxu0 %v81
  %2544 = vmatprep.subr.mxu0 0.0
  %2545 = vmatpush1.msra.mxu0 %v82
  %2546 = vmatprep.subr.mxu0 0.0
  %2547 = vmatpush1.msra.mxu0 %v83
  %2548 = vmatprep.subr.mxu0 0.0
  %2549 = vmatpush1.msra.mxu0 0.0
  %2550 = vmatprep.subr.mxu0 0.0
  %2551 = vmatpush1.msra.mxu0 0.0
  %2552 = vmatprep.subr.mxu0 0.0
  %2553 = vmatpush1.msra.mxu0 0.0
  %2554 = vmatprep.subr.mxu0 0.0
  %2555 = vmatpush1.msra.mxu0 0.0
  %2556 = vmatprep.subr.mxu0 0.0
  %2557 = vmatpush1.msra.mxu0 0.0
  %2558 = vmatprep.subr.mxu0 0.0
  %2559 = vmatpush1.msra.mxu0 0.0
  %2560 = vmatprep.subr.mxu0 0.0
  %2561 = vmatpush1.msra.mxu0 0.0
  %2562 = vmatprep.subr.mxu0 0.0
  %2563 = vmatpush1.msra.mxu0 0.0
  %2564 = vmatprep.subr.mxu0 0.0
  %2565 = vmatpush1.msra.mxu0 0.0
  %2566 = vmatprep.subr.mxu0 0.0
  %2567 = vmatpush1.msra.mxu0 0.0
  %2568 = vmatprep.subr.mxu0 0.0
  %2569 = vmatpush1.msra.mxu0 0.0
  %2570 = vmatprep.subr.mxu0 0.0
  %2571 = vmatpush1.msra.mxu0 0.0
  %2572 = vmatprep.subr.mxu0 0.0
  %2573 = vmatpush1.msra.mxu0 0.0
  %2574 = vmatprep.subr.mxu0 0.0
  %2575 = vmatpush1.msra.mxu0 0.0
  %2576 = vmatprep.subr.mxu0 0.0
  %2577 = vmatpush1.msra.mxu0 0.0
  %2578 = vmatprep.subr.mxu0 0.0
  %2579 = vmatpush1.msra.mxu0 0.0
  %2580 = vmatprep.subr.mxu0 0.0
  %2581 = vmatpush1.msra.mxu0 0.0
  %2582 = vmatprep.subr.mxu0 0.0
  %2583 = vmatpush1.msra.mxu0 0.0
  %2584 = vmatprep.subr.mxu0 0.0
  %2585 = vmatpush1.msra.mxu0 0.0
  %2586 = vmatprep.subr.mxu0 0.0
  %2587 = vmatpush1.msra.mxu0 0.0
  %2588 = vmatprep.subr.mxu0 0.0
  %2589 = vmatpush1.msra.mxu0 0.0
  %2590 = vmatprep.subr.mxu0 0.0
  %2591 = vmatpush1.msra.mxu0 0.0
  %2592 = vmatprep.subr.mxu0 0.0
  %2593 = vmatpush1.msra.mxu0 0.0
  %2594 = vmatprep.subr.mxu0 0.0
  %2595 = vmatpush1.msra.mxu0 0.0
  %2596 = vmatprep.subr.mxu0 0.0
  %2597 = vmatpush1.msra.mxu0 0.0
  %2598 = vmatprep.subr.mxu0 0.0
  %2599 = vmatpush1.msra.mxu0 0.0
  %2600 = vmatprep.subr.mxu0 0.0
  %2601 = vmatpush1.msra.mxu0 0.0
  %2602 = vmatprep.subr.mxu0 0.0
  %2603 = vmatpush1.msra.mxu0 0.0
  %2604 = vmatprep.mubr.f32.mxu0 0.0
  %2605 = vmatmul.mubr.f32.gmra.mrb[0].mxu0 %v2171
  %v2606 = vpop.f32.mrb[0].mxu0
  %v2607 = vadd.f32 %v126, %v2606
  %v2608 = vpop.f32.mrb[0].mxu0
  %2609 = vdwg.mxu0
  %v2610 = vmul.f32 %v2322, %v2607
  %v2611 = vadd.f32 %v2537, %v2610
  %v2612 = vtanh.pop %v2611
  %v2613 = vsub.f32 1.0, %v2469
  %v2614 = vmul.f32 %v2613, %v2612
  %v2615 = vmul.f32 %v2469, %v1930
  %v2616 = vadd.f32 %v2614, %v2615
  %v2617 = vsub.f32 %v2169, %v1927
  %2619 = vset.pattern.permute.xlu0 0
  %2620 = vperm.xlu0 %2619, %v1935
  %v2621 = vpop.permute.xlu0 %2620
  %v2623 = vmul.f32 %v2621, %v2617
  %v2624 = vadd.f32 %v1927, %v2623
  %v2625 = vsub.f32 %v2616, %v1930
  %v2626 = vmul.f32 %v2621, %v2625
  %v2627 = vadd.f32 %v1930, %v2626
  %v2628 = vmul.f32 %v2621, %v2616
  %v2629 = vadd.f32 %v1932, %v2628
  %vm2630 = vcmp.gt.s32.totalorder %v41, 3
  %v2631 = vsel %vm2630, 1, 0
  %v2632 = vcvt.s32.f32 %v2631
  %v2634 = vsel %vm548, %v2624, 0
  %2636 = vmatprep.subr.mxu0 0.0
  %2637 = vmatpush1.msra.mxu0 %v42
  %2638 = vmatprep.subr.mxu0 0.0
  %2639 = vmatpush1.msra.mxu0 %v43
  %2640 = vmatprep.subr.mxu0 0.0
  %2641 = vmatpush1.msra.mxu0 %v44
  %2642 = vmatprep.subr.mxu0 0.0
  %2643 = vmatpush1.msra.mxu0 %v45
  %2644 = vmatprep.subr.mxu0 0.0
  %2645 = vmatpush1.msra.mxu0 0.0
  %2646 = vmatprep.subr.mxu0 0.0
  %2647 = vmatpush1.msra.mxu0 0.0
  %2648 = vmatprep.subr.mxu0 0.0
  %2649 = vmatpush1.msra.mxu0 0.0
  %2650 = vmatprep.subr.mxu0 0.0
  %2651 = vmatpush1.msra.mxu0 0.0
  %2652 = vmatprep.subr.mxu0 0.0
  %2653 = vmatpush1.msra.mxu0 0.0
  %2654 = vmatprep.subr.mxu0 0.0
  %2655 = vmatpush1.msra.mxu0 0.0
  %2656 = vmatprep.subr.mxu0 0.0
  %2657 = vmatpush1.msra.mxu0 0.0
  %2658 = vmatprep.subr.mxu0 0.0
  %2659 = vmatpush1.msra.mxu0 0.0
  %2660 = vmatprep.subr.mxu0 0.0
  %2661 = vmatpush1.msra.mxu0 0.0
  %2662 = vmatprep.subr.mxu0 0.0
  %2663 = vmatpush1.msra.mxu0 0.0
  %2664 = vmatprep.subr.mxu0 0.0
  %2665 = vmatpush1.msra.mxu0 0.0
  %2666 = vmatprep.subr.mxu0 0.0
  %2667 = vmatpush1.msra.mxu0 0.0
  %2668 = vmatprep.subr.mxu0 0.0
  %2669 = vmatpush1.msra.mxu0 0.0
  %2670 = vmatprep.subr.mxu0 0.0
  %2671 = vmatpush1.msra.mxu0 0.0
  %2672 = vmatprep.subr.mxu0 0.0
  %2673 = vmatpush1.msra.mxu0 0.0
  %2674 = vmatprep.subr.mxu0 0.0
  %2675 = vmatpush1.msra.mxu0 0.0
  %2676 = vmatprep.subr.mxu0 0.0
  %2677 = vmatpush1.msra.mxu0 0.0
  %2678 = vmatprep.subr.mxu0 0.0
  %2679 = vmatpush1.msra.mxu0 0.0
  %2680 = vmatprep.subr.mxu0 0.0
  %2681 = vmatpush1.msra.mxu0 0.0
  %2682 = vmatprep.subr.mxu0 0.0
  %2683 = vmatpush1.msra.mxu0 0.0
  %2684 = vmatprep.subr.mxu0 0.0
  %2685 = vmatpush1.msra.mxu0 0.0
  %2686 = vmatprep.subr.mxu0 0.0
  %2687 = vmatpush1.msra.mxu0 0.0
  %2688 = vmatprep.subr.mxu0 0.0
  %2689 = vmatpush1.msra.mxu0 0.0
  %2690 = vmatprep.subr.mxu0 0.0
  %2691 = vmatpush1.msra.mxu0 0.0
  %2692 = vmatprep.subr.mxu0 0.0
  %2693 = vmatpush1.msra.mxu0 0.0
  %2694 = vmatprep.subr.mxu0 0.0
  %2695 = vmatpush1.msra.mxu0 0.0
  %2696 = vmatprep.subr.mxu0 0.0
  %2697 = vmatpush1.msra.mxu0 0.0
  %2698 = vmatprep.subr.mxu0 0.0
  %2699 = vmatpush1.msra.mxu0 0.0
  %2700 = vmatprep.mubr.f32.mxu0 0.0
  %2701 = vmatmul.mubr.f32.gmra.mrb[0].mxu0 %v2634
  %v2702 = vpop.f32.mrb[0].mxu0
  %v2703 = vadd.f32 0.0, %v2702
  %v2704 = vpop.f32.mrb[0].mxu0
  %2705 = vdwg.mxu0
  %v2706 = vadd.f32 %v288, %v2703
  %v2707 = vxor.u32 %v2706, 2147483648
  %v2708 = vmul.f32 %v2707, 1.442695
  %v2709 = vpow.pop %v2708
  %v2710 = vadd.f32 %v2709, 1.0
  %v2711 = vrcp.pop %v2710
  %v2712 = vmul.f32 1.0, %v2711
  %2713 = vmatprep.subr.mxu0 0.0
  %2714 = vmatpush1.msra.mxu0 %v47
  %2715 = vmatprep.subr.mxu0 0.0
  %2716 = vmatpush1.msra.mxu0 %v48
  %2717 = vmatprep.subr.mxu0 0.0
  %2718 = vmatpush1.msra.mxu0 %v49
  %2719 = vmatprep.subr.mxu0 0.0
  %2720 = vmatpush1.msra.mxu0 %v50
  %2721 = vmatprep.subr.mxu0 0.0
  %2722 = vmatpush1.msra.mxu0 0.0
  %2723 = vmatprep.subr.mxu0 0.0
  %2724 = vmatpush1.msra.mxu0 0.0
  %2725 = vmatprep.subr.mxu0 0.0
  %2726 = vmatpush1.msra.mxu0 0.0
  %2727 = vmatprep.subr.mxu0 0.0
  %2728 = vmatpush1.msra.mxu0 0.0
  %2729 = vmatprep.subr.mxu0 0.0
  %2730 = vmatpush1.msra.mxu0 0.0
  %2731 = vmatprep.subr.mxu0 0.0
  %2732 = vmatpush1.msra.mxu0 0.0
  %2733 = vmatprep.subr.mxu0 0.0
  %2734 = vmatpush1.msra.mxu0 0.0
  %2735 = vmatprep.subr.mxu0 0.0
  %2736 = vmatpush1.msra.mxu0 0.0
  %2737 = vmatprep.subr.mxu0 0.0
  %2738 = vmatpush1.msra.mxu0 0.0
  %2739 = vmatprep.subr.mxu0 0.0
  %2740 = vmatpush1.msra.mxu0 0.0
  %2741 = vmatprep.subr.mxu0 0.0
  %2742 = vmatpush1.msra.mxu0 0.0
  %2743 = vmatprep.subr.mxu0 0.0
  %2744 = vmatpush1.msra.mxu0 0.0
  %2745 = vmatprep.subr.mxu0 0.0
  %2746 = vmatpush1.msra.mxu0 0.0
  %2747 = vmatprep.subr.mxu0 0.0
  %2748 = vmatpush1.msra.mxu0 0.0
  %2749 = vmatprep.subr.mxu0 0.0
  %2750 = vmatpush1.msra.mxu0 0.0
  %2751 = vmatprep.subr.mxu0 0.0
  %2752 = vmatpush1.msra.mxu0 0.0
  %2753 = vmatprep.subr.mxu0 0.0
  %2754 = vmatpush1.msra.mxu0 0.0
  %2755 = vmatprep.subr.mxu0 0.0
  %2756 = vmatpush1.msra.mxu0 0.0
  %2757 = vmatprep.subr.mxu0 0.0
  %2758 = vmatpush1.msra.mxu0 0.0
  %2759 = vmatprep.subr.mxu0 0.0
  %2760 = vmatpush1.msra.mxu0 0.0
  %2761 = vmatprep.subr.mxu0 0.0
  %2762 = vmatpush1.msra.mxu0 0.0
  %2763 = vmatprep.subr.mxu0 0.0
  %2764 = vmatpush1.msra.mxu0 0.0
  %2765 = vmatprep.subr.mxu0 0.0
  %2766 = vmatpush1.msra.mxu0 0.0
  %2767 = vmatprep.subr.mxu0 0.0
  %2768 = vmatpush1.msra.mxu0 0.0
  %2769 = vmatprep.subr.mxu0 0.0
  %2770 = vmatpush1.msra.mxu0 0.0
  %2771 = vmatprep.subr.mxu0 0.0
  %2772 = vmatpush1.msra.mxu0 0.0
  %2773 = vmatprep.subr.mxu0 0.0
  %2774 = vmatpush1.msra.mxu0 0.0
  %2775 = vmatprep.subr.mxu0 0.0
  %2776 = vmatpush1.msra.mxu0 0.0
  %2777 = vmatprep.mubr.f32.mxu0 0.0
  %2778 = vmatmul.mubr.f32.gmra.mrb[0].mxu0 %v2634
  %v2779 = vpop.f32.mrb[0].mxu0
  %v2780 = vadd.f32 0.0, %v2779
  %v2781 = vpop.f32.mrb[0].mxu0
  %2782 = vdwg.mxu0
  %v2783 = vadd.f32 %v422, %v2780
  %v2784 = vxor.u32 %v2783, 2147483648
  %v2785 = vmul.f32 %v2784, 1.442695
  %v2786 = vpow.pop %v2785
  %v2787 = vadd.f32 %v2786, 1.0
  %v2788 = vrcp.pop %v2787
  %v2789 = vmul.f32 1.0, %v2788
  %2790 = vmatprep.subr.mxu0 0.0
  %2791 = vmatpush1.msra.mxu0 %v52
  %2792 = vmatprep.subr.mxu0 0.0
  %2793 = vmatpush1.msra.mxu0 %v53
  %2794 = vmatprep.subr.mxu0 0.0
  %2795 = vmatpush1.msra.mxu0 %v54
  %2796 = vmatprep.subr.mxu0 0.0
  %2797 = vmatpush1.msra.mxu0 %v55
  %2798 = vmatprep.subr.mxu0 0.0
  %2799 = vmatpush1.msra.mxu0 0.0
  %2800 = vmatprep.subr.mxu0 0.0
  %2801 = vmatpush1.msra.mxu0 0.0
  %2802 = vmatprep.subr.mxu0 0.0
  %2803 = vmatpush1.msra.mxu0 0.0
  %2804 = vmatprep.subr.mxu0 0.0
  %2805 = vmatpush1.msra.mxu0 0.0
  %2806 = vmatprep.subr.mxu0 0.0
  %2807 = vmatpush1.msra.mxu0 0.0
  %2808 = vmatprep.subr.mxu0 0.0
  %2809 = vmatpush1.msra.mxu0 0.0
  %2810 = vmatprep.subr.mxu0 0.0
  %2811 = vmatpush1.msra.mxu0 0.0
  %2812 = vmatprep.subr.mxu0 0.0
  %2813 = vmatpush1.msra.mxu0 0.0
  %2814 = vmatprep.subr.mxu0 0.0
  %2815 = vmatpush1.msra.mxu0 0.0
  %2816 = vmatprep.subr.mxu0 0.0
  %2817 = vmatpush1.msra.mxu0 0.0
  %2818 = vmatprep.subr.mxu0 0.0
  %2819 = vmatpush1.msra.mxu0 0.0
  %2820 = vmatprep.subr.mxu0 0.0
  %2821 = vmatpush1.msra.mxu0 0.0
  %2822 = vmatprep.subr.mxu0 0.0
  %2823 = vmatpush1.msra.mxu0 0.0
  %2824 = vmatprep.subr.mxu0 0.0
  %2825 = vmatpush1.msra.mxu0 0.0
  %2826 = vmatprep.subr.mxu0 0.0
  %2827 = vmatpush1.msra.mxu0 0.0
  %2828 = vmatprep.subr.mxu0 0.0
  %2829 = vmatpush1.msra.mxu0 0.0
  %2830 = vmatprep.subr.mxu0 0.0
  %2831 = vmatpush1.msra.mxu0 0.0
  %2832 = vmatprep.subr.mxu0 0.0
  %2833 = vmatpush1.msra.mxu0 0.0
  %2834 = vmatprep.subr.mxu0 0.0
  %2835 = vmatpush1.msra.mxu0 0.0
  %2836 = vmatprep.subr.mxu0 0.0
  %2837 = vmatpush1.msra.mxu0 0.0
  %2838 = vmatprep.subr.mxu0 0.0
  %2839 = vmatpush1.msra.mxu0 0.0
  %2840 = vmatprep.subr.mxu0 0.0
  %2841 = vmatpush1.msra.mxu0 0.0
  %2842 = vmatprep.subr.mxu0 0.0
  %2843 = vmatpush1.msra.mxu0 0.0
  %2844 = vmatprep.subr.mxu0 0.0
  %2845 = vmatpush1.msra.mxu0 0.0
  %2846 = vmatprep.subr.mxu0 0.0
  %2847 = vmatpush1.msra.mxu0 0.0
  %2848 = vmatprep.subr.mxu0 0.0
  %2849 = vmatpush1.msra.mxu0 0.0
  %2850 = vmatprep.subr.mxu0 0.0
  %2851 = vmatpush1.msra.mxu0 0.0
  %2852 = vmatprep.subr.mxu0 0.0
  %2853 = vmatpush1.msra.mxu0 0.0
  %2854 = vmatprep.mubr.f32.mxu0 0.0
  %2855 = vmatmul.mubr.f32.gmra.mrb[0].mxu0 %v2634
  %v2856 = vpop.f32.mrb[0].mxu0
  %v2857 = vadd.f32 %v90, %v2856
  %v2858 = vpop.f32.mrb[0].mxu0
  %2859 = vdwg.mxu0
  %v2860 = vmul.f32 %v2712, %v2857
  %v2861 = vadd.f32 %v522, %v2860
  %v2862 = vtanh.pop %v2861
  %v2863 = vsub.f32 1.0, %v2789
  %v2864 = vmul.f32 %v2863, %v2862
  %v2865 = vmul.f32 %v2789, %v2624
  %v2866 = vadd.f32 %v2864, %v2865
  %v2868 = vsel %vm548, %v2627, 0
  %2870 = vmatprep.subr.mxu0 0.0
  %2871 = vmatpush1.msra.mxu0 %v70
  %2872 = vmatprep.subr.mxu0 0.0
  %2873 = vmatpush1.msra.mxu0 %v71
  %2874 = vmatprep.subr.mxu0 0.0
  %2875 = vmatpush1.msra.mxu0 %v72
  %2876 = vmatprep.subr.mxu0 0.0
  %2877 = vmatpush1.msra.mxu0 %v73
  %2878 = vmatprep.subr.mxu0 0.0
  %2879 = vmatpush1.msra.mxu0 0.0
  %2880 = vmatprep.subr.mxu0 0.0
  %2881 = vmatpush1.msra.mxu0 0.0
  %2882 = vmatprep.subr.mxu0 0.0
  %2883 = vmatpush1.msra.mxu0 0.0
  %2884 = vmatprep.subr.mxu0 0.0
  %2885 = vmatpush1.msra.mxu0 0.0
  %2886 = vmatprep.subr.mxu0 0.0
  %2887 = vmatpush1.msra.mxu0 0.0
  %2888 = vmatprep.subr.mxu0 0.0
  %2889 = vmatpush1.msra.mxu0 0.0
  %2890 = vmatprep.subr.mxu0 0.0
  %2891 = vmatpush1.msra.mxu0 0.0
  %2892 = vmatprep.subr.mxu0 0.0
  %2893 = vmatpush1.msra.mxu0 0.0
  %2894 = vmatprep.subr.mxu0 0.0
  %2895 = vmatpush1.msra.mxu0 0.0
  %2896 = vmatprep.subr.mxu0 0.0
  %2897 = vmatpush1.msra.mxu0 0.0
  %2898 = vmatprep.subr.mxu0 0.0
  %2899 = vmatpush1.msra.mxu0 0.0
  %2900 = vmatprep.subr.mxu0 0.0
  %2901 = vmatpush1.msra.mxu0 0.0
  %2902 = vmatprep.subr.mxu0 0.0
  %2903 = vmatpush1.msra.mxu0 0.0
  %2904 = vmatprep.subr.mxu0 0.0
  %2905 = vmatpush1.msra.mxu0 0.0
  %2906 = vmatprep.subr.mxu0 0.0
  %2907 = vmatpush1.msra.mxu0 0.0
  %2908 = vmatprep.subr.mxu0 0.0
  %2909 = vmatpush1.msra.mxu0 0.0
  %2910 = vmatprep.subr.mxu0 0.0
  %2911 = vmatpush1.msra.mxu0 0.0
  %2912 = vmatprep.subr.mxu0 0.0
  %2913 = vmatpush1.msra.mxu0 0.0
  %2914 = vmatprep.subr.mxu0 0.0
  %2915 = vmatpush1.msra.mxu0 0.0
  %2916 = vmatprep.subr.mxu0 0.0
  %2917 = vmatpush1.msra.mxu0 0.0
  %2918 = vmatprep.subr.mxu0 0.0
  %2919 = vmatpush1.msra.mxu0 0.0
  %2920 = vmatprep.subr.mxu0 0.0
  %2921 = vmatpush1.msra.mxu0 0.0
  %2922 = vmatprep.subr.mxu0 0.0
  %2923 = vmatpush1.msra.mxu0 0.0
  %2924 = vmatprep.subr.mxu0 0.0
  %2925 = vmatpush1.msra.mxu0 0.0
  %2926 = vmatprep.subr.mxu0 0.0
  %2927 = vmatpush1.msra.mxu0 0.0
  %2928 = vmatprep.subr.mxu0 0.0
  %2929 = vmatpush1.msra.mxu0 0.0
  %2930 = vmatprep.subr.mxu0 0.0
  %2931 = vmatpush1.msra.mxu0 0.0
  %2932 = vmatprep.subr.mxu0 0.0
  %2933 = vmatpush1.msra.mxu0 0.0
  %2934 = vmatprep.mubr.f32.mxu0 0.0
  %2935 = vmatmul.mubr.f32.gmra.mrb[0].mxu0 %v2868
  %v2936 = vpop.f32.mrb[0].mxu0
  %v2937 = vadd.f32 0.0, %v2936
  %v2938 = vpop.f32.mrb[0].mxu0
  %2939 = vdwg.mxu0
  %v2941 = vsel %vm548, %v2866, 0
  %2943 = vmatprep.subr.mxu0 0.0
  %2944 = vmatpush1.msra.mxu0 %v56
  %2945 = vmatprep.subr.mxu0 0.0
  %2946 = vmatpush1.msra.mxu0 %v57
  %2947 = vmatprep.subr.mxu0 0.0
  %2948 = vmatpush1.msra.mxu0 %v58
  %2949 = vmatprep.subr.mxu0 0.0
  %2950 = vmatpush1.msra.mxu0 %v59
  %2951 = vmatprep.subr.mxu0 0.0
  %2952 = vmatpush1.msra.mxu0 0.0
  %2953 = vmatprep.subr.mxu0 0.0
  %2954 = vmatpush1.msra.mxu0 0.0
  %2955 = vmatprep.subr.mxu0 0.0
  %2956 = vmatpush1.msra.mxu0 0.0
  %2957 = vmatprep.subr.mxu0 0.0
  %2958 = vmatpush1.msra.mxu0 0.0
  %2959 = vmatprep.subr.mxu0 0.0
  %2960 = vmatpush1.msra.mxu0 0.0
  %2961 = vmatprep.subr.mxu0 0.0
  %2962 = vmatpush1.msra.mxu0 0.0
  %2963 = vmatprep.subr.mxu0 0.0
  %2964 = vmatpush1.msra.mxu0 0.0
  %2965 = vmatprep.subr.mxu0 0.0
  %2966 = vmatpush1.msra.mxu0 0.0
  %2967 = vmatprep.subr.mxu0 0.0
  %2968 = vmatpush1.msra.mxu0 0.0
  %2969 = vmatprep.subr.mxu0 0.0
  %2970 = vmatpush1.msra.mxu0 0.0
  %2971 = vmatprep.subr.mxu0 0.0
  %2972 = vmatpush1.msra.mxu0 0.0
  %2973 = vmatprep.subr.mxu0 0.0
  %2974 = vmatpush1.msra.mxu0 0.0
  %2975 = vmatprep.subr.mxu0 0.0
  %2976 = vmatpush1.msra.mxu0 0.0
  %2977 = vmatprep.subr.mxu0 0.0
  %2978 = vmatpush1.msra.mxu0 0.0
  %2979 = vmatprep.subr.mxu0 0.0
  %2980 = vmatpush1.msra.mxu0 0.0
  %2981 = vmatprep.subr.mxu0 0.0
  %2982 = vmatpush1.msra.mxu0 0.0
  %2983 = vmatprep.subr.mxu0 0.0
  %2984 = vmatpush1.msra.mxu0 0.0
  %2985 = vmatprep.subr.mxu0 0.0
  %2986 = vmatpush1.msra.mxu0 0.0
  %2987 = vmatprep.subr.mxu0 0.0
  %2988 = vmatpush1.msra.mxu0 0.0
  %2989 = vmatprep.subr.mxu0 0.0
  %2990 = vmatpush1.msra.mxu0 0.0
  %2991 = vmatprep.subr.mxu0 0.0
  %2992 = vmatpush1.msra.mxu0 0.0
  %2993 = vmatprep.subr.mxu0 0.0
  %2994 = vmatpush1.msra.mxu0 0.0
  %2995 = vmatprep.subr.mxu0 0.0
  %2996 = vmatpush1.msra.mxu0 0.0
  %2997 = vmatprep.subr.mxu0 0.0
  %2998 = vmatpush1.msra.mxu0 0.0
  %2999 = vmatprep.subr.mxu0 0.0
  %3000 = vmatpush1.msra.mxu0 0.0
  %3001 = vmatprep.subr.mxu0 0.0
  %3002 = vmatpush1.msra.mxu0 0.0
  %3003 = vmatprep.subr.mxu0 0.0
  %3004 = vmatpush1.msra.mxu0 0.0
  %3005 = vmatprep.subr.mxu0 0.0
  %3006 = vmatpush1.msra.mxu0 0.0
  %3007 = vmatprep.mubr.f32.mxu0 0.0
  %3008 = vmatmul.mubr.f32.gmra.mrb[0].mxu0 %v2941
  %v3009 = vpop.f32.mrb[0].mxu0
  %v3010 = vadd.f32 %v2937, %v3009
  %v3011 = vpop.f32.mrb[0].mxu0
  %3012 = vdwg.mxu0
  %v3013 = vadd.f32 %v3010, %v99
  %v3014 = vxor.u32 %v3013, 2147483648
  %v3015 = vmul.f32 %v3014, 1.442695
  %v3016 = vpow.pop %v3015
  %v3017 = vadd.f32 %v3016, 1.0
  %v3018 = vrcp.pop %v3017
  %v3019 = vmul.f32 1.0, %v3018
  %3020 = vmatprep.subr.mxu0 0.0
  %3021 = vmatpush1.msra.mxu0 %v75
  %3022 = vmatprep.subr.mxu0 0.0
  %3023 = vmatpush1.msra.mxu0 %v76
  %3024 = vmatprep.subr.mxu0 0.0
  %3025 = vmatpush1.msra.mxu0 %v77
  %3026 = vmatprep.subr.mxu0 0.0
  %3027 = vmatpush1.msra.mxu0 %v78
  %3028 = vmatprep.subr.mxu0 0.0
  %3029 = vmatpush1.msra.mxu0 0.0
  %3030 = vmatprep.subr.mxu0 0.0
  %3031 = vmatpush1.msra.mxu0 0.0
  %3032 = vmatprep.subr.mxu0 0.0
  %3033 = vmatpush1.msra.mxu0 0.0
  %3034 = vmatprep.subr.mxu0 0.0
  %3035 = vmatpush1.msra.mxu0 0.0
  %3036 = vmatprep.subr.mxu0 0.0
  %3037 = vmatpush1.msra.mxu0 0.0
  %3038 = vmatprep.subr.mxu0 0.0
  %3039 = vmatpush1.msra.mxu0 0.0
  %3040 = vmatprep.subr.mxu0 0.0
  %3041 = vmatpush1.msra.mxu0 0.0
  %3042 = vmatprep.subr.mxu0 0.0
  %3043 = vmatpush1.msra.mxu0 0.0
  %3044 = vmatprep.subr.mxu0 0.0
  %3045 = vmatpush1.msra.mxu0 0.0
  %3046 = vmatprep.subr.mxu0 0.0
  %3047 = vmatpush1.msra.mxu0 0.0
  %3048 = vmatprep.subr.mxu0 0.0
  %3049 = vmatpush1.msra.mxu0 0.0
  %3050 = vmatprep.subr.mxu0 0.0
  %3051 = vmatpush1.msra.mxu0 0.0
  %3052 = vmatprep.subr.mxu0 0.0
  %3053 = vmatpush1.msra.mxu0 0.0
  %3054 = vmatprep.subr.mxu0 0.0
  %3055 = vmatpush1.msra.mxu0 0.0
  %3056 = vmatprep.subr.mxu0 0.0
  %3057 = vmatpush1.msra.mxu0 0.0
  %3058 = vmatprep.subr.mxu0 0.0
  %3059 = vmatpush1.msra.mxu0 0.0
  %3060 = vmatprep.subr.mxu0 0.0
  %3061 = vmatpush1.msra.mxu0 0.0
  %3062 = vmatprep.subr.mxu0 0.0
  %3063 = vmatpush1.msra.mxu0 0.0
  %3064 = vmatprep.subr.mxu0 0.0
  %3065 = vmatpush1.msra.mxu0 0.0
  %3066 = vmatprep.subr.mxu0 0.0
  %3067 = vmatpush1.msra.mxu0 0.0
  %3068 = vmatprep.subr.mxu0 0.0
  %3069 = vmatpush1.msra.mxu0 0.0
  %3070 = vmatprep.subr.mxu0 0.0
  %3071 = vmatpush1.msra.mxu0 0.0
  %3072 = vmatprep.subr.mxu0 0.0
  %3073 = vmatpush1.msra.mxu0 0.0
  %3074 = vmatprep.subr.mxu0 0.0
  %3075 = vmatpush1.msra.mxu0 0.0
  %3076 = vmatprep.subr.mxu0 0.0
  %3077 = vmatpush1.msra.mxu0 0.0
  %3078 = vmatprep.subr.mxu0 0.0
  %3079 = vmatpush1.msra.mxu0 0.0
  %3080 = vmatprep.subr.mxu0 0.0
  %3081 = vmatpush1.msra.mxu0 0.0
  %3082 = vmatprep.subr.mxu0 0.0
  %3083 = vmatpush1.msra.mxu0 0.0
  %3084 = vmatprep.mubr.f32.mxu0 0.0
  %3085 = vmatmul.mubr.f32.gmra.mrb[0].mxu0 %v2868
  %v3086 = vpop.f32.mrb[0].mxu0
  %v3087 = vadd.f32 0.0, %v3086
  %v3088 = vpop.f32.mrb[0].mxu0
  %3089 = vdwg.mxu0
  %3090 = vmatprep.subr.mxu0 0.0
  %3091 = vmatpush1.msra.mxu0 %v61
  %3092 = vmatprep.subr.mxu0 0.0
  %3093 = vmatpush1.msra.mxu0 %v62
  %3094 = vmatprep.subr.mxu0 0.0
  %3095 = vmatpush1.msra.mxu0 %v63
  %3096 = vmatprep.subr.mxu0 0.0
  %3097 = vmatpush1.msra.mxu0 %v64
  %3098 = vmatprep.subr.mxu0 0.0
  %3099 = vmatpush1.msra.mxu0 0.0
  %3100 = vmatprep.subr.mxu0 0.0
  %3101 = vmatpush1.msra.mxu0 0.0
  %3102 = vmatprep.subr.mxu0 0.0
  %3103 = vmatpush1.msra.mxu0 0.0
  %3104 = vmatprep.subr.mxu0 0.0
  %3105 = vmatpush1.msra.mxu0 0.0
  %3106 = vmatprep.subr.mxu0 0.0
  %3107 = vmatpush1.msra.mxu0 0.0
  %3108 = vmatprep.subr.mxu0 0.0
  %3109 = vmatpush1.msra.mxu0 0.0
  %3110 = vmatprep.subr.mxu0 0.0
  %3111 = vmatpush1.msra.mxu0 0.0
  %3112 = vmatprep.subr.mxu0 0.0
  %3113 = vmatpush1.msra.mxu0 0.0
  %3114 = vmatprep.subr.mxu0 0.0
  %3115 = vmatpush1.msra.mxu0 0.0
  %3116 = vmatprep.subr.mxu0 0.0
  %3117 = vmatpush1.msra.mxu0 0.0
  %3118 = vmatprep.subr.mxu0 0.0
  %3119 = vmatpush1.msra.mxu0 0.0
  %3120 = vmatprep.subr.mxu0 0.0
  %3121 = vmatpush1.msra.mxu0 0.0
  %3122 = vmatprep.subr.mxu0 0.0
  %3123 = vmatpush1.msra.mxu0 0.0
  %3124 = vmatprep.subr.mxu0 0.0
  %3125 = vmatpush1.msra.mxu0 0.0
  %3126 = vmatprep.subr.mxu0 0.0
  %3127 = vmatpush1.msra.mxu0 0.0
  %3128 = vmatprep.subr.mxu0 0.0
  %3129 = vmatpush1.msra.mxu0 0.0
  %3130 = vmatprep.subr.mxu0 0.0
  %3131 = vmatpush1.msra.mxu0 0.0
  %3132 = vmatprep.subr.mxu0 0.0
  %3133 = vmatpush1.msra.mxu0 0.0
  %3134 = vmatprep.subr.mxu0 0.0
  %3135 = vmatpush1.msra.mxu0 0.0
  %3136 = vmatprep.subr.mxu0 0.0
  %3137 = vmatpush1.msra.mxu0 0.0
  %3138 = vmatprep.subr.mxu0 0.0
  %3139 = vmatpush1.msra.mxu0 0.0
  %3140 = vmatprep.subr.mxu0 0.0
  %3141 = vmatpush1.msra.mxu0 0.0
  %3142 = vmatprep.subr.mxu0 0.0
  %3143 = vmatpush1.msra.mxu0 0.0
  %3144 = vmatprep.subr.mxu0 0.0
  %3145 = vmatpush1.msra.mxu0 0.0
  %3146 = vmatprep.subr.mxu0 0.0
  %3147 = vmatpush1.msra.mxu0 0.0
  %3148 = vmatprep.subr.mxu0 0.0
  %3149 = vmatpush1.msra.mxu0 0.0
  %3150 = vmatprep.subr.mxu0 0.0
  %3151 = vmatpush1.msra.mxu0 0.0
  %3152 = vmatprep.subr.mxu0 0.0
  %3153 = vmatpush1.msra.mxu0 0.0
  %3154 = vmatprep.mubr.f32.mxu0 0.0
  %3155 = vmatmul.mubr.f32.gmra.mrb[0].mxu0 %v2941
  %v3156 = vpop.f32.mrb[0].mxu0
  %v3157 = vadd.f32 %v3087, %v3156
  %v3158 = vpop.f32.mrb[0].mxu0
  %3159 = vdwg.mxu0
  %v3160 = vadd.f32 %v3157, %v110
  %v3161 = vxor.u32 %v3160, 2147483648
  %v3162 = vmul.f32 %v3161, 1.442695
  %v3163 = vpow.pop %v3162
  %v3164 = vadd.f32 %v3163, 1.0
  %v3165 = vrcp.pop %v3164
  %v3166 = vmul.f32 1.0, %v3165
  %3167 = vmatprep.subr.mxu0 0.0
  %3168 = vmatpush1.msra.mxu0 %v66
  %3169 = vmatprep.subr.mxu0 0.0
  %3170 = vmatpush1.msra.mxu0 %v67
  %3171 = vmatprep.subr.mxu0 0.0
  %3172 = vmatpush1.msra.mxu0 %v68
  %3173 = vmatprep.subr.mxu0 0.0
  %3174 = vmatpush1.msra.mxu0 %v69
  %3175 = vmatprep.subr.mxu0 0.0
  %3176 = vmatpush1.msra.mxu0 0.0
  %3177 = vmatprep.subr.mxu0 0.0
  %3178 = vmatpush1.msra.mxu0 0.0
  %3179 = vmatprep.subr.mxu0 0.0
  %3180 = vmatpush1.msra.mxu0 0.0
  %3181 = vmatprep.subr.mxu0 0.0
  %3182 = vmatpush1.msra.mxu0 0.0
  %3183 = vmatprep.subr.mxu0 0.0
  %3184 = vmatpush1.msra.mxu0 0.0
  %3185 = vmatprep.subr.mxu0 0.0
  %3186 = vmatpush1.msra.mxu0 0.0
  %3187 = vmatprep.subr.mxu0 0.0
  %3188 = vmatpush1.msra.mxu0 0.0
  %3189 = vmatprep.subr.mxu0 0.0
  %3190 = vmatpush1.msra.mxu0 0.0
  %3191 = vmatprep.subr.mxu0 0.0
  %3192 = vmatpush1.msra.mxu0 0.0
  %3193 = vmatprep.subr.mxu0 0.0
  %3194 = vmatpush1.msra.mxu0 0.0
  %3195 = vmatprep.subr.mxu0 0.0
  %3196 = vmatpush1.msra.mxu0 0.0
  %3197 = vmatprep.subr.mxu0 0.0
  %3198 = vmatpush1.msra.mxu0 0.0
  %3199 = vmatprep.subr.mxu0 0.0
  %3200 = vmatpush1.msra.mxu0 0.0
  %3201 = vmatprep.subr.mxu0 0.0
  %3202 = vmatpush1.msra.mxu0 0.0
  %3203 = vmatprep.subr.mxu0 0.0
  %3204 = vmatpush1.msra.mxu0 0.0
  %3205 = vmatprep.subr.mxu0 0.0
  %3206 = vmatpush1.msra.mxu0 0.0
  %3207 = vmatprep.subr.mxu0 0.0
  %3208 = vmatpush1.msra.mxu0 0.0
  %3209 = vmatprep.subr.mxu0 0.0
  %3210 = vmatpush1.msra.mxu0 0.0
  %3211 = vmatprep.subr.mxu0 0.0
  %3212 = vmatpush1.msra.mxu0 0.0
  %3213 = vmatprep.subr.mxu0 0.0
  %3214 = vmatpush1.msra.mxu0 0.0
  %3215 = vmatprep.subr.mxu0 0.0
  %3216 = vmatpush1.msra.mxu0 0.0
  %3217 = vmatprep.subr.mxu0 0.0
  %3218 = vmatpush1.msra.mxu0 0.0
  %3219 = vmatprep.subr.mxu0 0.0
  %3220 = vmatpush1.msra.mxu0 0.0
  %3221 = vmatprep.subr.mxu0 0.0
  %3222 = vmatpush1.msra.mxu0 0.0
  %3223 = vmatprep.subr.mxu0 0.0
  %3224 = vmatpush1.msra.mxu0 0.0
  %3225 = vmatprep.subr.mxu0 0.0
  %3226 = vmatpush1.msra.mxu0 0.0
  %3227 = vmatprep.subr.mxu0 0.0
  %3228 = vmatpush1.msra.mxu0 0.0
  %3229 = vmatprep.subr.mxu0 0.0
  %3230 = vmatpush1.msra.mxu0 0.0
  %3231 = vmatprep.mubr.f32.mxu0 0.0
  %3232 = vmatmul.mubr.f32.gmra.mrb[0].mxu0 %v2941
  %v3233 = vpop.f32.mrb[0].mxu0
  %v3234 = vadd.f32 %v118, %v3233
  %v3235 = vpop.f32.mrb[0].mxu0
  %3236 = vdwg.mxu0
  %3237 = vmatprep.subr.mxu0 0.0
  %3238 = vmatpush1.msra.mxu0 %v80
  %3239 = vmatprep.subr.mxu0 0.0
  %3240 = vmatpush1.msra.mxu0 %v81
  %3241 = vmatprep.subr.mxu0 0.0
  %3242 = vmatpush1.msra.mxu0 %v82
  %3243 = vmatprep.subr.mxu0 0.0
  %3244 = vmatpush1.msra.mxu0 %v83
  %3245 = vmatprep.subr.mxu0 0.0
  %3246 = vmatpush1.msra.mxu0 0.0
  %3247 = vmatprep.subr.mxu0 0.0
  %3248 = vmatpush1.msra.mxu0 0.0
  %3249 = vmatprep.subr.mxu0 0.0
  %3250 = vmatpush1.msra.mxu0 0.0
  %3251 = vmatprep.subr.mxu0 0.0
  %3252 = vmatpush1.msra.mxu0 0.0
  %3253 = vmatprep.subr.mxu0 0.0
  %3254 = vmatpush1.msra.mxu0 0.0
  %3255 = vmatprep.subr.mxu0 0.0
  %3256 = vmatpush1.msra.mxu0 0.0
  %3257 = vmatprep.subr.mxu0 0.0
  %3258 = vmatpush1.msra.mxu0 0.0
  %3259 = vmatprep.subr.mxu0 0.0
  %3260 = vmatpush1.msra.mxu0 0.0
  %3261 = vmatprep.subr.mxu0 0.0
  %3262 = vmatpush1.msra.mxu0 0.0
  %3263 = vmatprep.subr.mxu0 0.0
  %3264 = vmatpush1.msra.mxu0 0.0
  %3265 = vmatprep.subr.mxu0 0.0
  %3266 = vmatpush1.msra.mxu0 0.0
  %3267 = vmatprep.subr.mxu0 0.0
  %3268 = vmatpush1.msra.mxu0 0.0
  %3269 = vmatprep.subr.mxu0 0.0
  %3270 = vmatpush1.msra.mxu0 0.0
  %3271 = vmatprep.subr.mxu0 0.0
  %3272 = vmatpush1.msra.mxu0 0.0
  %3273 = vmatprep.subr.mxu0 0.0
  %3274 = vmatpush1.msra.mxu0 0.0
  %3275 = vmatprep.subr.mxu0 0.0
  %3276 = vmatpush1.msra.mxu0 0.0
  %3277 = vmatprep.subr.mxu0 0.0
  %3278 = vmatpush1.msra.mxu0 0.0
  %3279 = vmatprep.subr.mxu0 0.0
  %3280 = vmatpush1.msra.mxu0 0.0
  %3281 = vmatprep.subr.mxu0 0.0
  %3282 = vmatpush1.msra.mxu0 0.0
  %3283 = vmatprep.subr.mxu0 0.0
  %3284 = vmatpush1.msra.mxu0 0.0
  %3285 = vmatprep.subr.mxu0 0.0
  %3286 = vmatpush1.msra.mxu0 0.0
  %3287 = vmatprep.subr.mxu0 0.0
  %3288 = vmatpush1.msra.mxu0 0.0
  %3289 = vmatprep.subr.mxu0 0.0
  %3290 = vmatpush1.msra.mxu0 0.0
  %3291 = vmatprep.subr.mxu0 0.0
  %3292 = vmatpush1.msra.mxu0 0.0
  %3293 = vmatprep.subr.mxu0 0.0
  %3294 = vmatpush1.msra.mxu0 0.0
  %3295 = vmatprep.subr.mxu0 0.0
  %3296 = vmatpush1.msra.mxu0 0.0
  %3297 = vmatprep.subr.mxu0 0.0
  %3298 = vmatpush1.msra.mxu0 0.0
  %3299 = vmatprep.subr.mxu0 0.0
  %3300 = vmatpush1.msra.mxu0 0.0
  %3301 = vmatprep.mubr.f32.mxu0 0.0
  %3302 = vmatmul.mubr.f32.gmra.mrb[0].mxu0 %v2868
  %v3303 = vpop.f32.mrb[0].mxu0
  %v3304 = vadd.f32 %v126, %v3303
  %v3305 = vpop.f32.mrb[0].mxu0
  %3306 = vdwg.mxu0
  %v3307 = vmul.f32 %v3019, %v3304
  %v3308 = vadd.f32 %v3234, %v3307
  %v3309 = vtanh.pop %v3308
  %v3310 = vsub.f32 1.0, %v3166
  %v3311 = vmul.f32 %v3310, %v3309
  %v3312 = vmul.f32 %v3166, %v2627
  %v3313 = vadd.f32 %v3311, %v3312
  %v3314 = vsub.f32 %v2866, %v2624
  %3316 = vset.pattern.permute.xlu0 0
  %3317 = vperm.xlu0 %3316, %v2632
  %v3318 = vpop.permute.xlu0 %3317
  %v3320 = vmul.f32 %v3318, %v3314
  %v3321 = vadd.f32 %v2624, %v3320
  %v3322 = vsub.f32 %v3313, %v2627
  %v3323 = vmul.f32 %v3318, %v3322
  %v3324 = vadd.f32 %v2627, %v3323
  %v3325 = vmul.f32 %v3318, %v3313
  %v3326 = vadd.f32 %v2629, %v3325
  %vm3327 = vcmp.gt.s32.totalorder %v41, 4
  %v3328 = vsel %vm3327, 1, 0
  %v3329 = vcvt.s32.f32 %v3328
  %v3331 = vsel %vm548, %v3321, 0
  %3333 = vmatprep.subr.mxu0 0.0
  %3334 = vmatpush1.msra.mxu0 %v42
  %3335 = vmatprep.subr.mxu0 0.0
  %3336 = vmatpush1.msra.mxu0 %v43
  %3337 = vmatprep.subr.mxu0 0.0
  %3338 = vmatpush1.msra.mxu0 %v44
  %3339 = vmatprep.subr.mxu0 0.0
  %3340 = vmatpush1.msra.mxu0 %v45
  %3341 = vmatprep.subr.mxu0 0.0
  %3342 = vmatpush1.msra.mxu0 0.0
  %3343 = vmatprep.subr.mxu0 0.0
  %3344 = vmatpush1.msra.mxu0 0.0
  %3345 = vmatprep.subr.mxu0 0.0
  %3346 = vmatpush1.msra.mxu0 0.0
  %3347 = vmatprep.subr.mxu0 0.0
  %3348 = vmatpush1.msra.mxu0 0.0
  %3349 = vmatprep.subr.mxu0 0.0
  %3350 = vmatpush1.msra.mxu0 0.0
  %3351 = vmatprep.subr.mxu0 0.0
  %3352 = vmatpush1.msra.mxu0 0.0
  %3353 = vmatprep.subr.mxu0 0.0
  %3354 = vmatpush1.msra.mxu0 0.0
  %3355 = vmatprep.subr.mxu0 0.0
  %3356 = vmatpush1.msra.mxu0 0.0
  %3357 = vmatprep.subr.mxu0 0.0
  %3358 = vmatpush1.msra.mxu0 0.0
  %3359 = vmatprep.subr.mxu0 0.0
  %3360 = vmatpush1.msra.mxu0 0.0
  %3361 = vmatprep.subr.mxu0 0.0
  %3362 = vmatpush1.msra.mxu0 0.0
  %3363 = vmatprep.subr.mxu0 0.0
  %3364 = vmatpush1.msra.mxu0 0.0
  %3365 = vmatprep.subr.mxu0 0.0
  %3366 = vmatpush1.msra.mxu0 0.0
  %3367 = vmatprep.subr.mxu0 0.0
  %3368 = vmatpush1.msra.mxu0 0.0
  %3369 = vmatprep.subr.mxu0 0.0
  %3370 = vmatpush1.msra.mxu0 0.0
  %3371 = vmatprep.subr.mxu0 0.0
  %3372 = vmatpush1.msra.mxu0 0.0
  %3373 = vmatprep.subr.mxu0 0.0
  %3374 = vmatpush1.msra.mxu0 0.0
  %3375 = vmatprep.subr.mxu0 0.0
  %3376 = vmatpush1.msra.mxu0 0.0
  %3377 = vmatprep.subr.mxu0 0.0
  %3378 = vmatpush1.msra.mxu0 0.0
  %3379 = vmatprep.subr.mxu0 0.0
  %3380 = vmatpush1.msra.mxu0 0.0
  %3381 = vmatprep.subr.mxu0 0.0
  %3382 = vmatpush1.msra.mxu0 0.0
  %3383 = vmatprep.subr.mxu0 0.0
  %3384 = vmatpush1.msra.mxu0 0.0
  %3385 = vmatprep.subr.mxu0 0.0
  %3386 = vmatpush1.msra.mxu0 0.0
  %3387 = vmatprep.subr.mxu0 0.0
  %3388 = vmatpush1.msra.mxu0 0.0
  %3389 = vmatprep.subr.mxu0 0.0
  %3390 = vmatpush1.msra.mxu0 0.0
  %3391 = vmatprep.subr.mxu0 0.0
  %3392 = vmatpush1.msra.mxu0 0.0
  %3393 = vmatprep.subr.mxu0 0.0
  %3394 = vmatpush1.msra.mxu0 0.0
  %3395 = vmatprep.subr.mxu0 0.0
  %3396 = vmatpush1.msra.mxu0 0.0
  %3397 = vmatprep.mubr.f32.mxu0 0.0
  %3398 = vmatmul.mubr.f32.gmra.mrb[0].mxu0 %v3331
  %v3399 = vpop.f32.mrb[0].mxu0
  %v3400 = vadd.f32 0.0, %v3399
  %v3401 = vpop.f32.mrb[0].mxu0
  %3402 = vdwg.mxu0
  %v3403 = vadd.f32 %v289, %v3400
  %v3404 = vxor.u32 %v3403, 2147483648
  %v3405 = vmul.f32 %v3404, 1.442695
  %v3406 = vpow.pop %v3405
  %v3407 = vadd.f32 %v3406, 1.0
  %v3408 = vrcp.pop %v3407
  %v3409 = vmul.f32 1.0, %v3408
  %3410 = vmatprep.subr.mxu0 0.0
  %3411 = vmatpush1.msra.mxu0 %v47
  %3412 = vmatprep.subr.mxu0 0.0
  %3413 = vmatpush1.msra.mxu0 %v48
  %3414 = vmatprep.subr.mxu0 0.0
  %3415 = vmatpush1.msra.mxu0 %v49
  %3416 = vmatprep.subr.mxu0 0.0
  %3417 = vmatpush1.msra.mxu0 %v50
  %3418 = vmatprep.subr.mxu0 0.0
  %3419 = vmatpush1.msra.mxu0 0.0
  %3420 = vmatprep.subr.mxu0 0.0
  %3421 = vmatpush1.msra.mxu0 0.0
  %3422 = vmatprep.subr.mxu0 0.0
  %3423 = vmatpush1.msra.mxu0 0.0
  %3424 = vmatprep.subr.mxu0 0.0
  %3425 = vmatpush1.msra.mxu0 0.0
  %3426 = vmatprep.subr.mxu0 0.0
  %3427 = vmatpush1.msra.mxu0 0.0
  %3428 = vmatprep.subr.mxu0 0.0
  %3429 = vmatpush1.msra.mxu0 0.0
  %3430 = vmatprep.subr.mxu0 0.0
  %3431 = vmatpush1.msra.mxu0 0.0
  %3432 = vmatprep.subr.mxu0 0.0
  %3433 = vmatpush1.msra.mxu0 0.0
  %3434 = vmatprep.subr.mxu0 0.0
  %3435 = vmatpush1.msra.mxu0 0.0
  %3436 = vmatprep.subr.mxu0 0.0
  %3437 = vmatpush1.msra.mxu0 0.0
  %3438 = vmatprep.subr.mxu0 0.0
  %3439 = vmatpush1.msra.mxu0 0.0
  %3440 = vmatprep.subr.mxu0 0.0
  %3441 = vmatpush1.msra.mxu0 0.0
  %3442 = vmatprep.subr.mxu0 0.0
  %3443 = vmatpush1.msra.mxu0 0.0
  %3444 = vmatprep.subr.mxu0 0.0
  %3445 = vmatpush1.msra.mxu0 0.0
  %3446 = vmatprep.subr.mxu0 0.0
  %3447 = vmatpush1.msra.mxu0 0.0
  %3448 = vmatprep.subr.mxu0 0.0
  %3449 = vmatpush1.msra.mxu0 0.0
  %3450 = vmatprep.subr.mxu0 0.0
  %3451 = vmatpush1.msra.mxu0 0.0
  %3452 = vmatprep.subr.mxu0 0.0
  %3453 = vmatpush1.msra.mxu0 0.0
  %3454 = vmatprep.subr.mxu0 0.0
  %3455 = vmatpush1.msra.mxu0 0.0
  %3456 = vmatprep.subr.mxu0 0.0
  %3457 = vmatpush1.msra.mxu0 0.0
  %3458 = vmatprep.subr.mxu0 0.0
  %3459 = vmatpush1.msra.mxu0 0.0
  %3460 = vmatprep.subr.mxu0 0.0
  %3461 = vmatpush1.msra.mxu0 0.0
  %3462 = vmatprep.subr.mxu0 0.0
  %3463 = vmatpush1.msra.mxu0 0.0
  %3464 = vmatprep.subr.mxu0 0.0
  %3465 = vmatpush1.msra.mxu0 0.0
  %3466 = vmatprep.subr.mxu0 0.0
  %3467 = vmatpush1.msra.mxu0 0.0
  %3468 = vmatprep.subr.mxu0 0.0
  %3469 = vmatpush1.msra.mxu0 0.0
  %3470 = vmatprep.subr.mxu0 0.0
  %3471 = vmatpush1.msra.mxu0 0.0
  %3472 = vmatprep.subr.mxu0 0.0
  %3473 = vmatpush1.msra.mxu0 0.0
  %3474 = vmatprep.mubr.f32.mxu0 0.0
  %3475 = vmatmul.mubr.f32.gmra.mrb[0].mxu0 %v3331
  %v3476 = vpop.f32.mrb[0].mxu0
  %v3477 = vadd.f32 0.0, %v3476
  %v3478 = vpop.f32.mrb[0].mxu0
  %3479 = vdwg.mxu0
  %v3480 = vadd.f32 %v423, %v3477
  %v3481 = vxor.u32 %v3480, 2147483648
  %v3482 = vmul.f32 %v3481, 1.442695
  %v3483 = vpow.pop %v3482
  %v3484 = vadd.f32 %v3483, 1.0
  %v3485 = vrcp.pop %v3484
  %v3486 = vmul.f32 1.0, %v3485
  %3487 = vmatprep.subr.mxu0 0.0
  %3488 = vmatpush1.msra.mxu0 %v52
  %3489 = vmatprep.subr.mxu0 0.0
  %3490 = vmatpush1.msra.mxu0 %v53
  %3491 = vmatprep.subr.mxu0 0.0
  %3492 = vmatpush1.msra.mxu0 %v54
  %3493 = vmatprep.subr.mxu0 0.0
  %3494 = vmatpush1.msra.mxu0 %v55
  %3495 = vmatprep.subr.mxu0 0.0
  %3496 = vmatpush1.msra.mxu0 0.0
  %3497 = vmatprep.subr.mxu0 0.0
  %3498 = vmatpush1.msra.mxu0 0.0
  %3499 = vmatprep.subr.mxu0 0.0
  %3500 = vmatpush1.msra.mxu0 0.0
  %3501 = vmatprep.subr.mxu0 0.0
  %3502 = vmatpush1.msra.mxu0 0.0
  %3503 = vmatprep.subr.mxu0 0.0
  %3504 = vmatpush1.msra.mxu0 0.0
  %3505 = vmatprep.subr.mxu0 0.0
  %3506 = vmatpush1.msra.mxu0 0.0
  %3507 = vmatprep.subr.mxu0 0.0
  %3508 = vmatpush1.msra.mxu0 0.0
  %3509 = vmatprep.subr.mxu0 0.0
  %3510 = vmatpush1.msra.mxu0 0.0
  %3511 = vmatprep.subr.mxu0 0.0
  %3512 = vmatpush1.msra.mxu0 0.0
  %3513 = vmatprep.subr.mxu0 0.0
  %3514 = vmatpush1.msra.mxu0 0.0
  %3515 = vmatprep.subr.mxu0 0.0
  %3516 = vmatpush1.msra.mxu0 0.0
  %3517 = vmatprep.subr.mxu0 0.0
  %3518 = vmatpush1.msra.mxu0 0.0
  %3519 = vmatprep.subr.mxu0 0.0
  %3520 = vmatpush1.msra.mxu0 0.0
  %3521 = vmatprep.subr.mxu0 0.0
  %3522 = vmatpush1.msra.mxu0 0.0
  %3523 = vmatprep.subr.mxu0 0.0
  %3524 = vmatpush1.msra.mxu0 0.0
  %3525 = vmatprep.subr.mxu0 0.0
  %3526 = vmatpush1.msra.mxu0 0.0
  %3527 = vmatprep.subr.mxu0 0.0
  %3528 = vmatpush1.msra.mxu0 0.0
  %3529 = vmatprep.subr.mxu0 0.0
  %3530 = vmatpush1.msra.mxu0 0.0
  %3531 = vmatprep.subr.mxu0 0.0
  %3532 = vmatpush1.msra.mxu0 0.0
  %3533 = vmatprep.subr.mxu0 0.0
  %3534 = vmatpush1.msra.mxu0 0.0
  %3535 = vmatprep.subr.mxu0 0.0
  %3536 = vmatpush1.msra.mxu0 0.0
  %3537 = vmatprep.subr.mxu0 0.0
  %3538 = vmatpush1.msra.mxu0 0.0
  %3539 = vmatprep.subr.mxu0 0.0
  %3540 = vmatpush1.msra.mxu0 0.0
  %3541 = vmatprep.subr.mxu0 0.0
  %3542 = vmatpush1.msra.mxu0 0.0
  %3543 = vmatprep.subr.mxu0 0.0
  %3544 = vmatpush1.msra.mxu0 0.0
  %3545 = vmatprep.subr.mxu0 0.0
  %3546 = vmatpush1.msra.mxu0 0.0
  %3547 = vmatprep.subr.mxu0 0.0
  %3548 = vmatpush1.msra.mxu0 0.0
  %3549 = vmatprep.subr.mxu0 0.0
  %3550 = vmatpush1.msra.mxu0 0.0
  %3551 = vmatprep.mubr.f32.mxu0 0.0
  %3552 = vmatmul.mubr.f32.gmra.mrb[0].mxu0 %v3331
  %v3553 = vpop.f32.mrb[0].mxu0
  %v3554 = vadd.f32 %v90, %v3553
  %v3555 = vpop.f32.mrb[0].mxu0
  %3556 = vdwg.mxu0
  %v3557 = vmul.f32 %v3409, %v3554
  %v3558 = vadd.f32 %v527, %v3557
  %v3559 = vtanh.pop %v3558
  %v3560 = vsub.f32 1.0, %v3486
  %v3561 = vmul.f32 %v3560, %v3559
  %v3562 = vmul.f32 %v3486, %v3321
  %v3563 = vadd.f32 %v3561, %v3562
  %v3565 = vsel %vm548, %v3324, 0
  %3567 = vmatprep.subr.mxu0 0.0
  %3568 = vmatpush1.msra.mxu0 %v70
  %3569 = vmatprep.subr.mxu0 0.0
  %3570 = vmatpush1.msra.mxu0 %v71
  %3571 = vmatprep.subr.mxu0 0.0
  %3572 = vmatpush1.msra.mxu0 %v72
  %3573 = vmatprep.subr.mxu0 0.0
  %3574 = vmatpush1.msra.mxu0 %v73
  %3575 = vmatprep.subr.mxu0 0.0
  %3576 = vmatpush1.msra.mxu0 0.0
  %3577 = vmatprep.subr.mxu0 0.0
  %3578 = vmatpush1.msra.mxu0 0.0
  %3579 = vmatprep.subr.mxu0 0.0
  %3580 = vmatpush1.msra.mxu0 0.0
  %3581 = vmatprep.subr.mxu0 0.0
  %3582 = vmatpush1.msra.mxu0 0.0
  %3583 = vmatprep.subr.mxu0 0.0
  %3584 = vmatpush1.msra.mxu0 0.0
  %3585 = vmatprep.subr.mxu0 0.0
  %3586 = vmatpush1.msra.mxu0 0.0
  %3587 = vmatprep.subr.mxu0 0.0
  %3588 = vmatpush1.msra.mxu0 0.0
  %3589 = vmatprep.subr.mxu0 0.0
  %3590 = vmatpush1.msra.mxu0 0.0
  %3591 = vmatprep.subr.mxu0 0.0
  %3592 = vmatpush1.msra.mxu0 0.0
  %3593 = vmatprep.subr.mxu0 0.0
  %3594 = vmatpush1.msra.mxu0 0.0
  %3595 = vmatprep.subr.mxu0 0.0
  %3596 = vmatpush1.msra.mxu0 0.0
  %3597 = vmatprep.subr.mxu0 0.0
  %3598 = vmatpush1.msra.mxu0 0.0
  %3599 = vmatprep.subr.mxu0 0.0
  %3600 = vmatpush1.msra.mxu0 0.0
  %3601 = vmatprep.subr.mxu0 0.0
  %3602 = vmatpush1.msra.mxu0 0.0
  %3603 = vmatprep.subr.mxu0 0.0
  %3604 = vmatpush1.msra.mxu0 0.0
  %3605 = vmatprep.subr.mxu0 0.0
  %3606 = vmatpush1.msra.mxu0 0.0
  %3607 = vmatprep.subr.mxu0 0.0
  %3608 = vmatpush1.msra.mxu0 0.0
  %3609 = vmatprep.subr.mxu0 0.0
  %3610 = vmatpush1.msra.mxu0 0.0
  %3611 = vmatprep.subr.mxu0 0.0
  %3612 = vmatpush1.msra.mxu0 0.0
  %3613 = vmatprep.subr.mxu0 0.0
  %3614 = vmatpush1.msra.mxu0 0.0
  %3615 = vmatprep.subr.mxu0 0.0
  %3616 = vmatpush1.msra.mxu0 0.0
  %3617 = vmatprep.subr.mxu0 0.0
  %3618 = vmatpush1.msra.mxu0 0.0
  %3619 = vmatprep.subr.mxu0 0.0
  %3620 = vmatpush1.msra.mxu0 0.0
  %3621 = vmatprep.subr.mxu0 0.0
  %3622 = vmatpush1.msra.mxu0 0.0
  %3623 = vmatprep.subr.mxu0 0.0
  %3624 = vmatpush1.msra.mxu0 0.0
  %3625 = vmatprep.subr.mxu0 0.0
  %3626 = vmatpush1.msra.mxu0 0.0
  %3627 = vmatprep.subr.mxu0 0.0
  %3628 = vmatpush1.msra.mxu0 0.0
  %3629 = vmatprep.subr.mxu0 0.0
  %3630 = vmatpush1.msra.mxu0 0.0
  %3631 = vmatprep.mubr.f32.mxu0 0.0
  %3632 = vmatmul.mubr.f32.gmra.mrb[0].mxu0 %v3565
  %v3633 = vpop.f32.mrb[0].mxu0
  %v3634 = vadd.f32 0.0, %v3633
  %v3635 = vpop.f32.mrb[0].mxu0
  %3636 = vdwg.mxu0
  %v3638 = vsel %vm548, %v3563, 0
  %3640 = vmatprep.subr.mxu0 0.0
  %3641 = vmatpush1.msra.mxu0 %v56
  %3642 = vmatprep.subr.mxu0 0.0
  %3643 = vmatpush1.msra.mxu0 %v57
  %3644 = vmatprep.subr.mxu0 0.0
  %3645 = vmatpush1.msra.mxu0 %v58
  %3646 = vmatprep.subr.mxu0 0.0
  %3647 = vmatpush1.msra.mxu0 %v59
  %3648 = vmatprep.subr.mxu0 0.0
  %3649 = vmatpush1.msra.mxu0 0.0
  %3650 = vmatprep.subr.mxu0 0.0
  %3651 = vmatpush1.msra.mxu0 0.0
  %3652 = vmatprep.subr.mxu0 0.0
  %3653 = vmatpush1.msra.mxu0 0.0
  %3654 = vmatprep.subr.mxu0 0.0
  %3655 = vmatpush1.msra.mxu0 0.0
  %3656 = vmatprep.subr.mxu0 0.0
  %3657 = vmatpush1.msra.mxu0 0.0
  %3658 = vmatprep.subr.mxu0 0.0
  %3659 = vmatpush1.msra.mxu0 0.0
  %3660 = vmatprep.subr.mxu0 0.0
  %3661 = vmatpush1.msra.mxu0 0.0
  %3662 = vmatprep.subr.mxu0 0.0
  %3663 = vmatpush1.msra.mxu0 0.0
  %3664 = vmatprep.subr.mxu0 0.0
  %3665 = vmatpush1.msra.mxu0 0.0
  %3666 = vmatprep.subr.mxu0 0.0
  %3667 = vmatpush1.msra.mxu0 0.0
  %3668 = vmatprep.subr.mxu0 0.0
  %3669 = vmatpush1.msra.mxu0 0.0
  %3670 = vmatprep.subr.mxu0 0.0
  %3671 = vmatpush1.msra.mxu0 0.0
  %3672 = vmatprep.subr.mxu0 0.0
  %3673 = vmatpush1.msra.mxu0 0.0
  %3674 = vmatprep.subr.mxu0 0.0
  %3675 = vmatpush1.msra.mxu0 0.0
  %3676 = vmatprep.subr.mxu0 0.0
  %3677 = vmatpush1.msra.mxu0 0.0
  %3678 = vmatprep.subr.mxu0 0.0
  %3679 = vmatpush1.msra.mxu0 0.0
  %3680 = vmatprep.subr.mxu0 0.0
  %3681 = vmatpush1.msra.mxu0 0.0
  %3682 = vmatprep.subr.mxu0 0.0
  %3683 = vmatpush1.msra.mxu0 0.0
  %3684 = vmatprep.subr.mxu0 0.0
  %3685 = vmatpush1.msra.mxu0 0.0
  %3686 = vmatprep.subr.mxu0 0.0
  %3687 = vmatpush1.msra.mxu0 0.0
  %3688 = vmatprep.subr.mxu0 0.0
  %3689 = vmatpush1.msra.mxu0 0.0
  %3690 = vmatprep.subr.mxu0 0.0
  %3691 = vmatpush1.msra.mxu0 0.0
  %3692 = vmatprep.subr.mxu0 0.0
  %3693 = vmatpush1.msra.mxu0 0.0
  %3694 = vmatprep.subr.mxu0 0.0
  %3695 = vmatpush1.msra.mxu0 0.0
  %3696 = vmatprep.subr.mxu0 0.0
  %3697 = vmatpush1.msra.mxu0 0.0
  %3698 = vmatprep.subr.mxu0 0.0
  %3699 = vmatpush1.msra.mxu0 0.0
  %3700 = vmatprep.subr.mxu0 0.0
  %3701 = vmatpush1.msra.mxu0 0.0
  %3702 = vmatprep.subr.mxu0 0.0
  %3703 = vmatpush1.msra.mxu0 0.0
  %3704 = vmatprep.mubr.f32.mxu0 0.0
  %3705 = vmatmul.mubr.f32.gmra.mrb[0].mxu0 %v3638
  %v3706 = vpop.f32.mrb[0].mxu0
  %v3707 = vadd.f32 %v3634, %v3706
  %v3708 = vpop.f32.mrb[0].mxu0
  %3709 = vdwg.mxu0
  %v3710 = vadd.f32 %v3707, %v99
  %v3711 = vxor.u32 %v3710, 2147483648
  %v3712 = vmul.f32 %v3711, 1.442695
  %v3713 = vpow.pop %v3712
  %v3714 = vadd.f32 %v3713, 1.0
  %v3715 = vrcp.pop %v3714
  %v3716 = vmul.f32 1.0, %v3715
  %3717 = vmatprep.subr.mxu0 0.0
  %3718 = vmatpush1.msra.mxu0 %v75
  %3719 = vmatprep.subr.mxu0 0.0
  %3720 = vmatpush1.msra.mxu0 %v76
  %3721 = vmatprep.subr.mxu0 0.0
  %3722 = vmatpush1.msra.mxu0 %v77
  %3723 = vmatprep.subr.mxu0 0.0
  %3724 = vmatpush1.msra.mxu0 %v78
  %3725 = vmatprep.subr.mxu0 0.0
  %3726 = vmatpush1.msra.mxu0 0.0
  %3727 = vmatprep.subr.mxu0 0.0
  %3728 = vmatpush1.msra.mxu0 0.0
  %3729 = vmatprep.subr.mxu0 0.0
  %3730 = vmatpush1.msra.mxu0 0.0
  %3731 = vmatprep.subr.mxu0 0.0
  %3732 = vmatpush1.msra.mxu0 0.0
  %3733 = vmatprep.subr.mxu0 0.0
  %3734 = vmatpush1.msra.mxu0 0.0
  %3735 = vmatprep.subr.mxu0 0.0
  %3736 = vmatpush1.msra.mxu0 0.0
  %3737 = vmatprep.subr.mxu0 0.0
  %3738 = vmatpush1.msra.mxu0 0.0
  %3739 = vmatprep.subr.mxu0 0.0
  %3740 = vmatpush1.msra.mxu0 0.0
  %3741 = vmatprep.subr.mxu0 0.0
  %3742 = vmatpush1.msra.mxu0 0.0
  %3743 = vmatprep.subr.mxu0 0.0
  %3744 = vmatpush1.msra.mxu0 0.0
  %3745 = vmatprep.subr.mxu0 0.0
  %3746 = vmatpush1.msra.mxu0 0.0
  %3747 = vmatprep.subr.mxu0 0.0
  %3748 = vmatpush1.msra.mxu0 0.0
  %3749 = vmatprep.subr.mxu0 0.0
  %3750 = vmatpush1.msra.mxu0 0.0
  %3751 = vmatprep.subr.mxu0 0.0
  %3752 = vmatpush1.msra.mxu0 0.0
  %3753 = vmatprep.subr.mxu0 0.0
  %3754 = vmatpush1.msra.mxu0 0.0
  %3755 = vmatprep.subr.mxu0 0.0
  %3756 = vmatpush1.msra.mxu0 0.0
  %3757 = vmatprep.subr.mxu0 0.0
  %3758 = vmatpush1.msra.mxu0 0.0
  %3759 = vmatprep.subr.mxu0 0.0
  %3760 = vmatpush1.msra.mxu0 0.0
  %3761 = vmatprep.subr.mxu0 0.0
  %3762 = vmatpush1.msra.mxu0 0.0
  %3763 = vmatprep.subr.mxu0 0.0
  %3764 = vmatpush1.msra.mxu0 0.0
  %3765 = vmatprep.subr.mxu0 0.0
  %3766 = vmatpush1.msra.mxu0 0.0
  %3767 = vmatprep.subr.mxu0 0.0
  %3768 = vmatpush1.msra.mxu0 0.0
  %3769 = vmatprep.subr.mxu0 0.0
  %3770 = vmatpush1.msra.mxu0 0.0
  %3771 = vmatprep.subr.mxu0 0.0
  %3772 = vmatpush1.msra.mxu0 0.0
  %3773 = vmatprep.subr.mxu0 0.0
  %3774 = vmatpush1.msra.mxu0 0.0
  %3775 = vmatprep.subr.mxu0 0.0
  %3776 = vmatpush1.msra.mxu0 0.0
  %3777 = vmatprep.subr.mxu0 0.0
  %3778 = vmatpush1.msra.mxu0 0.0
  %3779 = vmatprep.subr.mxu0 0.0
  %3780 = vmatpush1.msra.mxu0 0.0
  %3781 = vmatprep.mubr.f32.mxu0 0.0
  %3782 = vmatmul.mubr.f32.gmra.mrb[0].mxu0 %v3565
  %v3783 = vpop.f32.mrb[0].mxu0
  %v3784 = vadd.f32 0.0, %v3783
  %v3785 = vpop.f32.mrb[0].mxu0
  %3786 = vdwg.mxu0
  %3787 = vmatprep.subr.mxu0 0.0
  %3788 = vmatpush1.msra.mxu0 %v61
  %3789 = vmatprep.subr.mxu0 0.0
  %3790 = vmatpush1.msra.mxu0 %v62
  %3791 = vmatprep.subr.mxu0 0.0
  %3792 = vmatpush1.msra.mxu0 %v63
  %3793 = vmatprep.subr.mxu0 0.0
  %3794 = vmatpush1.msra.mxu0 %v64
  %3795 = vmatprep.subr.mxu0 0.0
  %3796 = vmatpush1.msra.mxu0 0.0
  %3797 = vmatprep.subr.mxu0 0.0
  %3798 = vmatpush1.msra.mxu0 0.0
  %3799 = vmatprep.subr.mxu0 0.0
  %3800 = vmatpush1.msra.mxu0 0.0
  %3801 = vmatprep.subr.mxu0 0.0
  %3802 = vmatpush1.msra.mxu0 0.0
  %3803 = vmatprep.subr.mxu0 0.0
  %3804 = vmatpush1.msra.mxu0 0.0
  %3805 = vmatprep.subr.mxu0 0.0
  %3806 = vmatpush1.msra.mxu0 0.0
  %3807 = vmatprep.subr.mxu0 0.0
  %3808 = vmatpush1.msra.mxu0 0.0
  %3809 = vmatprep.subr.mxu0 0.0
  %3810 = vmatpush1.msra.mxu0 0.0
  %3811 = vmatprep.subr.mxu0 0.0
  %3812 = vmatpush1.msra.mxu0 0.0
  %3813 = vmatprep.subr.mxu0 0.0
  %3814 = vmatpush1.msra.mxu0 0.0
  %3815 = vmatprep.subr.mxu0 0.0
  %3816 = vmatpush1.msra.mxu0 0.0
  %3817 = vmatprep.subr.mxu0 0.0
  %3818 = vmatpush1.msra.mxu0 0.0
  %3819 = vmatprep.subr.mxu0 0.0
  %3820 = vmatpush1.msra.mxu0 0.0
  %3821 = vmatprep.subr.mxu0 0.0
  %3822 = vmatpush1.msra.mxu0 0.0
  %3823 = vmatprep.subr.mxu0 0.0
  %3824 = vmatpush1.msra.mxu0 0.0
  %3825 = vmatprep.subr.mxu0 0.0
  %3826 = vmatpush1.msra.mxu0 0.0
  %3827 = vmatprep.subr.mxu0 0.0
  %3828 = vmatpush1.msra.mxu0 0.0
  %3829 = vmatprep.subr.mxu0 0.0
  %3830 = vmatpush1.msra.mxu0 0.0
  %3831 = vmatprep.subr.mxu0 0.0
  %3832 = vmatpush1.msra.mxu0 0.0
  %3833 = vmatprep.subr.mxu0 0.0
  %3834 = vmatpush1.msra.mxu0 0.0
  %3835 = vmatprep.subr.mxu0 0.0
  %3836 = vmatpush1.msra.mxu0 0.0
  %3837 = vmatprep.subr.mxu0 0.0
  %3838 = vmatpush1.msra.mxu0 0.0
  %3839 = vmatprep.subr.mxu0 0.0
  %3840 = vmatpush1.msra.mxu0 0.0
  %3841 = vmatprep.subr.mxu0 0.0
  %3842 = vmatpush1.msra.mxu0 0.0
  %3843 = vmatprep.subr.mxu0 0.0
  %3844 = vmatpush1.msra.mxu0 0.0
  %3845 = vmatprep.subr.mxu0 0.0
  %3846 = vmatpush1.msra.mxu0 0.0
  %3847 = vmatprep.subr.mxu0 0.0
  %3848 = vmatpush1.msra.mxu0 0.0
  %3849 = vmatprep.subr.mxu0 0.0
  %3850 = vmatpush1.msra.mxu0 0.0
  %3851 = vmatprep.mubr.f32.mxu0 0.0
  %3852 = vmatmul.mubr.f32.gmra.mrb[0].mxu0 %v3638
  %v3853 = vpop.f32.mrb[0].mxu0
  %v3854 = vadd.f32 %v3784, %v3853
  %v3855 = vpop.f32.mrb[0].mxu0
  %3856 = vdwg.mxu0
  %v3857 = vadd.f32 %v3854, %v110
  %v3858 = vxor.u32 %v3857, 2147483648
  %v3859 = vmul.f32 %v3858, 1.442695
  %v3860 = vpow.pop %v3859
  %v3861 = vadd.f32 %v3860, 1.0
  %v3862 = vrcp.pop %v3861
  %v3863 = vmul.f32 1.0, %v3862
  %3864 = vmatprep.subr.mxu0 0.0
  %3865 = vmatpush1.msra.mxu0 %v66
  %3866 = vmatprep.subr.mxu0 0.0
  %3867 = vmatpush1.msra.mxu0 %v67
  %3868 = vmatprep.subr.mxu0 0.0
  %3869 = vmatpush1.msra.mxu0 %v68
  %3870 = vmatprep.subr.mxu0 0.0
  %3871 = vmatpush1.msra.mxu0 %v69
  %3872 = vmatprep.subr.mxu0 0.0
  %3873 = vmatpush1.msra.mxu0 0.0
  %3874 = vmatprep.subr.mxu0 0.0
  %3875 = vmatpush1.msra.mxu0 0.0
  %3876 = vmatprep.subr.mxu0 0.0
  %3877 = vmatpush1.msra.mxu0 0.0
  %3878 = vmatprep.subr.mxu0 0.0
  %3879 = vmatpush1.msra.mxu0 0.0
  %3880 = vmatprep.subr.mxu0 0.0
  %3881 = vmatpush1.msra.mxu0 0.0
  %3882 = vmatprep.subr.mxu0 0.0
  %3883 = vmatpush1.msra.mxu0 0.0
  %3884 = vmatprep.subr.mxu0 0.0
  %3885 = vmatpush1.msra.mxu0 0.0
  %3886 = vmatprep.subr.mxu0 0.0
  %3887 = vmatpush1.msra.mxu0 0.0
  %3888 = vmatprep.subr.mxu0 0.0
  %3889 = vmatpush1.msra.mxu0 0.0
  %3890 = vmatprep.subr.mxu0 0.0
  %3891 = vmatpush1.msra.mxu0 0.0
  %3892 = vmatprep.subr.mxu0 0.0
  %3893 = vmatpush1.msra.mxu0 0.0
  %3894 = vmatprep.subr.mxu0 0.0
  %3895 = vmatpush1.msra.mxu0 0.0
  %3896 = vmatprep.subr.mxu0 0.0
  %3897 = vmatpush1.msra.mxu0 0.0
  %3898 = vmatprep.subr.mxu0 0.0
  %3899 = vmatpush1.msra.mxu0 0.0
  %3900 = vmatprep.subr.mxu0 0.0
  %3901 = vmatpush1.msra.mxu0 0.0
  %3902 = vmatprep.subr.mxu0 0.0
  %3903 = vmatpush1.msra.mxu0 0.0
  %3904 = vmatprep.subr.mxu0 0.0
  %3905 = vmatpush1.msra.mxu0 0.0
  %3906 = vmatprep.subr.mxu0 0.0
  %3907 = vmatpush1.msra.mxu0 0.0
  %3908 = vmatprep.subr.mxu0 0.0
  %3909 = vmatpush1.msra.mxu0 0.0
  %3910 = vmatprep.subr.mxu0 0.0
  %3911 = vmatpush1.msra.mxu0 0.0
  %3912 = vmatprep.subr.mxu0 0.0
  %3913 = vmatpush1.msra.mxu0 0.0
  %3914 = vmatprep.subr.mxu0 0.0
  %3915 = vmatpush1.msra.mxu0 0.0
  %3916 = vmatprep.subr.mxu0 0.0
  %3917 = vmatpush1.msra.mxu0 0.0
  %3918 = vmatprep.subr.mxu0 0.0
  %3919 = vmatpush1.msra.mxu0 0.0
  %3920 = vmatprep.subr.mxu0 0.0
  %3921 = vmatpush1.msra.mxu0 0.0
  %3922 = vmatprep.subr.mxu0 0.0
  %3923 = vmatpush1.msra.mxu0 0.0
  %3924 = vmatprep.subr.mxu0 0.0
  %3925 = vmatpush1.msra.mxu0 0.0
  %3926 = vmatprep.subr.mxu0 0.0
  %3927 = vmatpush1.msra.mxu0 0.0
  %3928 = vmatprep.mubr.f32.mxu0 0.0
  %3929 = vmatmul.mubr.f32.gmra.mrb[0].mxu0 %v3638
  %v3930 = vpop.f32.mrb[0].mxu0
  %v3931 = vadd.f32 %v118, %v3930
  %v3932 = vpop.f32.mrb[0].mxu0
  %3933 = vdwg.mxu0
  %3934 = vmatprep.subr.mxu0 0.0
  %3935 = vmatpush1.msra.mxu0 %v80
  %3936 = vmatprep.subr.mxu0 0.0
  %3937 = vmatpush1.msra.mxu0 %v81
  %3938 = vmatprep.subr.mxu0 0.0
  %3939 = vmatpush1.msra.mxu0 %v82
  %3940 = vmatprep.subr.mxu0 0.0
  %3941 = vmatpush1.msra.mxu0 %v83
  %3942 = vmatprep.subr.mxu0 0.0
  %3943 = vmatpush1.msra.mxu0 0.0
  %3944 = vmatprep.subr.mxu0 0.0
  %3945 = vmatpush1.msra.mxu0 0.0
  %3946 = vmatprep.subr.mxu0 0.0
  %3947 = vmatpush1.msra.mxu0 0.0
  %3948 = vmatprep.subr.mxu0 0.0
  %3949 = vmatpush1.msra.mxu0 0.0
  %3950 = vmatprep.subr.mxu0 0.0
  %3951 = vmatpush1.msra.mxu0 0.0
  %3952 = vmatprep.subr.mxu0 0.0
  %3953 = vmatpush1.msra.mxu0 0.0
  %3954 = vmatprep.subr.mxu0 0.0
  %3955 = vmatpush1.msra.mxu0 0.0
  %3956 = vmatprep.subr.mxu0 0.0
  %3957 = vmatpush1.msra.mxu0 0.0
  %3958 = vmatprep.subr.mxu0 0.0
  %3959 = vmatpush1.msra.mxu0 0.0
  %3960 = vmatprep.subr.mxu0 0.0
  %3961 = vmatpush1.msra.mxu0 0.0
  %3962 = vmatprep.subr.mxu0 0.0
  %3963 = vmatpush1.msra.mxu0 0.0
  %3964 = vmatprep.subr.mxu0 0.0
  %3965 = vmatpush1.msra.mxu0 0.0
  %3966 = vmatprep.subr.mxu0 0.0
  %3967 = vmatpush1.msra.mxu0 0.0
  %3968 = vmatprep.subr.mxu0 0.0
  %3969 = vmatpush1.msra.mxu0 0.0
  %3970 = vmatprep.subr.mxu0 0.0
  %3971 = vmatpush1.msra.mxu0 0.0
  %3972 = vmatprep.subr.mxu0 0.0
  %3973 = vmatpush1.msra.mxu0 0.0
  %3974 = vmatprep.subr.mxu0 0.0
  %3975 = vmatpush1.msra.mxu0 0.0
  %3976 = vmatprep.subr.mxu0 0.0
  %3977 = vmatpush1.msra.mxu0 0.0
  %3978 = vmatprep.subr.mxu0 0.0
  %3979 = vmatpush1.msra.mxu0 0.0
  %3980 = vmatprep.subr.mxu0 0.0
  %3981 = vmatpush1.msra.mxu0 0.0
  %3982 = vmatprep.subr.mxu0 0.0
  %3983 = vmatpush1.msra.mxu0 0.0
  %3984 = vmatprep.subr.mxu0 0.0
  %3985 = vmatpush1.msra.mxu0 0.0
  %3986 = vmatprep.subr.mxu0 0.0
  %3987 = vmatpush1.msra.mxu0 0.0
  %3988 = vmatprep.subr.mxu0 0.0
  %3989 = vmatpush1.msra.mxu0 0.0
  %3990 = vmatprep.subr.mxu0 0.0
  %3991 = vmatpush1.msra.mxu0 0.0
  %3992 = vmatprep.subr.mxu0 0.0
  %3993 = vmatpush1.msra.mxu0 0.0
  %3994 = vmatprep.subr.mxu0 0.0
  %3995 = vmatpush1.msra.mxu0 0.0
  %3996 = vmatprep.subr.mxu0 0.0
  %3997 = vmatpush1.msra.mxu0 0.0
  %3998 = vmatprep.mubr.f32.mxu0 0.0
  %3999 = vmatmul.mubr.f32.gmra.mrb[0].mxu0 %v3565
  %v4000 = vpop.f32.mrb[0].mxu0
  %v4001 = vadd.f32 %v126, %v4000
  %v4002 = vpop.f32.mrb[0].mxu0
  %4003 = vdwg.mxu0
  %v4004 = vmul.f32 %v3716, %v4001
  %v4005 = vadd.f32 %v3931, %v4004
  %v4006 = vtanh.pop %v4005
  %v4007 = vsub.f32 1.0, %v3863
  %v4008 = vmul.f32 %v4007, %v4006
  %v4009 = vmul.f32 %v3863, %v3324
  %v4010 = vadd.f32 %v4008, %v4009
  %v4011 = vsub.f32 %v3563, %v3321
  %4013 = vset.pattern.permute.xlu0 0
  %4014 = vperm.xlu0 %4013, %v3329
  %v4015 = vpop.permute.xlu0 %4014
  %v4017 = vmul.f32 %v4015, %v4011
  %v4018 = vadd.f32 %v3321, %v4017
  %v4019 = vsub.f32 %v4010, %v3324
  %v4020 = vmul.f32 %v4015, %v4019
  %v4021 = vadd.f32 %v3324, %v4020
  %v4022 = vmul.f32 %v4015, %v4010
  %v4023 = vadd.f32 %v3326, %v4022
  %vm4024 = vcmp.gt.s32.totalorder %v41, 5
  %v4025 = vsel %vm4024, 1, 0
  %v4026 = vcvt.s32.f32 %v4025
  %v4028 = vsel %vm548, %v4018, 0
  %4030 = vmatprep.subr.mxu0 0.0
  %4031 = vmatpush1.msra.mxu0 %v42
  %4032 = vmatprep.subr.mxu0 0.0
  %4033 = vmatpush1.msra.mxu0 %v43
  %4034 = vmatprep.subr.mxu0 0.0
  %4035 = vmatpush1.msra.mxu0 %v44
  %4036 = vmatprep.subr.mxu0 0.0
  %4037 = vmatpush1.msra.mxu0 %v45
  %4038 = vmatprep.subr.mxu0 0.0
  %4039 = vmatpush1.msra.mxu0 0.0
  %4040 = vmatprep.subr.mxu0 0.0
  %4041 = vmatpush1.msra.mxu0 0.0
  %4042 = vmatprep.subr.mxu0 0.0
  %4043 = vmatpush1.msra.mxu0 0.0
  %4044 = vmatprep.subr.mxu0 0.0
  %4045 = vmatpush1.msra.mxu0 0.0
  %4046 = vmatprep.subr.mxu0 0.0
  %4047 = vmatpush1.msra.mxu0 0.0
  %4048 = vmatprep.subr.mxu0 0.0
  %4049 = vmatpush1.msra.mxu0 0.0
  %4050 = vmatprep.subr.mxu0 0.0
  %4051 = vmatpush1.msra.mxu0 0.0
  %4052 = vmatprep.subr.mxu0 0.0
  %4053 = vmatpush1.msra.mxu0 0.0
  %4054 = vmatprep.subr.mxu0 0.0
  %4055 = vmatpush1.msra.mxu0 0.0
  %4056 = vmatprep.subr.mxu0 0.0
  %4057 = vmatpush1.msra.mxu0 0.0
  %4058 = vmatprep.subr.mxu0 0.0
  %4059 = vmatpush1.msra.mxu0 0.0
  %4060 = vmatprep.subr.mxu0 0.0
  %4061 = vmatpush1.msra.mxu0 0.0
  %4062 = vmatprep.subr.mxu0 0.0
  %4063 = vmatpush1.msra.mxu0 0.0
  %4064 = vmatprep.subr.mxu0 0.0
  %4065 = vmatpush1.msra.mxu0 0.0
  %4066 = vmatprep.subr.mxu0 0.0
  %4067 = vmatpush1.msra.mxu0 0.0
  %4068 = vmatprep.subr.mxu0 0.0
  %4069 = vmatpush1.msra.mxu0 0.0
  %4070 = vmatprep.subr.mxu0 0.0
  %4071 = vmatpush1.msra.mxu0 0.0
  %4072 = vmatprep.subr.mxu0 0.0
  %4073 = vmatpush1.msra.mxu0 0.0
  %4074 = vmatprep.subr.mxu0 0.0
  %4075 = vmatpush1.msra.mxu0 0.0
  %4076 = vmatprep.subr.mxu0 0.0
  %4077 = vmatpush1.msra.mxu0 0.0
  %4078 = vmatprep.subr.mxu0 0.0
  %4079 = vmatpush1.msra.mxu0 0.0
  %4080 = vmatprep.subr.mxu0 0.0
  %4081 = vmatpush1.msra.mxu0 0.0
  %4082 = vmatprep.subr.mxu0 0.0
  %4083 = vmatpush1.msra.mxu0 0.0
  %4084 = vmatprep.subr.mxu0 0.0
  %4085 = vmatpush1.msra.mxu0 0.0
  %4086 = vmatprep.subr.mxu0 0.0
  %4087 = vmatpush1.msra.mxu0 0.0
  %4088 = vmatprep.subr.mxu0 0.0
  %4089 = vmatpush1.msra.mxu0 0.0
  %4090 = vmatprep.subr.mxu0 0.0
  %4091 = vmatpush1.msra.mxu0 0.0
  %4092 = vmatprep.subr.mxu0 0.0
  %4093 = vmatpush1.msra.mxu0 0.0
  %4094 = vmatprep.mubr.f32.mxu0 0.0
  %4095 = vmatmul.mubr.f32.gmra.mrb[0].mxu0 %v4028
  %v4096 = vpop.f32.mrb[0].mxu0
  %v4097 = vadd.f32 0.0, %v4096
  %v4098 = vpop.f32.mrb[0].mxu0
  %4099 = vdwg.mxu0
  %v4100 = vadd.f32 %v290, %v4097
  %v4101 = vxor.u32 %v4100, 2147483648
  %v4102 = vmul.f32 %v4101, 1.442695
  %v4103 = vpow.pop %v4102
  %v4104 = vadd.f32 %v4103, 1.0
  %v4105 = vrcp.pop %v4104
  %v4106 = vmul.f32 1.0, %v4105
  %4107 = vmatprep.subr.mxu0 0.0
  %4108 = vmatpush1.msra.mxu0 %v47
  %4109 = vmatprep.subr.mxu0 0.0
  %4110 = vmatpush1.msra.mxu0 %v48
  %4111 = vmatprep.subr.mxu0 0.0
  %4112 = vmatpush1.msra.mxu0 %v49
  %4113 = vmatprep.subr.mxu0 0.0
  %4114 = vmatpush1.msra.mxu0 %v50
  %4115 = vmatprep.subr.mxu0 0.0
  %4116 = vmatpush1.msra.mxu0 0.0
  %4117 = vmatprep.subr.mxu0 0.0
  %4118 = vmatpush1.msra.mxu0 0.0
  %4119 = vmatprep.subr.mxu0 0.0
  %4120 = vmatpush1.msra.mxu0 0.0
  %4121 = vmatprep.subr.mxu0 0.0
  %4122 = vmatpush1.msra.mxu0 0.0
  %4123 = vmatprep.subr.mxu0 0.0
  %4124 = vmatpush1.msra.mxu0 0.0
  %4125 = vmatprep.subr.mxu0 0.0
  %4126 = vmatpush1.msra.mxu0 0.0
  %4127 = vmatprep.subr.mxu0 0.0
  %4128 = vmatpush1.msra.mxu0 0.0
  %4129 = vmatprep.subr.mxu0 0.0
  %4130 = vmatpush1.msra.mxu0 0.0
  %4131 = vmatprep.subr.mxu0 0.0
  %4132 = vmatpush1.msra.mxu0 0.0
  %4133 = vmatprep.subr.mxu0 0.0
  %4134 = vmatpush1.msra.mxu0 0.0
  %4135 = vmatprep.subr.mxu0 0.0
  %4136 = vmatpush1.msra.mxu0 0.0
  %4137 = vmatprep.subr.mxu0 0.0
  %4138 = vmatpush1.msra.mxu0 0.0
  %4139 = vmatprep.subr.mxu0 0.0
  %4140 = vmatpush1.msra.mxu0 0.0
  %4141 = vmatprep.subr.mxu0 0.0
  %4142 = vmatpush1.msra.mxu0 0.0
  %4143 = vmatprep.subr.mxu0 0.0
  %4144 = vmatpush1.msra.mxu0 0.0
  %4145 = vmatprep.subr.mxu0 0.0
  %4146 = vmatpush1.msra.mxu0 0.0
  %4147 = vmatprep.subr.mxu0 0.0
  %4148 = vmatpush1.msra.mxu0 0.0
  %4149 = vmatprep.subr.mxu0 0.0
  %4150 = vmatpush1.msra.mxu0 0.0
  %4151 = vmatprep.subr.mxu0 0.0
  %4152 = vmatpush1.msra.mxu0 0.0
  %4153 = vmatprep.subr.mxu0 0.0
  %4154 = vmatpush1.msra.mxu0 0.0
  %4155 = vmatprep.subr.mxu0 0.0
  %4156 = vmatpush1.msra.mxu0 0.0
  %4157 = vmatprep.subr.mxu0 0.0
  %4158 = vmatpush1.msra.mxu0 0.0
  %4159 = vmatprep.subr.mxu0 0.0
  %4160 = vmatpush1.msra.mxu0 0.0
  %4161 = vmatprep.subr.mxu0 0.0
  %4162 = vmatpush1.msra.mxu0 0.0
  %4163 = vmatprep.subr.mxu0 0.0
  %4164 = vmatpush1.msra.mxu0 0.0
  %4165 = vmatprep.subr.mxu0 0.0
  %4166 = vmatpush1.msra.mxu0 0.0
  %4167 = vmatprep.subr.mxu0 0.0
  %4168 = vmatpush1.msra.mxu0 0.0
  %4169 = vmatprep.subr.mxu0 0.0
  %4170 = vmatpush1.msra.mxu0 0.0
  %4171 = vmatprep.mubr.f32.mxu0 0.0
  %4172 = vmatmul.mubr.f32.gmra.mrb[0].mxu0 %v4028
  %v4173 = vpop.f32.mrb[0].mxu0
  %v4174 = vadd.f32 0.0, %v4173
  %v4175 = vpop.f32.mrb[0].mxu0
  %4176 = vdwg.mxu0
  %v4177 = vadd.f32 %v424, %v4174
  %v4178 = vxor.u32 %v4177, 2147483648
  %v4179 = vmul.f32 %v4178, 1.442695
  %v4180 = vpow.pop %v4179
  %v4181 = vadd.f32 %v4180, 1.0
  %v4182 = vrcp.pop %v4181
  %v4183 = vmul.f32 1.0, %v4182
  %4184 = vmatprep.subr.mxu0 0.0
  %4185 = vmatpush1.msra.mxu0 %v52
  %4186 = vmatprep.subr.mxu0 0.0
  %4187 = vmatpush1.msra.mxu0 %v53
  %4188 = vmatprep.subr.mxu0 0.0
  %4189 = vmatpush1.msra.mxu0 %v54
  %4190 = vmatprep.subr.mxu0 0.0
  %4191 = vmatpush1.msra.mxu0 %v55
  %4192 = vmatprep.subr.mxu0 0.0
  %4193 = vmatpush1.msra.mxu0 0.0
  %4194 = vmatprep.subr.mxu0 0.0
  %4195 = vmatpush1.msra.mxu0 0.0
  %4196 = vmatprep.subr.mxu0 0.0
  %4197 = vmatpush1.msra.mxu0 0.0
  %4198 = vmatprep.subr.mxu0 0.0
  %4199 = vmatpush1.msra.mxu0 0.0
  %4200 = vmatprep.subr.mxu0 0.0
  %4201 = vmatpush1.msra.mxu0 0.0
  %4202 = vmatprep.subr.mxu0 0.0
  %4203 = vmatpush1.msra.mxu0 0.0
  %4204 = vmatprep.subr.mxu0 0.0
  %4205 = vmatpush1.msra.mxu0 0.0
  %4206 = vmatprep.subr.mxu0 0.0
  %4207 = vmatpush1.msra.mxu0 0.0
  %4208 = vmatprep.subr.mxu0 0.0
  %4209 = vmatpush1.msra.mxu0 0.0
  %4210 = vmatprep.subr.mxu0 0.0
  %4211 = vmatpush1.msra.mxu0 0.0
  %4212 = vmatprep.subr.mxu0 0.0
  %4213 = vmatpush1.msra.mxu0 0.0
  %4214 = vmatprep.subr.mxu0 0.0
  %4215 = vmatpush1.msra.mxu0 0.0
  %4216 = vmatprep.subr.mxu0 0.0
  %4217 = vmatpush1.msra.mxu0 0.0
  %4218 = vmatprep.subr.mxu0 0.0
  %4219 = vmatpush1.msra.mxu0 0.0
  %4220 = vmatprep.subr.mxu0 0.0
  %4221 = vmatpush1.msra.mxu0 0.0
  %4222 = vmatprep.subr.mxu0 0.0
  %4223 = vmatpush1.msra.mxu0 0.0
  %4224 = vmatprep.subr.mxu0 0.0
  %4225 = vmatpush1.msra.mxu0 0.0
  %4226 = vmatprep.subr.mxu0 0.0
  %4227 = vmatpush1.msra.mxu0 0.0
  %4228 = vmatprep.subr.mxu0 0.0
  %4229 = vmatpush1.msra.mxu0 0.0
  %4230 = vmatprep.subr.mxu0 0.0
  %4231 = vmatpush1.msra.mxu0 0.0
  %4232 = vmatprep.subr.mxu0 0.0
  %4233 = vmatpush1.msra.mxu0 0.0
  %4234 = vmatprep.subr.mxu0 0.0
  %4235 = vmatpush1.msra.mxu0 0.0
  %4236 = vmatprep.subr.mxu0 0.0
  %4237 = vmatpush1.msra.mxu0 0.0
  %4238 = vmatprep.subr.mxu0 0.0
  %4239 = vmatpush1.msra.mxu0 0.0
  %4240 = vmatprep.subr.mxu0 0.0
  %4241 = vmatpush1.msra.mxu0 0.0
  %4242 = vmatprep.subr.mxu0 0.0
  %4243 = vmatpush1.msra.mxu0 0.0
  %4244 = vmatprep.subr.mxu0 0.0
  %4245 = vmatpush1.msra.mxu0 0.0
  %4246 = vmatprep.subr.mxu0 0.0
  %4247 = vmatpush1.msra.mxu0 0.0
  %4248 = vmatprep.mubr.f32.mxu0 0.0
  %4249 = vmatmul.mubr.f32.gmra.mrb[0].mxu0 %v4028
  %v4250 = vpop.f32.mrb[0].mxu0
  %v4251 = vadd.f32 %v90, %v4250
  %v4252 = vpop.f32.mrb[0].mxu0
  %4253 = vdwg.mxu0
  %v4254 = vmul.f32 %v4106, %v4251
  %v4255 = vadd.f32 %v532, %v4254
  %v4256 = vtanh.pop %v4255
  %v4257 = vsub.f32 1.0, %v4183
  %v4258 = vmul.f32 %v4257, %v4256
  %v4259 = vmul.f32 %v4183, %v4018
  %v4260 = vadd.f32 %v4258, %v4259
  %v4262 = vsel %vm548, %v4021, 0
  %4264 = vmatprep.subr.mxu0 0.0
  %4265 = vmatpush1.msra.mxu0 %v70
  %4266 = vmatprep.subr.mxu0 0.0
  %4267 = vmatpush1.msra.mxu0 %v71
  %4268 = vmatprep.subr.mxu0 0.0
  %4269 = vmatpush1.msra.mxu0 %v72
  %4270 = vmatprep.subr.mxu0 0.0
  %4271 = vmatpush1.msra.mxu0 %v73
  %4272 = vmatprep.subr.mxu0 0.0
  %4273 = vmatpush1.msra.mxu0 0.0
  %4274 = vmatprep.subr.mxu0 0.0
  %4275 = vmatpush1.msra.mxu0 0.0
  %4276 = vmatprep.subr.mxu0 0.0
  %4277 = vmatpush1.msra.mxu0 0.0
  %4278 = vmatprep.subr.mxu0 0.0
  %4279 = vmatpush1.msra.mxu0 0.0
  %4280 = vmatprep.subr.mxu0 0.0
  %4281 = vmatpush1.msra.mxu0 0.0
  %4282 = vmatprep.subr.mxu0 0.0
  %4283 = vmatpush1.msra.mxu0 0.0
  %4284 = vmatprep.subr.mxu0 0.0
  %4285 = vmatpush1.msra.mxu0 0.0
  %4286 = vmatprep.subr.mxu0 0.0
  %4287 = vmatpush1.msra.mxu0 0.0
  %4288 = vmatprep.subr.mxu0 0.0
  %4289 = vmatpush1.msra.mxu0 0.0
  %4290 = vmatprep.subr.mxu0 0.0
  %4291 = vmatpush1.msra.mxu0 0.0
  %4292 = vmatprep.subr.mxu0 0.0
  %4293 = vmatpush1.msra.mxu0 0.0
  %4294 = vmatprep.subr.mxu0 0.0
  %4295 = vmatpush1.msra.mxu0 0.0
  %4296 = vmatprep.subr.mxu0 0.0
  %4297 = vmatpush1.msra.mxu0 0.0
  %4298 = vmatprep.subr.mxu0 0.0
  %4299 = vmatpush1.msra.mxu0 0.0
  %4300 = vmatprep.subr.mxu0 0.0
  %4301 = vmatpush1.msra.mxu0 0.0
  %4302 = vmatprep.subr.mxu0 0.0
  %4303 = vmatpush1.msra.mxu0 0.0
  %4304 = vmatprep.subr.mxu0 0.0
  %4305 = vmatpush1.msra.mxu0 0.0
  %4306 = vmatprep.subr.mxu0 0.0
  %4307 = vmatpush1.msra.mxu0 0.0
  %4308 = vmatprep.subr.mxu0 0.0
  %4309 = vmatpush1.msra.mxu0 0.0
  %4310 = vmatprep.subr.mxu0 0.0
  %4311 = vmatpush1.msra.mxu0 0.0
  %4312 = vmatprep.subr.mxu0 0.0
  %4313 = vmatpush1.msra.mxu0 0.0
  %4314 = vmatprep.subr.mxu0 0.0
  %4315 = vmatpush1.msra.mxu0 0.0
  %4316 = vmatprep.subr.mxu0 0.0
  %4317 = vmatpush1.msra.mxu0 0.0
  %4318 = vmatprep.subr.mxu0 0.0
  %4319 = vmatpush1.msra.mxu0 0.0
  %4320 = vmatprep.subr.mxu0 0.0
  %4321 = vmatpush1.msra.mxu0 0.0
  %4322 = vmatprep.subr.mxu0 0.0
  %4323 = vmatpush1.msra.mxu0 0.0
  %4324 = vmatprep.subr.mxu0 0.0
  %4325 = vmatpush1.msra.mxu0 0.0
  %4326 = vmatprep.subr.mxu0 0.0
  %4327 = vmatpush1.msra.mxu0 0.0
  %4328 = vmatprep.mubr.f32.mxu0 0.0
  %4329 = vmatmul.mubr.f32.gmra.mrb[0].mxu0 %v4262
  %v4330 = vpop.f32.mrb[0].mxu0
  %v4331 = vadd.f32 0.0, %v4330
  %v4332 = vpop.f32.mrb[0].mxu0
  %4333 = vdwg.mxu0
  %v4335 = vsel %vm548, %v4260, 0
  %4337 = vmatprep.subr.mxu0 0.0
  %4338 = vmatpush1.msra.mxu0 %v56
  %4339 = vmatprep.subr.mxu0 0.0
  %4340 = vmatpush1.msra.mxu0 %v57
  %4341 = vmatprep.subr.mxu0 0.0
  %4342 = vmatpush1.msra.mxu0 %v58
  %4343 = vmatprep.subr.mxu0 0.0
  %4344 = vmatpush1.msra.mxu0 %v59
  %4345 = vmatprep.subr.mxu0 0.0
  %4346 = vmatpush1.msra.mxu0 0.0
  %4347 = vmatprep.subr.mxu0 0.0
  %4348 = vmatpush1.msra.mxu0 0.0
  %4349 = vmatprep.subr.mxu0 0.0
  %4350 = vmatpush1.msra.mxu0 0.0
  %4351 = vmatprep.subr.mxu0 0.0
  %4352 = vmatpush1.msra.mxu0 0.0
  %4353 = vmatprep.subr.mxu0 0.0
  %4354 = vmatpush1.msra.mxu0 0.0
  %4355 = vmatprep.subr.mxu0 0.0
  %4356 = vmatpush1.msra.mxu0 0.0
  %4357 = vmatprep.subr.mxu0 0.0
  %4358 = vmatpush1.msra.mxu0 0.0
  %4359 = vmatprep.subr.mxu0 0.0
  %4360 = vmatpush1.msra.mxu0 0.0
  %4361 = vmatprep.subr.mxu0 0.0
  %4362 = vmatpush1.msra.mxu0 0.0
  %4363 = vmatprep.subr.mxu0 0.0
  %4364 = vmatpush1.msra.mxu0 0.0
  %4365 = vmatprep.subr.mxu0 0.0
  %4366 = vmatpush1.msra.mxu0 0.0
  %4367 = vmatprep.subr.mxu0 0.0
  %4368 = vmatpush1.msra.mxu0 0.0
  %4369 = vmatprep.subr.mxu0 0.0
  %4370 = vmatpush1.msra.mxu0 0.0
  %4371 = vmatprep.subr.mxu0 0.0
  %4372 = vmatpush1.msra.mxu0 0.0
  %4373 = vmatprep.subr.mxu0 0.0
  %4374 = vmatpush1.msra.mxu0 0.0
  %4375 = vmatprep.subr.mxu0 0.0
  %4376 = vmatpush1.msra.mxu0 0.0
  %4377 = vmatprep.subr.mxu0 0.0
  %4378 = vmatpush1.msra.mxu0 0.0
  %4379 = vmatprep.subr.mxu0 0.0
  %4380 = vmatpush1.msra.mxu0 0.0
  %4381 = vmatprep.subr.mxu0 0.0
  %4382 = vmatpush1.msra.mxu0 0.0
  %4383 = vmatprep.subr.mxu0 0.0
  %4384 = vmatpush1.msra.mxu0 0.0
  %4385 = vmatprep.subr.mxu0 0.0
  %4386 = vmatpush1.msra.mxu0 0.0
  %4387 = vmatprep.subr.mxu0 0.0
  %4388 = vmatpush1.msra.mxu0 0.0
  %4389 = vmatprep.subr.mxu0 0.0
  %4390 = vmatpush1.msra.mxu0 0.0
  %4391 = vmatprep.subr.mxu0 0.0
  %4392 = vmatpush1.msra.mxu0 0.0
  %4393 = vmatprep.subr.mxu0 0.0
  %4394 = vmatpush1.msra.mxu0 0.0
  %4395 = vmatprep.subr.mxu0 0.0
  %4396 = vmatpush1.msra.mxu0 0.0
  %4397 = vmatprep.subr.mxu0 0.0
  %4398 = vmatpush1.msra.mxu0 0.0
  %4399 = vmatprep.subr.mxu0 0.0
  %4400 = vmatpush1.msra.mxu0 0.0
  %4401 = vmatprep.mubr.f32.mxu0 0.0
  %4402 = vmatmul.mubr.f32.gmra.mrb[0].mxu0 %v4335
  %v4403 = vpop.f32.mrb[0].mxu0
  %v4404 = vadd.f32 %v4331, %v4403
  %v4405 = vpop.f32.mrb[0].mxu0
  %4406 = vdwg.mxu0
  %v4407 = vadd.f32 %v4404, %v99
  %v4408 = vxor.u32 %v4407, 2147483648
  %v4409 = vmul.f32 %v4408, 1.442695
  %v4410 = vpow.pop %v4409
  %v4411 = vadd.f32 %v4410, 1.0
  %v4412 = vrcp.pop %v4411
  %v4413 = vmul.f32 1.0, %v4412
  %4414 = vmatprep.subr.mxu0 0.0
  %4415 = vmatpush1.msra.mxu0 %v75
  %4416 = vmatprep.subr.mxu0 0.0
  %4417 = vmatpush1.msra.mxu0 %v76
  %4418 = vmatprep.subr.mxu0 0.0
  %4419 = vmatpush1.msra.mxu0 %v77
  %4420 = vmatprep.subr.mxu0 0.0
  %4421 = vmatpush1.msra.mxu0 %v78
  %4422 = vmatprep.subr.mxu0 0.0
  %4423 = vmatpush1.msra.mxu0 0.0
  %4424 = vmatprep.subr.mxu0 0.0
  %4425 = vmatpush1.msra.mxu0 0.0
  %4426 = vmatprep.subr.mxu0 0.0
  %4427 = vmatpush1.msra.mxu0 0.0
  %4428 = vmatprep.subr.mxu0 0.0
  %4429 = vmatpush1.msra.mxu0 0.0
  %4430 = vmatprep.subr.mxu0 0.0
  %4431 = vmatpush1.msra.mxu0 0.0
  %4432 = vmatprep.subr.mxu0 0.0
  %4433 = vmatpush1.msra.mxu0 0.0
  %4434 = vmatprep.subr.mxu0 0.0
  %4435 = vmatpush1.msra.mxu0 0.0
  %4436 = vmatprep.subr.mxu0 0.0
  %4437 = vmatpush1.msra.mxu0 0.0
  %4438 = vmatprep.subr.mxu0 0.0
  %4439 = vmatpush1.msra.mxu0 0.0
  %4440 = vmatprep.subr.mxu0 0.0
  %4441 = vmatpush1.msra.mxu0 0.0
  %4442 = vmatprep.subr.mxu0 0.0
  %4443 = vmatpush1.msra.mxu0 0.0
  %4444 = vmatprep.subr.mxu0 0.0
  %4445 = vmatpush1.msra.mxu0 0.0
  %4446 = vmatprep.subr.mxu0 0.0
  %4447 = vmatpush1.msra.mxu0 0.0
  %4448 = vmatprep.subr.mxu0 0.0
  %4449 = vmatpush1.msra.mxu0 0.0
  %4450 = vmatprep.subr.mxu0 0.0
  %4451 = vmatpush1.msra.mxu0 0.0
  %4452 = vmatprep.subr.mxu0 0.0
  %4453 = vmatpush1.msra.mxu0 0.0
  %4454 = vmatprep.subr.mxu0 0.0
  %4455 = vmatpush1.msra.mxu0 0.0
  %4456 = vmatprep.subr.mxu0 0.0
  %4457 = vmatpush1.msra.mxu0 0.0
  %4458 = vmatprep.subr.mxu0 0.0
  %4459 = vmatpush1.msra.mxu0 0.0
  %4460 = vmatprep.subr.mxu0 0.0
  %4461 = vmatpush1.msra.mxu0 0.0
  %4462 = vmatprep.subr.mxu0 0.0
  %4463 = vmatpush1.msra.mxu0 0.0
  %4464 = vmatprep.subr.mxu0 0.0
  %4465 = vmatpush1.msra.mxu0 0.0
  %4466 = vmatprep.subr.mxu0 0.0
  %4467 = vmatpush1.msra.mxu0 0.0
  %4468 = vmatprep.subr.mxu0 0.0
  %4469 = vmatpush1.msra.mxu0 0.0
  %4470 = vmatprep.subr.mxu0 0.0
  %4471 = vmatpush1.msra.mxu0 0.0
  %4472 = vmatprep.subr.mxu0 0.0
  %4473 = vmatpush1.msra.mxu0 0.0
  %4474 = vmatprep.subr.mxu0 0.0
  %4475 = vmatpush1.msra.mxu0 0.0
  %4476 = vmatprep.subr.mxu0 0.0
  %4477 = vmatpush1.msra.mxu0 0.0
  %4478 = vmatprep.mubr.f32.mxu0 0.0
  %4479 = vmatmul.mubr.f32.gmra.mrb[0].mxu0 %v4262
  %v4480 = vpop.f32.mrb[0].mxu0
  %v4481 = vadd.f32 0.0, %v4480
  %v4482 = vpop.f32.mrb[0].mxu0
  %4483 = vdwg.mxu0
  %4484 = vmatprep.subr.mxu0 0.0
  %4485 = vmatpush1.msra.mxu0 %v61
  %4486 = vmatprep.subr.mxu0 0.0
  %4487 = vmatpush1.msra.mxu0 %v62
  %4488 = vmatprep.subr.mxu0 0.0
  %4489 = vmatpush1.msra.mxu0 %v63
  %4490 = vmatprep.subr.mxu0 0.0
  %4491 = vmatpush1.msra.mxu0 %v64
  %4492 = vmatprep.subr.mxu0 0.0
  %4493 = vmatpush1.msra.mxu0 0.0
  %4494 = vmatprep.subr.mxu0 0.0
  %4495 = vmatpush1.msra.mxu0 0.0
  %4496 = vmatprep.subr.mxu0 0.0
  %4497 = vmatpush1.msra.mxu0 0.0
  %4498 = vmatprep.subr.mxu0 0.0
  %4499 = vmatpush1.msra.mxu0 0.0
  %4500 = vmatprep.subr.mxu0 0.0
  %4501 = vmatpush1.msra.mxu0 0.0
  %4502 = vmatprep.subr.mxu0 0.0
  %4503 = vmatpush1.msra.mxu0 0.0
  %4504 = vmatprep.subr.mxu0 0.0
  %4505 = vmatpush1.msra.mxu0 0.0
  %4506 = vmatprep.subr.mxu0 0.0
  %4507 = vmatpush1.msra.mxu0 0.0
  %4508 = vmatprep.subr.mxu0 0.0
  %4509 = vmatpush1.msra.mxu0 0.0
  %4510 = vmatprep.subr.mxu0 0.0
  %4511 = vmatpush1.msra.mxu0 0.0
  %4512 = vmatprep.subr.mxu0 0.0
  %4513 = vmatpush1.msra.mxu0 0.0
  %4514 = vmatprep.subr.mxu0 0.0
  %4515 = vmatpush1.msra.mxu0 0.0
  %4516 = vmatprep.subr.mxu0 0.0
  %4517 = vmatpush1.msra.mxu0 0.0
  %4518 = vmatprep.subr.mxu0 0.0
  %4519 = vmatpush1.msra.mxu0 0.0
  %4520 = vmatprep.subr.mxu0 0.0
  %4521 = vmatpush1.msra.mxu0 0.0
  %4522 = vmatprep.subr.mxu0 0.0
  %4523 = vmatpush1.msra.mxu0 0.0
  %4524 = vmatprep.subr.mxu0 0.0
  %4525 = vmatpush1.msra.mxu0 0.0
  %4526 = vmatprep.subr.mxu0 0.0
  %4527 = vmatpush1.msra.mxu0 0.0
  %4528 = vmatprep.subr.mxu0 0.0
  %4529 = vmatpush1.msra.mxu0 0.0
  %4530 = vmatprep.subr.mxu0 0.0
  %4531 = vmatpush1.msra.mxu0 0.0
  %4532 = vmatprep.subr.mxu0 0.0
  %4533 = vmatpush1.msra.mxu0 0.0
  %4534 = vmatprep.subr.mxu0 0.0
  %4535 = vmatpush1.msra.mxu0 0.0
  %4536 = vmatprep.subr.mxu0 0.0
  %4537 = vmatpush1.msra.mxu0 0.0
  %4538 = vmatprep.subr.mxu0 0.0
  %4539 = vmatpush1.msra.mxu0 0.0
  %4540 = vmatprep.subr.mxu0 0.0
  %4541 = vmatpush1.msra.mxu0 0.0
  %4542 = vmatprep.subr.mxu0 0.0
  %4543 = vmatpush1.msra.mxu0 0.0
  %4544 = vmatprep.subr.mxu0 0.0
  %4545 = vmatpush1.msra.mxu0 0.0
  %4546 = vmatprep.subr.mxu0 0.0
  %4547 = vmatpush1.msra.mxu0 0.0
  %4548 = vmatprep.mubr.f32.mxu0 0.0
  %4549 = vmatmul.mubr.f32.gmra.mrb[0].mxu0 %v4335
  %v4550 = vpop.f32.mrb[0].mxu0
  %v4551 = vadd.f32 %v4481, %v4550
  %v4552 = vpop.f32.mrb[0].mxu0
  %4553 = vdwg.mxu0
  %v4554 = vadd.f32 %v4551, %v110
  %v4555 = vxor.u32 %v4554, 2147483648
  %v4556 = vmul.f32 %v4555, 1.442695
  %v4557 = vpow.pop %v4556
  %v4558 = vadd.f32 %v4557, 1.0
  %v4559 = vrcp.pop %v4558
  %v4560 = vmul.f32 1.0, %v4559
  %4561 = vmatprep.subr.mxu0 0.0
  %4562 = vmatpush1.msra.mxu0 %v66
  %4563 = vmatprep.subr.mxu0 0.0
  %4564 = vmatpush1.msra.mxu0 %v67
  %4565 = vmatprep.subr.mxu0 0.0
  %4566 = vmatpush1.msra.mxu0 %v68
  %4567 = vmatprep.subr.mxu0 0.0
  %4568 = vmatpush1.msra.mxu0 %v69
  %4569 = vmatprep.subr.mxu0 0.0
  %4570 = vmatpush1.msra.mxu0 0.0
  %4571 = vmatprep.subr.mxu0 0.0
  %4572 = vmatpush1.msra.mxu0 0.0
  %4573 = vmatprep.subr.mxu0 0.0
  %4574 = vmatpush1.msra.mxu0 0.0
  %4575 = vmatprep.subr.mxu0 0.0
  %4576 = vmatpush1.msra.mxu0 0.0
  %4577 = vmatprep.subr.mxu0 0.0
  %4578 = vmatpush1.msra.mxu0 0.0
  %4579 = vmatprep.subr.mxu0 0.0
  %4580 = vmatpush1.msra.mxu0 0.0
  %4581 = vmatprep.subr.mxu0 0.0
  %4582 = vmatpush1.msra.mxu0 0.0
  %4583 = vmatprep.subr.mxu0 0.0
  %4584 = vmatpush1.msra.mxu0 0.0
  %4585 = vmatprep.subr.mxu0 0.0
  %4586 = vmatpush1.msra.mxu0 0.0
  %4587 = vmatprep.subr.mxu0 0.0
  %4588 = vmatpush1.msra.mxu0 0.0
  %4589 = vmatprep.subr.mxu0 0.0
  %4590 = vmatpush1.msra.mxu0 0.0
  %4591 = vmatprep.subr.mxu0 0.0
  %4592 = vmatpush1.msra.mxu0 0.0
  %4593 = vmatprep.subr.mxu0 0.0
  %4594 = vmatpush1.msra.mxu0 0.0
  %4595 = vmatprep.subr.mxu0 0.0
  %4596 = vmatpush1.msra.mxu0 0.0
  %4597 = vmatprep.subr.mxu0 0.0
  %4598 = vmatpush1.msra.mxu0 0.0
  %4599 = vmatprep.subr.mxu0 0.0
  %4600 = vmatpush1.msra.mxu0 0.0
  %4601 = vmatprep.subr.mxu0 0.0
  %4602 = vmatpush1.msra.mxu0 0.0
  %4603 = vmatprep.subr.mxu0 0.0
  %4604 = vmatpush1.msra.mxu0 0.0
  %4605 = vmatprep.subr.mxu0 0.0
  %4606 = vmatpush1.msra.mxu0 0.0
  %4607 = vmatprep.subr.mxu0 0.0
  %4608 = vmatpush1.msra.mxu0 0.0
  %4609 = vmatprep.subr.mxu0 0.0
  %4610 = vmatpush1.msra.mxu0 0.0
  %4611 = vmatprep.subr.mxu0 0.0
  %4612 = vmatpush1.msra.mxu0 0.0
  %4613 = vmatprep.subr.mxu0 0.0
  %4614 = vmatpush1.msra.mxu0 0.0
  %4615 = vmatprep.subr.mxu0 0.0
  %4616 = vmatpush1.msra.mxu0 0.0
  %4617 = vmatprep.subr.mxu0 0.0
  %4618 = vmatpush1.msra.mxu0 0.0
  %4619 = vmatprep.subr.mxu0 0.0
  %4620 = vmatpush1.msra.mxu0 0.0
  %4621 = vmatprep.subr.mxu0 0.0
  %4622 = vmatpush1.msra.mxu0 0.0
  %4623 = vmatprep.subr.mxu0 0.0
  %4624 = vmatpush1.msra.mxu0 0.0
  %4625 = vmatprep.mubr.f32.mxu0 0.0
  %4626 = vmatmul.mubr.f32.gmra.mrb[0].mxu0 %v4335
  %v4627 = vpop.f32.mrb[0].mxu0
  %v4628 = vadd.f32 %v118, %v4627
  %v4629 = vpop.f32.mrb[0].mxu0
  %4630 = vdwg.mxu0
  %4631 = vmatprep.subr.mxu0 0.0
  %4632 = vmatpush1.msra.mxu0 %v80
  %4633 = vmatprep.subr.mxu0 0.0
  %4634 = vmatpush1.msra.mxu0 %v81
  %4635 = vmatprep.subr.mxu0 0.0
  %4636 = vmatpush1.msra.mxu0 %v82
  %4637 = vmatprep.subr.mxu0 0.0
  %4638 = vmatpush1.msra.mxu0 %v83
  %4639 = vmatprep.subr.mxu0 0.0
  %4640 = vmatpush1.msra.mxu0 0.0
  %4641 = vmatprep.subr.mxu0 0.0
  %4642 = vmatpush1.msra.mxu0 0.0
  %4643 = vmatprep.subr.mxu0 0.0
  %4644 = vmatpush1.msra.mxu0 0.0
  %4645 = vmatprep.subr.mxu0 0.0
  %4646 = vmatpush1.msra.mxu0 0.0
  %4647 = vmatprep.subr.mxu0 0.0
  %4648 = vmatpush1.msra.mxu0 0.0
  %4649 = vmatprep.subr.mxu0 0.0
  %4650 = vmatpush1.msra.mxu0 0.0
  %4651 = vmatprep.subr.mxu0 0.0
  %4652 = vmatpush1.msra.mxu0 0.0
  %4653 = vmatprep.subr.mxu0 0.0
  %4654 = vmatpush1.msra.mxu0 0.0
  %4655 = vmatprep.subr.mxu0 0.0
  %4656 = vmatpush1.msra.mxu0 0.0
  %4657 = vmatprep.subr.mxu0 0.0
  %4658 = vmatpush1.msra.mxu0 0.0
  %4659 = vmatprep.subr.mxu0 0.0
  %4660 = vmatpush1.msra.mxu0 0.0
  %4661 = vmatprep.subr.mxu0 0.0
  %4662 = vmatpush1.msra.mxu0 0.0
  %4663 = vmatprep.subr.mxu0 0.0
  %4664 = vmatpush1.msra.mxu0 0.0
  %4665 = vmatprep.subr.mxu0 0.0
  %4666 = vmatpush1.msra.mxu0 0.0
  %4667 = vmatprep.subr.mxu0 0.0
  %4668 = vmatpush1.msra.mxu0 0.0
  %4669 = vmatprep.subr.mxu0 0.0
  %4670 = vmatpush1.msra.mxu0 0.0
  %4671 = vmatprep.subr.mxu0 0.0
  %4672 = vmatpush1.msra.mxu0 0.0
  %4673 = vmatprep.subr.mxu0 0.0
  %4674 = vmatpush1.msra.mxu0 0.0
  %4675 = vmatprep.subr.mxu0 0.0
  %4676 = vmatpush1.msra.mxu0 0.0
  %4677 = vmatprep.subr.mxu0 0.0
  %4678 = vmatpush1.msra.mxu0 0.0
  %4679 = vmatprep.subr.mxu0 0.0
  %4680 = vmatpush1.msra.mxu0 0.0
  %4681 = vmatprep.subr.mxu0 0.0
  %4682 = vmatpush1.msra.mxu0 0.0
  %4683 = vmatprep.subr.mxu0 0.0
  %4684 = vmatpush1.msra.mxu0 0.0
  %4685 = vmatprep.subr.mxu0 0.0
  %4686 = vmatpush1.msra.mxu0 0.0
  %4687 = vmatprep.subr.mxu0 0.0
  %4688 = vmatpush1.msra.mxu0 0.0
  %4689 = vmatprep.subr.mxu0 0.0
  %4690 = vmatpush1.msra.mxu0 0.0
  %4691 = vmatprep.subr.mxu0 0.0
  %4692 = vmatpush1.msra.mxu0 0.0
  %4693 = vmatprep.subr.mxu0 0.0
  %4694 = vmatpush1.msra.mxu0 0.0
  %4695 = vmatprep.mubr.f32.mxu0 0.0
  %4696 = vmatmul.mubr.f32.gmra.mrb[0].mxu0 %v4262
  %v4697 = vpop.f32.mrb[0].mxu0
  %v4698 = vadd.f32 %v126, %v4697
  %v4699 = vpop.f32.mrb[0].mxu0
  %4700 = vdwg.mxu0
  %v4701 = vmul.f32 %v4413, %v4698
  %v4702 = vadd.f32 %v4628, %v4701
  %v4703 = vtanh.pop %v4702
  %v4704 = vsub.f32 1.0, %v4560
  %v4705 = vmul.f32 %v4704, %v4703
  %v4706 = vmul.f32 %v4560, %v4021
  %v4707 = vadd.f32 %v4705, %v4706
  %v4708 = vsub.f32 %v4260, %v4018
  %4710 = vset.pattern.permute.xlu0 0
  %4711 = vperm.xlu0 %4710, %v4026
  %v4712 = vpop.permute.xlu0 %4711
  %v4714 = vmul.f32 %v4712, %v4708
  %v4715 = vadd.f32 %v4018, %v4714
  %v4716 = vsub.f32 %v4707, %v4021
  %v4717 = vmul.f32 %v4712, %v4716
  %v4718 = vadd.f32 %v4021, %v4717
  %v4719 = vmul.f32 %v4712, %v4707
  %v4720 = vadd.f32 %v4023, %v4719
  %vm4721 = vcmp.gt.s32.totalorder %v41, 6
  %v4722 = vsel %vm4721, 1, 0
  %v4723 = vcvt.s32.f32 %v4722
  %v4725 = vsel %vm548, %v4715, 0
  %4727 = vmatprep.subr.mxu0 0.0
  %4728 = vmatpush1.msra.mxu0 %v42
  %4729 = vmatprep.subr.mxu0 0.0
  %4730 = vmatpush1.msra.mxu0 %v43
  %4731 = vmatprep.subr.mxu0 0.0
  %4732 = vmatpush1.msra.mxu0 %v44
  %4733 = vmatprep.subr.mxu0 0.0
  %4734 = vmatpush1.msra.mxu0 %v45
  %4735 = vmatprep.subr.mxu0 0.0
  %4736 = vmatpush1.msra.mxu0 0.0
  %4737 = vmatprep.subr.mxu0 0.0
  %4738 = vmatpush1.msra.mxu0 0.0
  %4739 = vmatprep.subr.mxu0 0.0
  %4740 = vmatpush1.msra.mxu0 0.0
  %4741 = vmatprep.subr.mxu0 0.0
  %4742 = vmatpush1.msra.mxu0 0.0
  %4743 = vmatprep.subr.mxu0 0.0
  %4744 = vmatpush1.msra.mxu0 0.0
  %4745 = vmatprep.subr.mxu0 0.0
  %4746 = vmatpush1.msra.mxu0 0.0
  %4747 = vmatprep.subr.mxu0 0.0
  %4748 = vmatpush1.msra.mxu0 0.0
  %4749 = vmatprep.subr.mxu0 0.0
  %4750 = vmatpush1.msra.mxu0 0.0
  %4751 = vmatprep.subr.mxu0 0.0
  %4752 = vmatpush1.msra.mxu0 0.0
  %4753 = vmatprep.subr.mxu0 0.0
  %4754 = vmatpush1.msra.mxu0 0.0
  %4755 = vmatprep.subr.mxu0 0.0
  %4756 = vmatpush1.msra.mxu0 0.0
  %4757 = vmatprep.subr.mxu0 0.0
  %4758 = vmatpush1.msra.mxu0 0.0
  %4759 = vmatprep.subr.mxu0 0.0
  %4760 = vmatpush1.msra.mxu0 0.0
  %4761 = vmatprep.subr.mxu0 0.0
  %4762 = vmatpush1.msra.mxu0 0.0
  %4763 = vmatprep.subr.mxu0 0.0
  %4764 = vmatpush1.msra.mxu0 0.0
  %4765 = vmatprep.subr.mxu0 0.0
  %4766 = vmatpush1.msra.mxu0 0.0
  %4767 = vmatprep.subr.mxu0 0.0
  %4768 = vmatpush1.msra.mxu0 0.0
  %4769 = vmatprep.subr.mxu0 0.0
  %4770 = vmatpush1.msra.mxu0 0.0
  %4771 = vmatprep.subr.mxu0 0.0
  %4772 = vmatpush1.msra.mxu0 0.0
  %4773 = vmatprep.subr.mxu0 0.0
  %4774 = vmatpush1.msra.mxu0 0.0
  %4775 = vmatprep.subr.mxu0 0.0
  %4776 = vmatpush1.msra.mxu0 0.0
  %4777 = vmatprep.subr.mxu0 0.0
  %4778 = vmatpush1.msra.mxu0 0.0
  %4779 = vmatprep.subr.mxu0 0.0
  %4780 = vmatpush1.msra.mxu0 0.0
  %4781 = vmatprep.subr.mxu0 0.0
  %4782 = vmatpush1.msra.mxu0 0.0
  %4783 = vmatprep.subr.mxu0 0.0
  %4784 = vmatpush1.msra.mxu0 0.0
  %4785 = vmatprep.subr.mxu0 0.0
  %4786 = vmatpush1.msra.mxu0 0.0
  %4787 = vmatprep.subr.mxu0 0.0
  %4788 = vmatpush1.msra.mxu0 0.0
  %4789 = vmatprep.subr.mxu0 0.0
  %4790 = vmatpush1.msra.mxu0 0.0
  %4791 = vmatprep.mubr.f32.mxu0 0.0
  %4792 = vmatmul.mubr.f32.gmra.mrb[0].mxu0 %v4725
  %v4793 = vpop.f32.mrb[0].mxu0
  %v4794 = vadd.f32 0.0, %v4793
  %v4795 = vpop.f32.mrb[0].mxu0
  %4796 = vdwg.mxu0
  %v4797 = vadd.f32 %v291, %v4794
  %v4798 = vxor.u32 %v4797, 2147483648
  %v4799 = vmul.f32 %v4798, 1.442695
  %v4800 = vpow.pop %v4799
  %v4801 = vadd.f32 %v4800, 1.0
  %v4802 = vrcp.pop %v4801
  %v4803 = vmul.f32 1.0, %v4802
  %4804 = vmatprep.subr.mxu0 0.0
  %4805 = vmatpush1.msra.mxu0 %v47
  %4806 = vmatprep.subr.mxu0 0.0
  %4807 = vmatpush1.msra.mxu0 %v48
  %4808 = vmatprep.subr.mxu0 0.0
  %4809 = vmatpush1.msra.mxu0 %v49
  %4810 = vmatprep.subr.mxu0 0.0
  %4811 = vmatpush1.msra.mxu0 %v50
  %4812 = vmatprep.subr.mxu0 0.0
  %4813 = vmatpush1.msra.mxu0 0.0
  %4814 = vmatprep.subr.mxu0 0.0
  %4815 = vmatpush1.msra.mxu0 0.0
  %4816 = vmatprep.subr.mxu0 0.0
  %4817 = vmatpush1.msra.mxu0 0.0
  %4818 = vmatprep.subr.mxu0 0.0
  %4819 = vmatpush1.msra.mxu0 0.0
  %4820 = vmatprep.subr.mxu0 0.0
  %4821 = vmatpush1.msra.mxu0 0.0
  %4822 = vmatprep.subr.mxu0 0.0
  %4823 = vmatpush1.msra.mxu0 0.0
  %4824 = vmatprep.subr.mxu0 0.0
  %4825 = vmatpush1.msra.mxu0 0.0
  %4826 = vmatprep.subr.mxu0 0.0
  %4827 = vmatpush1.msra.mxu0 0.0
  %4828 = vmatprep.subr.mxu0 0.0
  %4829 = vmatpush1.msra.mxu0 0.0
  %4830 = vmatprep.subr.mxu0 0.0
  %4831 = vmatpush1.msra.mxu0 0.0
  %4832 = vmatprep.subr.mxu0 0.0
  %4833 = vmatpush1.msra.mxu0 0.0
  %4834 = vmatprep.subr.mxu0 0.0
  %4835 = vmatpush1.msra.mxu0 0.0
  %4836 = vmatprep.subr.mxu0 0.0
  %4837 = vmatpush1.msra.mxu0 0.0
  %4838 = vmatprep.subr.mxu0 0.0
  %4839 = vmatpush1.msra.mxu0 0.0
  %4840 = vmatprep.subr.mxu0 0.0
  %4841 = vmatpush1.msra.mxu0 0.0
  %4842 = vmatprep.subr.mxu0 0.0
  %4843 = vmatpush1.msra.mxu0 0.0
  %4844 = vmatprep.subr.mxu0 0.0
  %4845 = vmatpush1.msra.mxu0 0.0
  %4846 = vmatprep.subr.mxu0 0.0
  %4847 = vmatpush1.msra.mxu0 0.0
  %4848 = vmatprep.subr.mxu0 0.0
  %4849 = vmatpush1.msra.mxu0 0.0
  %4850 = vmatprep.subr.mxu0 0.0
  %4851 = vmatpush1.msra.mxu0 0.0
  %4852 = vmatprep.subr.mxu0 0.0
  %4853 = vmatpush1.msra.mxu0 0.0
  %4854 = vmatprep.subr.mxu0 0.0
  %4855 = vmatpush1.msra.mxu0 0.0
  %4856 = vmatprep.subr.mxu0 0.0
  %4857 = vmatpush1.msra.mxu0 0.0
  %4858 = vmatprep.subr.mxu0 0.0
  %4859 = vmatpush1.msra.mxu0 0.0
  %4860 = vmatprep.subr.mxu0 0.0
  %4861 = vmatpush1.msra.mxu0 0.0
  %4862 = vmatprep.subr.mxu0 0.0
  %4863 = vmatpush1.msra.mxu0 0.0
  %4864 = vmatprep.subr.mxu0 0.0
  %4865 = vmatpush1.msra.mxu0 0.0
  %4866 = vmatprep.subr.mxu0 0.0
  %4867 = vmatpush1.msra.mxu0 0.0
  %4868 = vmatprep.mubr.f32.mxu0 0.0
  %4869 = vmatmul.mubr.f32.gmra.mrb[0].mxu0 %v4725
  %v4870 = vpop.f32.mrb[0].mxu0
  %v4871 = vadd.f32 0.0, %v4870
  %v4872 = vpop.f32.mrb[0].mxu0
  %4873 = vdwg.mxu0
  %v4874 = vadd.f32 %v425, %v4871
  %v4875 = vxor.u32 %v4874, 2147483648
  %v4876 = vmul.f32 %v4875, 1.442695
  %v4877 = vpow.pop %v4876
  %v4878 = vadd.f32 %v4877, 1.0
  %v4879 = vrcp.pop %v4878
  %v4880 = vmul.f32 1.0, %v4879
  %4881 = vmatprep.subr.mxu0 0.0
  %4882 = vmatpush1.msra.mxu0 %v52
  %4883 = vmatprep.subr.mxu0 0.0
  %4884 = vmatpush1.msra.mxu0 %v53
  %4885 = vmatprep.subr.mxu0 0.0
  %4886 = vmatpush1.msra.mxu0 %v54
  %4887 = vmatprep.subr.mxu0 0.0
  %4888 = vmatpush1.msra.mxu0 %v55
  %4889 = vmatprep.subr.mxu0 0.0
  %4890 = vmatpush1.msra.mxu0 0.0
  %4891 = vmatprep.subr.mxu0 0.0
  %4892 = vmatpush1.msra.mxu0 0.0
  %4893 = vmatprep.subr.mxu0 0.0
  %4894 = vmatpush1.msra.mxu0 0.0
  %4895 = vmatprep.subr.mxu0 0.0
  %4896 = vmatpush1.msra.mxu0 0.0
  %4897 = vmatprep.subr.mxu0 0.0
  %4898 = vmatpush1.msra.mxu0 0.0
  %4899 = vmatprep.subr.mxu0 0.0
  %4900 = vmatpush1.msra.mxu0 0.0
  %4901 = vmatprep.subr.mxu0 0.0
  %4902 = vmatpush1.msra.mxu0 0.0
  %4903 = vmatprep.subr.mxu0 0.0
  %4904 = vmatpush1.msra.mxu0 0.0
  %4905 = vmatprep.subr.mxu0 0.0
  %4906 = vmatpush1.msra.mxu0 0.0
  %4907 = vmatprep.subr.mxu0 0.0
  %4908 = vmatpush1.msra.mxu0 0.0
  %4909 = vmatprep.subr.mxu0 0.0
  %4910 = vmatpush1.msra.mxu0 0.0
  %4911 = vmatprep.subr.mxu0 0.0
  %4912 = vmatpush1.msra.mxu0 0.0
  %4913 = vmatprep.subr.mxu0 0.0
  %4914 = vmatpush1.msra.mxu0 0.0
  %4915 = vmatprep.subr.mxu0 0.0
  %4916 = vmatpush1.msra.mxu0 0.0
  %4917 = vmatprep.subr.mxu0 0.0
  %4918 = vmatpush1.msra.mxu0 0.0
  %4919 = vmatprep.subr.mxu0 0.0
  %4920 = vmatpush1.msra.mxu0 0.0
  %4921 = vmatprep.subr.mxu0 0.0
  %4922 = vmatpush1.msra.mxu0 0.0
  %4923 = vmatprep.subr.mxu0 0.0
  %4924 = vmatpush1.msra.mxu0 0.0
  %4925 = vmatprep.subr.mxu0 0.0
  %4926 = vmatpush1.msra.mxu0 0.0
  %4927 = vmatprep.subr.mxu0 0.0
  %4928 = vmatpush1.msra.mxu0 0.0
  %4929 = vmatprep.subr.mxu0 0.0
  %4930 = vmatpush1.msra.mxu0 0.0
  %4931 = vmatprep.subr.mxu0 0.0
  %4932 = vmatpush1.msra.mxu0 0.0
  %4933 = vmatprep.subr.mxu0 0.0
  %4934 = vmatpush1.msra.mxu0 0.0
  %4935 = vmatprep.subr.mxu0 0.0
  %4936 = vmatpush1.msra.mxu0 0.0
  %4937 = vmatprep.subr.mxu0 0.0
  %4938 = vmatpush1.msra.mxu0 0.0
  %4939 = vmatprep.subr.mxu0 0.0
  %4940 = vmatpush1.msra.mxu0 0.0
  %4941 = vmatprep.subr.mxu0 0.0
  %4942 = vmatpush1.msra.mxu0 0.0
  %4943 = vmatprep.subr.mxu0 0.0
  %4944 = vmatpush1.msra.mxu0 0.0
  %4945 = vmatprep.mubr.f32.mxu0 0.0
  %4946 = vmatmul.mubr.f32.gmra.mrb[0].mxu0 %v4725
  %v4947 = vpop.f32.mrb[0].mxu0
  %v4948 = vadd.f32 %v90, %v4947
  %v4949 = vpop.f32.mrb[0].mxu0
  %4950 = vdwg.mxu0
  %v4951 = vmul.f32 %v4803, %v4948
  %v4952 = vadd.f32 %v537, %v4951
  %v4953 = vtanh.pop %v4952
  %v4954 = vsub.f32 1.0, %v4880
  %v4955 = vmul.f32 %v4954, %v4953
  %v4956 = vmul.f32 %v4880, %v4715
  %v4957 = vadd.f32 %v4955, %v4956
  %v4959 = vsel %vm548, %v4718, 0
  %4961 = vmatprep.subr.mxu0 0.0
  %4962 = vmatpush1.msra.mxu0 %v70
  %4963 = vmatprep.subr.mxu0 0.0
  %4964 = vmatpush1.msra.mxu0 %v71
  %4965 = vmatprep.subr.mxu0 0.0
  %4966 = vmatpush1.msra.mxu0 %v72
  %4967 = vmatprep.subr.mxu0 0.0
  %4968 = vmatpush1.msra.mxu0 %v73
  %4969 = vmatprep.subr.mxu0 0.0
  %4970 = vmatpush1.msra.mxu0 0.0
  %4971 = vmatprep.subr.mxu0 0.0
  %4972 = vmatpush1.msra.mxu0 0.0
  %4973 = vmatprep.subr.mxu0 0.0
  %4974 = vmatpush1.msra.mxu0 0.0
  %4975 = vmatprep.subr.mxu0 0.0
  %4976 = vmatpush1.msra.mxu0 0.0
  %4977 = vmatprep.subr.mxu0 0.0
  %4978 = vmatpush1.msra.mxu0 0.0
  %4979 = vmatprep.subr.mxu0 0.0
  %4980 = vmatpush1.msra.mxu0 0.0
  %4981 = vmatprep.subr.mxu0 0.0
  %4982 = vmatpush1.msra.mxu0 0.0
  %4983 = vmatprep.subr.mxu0 0.0
  %4984 = vmatpush1.msra.mxu0 0.0
  %4985 = vmatprep.subr.mxu0 0.0
  %4986 = vmatpush1.msra.mxu0 0.0
  %4987 = vmatprep.subr.mxu0 0.0
  %4988 = vmatpush1.msra.mxu0 0.0
  %4989 = vmatprep.subr.mxu0 0.0
  %4990 = vmatpush1.msra.mxu0 0.0
  %4991 = vmatprep.subr.mxu0 0.0
  %4992 = vmatpush1.msra.mxu0 0.0
  %4993 = vmatprep.subr.mxu0 0.0
  %4994 = vmatpush1.msra.mxu0 0.0
  %4995 = vmatprep.subr.mxu0 0.0
  %4996 = vmatpush1.msra.mxu0 0.0
  %4997 = vmatprep.subr.mxu0 0.0
  %4998 = vmatpush1.msra.mxu0 0.0
  %4999 = vmatprep.subr.mxu0 0.0
  %5000 = vmatpush1.msra.mxu0 0.0
  %5001 = vmatprep.subr.mxu0 0.0
  %5002 = vmatpush1.msra.mxu0 0.0
  %5003 = vmatprep.subr.mxu0 0.0
  %5004 = vmatpush1.msra.mxu0 0.0
  %5005 = vmatprep.subr.mxu0 0.0
  %5006 = vmatpush1.msra.mxu0 0.0
  %5007 = vmatprep.subr.mxu0 0.0
  %5008 = vmatpush1.msra.mxu0 0.0
  %5009 = vmatprep.subr.mxu0 0.0
  %5010 = vmatpush1.msra.mxu0 0.0
  %5011 = vmatprep.subr.mxu0 0.0
  %5012 = vmatpush1.msra.mxu0 0.0
  %5013 = vmatprep.subr.mxu0 0.0
  %5014 = vmatpush1.msra.mxu0 0.0
  %5015 = vmatprep.subr.mxu0 0.0
  %5016 = vmatpush1.msra.mxu0 0.0
  %5017 = vmatprep.subr.mxu0 0.0
  %5018 = vmatpush1.msra.mxu0 0.0
  %5019 = vmatprep.subr.mxu0 0.0
  %5020 = vmatpush1.msra.mxu0 0.0
  %5021 = vmatprep.subr.mxu0 0.0
  %5022 = vmatpush1.msra.mxu0 0.0
  %5023 = vmatprep.subr.mxu0 0.0
  %5024 = vmatpush1.msra.mxu0 0.0
  %5025 = vmatprep.mubr.f32.mxu0 0.0
  %5026 = vmatmul.mubr.f32.gmra.mrb[0].mxu0 %v4959
  %v5027 = vpop.f32.mrb[0].mxu0
  %v5028 = vadd.f32 0.0, %v5027
  %v5029 = vpop.f32.mrb[0].mxu0
  %5030 = vdwg.mxu0
  %v5032 = vsel %vm548, %v4957, 0
  %5034 = vmatprep.subr.mxu0 0.0
  %5035 = vmatpush1.msra.mxu0 %v56
  %5036 = vmatprep.subr.mxu0 0.0
  %5037 = vmatpush1.msra.mxu0 %v57
  %5038 = vmatprep.subr.mxu0 0.0
  %5039 = vmatpush1.msra.mxu0 %v58
  %5040 = vmatprep.subr.mxu0 0.0
  %5041 = vmatpush1.msra.mxu0 %v59
  %5042 = vmatprep.subr.mxu0 0.0
  %5043 = vmatpush1.msra.mxu0 0.0
  %5044 = vmatprep.subr.mxu0 0.0
  %5045 = vmatpush1.msra.mxu0 0.0
  %5046 = vmatprep.subr.mxu0 0.0
  %5047 = vmatpush1.msra.mxu0 0.0
  %5048 = vmatprep.subr.mxu0 0.0
  %5049 = vmatpush1.msra.mxu0 0.0
  %5050 = vmatprep.subr.mxu0 0.0
  %5051 = vmatpush1.msra.mxu0 0.0
  %5052 = vmatprep.subr.mxu0 0.0
  %5053 = vmatpush1.msra.mxu0 0.0
  %5054 = vmatprep.subr.mxu0 0.0
  %5055 = vmatpush1.msra.mxu0 0.0
  %5056 = vmatprep.subr.mxu0 0.0
  %5057 = vmatpush1.msra.mxu0 0.0
  %5058 = vmatprep.subr.mxu0 0.0
  %5059 = vmatpush1.msra.mxu0 0.0
  %5060 = vmatprep.subr.mxu0 0.0
  %5061 = vmatpush1.msra.mxu0 0.0
  %5062 = vmatprep.subr.mxu0 0.0
  %5063 = vmatpush1.msra.mxu0 0.0
  %5064 = vmatprep.subr.mxu0 0.0
  %5065 = vmatpush1.msra.mxu0 0.0
  %5066 = vmatprep.subr.mxu0 0.0
  %5067 = vmatpush1.msra.mxu0 0.0
  %5068 = vmatprep.subr.mxu0 0.0
  %5069 = vmatpush1.msra.mxu0 0.0
  %5070 = vmatprep.subr.mxu0 0.0
  %5071 = vmatpush1.msra.mxu0 0.0
  %5072 = vmatprep.subr.mxu0 0.0
  %5073 = vmatpush1.msra.mxu0 0.0
  %5074 = vmatprep.subr.mxu0 0.0
  %5075 = vmatpush1.msra.mxu0 0.0
  %5076 = vmatprep.subr.mxu0 0.0
  %5077 = vmatpush1.msra.mxu0 0.0
  %5078 = vmatprep.subr.mxu0 0.0
  %5079 = vmatpush1.msra.mxu0 0.0
  %5080 = vmatprep.subr.mxu0 0.0
  %5081 = vmatpush1.msra.mxu0 0.0
  %5082 = vmatprep.subr.mxu0 0.0
  %5083 = vmatpush1.msra.mxu0 0.0
  %5084 = vmatprep.subr.mxu0 0.0
  %5085 = vmatpush1.msra.mxu0 0.0
  %5086 = vmatprep.subr.mxu0 0.0
  %5087 = vmatpush1.msra.mxu0 0.0
  %5088 = vmatprep.subr.mxu0 0.0
  %5089 = vmatpush1.msra.mxu0 0.0
  %5090 = vmatprep.subr.mxu0 0.0
  %5091 = vmatpush1.msra.mxu0 0.0
  %5092 = vmatprep.subr.mxu0 0.0
  %5093 = vmatpush1.msra.mxu0 0.0
  %5094 = vmatprep.subr.mxu0 0.0
  %5095 = vmatpush1.msra.mxu0 0.0
  %5096 = vmatprep.subr.mxu0 0.0
  %5097 = vmatpush1.msra.mxu0 0.0
  %5098 = vmatprep.mubr.f32.mxu0 0.0
  %5099 = vmatmul.mubr.f32.gmra.mrb[0].mxu0 %v5032
  %v5100 = vpop.f32.mrb[0].mxu0
  %v5101 = vadd.f32 %v5028, %v5100
  %v5102 = vpop.f32.mrb[0].mxu0
  %5103 = vdwg.mxu0
  %v5104 = vadd.f32 %v5101, %v99
  %v5105 = vxor.u32 %v5104, 2147483648
  %v5106 = vmul.f32 %v5105, 1.442695
  %v5107 = vpow.pop %v5106
  %v5108 = vadd.f32 %v5107, 1.0
  %v5109 = vrcp.pop %v5108
  %v5110 = vmul.f32 1.0, %v5109
  %5111 = vmatprep.subr.mxu0 0.0
  %5112 = vmatpush1.msra.mxu0 %v75
  %5113 = vmatprep.subr.mxu0 0.0
  %5114 = vmatpush1.msra.mxu0 %v76
  %5115 = vmatprep.subr.mxu0 0.0
  %5116 = vmatpush1.msra.mxu0 %v77
  %5117 = vmatprep.subr.mxu0 0.0
  %5118 = vmatpush1.msra.mxu0 %v78
  %5119 = vmatprep.subr.mxu0 0.0
  %5120 = vmatpush1.msra.mxu0 0.0
  %5121 = vmatprep.subr.mxu0 0.0
  %5122 = vmatpush1.msra.mxu0 0.0
  %5123 = vmatprep.subr.mxu0 0.0
  %5124 = vmatpush1.msra.mxu0 0.0
  %5125 = vmatprep.subr.mxu0 0.0
  %5126 = vmatpush1.msra.mxu0 0.0
  %5127 = vmatprep.subr.mxu0 0.0
  %5128 = vmatpush1.msra.mxu0 0.0
  %5129 = vmatprep.subr.mxu0 0.0
  %5130 = vmatpush1.msra.mxu0 0.0
  %5131 = vmatprep.subr.mxu0 0.0
  %5132 = vmatpush1.msra.mxu0 0.0
  %5133 = vmatprep.subr.mxu0 0.0
  %5134 = vmatpush1.msra.mxu0 0.0
  %5135 = vmatprep.subr.mxu0 0.0
  %5136 = vmatpush1.msra.mxu0 0.0
  %5137 = vmatprep.subr.mxu0 0.0
  %5138 = vmatpush1.msra.mxu0 0.0
  %5139 = vmatprep.subr.mxu0 0.0
  %5140 = vmatpush1.msra.mxu0 0.0
  %5141 = vmatprep.subr.mxu0 0.0
  %5142 = vmatpush1.msra.mxu0 0.0
  %5143 = vmatprep.subr.mxu0 0.0
  %5144 = vmatpush1.msra.mxu0 0.0
  %5145 = vmatprep.subr.mxu0 0.0
  %5146 = vmatpush1.msra.mxu0 0.0
  %5147 = vmatprep.subr.mxu0 0.0
  %5148 = vmatpush1.msra.mxu0 0.0
  %5149 = vmatprep.subr.mxu0 0.0
  %5150 = vmatpush1.msra.mxu0 0.0
  %5151 = vmatprep.subr.mxu0 0.0
  %5152 = vmatpush1.msra.mxu0 0.0
  %5153 = vmatprep.subr.mxu0 0.0
  %5154 = vmatpush1.msra.mxu0 0.0
  %5155 = vmatprep.subr.mxu0 0.0
  %5156 = vmatpush1.msra.mxu0 0.0
  %5157 = vmatprep.subr.mxu0 0.0
  %5158 = vmatpush1.msra.mxu0 0.0
  %5159 = vmatprep.subr.mxu0 0.0
  %5160 = vmatpush1.msra.mxu0 0.0
  %5161 = vmatprep.subr.mxu0 0.0
  %5162 = vmatpush1.msra.mxu0 0.0
  %5163 = vmatprep.subr.mxu0 0.0
  %5164 = vmatpush1.msra.mxu0 0.0
  %5165 = vmatprep.subr.mxu0 0.0
  %5166 = vmatpush1.msra.mxu0 0.0
  %5167 = vmatprep.subr.mxu0 0.0
  %5168 = vmatpush1.msra.mxu0 0.0
  %5169 = vmatprep.subr.mxu0 0.0
  %5170 = vmatpush1.msra.mxu0 0.0
  %5171 = vmatprep.subr.mxu0 0.0
  %5172 = vmatpush1.msra.mxu0 0.0
  %5173 = vmatprep.subr.mxu0 0.0
  %5174 = vmatpush1.msra.mxu0 0.0
  %5175 = vmatprep.mubr.f32.mxu0 0.0
  %5176 = vmatmul.mubr.f32.gmra.mrb[0].mxu0 %v4959
  %v5177 = vpop.f32.mrb[0].mxu0
  %v5178 = vadd.f32 0.0, %v5177
  %v5179 = vpop.f32.mrb[0].mxu0
  %5180 = vdwg.mxu0
  %5181 = vmatprep.subr.mxu0 0.0
  %5182 = vmatpush1.msra.mxu0 %v61
  %5183 = vmatprep.subr.mxu0 0.0
  %5184 = vmatpush1.msra.mxu0 %v62
  %5185 = vmatprep.subr.mxu0 0.0
  %5186 = vmatpush1.msra.mxu0 %v63
  %5187 = vmatprep.subr.mxu0 0.0
  %5188 = vmatpush1.msra.mxu0 %v64
  %5189 = vmatprep.subr.mxu0 0.0
  %5190 = vmatpush1.msra.mxu0 0.0
  %5191 = vmatprep.subr.mxu0 0.0
  %5192 = vmatpush1.msra.mxu0 0.0
  %5193 = vmatprep.subr.mxu0 0.0
  %5194 = vmatpush1.msra.mxu0 0.0
  %5195 = vmatprep.subr.mxu0 0.0
  %5196 = vmatpush1.msra.mxu0 0.0
  %5197 = vmatprep.subr.mxu0 0.0
  %5198 = vmatpush1.msra.mxu0 0.0
  %5199 = vmatprep.subr.mxu0 0.0
  %5200 = vmatpush1.msra.mxu0 0.0
  %5201 = vmatprep.subr.mxu0 0.0
  %5202 = vmatpush1.msra.mxu0 0.0
  %5203 = vmatprep.subr.mxu0 0.0
  %5204 = vmatpush1.msra.mxu0 0.0
  %5205 = vmatprep.subr.mxu0 0.0
  %5206 = vmatpush1.msra.mxu0 0.0
  %5207 = vmatprep.subr.mxu0 0.0
  %5208 = vmatpush1.msra.mxu0 0.0
  %5209 = vmatprep.subr.mxu0 0.0
  %5210 = vmatpush1.msra.mxu0 0.0
  %5211 = vmatprep.subr.mxu0 0.0
  %5212 = vmatpush1.msra.mxu0 0.0
  %5213 = vmatprep.subr.mxu0 0.0
  %5214 = vmatpush1.msra.mxu0 0.0
  %5215 = vmatprep.subr.mxu0 0.0
  %5216 = vmatpush1.msra.mxu0 0.0
  %5217 = vmatprep.subr.mxu0 0.0
  %5218 = vmatpush1.msra.mxu0 0.0
  %5219 = vmatprep.subr.mxu0 0.0
  %5220 = vmatpush1.msra.mxu0 0.0
  %5221 = vmatprep.subr.mxu0 0.0
  %5222 = vmatpush1.msra.mxu0 0.0
  %5223 = vmatprep.subr.mxu0 0.0
  %5224 = vmatpush1.msra.mxu0 0.0
  %5225 = vmatprep.subr.mxu0 0.0
  %5226 = vmatpush1.msra.mxu0 0.0
  %5227 = vmatprep.subr.mxu0 0.0
  %5228 = vmatpush1.msra.mxu0 0.0
  %5229 = vmatprep.subr.mxu0 0.0
  %5230 = vmatpush1.msra.mxu0 0.0
  %5231 = vmatprep.subr.mxu0 0.0
  %5232 = vmatpush1.msra.mxu0 0.0
  %5233 = vmatprep.subr.mxu0 0.0
  %5234 = vmatpush1.msra.mxu0 0.0
  %5235 = vmatprep.subr.mxu0 0.0
  %5236 = vmatpush1.msra.mxu0 0.0
  %5237 = vmatprep.subr.mxu0 0.0
  %5238 = vmatpush1.msra.mxu0 0.0
  %5239 = vmatprep.subr.mxu0 0.0
  %5240 = vmatpush1.msra.mxu0 0.0
  %5241 = vmatprep.subr.mxu0 0.0
  %5242 = vmatpush1.msra.mxu0 0.0
  %5243 = vmatprep.subr.mxu0 0.0
  %5244 = vmatpush1.msra.mxu0 0.0
  %5245 = vmatprep.mubr.f32.mxu0 0.0
  %5246 = vmatmul.mubr.f32.gmra.mrb[0].mxu0 %v5032
  %v5247 = vpop.f32.mrb[0].mxu0
  %v5248 = vadd.f32 %v5178, %v5247
  %v5249 = vpop.f32.mrb[0].mxu0
  %5250 = vdwg.mxu0
  %v5251 = vadd.f32 %v5248, %v110
  %v5252 = vxor.u32 %v5251, 2147483648
  %v5253 = vmul.f32 %v5252, 1.442695
  %v5254 = vpow.pop %v5253
  %v5255 = vadd.f32 %v5254, 1.0
  %v5256 = vrcp.pop %v5255
  %v5257 = vmul.f32 1.0, %v5256
  %5258 = vmatprep.subr.mxu0 0.0
  %5259 = vmatpush1.msra.mxu0 %v66
  %5260 = vmatprep.subr.mxu0 0.0
  %5261 = vmatpush1.msra.mxu0 %v67
  %5262 = vmatprep.subr.mxu0 0.0
  %5263 = vmatpush1.msra.mxu0 %v68
  %5264 = vmatprep.subr.mxu0 0.0
  %5265 = vmatpush1.msra.mxu0 %v69
  %5266 = vmatprep.subr.mxu0 0.0
  %5267 = vmatpush1.msra.mxu0 0.0
  %5268 = vmatprep.subr.mxu0 0.0
  %5269 = vmatpush1.msra.mxu0 0.0
  %5270 = vmatprep.subr.mxu0 0.0
  %5271 = vmatpush1.msra.mxu0 0.0
  %5272 = vmatprep.subr.mxu0 0.0
  %5273 = vmatpush1.msra.mxu0 0.0
  %5274 = vmatprep.subr.mxu0 0.0
  %5275 = vmatpush1.msra.mxu0 0.0
  %5276 = vmatprep.subr.mxu0 0.0
  %5277 = vmatpush1.msra.mxu0 0.0
  %5278 = vmatprep.subr.mxu0 0.0
  %5279 = vmatpush1.msra.mxu0 0.0
  %5280 = vmatprep.subr.mxu0 0.0
  %5281 = vmatpush1.msra.mxu0 0.0
  %5282 = vmatprep.subr.mxu0 0.0
  %5283 = vmatpush1.msra.mxu0 0.0
  %5284 = vmatprep.subr.mxu0 0.0
  %5285 = vmatpush1.msra.mxu0 0.0
  %5286 = vmatprep.subr.mxu0 0.0
  %5287 = vmatpush1.msra.mxu0 0.0
  %5288 = vmatprep.subr.mxu0 0.0
  %5289 = vmatpush1.msra.mxu0 0.0
  %5290 = vmatprep.subr.mxu0 0.0
  %5291 = vmatpush1.msra.mxu0 0.0
  %5292 = vmatprep.subr.mxu0 0.0
  %5293 = vmatpush1.msra.mxu0 0.0
  %5294 = vmatprep.subr.mxu0 0.0
  %5295 = vmatpush1.msra.mxu0 0.0
  %5296 = vmatprep.subr.mxu0 0.0
  %5297 = vmatpush1.msra.mxu0 0.0
  %5298 = vmatprep.subr.mxu0 0.0
  %5299 = vmatpush1.msra.mxu0 0.0
  %5300 = vmatprep.subr.mxu0 0.0
  %5301 = vmatpush1.msra.mxu0 0.0
  %5302 = vmatprep.subr.mxu0 0.0
  %5303 = vmatpush1.msra.mxu0 0.0
  %5304 = vmatprep.subr.mxu0 0.0
  %5305 = vmatpush1.msra.mxu0 0.0
  %5306 = vmatprep.subr.mxu0 0.0
  %5307 = vmatpush1.msra.mxu0 0.0
  %5308 = vmatprep.subr.mxu0 0.0
  %5309 = vmatpush1.msra.mxu0 0.0
  %5310 = vmatprep.subr.mxu0 0.0
  %5311 = vmatpush1.msra.mxu0 0.0
  %5312 = vmatprep.subr.mxu0 0.0
  %5313 = vmatpush1.msra.mxu0 0.0
  %5314 = vmatprep.subr.mxu0 0.0
  %5315 = vmatpush1.msra.mxu0 0.0
  %5316 = vmatprep.subr.mxu0 0.0
  %5317 = vmatpush1.msra.mxu0 0.0
  %5318 = vmatprep.subr.mxu0 0.0
  %5319 = vmatpush1.msra.mxu0 0.0
  %5320 = vmatprep.subr.mxu0 0.0
  %5321 = vmatpush1.msra.mxu0 0.0
  %5322 = vmatprep.mubr.f32.mxu0 0.0
  %5323 = vmatmul.mubr.f32.gmra.mrb[0].mxu0 %v5032
  %v5324 = vpop.f32.mrb[0].mxu0
  %v5325 = vadd.f32 %v118, %v5324
  %v5326 = vpop.f32.mrb[0].mxu0
  %5327 = vdwg.mxu0
  %5328 = vmatprep.subr.mxu0 0.0
  %5329 = vmatpush1.msra.mxu0 %v80
  %5330 = vmatprep.subr.mxu0 0.0
  %5331 = vmatpush1.msra.mxu0 %v81
  %5332 = vmatprep.subr.mxu0 0.0
  %5333 = vmatpush1.msra.mxu0 %v82
  %5334 = vmatprep.subr.mxu0 0.0
  %5335 = vmatpush1.msra.mxu0 %v83
  %5336 = vmatprep.subr.mxu0 0.0
  %5337 = vmatpush1.msra.mxu0 0.0
  %5338 = vmatprep.subr.mxu0 0.0
  %5339 = vmatpush1.msra.mxu0 0.0
  %5340 = vmatprep.subr.mxu0 0.0
  %5341 = vmatpush1.msra.mxu0 0.0
  %5342 = vmatprep.subr.mxu0 0.0
  %5343 = vmatpush1.msra.mxu0 0.0
  %5344 = vmatprep.subr.mxu0 0.0
  %5345 = vmatpush1.msra.mxu0 0.0
  %5346 = vmatprep.subr.mxu0 0.0
  %5347 = vmatpush1.msra.mxu0 0.0
  %5348 = vmatprep.subr.mxu0 0.0
  %5349 = vmatpush1.msra.mxu0 0.0
  %5350 = vmatprep.subr.mxu0 0.0
  %5351 = vmatpush1.msra.mxu0 0.0
  %5352 = vmatprep.subr.mxu0 0.0
  %5353 = vmatpush1.msra.mxu0 0.0
  %5354 = vmatprep.subr.mxu0 0.0
  %5355 = vmatpush1.msra.mxu0 0.0
  %5356 = vmatprep.subr.mxu0 0.0
  %5357 = vmatpush1.msra.mxu0 0.0
  %5358 = vmatprep.subr.mxu0 0.0
  %5359 = vmatpush1.msra.mxu0 0.0
  %5360 = vmatprep.subr.mxu0 0.0
  %5361 = vmatpush1.msra.mxu0 0.0
  %5362 = vmatprep.subr.mxu0 0.0
  %5363 = vmatpush1.msra.mxu0 0.0
  %5364 = vmatprep.subr.mxu0 0.0
  %5365 = vmatpush1.msra.mxu0 0.0
  %5366 = vmatprep.subr.mxu0 0.0
  %5367 = vmatpush1.msra.mxu0 0.0
  %5368 = vmatprep.subr.mxu0 0.0
  %5369 = vmatpush1.msra.mxu0 0.0
  %5370 = vmatprep.subr.mxu0 0.0
  %5371 = vmatpush1.msra.mxu0 0.0
  %5372 = vmatprep.subr.mxu0 0.0
  %5373 = vmatpush1.msra.mxu0 0.0
  %5374 = vmatprep.subr.mxu0 0.0
  %5375 = vmatpush1.msra.mxu0 0.0
  %5376 = vmatprep.subr.mxu0 0.0
  %5377 = vmatpush1.msra.mxu0 0.0
  %5378 = vmatprep.subr.mxu0 0.0
  %5379 = vmatpush1.msra.mxu0 0.0
  %5380 = vmatprep.subr.mxu0 0.0
  %5381 = vmatpush1.msra.mxu0 0.0
  %5382 = vmatprep.subr.mxu0 0.0
  %5383 = vmatpush1.msra.mxu0 0.0
  %5384 = vmatprep.subr.mxu0 0.0
  %5385 = vmatpush1.msra.mxu0 0.0
  %5386 = vmatprep.subr.mxu0 0.0
  %5387 = vmatpush1.msra.mxu0 0.0
  %5388 = vmatprep.subr.mxu0 0.0
  %5389 = vmatpush1.msra.mxu0 0.0
  %5390 = vmatprep.subr.mxu0 0.0
  %5391 = vmatpush1.msra.mxu0 0.0
  %5392 = vmatprep.mubr.f32.mxu0 0.0
  %5393 = vmatmul.mubr.f32.gmra.mrb[0].mxu0 %v4959
  %v5394 = vpop.f32.mrb[0].mxu0
  %v5395 = vadd.f32 %v126, %v5394
  %v5396 = vpop.f32.mrb[0].mxu0
  %5397 = vdwg.mxu0
  %v5398 = vmul.f32 %v5110, %v5395
  %v5399 = vadd.f32 %v5325, %v5398
  %v5400 = vtanh.pop %v5399
  %v5401 = vsub.f32 1.0, %v5257
  %v5402 = vmul.f32 %v5401, %v5400
  %v5403 = vmul.f32 %v5257, %v4718
  %v5404 = vadd.f32 %v5402, %v5403
  %v5405 = vsub.f32 %v4957, %v4715
  %5407 = vset.pattern.permute.xlu0 0
  %5408 = vperm.xlu0 %5407, %v4723
  %v5409 = vpop.permute.xlu0 %5408
  %v5411 = vmul.f32 %v5409, %v5405
  %v5412 = vadd.f32 %v4715, %v5411
  %v5413 = vsub.f32 %v5404, %v4718
  %v5414 = vmul.f32 %v5409, %v5413
  %v5415 = vadd.f32 %v4718, %v5414
  %v5416 = vmul.f32 %v5409, %v5404
  %v5417 = vadd.f32 %v4720, %v5416
  %vm5418 = vcmp.gt.s32.totalorder %v41, 7
  %v5419 = vsel %vm5418, 1, 0
  %v5420 = vcvt.s32.f32 %v5419
  %v5422 = vsel %vm548, %v5412, 0
  %5424 = vmatprep.subr.mxu0 0.0
  %5425 = vmatpush1.msra.mxu0 %v42
  %5426 = vmatprep.subr.mxu0 0.0
  %5427 = vmatpush1.msra.mxu0 %v43
  %5428 = vmatprep.subr.mxu0 0.0
  %5429 = vmatpush1.msra.mxu0 %v44
  %5430 = vmatprep.subr.mxu0 0.0
  %5431 = vmatpush1.msra.mxu0 %v45
  %5432 = vmatprep.subr.mxu0 0.0
  %5433 = vmatpush1.msra.mxu0 0.0
  %5434 = vmatprep.subr.mxu0 0.0
  %5435 = vmatpush1.msra.mxu0 0.0
  %5436 = vmatprep.subr.mxu0 0.0
  %5437 = vmatpush1.msra.mxu0 0.0
  %5438 = vmatprep.subr.mxu0 0.0
  %5439 = vmatpush1.msra.mxu0 0.0
  %5440 = vmatprep.subr.mxu0 0.0
  %5441 = vmatpush1.msra.mxu0 0.0
  %5442 = vmatprep.subr.mxu0 0.0
  %5443 = vmatpush1.msra.mxu0 0.0
  %5444 = vmatprep.subr.mxu0 0.0
  %5445 = vmatpush1.msra.mxu0 0.0
  %5446 = vmatprep.subr.mxu0 0.0
  %5447 = vmatpush1.msra.mxu0 0.0
  %5448 = vmatprep.subr.mxu0 0.0
  %5449 = vmatpush1.msra.mxu0 0.0
  %5450 = vmatprep.subr.mxu0 0.0
  %5451 = vmatpush1.msra.mxu0 0.0
  %5452 = vmatprep.subr.mxu0 0.0
  %5453 = vmatpush1.msra.mxu0 0.0
  %5454 = vmatprep.subr.mxu0 0.0
  %5455 = vmatpush1.msra.mxu0 0.0
  %5456 = vmatprep.subr.mxu0 0.0
  %5457 = vmatpush1.msra.mxu0 0.0
  %5458 = vmatprep.subr.mxu0 0.0
  %5459 = vmatpush1.msra.mxu0 0.0
  %5460 = vmatprep.subr.mxu0 0.0
  %5461 = vmatpush1.msra.mxu0 0.0
  %5462 = vmatprep.subr.mxu0 0.0
  %5463 = vmatpush1.msra.mxu0 0.0
  %5464 = vmatprep.subr.mxu0 0.0
  %5465 = vmatpush1.msra.mxu0 0.0
  %5466 = vmatprep.subr.mxu0 0.0
  %5467 = vmatpush1.msra.mxu0 0.0
  %5468 = vmatprep.subr.mxu0 0.0
  %5469 = vmatpush1.msra.mxu0 0.0
  %5470 = vmatprep.subr.mxu0 0.0
  %5471 = vmatpush1.msra.mxu0 0.0
  %5472 = vmatprep.subr.mxu0 0.0
  %5473 = vmatpush1.msra.mxu0 0.0
  %5474 = vmatprep.subr.mxu0 0.0
  %5475 = vmatpush1.msra.mxu0 0.0
  %5476 = vmatprep.subr.mxu0 0.0
  %5477 = vmatpush1.msra.mxu0 0.0
  %5478 = vmatprep.subr.mxu0 0.0
  %5479 = vmatpush1.msra.mxu0 0.0
  %5480 = vmatprep.subr.mxu0 0.0
  %5481 = vmatpush1.msra.mxu0 0.0
  %5482 = vmatprep.subr.mxu0 0.0
  %5483 = vmatpush1.msra.mxu0 0.0
  %5484 = vmatprep.subr.mxu0 0.0
  %5485 = vmatpush1.msra.mxu0 0.0
  %5486 = vmatprep.subr.mxu0 0.0
  %5487 = vmatpush1.msra.mxu0 0.0
  %5488 = vmatprep.mubr.f32.mxu0 0.0
  %5489 = vmatmul.mubr.f32.gmra.mrb[0].mxu0 %v5422
  %v5490 = vpop.f32.mrb[0].mxu0
  %v5491 = vadd.f32 0.0, %v5490
  %v5492 = vpop.f32.mrb[0].mxu0
  %5493 = vdwg.mxu0
  %v5494 = vadd.f32 %v292, %v5491
  %v5495 = vxor.u32 %v5494, 2147483648
  %v5496 = vmul.f32 %v5495, 1.442695
  %v5497 = vpow.pop %v5496
  %v5498 = vadd.f32 %v5497, 1.0
  %v5499 = vrcp.pop %v5498
  %v5500 = vmul.f32 1.0, %v5499
  %5501 = vmatprep.subr.mxu0 0.0
  %5502 = vmatpush1.msra.mxu0 %v47
  %5503 = vmatprep.subr.mxu0 0.0
  %5504 = vmatpush1.msra.mxu0 %v48
  %5505 = vmatprep.subr.mxu0 0.0
  %5506 = vmatpush1.msra.mxu0 %v49
  %5507 = vmatprep.subr.mxu0 0.0
  %5508 = vmatpush1.msra.mxu0 %v50
  %5509 = vmatprep.subr.mxu0 0.0
  %5510 = vmatpush1.msra.mxu0 0.0
  %5511 = vmatprep.subr.mxu0 0.0
  %5512 = vmatpush1.msra.mxu0 0.0
  %5513 = vmatprep.subr.mxu0 0.0
  %5514 = vmatpush1.msra.mxu0 0.0
  %5515 = vmatprep.subr.mxu0 0.0
  %5516 = vmatpush1.msra.mxu0 0.0
  %5517 = vmatprep.subr.mxu0 0.0
  %5518 = vmatpush1.msra.mxu0 0.0
  %5519 = vmatprep.subr.mxu0 0.0
  %5520 = vmatpush1.msra.mxu0 0.0
  %5521 = vmatprep.subr.mxu0 0.0
  %5522 = vmatpush1.msra.mxu0 0.0
  %5523 = vmatprep.subr.mxu0 0.0
  %5524 = vmatpush1.msra.mxu0 0.0
  %5525 = vmatprep.subr.mxu0 0.0
  %5526 = vmatpush1.msra.mxu0 0.0
  %5527 = vmatprep.subr.mxu0 0.0
  %5528 = vmatpush1.msra.mxu0 0.0
  %5529 = vmatprep.subr.mxu0 0.0
  %5530 = vmatpush1.msra.mxu0 0.0
  %5531 = vmatprep.subr.mxu0 0.0
  %5532 = vmatpush1.msra.mxu0 0.0
  %5533 = vmatprep.subr.mxu0 0.0
  %5534 = vmatpush1.msra.mxu0 0.0
  %5535 = vmatprep.subr.mxu0 0.0
  %5536 = vmatpush1.msra.mxu0 0.0
  %5537 = vmatprep.subr.mxu0 0.0
  %5538 = vmatpush1.msra.mxu0 0.0
  %5539 = vmatprep.subr.mxu0 0.0
  %5540 = vmatpush1.msra.mxu0 0.0
  %5541 = vmatprep.subr.mxu0 0.0
  %5542 = vmatpush1.msra.mxu0 0.0
  %5543 = vmatprep.subr.mxu0 0.0
  %5544 = vmatpush1.msra.mxu0 0.0
  %5545 = vmatprep.subr.mxu0 0.0
  %5546 = vmatpush1.msra.mxu0 0.0
  %5547 = vmatprep.subr.mxu0 0.0
  %5548 = vmatpush1.msra.mxu0 0.0
  %5549 = vmatprep.subr.mxu0 0.0
  %5550 = vmatpush1.msra.mxu0 0.0
  %5551 = vmatprep.subr.mxu0 0.0
  %5552 = vmatpush1.msra.mxu0 0.0
  %5553 = vmatprep.subr.mxu0 0.0
  %5554 = vmatpush1.msra.mxu0 0.0
  %5555 = vmatprep.subr.mxu0 0.0
  %5556 = vmatpush1.msra.mxu0 0.0
  %5557 = vmatprep.subr.mxu0 0.0
  %5558 = vmatpush1.msra.mxu0 0.0
  %5559 = vmatprep.subr.mxu0 0.0
  %5560 = vmatpush1.msra.mxu0 0.0
  %5561 = vmatprep.subr.mxu0 0.0
  %5562 = vmatpush1.msra.mxu0 0.0
  %5563 = vmatprep.subr.mxu0 0.0
  %5564 = vmatpush1.msra.mxu0 0.0
  %5565 = vmatprep.mubr.f32.mxu0 0.0
  %5566 = vmatmul.mubr.f32.gmra.mrb[0].mxu0 %v5422
  %v5567 = vpop.f32.mrb[0].mxu0
  %v5568 = vadd.f32 0.0, %v5567
  %v5569 = vpop.f32.mrb[0].mxu0
  %5570 = vdwg.mxu0
  %v5571 = vadd.f32 %v426, %v5568
  %v5572 = vxor.u32 %v5571, 2147483648
  %v5573 = vmul.f32 %v5572, 1.442695
  %v5574 = vpow.pop %v5573
  %v5575 = vadd.f32 %v5574, 1.0
  %v5576 = vrcp.pop %v5575
  %v5577 = vmul.f32 1.0, %v5576
  %5578 = vmatprep.subr.mxu0 0.0
  %5579 = vmatpush1.msra.mxu0 %v52
  %5580 = vmatprep.subr.mxu0 0.0
  %5581 = vmatpush1.msra.mxu0 %v53
  %5582 = vmatprep.subr.mxu0 0.0
  %5583 = vmatpush1.msra.mxu0 %v54
  %5584 = vmatprep.subr.mxu0 0.0
  %5585 = vmatpush1.msra.mxu0 %v55
  %5586 = vmatprep.subr.mxu0 0.0
  %5587 = vmatpush1.msra.mxu0 0.0
  %5588 = vmatprep.subr.mxu0 0.0
  %5589 = vmatpush1.msra.mxu0 0.0
  %5590 = vmatprep.subr.mxu0 0.0
  %5591 = vmatpush1.msra.mxu0 0.0
  %5592 = vmatprep.subr.mxu0 0.0
  %5593 = vmatpush1.msra.mxu0 0.0
  %5594 = vmatprep.subr.mxu0 0.0
  %5595 = vmatpush1.msra.mxu0 0.0
  %5596 = vmatprep.subr.mxu0 0.0
  %5597 = vmatpush1.msra.mxu0 0.0
  %5598 = vmatprep.subr.mxu0 0.0
  %5599 = vmatpush1.msra.mxu0 0.0
  %5600 = vmatprep.subr.mxu0 0.0
  %5601 = vmatpush1.msra.mxu0 0.0
  %5602 = vmatprep.subr.mxu0 0.0
  %5603 = vmatpush1.msra.mxu0 0.0
  %5604 = vmatprep.subr.mxu0 0.0
  %5605 = vmatpush1.msra.mxu0 0.0
  %5606 = vmatprep.subr.mxu0 0.0
  %5607 = vmatpush1.msra.mxu0 0.0
  %5608 = vmatprep.subr.mxu0 0.0
  %5609 = vmatpush1.msra.mxu0 0.0
  %5610 = vmatprep.subr.mxu0 0.0
  %5611 = vmatpush1.msra.mxu0 0.0
  %5612 = vmatprep.subr.mxu0 0.0
  %5613 = vmatpush1.msra.mxu0 0.0
  %5614 = vmatprep.subr.mxu0 0.0
  %5615 = vmatpush1.msra.mxu0 0.0
  %5616 = vmatprep.subr.mxu0 0.0
  %5617 = vmatpush1.msra.mxu0 0.0
  %5618 = vmatprep.subr.mxu0 0.0
  %5619 = vmatpush1.msra.mxu0 0.0
  %5620 = vmatprep.subr.mxu0 0.0
  %5621 = vmatpush1.msra.mxu0 0.0
  %5622 = vmatprep.subr.mxu0 0.0
  %5623 = vmatpush1.msra.mxu0 0.0
  %5624 = vmatprep.subr.mxu0 0.0
  %5625 = vmatpush1.msra.mxu0 0.0
  %5626 = vmatprep.subr.mxu0 0.0
  %5627 = vmatpush1.msra.mxu0 0.0
  %5628 = vmatprep.subr.mxu0 0.0
  %5629 = vmatpush1.msra.mxu0 0.0
  %5630 = vmatprep.subr.mxu0 0.0
  %5631 = vmatpush1.msra.mxu0 0.0
  %5632 = vmatprep.subr.mxu0 0.0
  %5633 = vmatpush1.msra.mxu0 0.0
  %5634 = vmatprep.subr.mxu0 0.0
  %5635 = vmatpush1.msra.mxu0 0.0
  %5636 = vmatprep.subr.mxu0 0.0
  %5637 = vmatpush1.msra.mxu0 0.0
  %5638 = vmatprep.subr.mxu0 0.0
  %5639 = vmatpush1.msra.mxu0 0.0
  %5640 = vmatprep.subr.mxu0 0.0
  %5641 = vmatpush1.msra.mxu0 0.0
  %5642 = vmatprep.mubr.f32.mxu0 0.0
  %5643 = vmatmul.mubr.f32.gmra.mrb[0].mxu0 %v5422
  %v5644 = vpop.f32.mrb[0].mxu0
  %v5645 = vadd.f32 %v90, %v5644
  %v5646 = vpop.f32.mrb[0].mxu0
  %5647 = vdwg.mxu0
  %v5648 = vmul.f32 %v5500, %v5645
  %v5649 = vadd.f32 %v542, %v5648
  %v5650 = vtanh.pop %v5649
  %v5651 = vsub.f32 1.0, %v5577
  %v5652 = vmul.f32 %v5651, %v5650
  %v5653 = vmul.f32 %v5577, %v5412
  %v5654 = vadd.f32 %v5652, %v5653
  %v5656 = vsel %vm548, %v5415, 0
  %5658 = vmatprep.subr.mxu0 0.0
  %5659 = vmatpush1.msra.mxu0 %v70
  %5660 = vmatprep.subr.mxu0 0.0
  %5661 = vmatpush1.msra.mxu0 %v71
  %5662 = vmatprep.subr.mxu0 0.0
  %5663 = vmatpush1.msra.mxu0 %v72
  %5664 = vmatprep.subr.mxu0 0.0
  %5665 = vmatpush1.msra.mxu0 %v73
  %5666 = vmatprep.subr.mxu0 0.0
  %5667 = vmatpush1.msra.mxu0 0.0
  %5668 = vmatprep.subr.mxu0 0.0
  %5669 = vmatpush1.msra.mxu0 0.0
  %5670 = vmatprep.subr.mxu0 0.0
  %5671 = vmatpush1.msra.mxu0 0.0
  %5672 = vmatprep.subr.mxu0 0.0
  %5673 = vmatpush1.msra.mxu0 0.0
  %5674 = vmatprep.subr.mxu0 0.0
  %5675 = vmatpush1.msra.mxu0 0.0
  %5676 = vmatprep.subr.mxu0 0.0
  %5677 = vmatpush1.msra.mxu0 0.0
  %5678 = vmatprep.subr.mxu0 0.0
  %5679 = vmatpush1.msra.mxu0 0.0
  %5680 = vmatprep.subr.mxu0 0.0
  %5681 = vmatpush1.msra.mxu0 0.0
  %5682 = vmatprep.subr.mxu0 0.0
  %5683 = vmatpush1.msra.mxu0 0.0
  %5684 = vmatprep.subr.mxu0 0.0
  %5685 = vmatpush1.msra.mxu0 0.0
  %5686 = vmatprep.subr.mxu0 0.0
  %5687 = vmatpush1.msra.mxu0 0.0
  %5688 = vmatprep.subr.mxu0 0.0
  %5689 = vmatpush1.msra.mxu0 0.0
  %5690 = vmatprep.subr.mxu0 0.0
  %5691 = vmatpush1.msra.mxu0 0.0
  %5692 = vmatprep.subr.mxu0 0.0
  %5693 = vmatpush1.msra.mxu0 0.0
  %5694 = vmatprep.subr.mxu0 0.0
  %5695 = vmatpush1.msra.mxu0 0.0
  %5696 = vmatprep.subr.mxu0 0.0
  %5697 = vmatpush1.msra.mxu0 0.0
  %5698 = vmatprep.subr.mxu0 0.0
  %5699 = vmatpush1.msra.mxu0 0.0
  %5700 = vmatprep.subr.mxu0 0.0
  %5701 = vmatpush1.msra.mxu0 0.0
  %5702 = vmatprep.subr.mxu0 0.0
  %5703 = vmatpush1.msra.mxu0 0.0
  %5704 = vmatprep.subr.mxu0 0.0
  %5705 = vmatpush1.msra.mxu0 0.0
  %5706 = vmatprep.subr.mxu0 0.0
  %5707 = vmatpush1.msra.mxu0 0.0
  %5708 = vmatprep.subr.mxu0 0.0
  %5709 = vmatpush1.msra.mxu0 0.0
  %5710 = vmatprep.subr.mxu0 0.0
  %5711 = vmatpush1.msra.mxu0 0.0
  %5712 = vmatprep.subr.mxu0 0.0
  %5713 = vmatpush1.msra.mxu0 0.0
  %5714 = vmatprep.subr.mxu0 0.0
  %5715 = vmatpush1.msra.mxu0 0.0
  %5716 = vmatprep.subr.mxu0 0.0
  %5717 = vmatpush1.msra.mxu0 0.0
  %5718 = vmatprep.subr.mxu0 0.0
  %5719 = vmatpush1.msra.mxu0 0.0
  %5720 = vmatprep.subr.mxu0 0.0
  %5721 = vmatpush1.msra.mxu0 0.0
  %5722 = vmatprep.mubr.f32.mxu0 0.0
  %5723 = vmatmul.mubr.f32.gmra.mrb[0].mxu0 %v5656
  %v5724 = vpop.f32.mrb[0].mxu0
  %v5725 = vadd.f32 0.0, %v5724
  %v5726 = vpop.f32.mrb[0].mxu0
  %5727 = vdwg.mxu0
  %v5729 = vsel %vm548, %v5654, 0
  %5731 = vmatprep.subr.mxu0 0.0
  %5732 = vmatpush1.msra.mxu0 %v56
  %5733 = vmatprep.subr.mxu0 0.0
  %5734 = vmatpush1.msra.mxu0 %v57
  %5735 = vmatprep.subr.mxu0 0.0
  %5736 = vmatpush1.msra.mxu0 %v58
  %5737 = vmatprep.subr.mxu0 0.0
  %5738 = vmatpush1.msra.mxu0 %v59
  %5739 = vmatprep.subr.mxu0 0.0
  %5740 = vmatpush1.msra.mxu0 0.0
  %5741 = vmatprep.subr.mxu0 0.0
  %5742 = vmatpush1.msra.mxu0 0.0
  %5743 = vmatprep.subr.mxu0 0.0
  %5744 = vmatpush1.msra.mxu0 0.0
  %5745 = vmatprep.subr.mxu0 0.0
  %5746 = vmatpush1.msra.mxu0 0.0
  %5747 = vmatprep.subr.mxu0 0.0
  %5748 = vmatpush1.msra.mxu0 0.0
  %5749 = vmatprep.subr.mxu0 0.0
  %5750 = vmatpush1.msra.mxu0 0.0
  %5751 = vmatprep.subr.mxu0 0.0
  %5752 = vmatpush1.msra.mxu0 0.0
  %5753 = vmatprep.subr.mxu0 0.0
  %5754 = vmatpush1.msra.mxu0 0.0
  %5755 = vmatprep.subr.mxu0 0.0
  %5756 = vmatpush1.msra.mxu0 0.0
  %5757 = vmatprep.subr.mxu0 0.0
  %5758 = vmatpush1.msra.mxu0 0.0
  %5759 = vmatprep.subr.mxu0 0.0
  %5760 = vmatpush1.msra.mxu0 0.0
  %5761 = vmatprep.subr.mxu0 0.0
  %5762 = vmatpush1.msra.mxu0 0.0
  %5763 = vmatprep.subr.mxu0 0.0
  %5764 = vmatpush1.msra.mxu0 0.0
  %5765 = vmatprep.subr.mxu0 0.0
  %5766 = vmatpush1.msra.mxu0 0.0
  %5767 = vmatprep.subr.mxu0 0.0
  %5768 = vmatpush1.msra.mxu0 0.0
  %5769 = vmatprep.subr.mxu0 0.0
  %5770 = vmatpush1.msra.mxu0 0.0
  %5771 = vmatprep.subr.mxu0 0.0
  %5772 = vmatpush1.msra.mxu0 0.0
  %5773 = vmatprep.subr.mxu0 0.0
  %5774 = vmatpush1.msra.mxu0 0.0
  %5775 = vmatprep.subr.mxu0 0.0
  %5776 = vmatpush1.msra.mxu0 0.0
  %5777 = vmatprep.subr.mxu0 0.0
  %5778 = vmatpush1.msra.mxu0 0.0
  %5779 = vmatprep.subr.mxu0 0.0
  %5780 = vmatpush1.msra.mxu0 0.0
  %5781 = vmatprep.subr.mxu0 0.0
  %5782 = vmatpush1.msra.mxu0 0.0
  %5783 = vmatprep.subr.mxu0 0.0
  %5784 = vmatpush1.msra.mxu0 0.0
  %5785 = vmatprep.subr.mxu0 0.0
  %5786 = vmatpush1.msra.mxu0 0.0
  %5787 = vmatprep.subr.mxu0 0.0
  %5788 = vmatpush1.msra.mxu0 0.0
  %5789 = vmatprep.subr.mxu0 0.0
  %5790 = vmatpush1.msra.mxu0 0.0
  %5791 = vmatprep.subr.mxu0 0.0
  %5792 = vmatpush1.msra.mxu0 0.0
  %5793 = vmatprep.subr.mxu0 0.0
  %5794 = vmatpush1.msra.mxu0 0.0
  %5795 = vmatprep.mubr.f32.mxu0 0.0
  %5796 = vmatmul.mubr.f32.gmra.mrb[0].mxu0 %v5729
  %v5797 = vpop.f32.mrb[0].mxu0
  %v5798 = vadd.f32 %v5725, %v5797
  %v5799 = vpop.f32.mrb[0].mxu0
  %5800 = vdwg.mxu0
  %v5801 = vadd.f32 %v5798, %v99
  %v5802 = vxor.u32 %v5801, 2147483648
  %v5803 = vmul.f32 %v5802, 1.442695
  %v5804 = vpow.pop %v5803
  %v5805 = vadd.f32 %v5804, 1.0
  %v5806 = vrcp.pop %v5805
  %v5807 = vmul.f32 1.0, %v5806
  %5808 = vmatprep.subr.mxu0 0.0
  %5809 = vmatpush1.msra.mxu0 %v75
  %5810 = vmatprep.subr.mxu0 0.0
  %5811 = vmatpush1.msra.mxu0 %v76
  %5812 = vmatprep.subr.mxu0 0.0
  %5813 = vmatpush1.msra.mxu0 %v77
  %5814 = vmatprep.subr.mxu0 0.0
  %5815 = vmatpush1.msra.mxu0 %v78
  %5816 = vmatprep.subr.mxu0 0.0
  %5817 = vmatpush1.msra.mxu0 0.0
  %5818 = vmatprep.subr.mxu0 0.0
  %5819 = vmatpush1.msra.mxu0 0.0
  %5820 = vmatprep.subr.mxu0 0.0
  %5821 = vmatpush1.msra.mxu0 0.0
  %5822 = vmatprep.subr.mxu0 0.0
  %5823 = vmatpush1.msra.mxu0 0.0
  %5824 = vmatprep.subr.mxu0 0.0
  %5825 = vmatpush1.msra.mxu0 0.0
  %5826 = vmatprep.subr.mxu0 0.0
  %5827 = vmatpush1.msra.mxu0 0.0
  %5828 = vmatprep.subr.mxu0 0.0
  %5829 = vmatpush1.msra.mxu0 0.0
  %5830 = vmatprep.subr.mxu0 0.0
  %5831 = vmatpush1.msra.mxu0 0.0
  %5832 = vmatprep.subr.mxu0 0.0
  %5833 = vmatpush1.msra.mxu0 0.0
  %5834 = vmatprep.subr.mxu0 0.0
  %5835 = vmatpush1.msra.mxu0 0.0
  %5836 = vmatprep.subr.mxu0 0.0
  %5837 = vmatpush1.msra.mxu0 0.0
  %5838 = vmatprep.subr.mxu0 0.0
  %5839 = vmatpush1.msra.mxu0 0.0
  %5840 = vmatprep.subr.mxu0 0.0
  %5841 = vmatpush1.msra.mxu0 0.0
  %5842 = vmatprep.subr.mxu0 0.0
  %5843 = vmatpush1.msra.mxu0 0.0
  %5844 = vmatprep.subr.mxu0 0.0
  %5845 = vmatpush1.msra.mxu0 0.0
  %5846 = vmatprep.subr.mxu0 0.0
  %5847 = vmatpush1.msra.mxu0 0.0
  %5848 = vmatprep.subr.mxu0 0.0
  %5849 = vmatpush1.msra.mxu0 0.0
  %5850 = vmatprep.subr.mxu0 0.0
  %5851 = vmatpush1.msra.mxu0 0.0
  %5852 = vmatprep.subr.mxu0 0.0
  %5853 = vmatpush1.msra.mxu0 0.0
  %5854 = vmatprep.subr.mxu0 0.0
  %5855 = vmatpush1.msra.mxu0 0.0
  %5856 = vmatprep.subr.mxu0 0.0
  %5857 = vmatpush1.msra.mxu0 0.0
  %5858 = vmatprep.subr.mxu0 0.0
  %5859 = vmatpush1.msra.mxu0 0.0
  %5860 = vmatprep.subr.mxu0 0.0
  %5861 = vmatpush1.msra.mxu0 0.0
  %5862 = vmatprep.subr.mxu0 0.0
  %5863 = vmatpush1.msra.mxu0 0.0
  %5864 = vmatprep.subr.mxu0 0.0
  %5865 = vmatpush1.msra.mxu0 0.0
  %5866 = vmatprep.subr.mxu0 0.0
  %5867 = vmatpush1.msra.mxu0 0.0
  %5868 = vmatprep.subr.mxu0 0.0
  %5869 = vmatpush1.msra.mxu0 0.0
  %5870 = vmatprep.subr.mxu0 0.0
  %5871 = vmatpush1.msra.mxu0 0.0
  %5872 = vmatprep.mubr.f32.mxu0 0.0
  %5873 = vmatmul.mubr.f32.gmra.mrb[0].mxu0 %v5656
  %v5874 = vpop.f32.mrb[0].mxu0
  %v5875 = vadd.f32 0.0, %v5874
  %v5876 = vpop.f32.mrb[0].mxu0
  %5877 = vdwg.mxu0
  %5878 = vmatprep.subr.mxu0 0.0
  %5879 = vmatpush1.msra.mxu0 %v61
  %5880 = vmatprep.subr.mxu0 0.0
  %5881 = vmatpush1.msra.mxu0 %v62
  %5882 = vmatprep.subr.mxu0 0.0
  %5883 = vmatpush1.msra.mxu0 %v63
  %5884 = vmatprep.subr.mxu0 0.0
  %5885 = vmatpush1.msra.mxu0 %v64
  %5886 = vmatprep.subr.mxu0 0.0
  %5887 = vmatpush1.msra.mxu0 0.0
  %5888 = vmatprep.subr.mxu0 0.0
  %5889 = vmatpush1.msra.mxu0 0.0
  %5890 = vmatprep.subr.mxu0 0.0
  %5891 = vmatpush1.msra.mxu0 0.0
  %5892 = vmatprep.subr.mxu0 0.0
  %5893 = vmatpush1.msra.mxu0 0.0
  %5894 = vmatprep.subr.mxu0 0.0
  %5895 = vmatpush1.msra.mxu0 0.0
  %5896 = vmatprep.subr.mxu0 0.0
  %5897 = vmatpush1.msra.mxu0 0.0
  %5898 = vmatprep.subr.mxu0 0.0
  %5899 = vmatpush1.msra.mxu0 0.0
  %5900 = vmatprep.subr.mxu0 0.0
  %5901 = vmatpush1.msra.mxu0 0.0
  %5902 = vmatprep.subr.mxu0 0.0
  %5903 = vmatpush1.msra.mxu0 0.0
  %5904 = vmatprep.subr.mxu0 0.0
  %5905 = vmatpush1.msra.mxu0 0.0
  %5906 = vmatprep.subr.mxu0 0.0
  %5907 = vmatpush1.msra.mxu0 0.0
  %5908 = vmatprep.subr.mxu0 0.0
  %5909 = vmatpush1.msra.mxu0 0.0
  %5910 = vmatprep.subr.mxu0 0.0
  %5911 = vmatpush1.msra.mxu0 0.0
  %5912 = vmatprep.subr.mxu0 0.0
  %5913 = vmatpush1.msra.mxu0 0.0
  %5914 = vmatprep.subr.mxu0 0.0
  %5915 = vmatpush1.msra.mxu0 0.0
  %5916 = vmatprep.subr.mxu0 0.0
  %5917 = vmatpush1.msra.mxu0 0.0
  %5918 = vmatprep.subr.mxu0 0.0
  %5919 = vmatpush1.msra.mxu0 0.0
  %5920 = vmatprep.subr.mxu0 0.0
  %5921 = vmatpush1.msra.mxu0 0.0
  %5922 = vmatprep.subr.mxu0 0.0
  %5923 = vmatpush1.msra.mxu0 0.0
  %5924 = vmatprep.subr.mxu0 0.0
  %5925 = vmatpush1.msra.mxu0 0.0
  %5926 = vmatprep.subr.mxu0 0.0
  %5927 = vmatpush1.msra.mxu0 0.0
  %5928 = vmatprep.subr.mxu0 0.0
  %5929 = vmatpush1.msra.mxu0 0.0
  %5930 = vmatprep.subr.mxu0 0.0
  %5931 = vmatpush1.msra.mxu0 0.0
  %5932 = vmatprep.subr.mxu0 0.0
  %5933 = vmatpush1.msra.mxu0 0.0
  %5934 = vmatprep.subr.mxu0 0.0
  %5935 = vmatpush1.msra.mxu0 0.0
  %5936 = vmatprep.subr.mxu0 0.0
  %5937 = vmatpush1.msra.mxu0 0.0
  %5938 = vmatprep.subr.mxu0 0.0
  %5939 = vmatpush1.msra.mxu0 0.0
  %5940 = vmatprep.subr.mxu0 0.0
  %5941 = vmatpush1.msra.mxu0 0.0
  %5942 = vmatprep.mubr.f32.mxu0 0.0
  %5943 = vmatmul.mubr.f32.gmra.mrb[0].mxu0 %v5729
  %v5944 = vpop.f32.mrb[0].mxu0
  %v5945 = vadd.f32 %v5875, %v5944
  %v5946 = vpop.f32.mrb[0].mxu0
  %5947 = vdwg.mxu0
  %v5948 = vadd.f32 %v5945, %v110
  %v5949 = vxor.u32 %v5948, 2147483648
  %v5950 = vmul.f32 %v5949, 1.442695
  %v5951 = vpow.pop %v5950
  %v5952 = vadd.f32 %v5951, 1.0
  %v5953 = vrcp.pop %v5952
  %v5954 = vmul.f32 1.0, %v5953
  %5955 = vmatprep.subr.mxu0 0.0
  %5956 = vmatpush1.msra.mxu0 %v66
  %5957 = vmatprep.subr.mxu0 0.0
  %5958 = vmatpush1.msra.mxu0 %v67
  %5959 = vmatprep.subr.mxu0 0.0
  %5960 = vmatpush1.msra.mxu0 %v68
  %5961 = vmatprep.subr.mxu0 0.0
  %5962 = vmatpush1.msra.mxu0 %v69
  %5963 = vmatprep.subr.mxu0 0.0
  %5964 = vmatpush1.msra.mxu0 0.0
  %5965 = vmatprep.subr.mxu0 0.0
  %5966 = vmatpush1.msra.mxu0 0.0
  %5967 = vmatprep.subr.mxu0 0.0
  %5968 = vmatpush1.msra.mxu0 0.0
  %5969 = vmatprep.subr.mxu0 0.0
  %5970 = vmatpush1.msra.mxu0 0.0
  %5971 = vmatprep.subr.mxu0 0.0
  %5972 = vmatpush1.msra.mxu0 0.0
  %5973 = vmatprep.subr.mxu0 0.0
  %5974 = vmatpush1.msra.mxu0 0.0
  %5975 = vmatprep.subr.mxu0 0.0
  %5976 = vmatpush1.msra.mxu0 0.0
  %5977 = vmatprep.subr.mxu0 0.0
  %5978 = vmatpush1.msra.mxu0 0.0
  %5979 = vmatprep.subr.mxu0 0.0
  %5980 = vmatpush1.msra.mxu0 0.0
  %5981 = vmatprep.subr.mxu0 0.0
  %5982 = vmatpush1.msra.mxu0 0.0
  %5983 = vmatprep.subr.mxu0 0.0
  %5984 = vmatpush1.msra.mxu0 0.0
  %5985 = vmatprep.subr.mxu0 0.0
  %5986 = vmatpush1.msra.mxu0 0.0
  %5987 = vmatprep.subr.mxu0 0.0
  %5988 = vmatpush1.msra.mxu0 0.0
  %5989 = vmatprep.subr.mxu0 0.0
  %5990 = vmatpush1.msra.mxu0 0.0
  %5991 = vmatprep.subr.mxu0 0.0
  %5992 = vmatpush1.msra.mxu0 0.0
  %5993 = vmatprep.subr.mxu0 0.0
  %5994 = vmatpush1.msra.mxu0 0.0
  %5995 = vmatprep.subr.mxu0 0.0
  %5996 = vmatpush1.msra.mxu0 0.0
  %5997 = vmatprep.subr.mxu0 0.0
  %5998 = vmatpush1.msra.mxu0 0.0
  %5999 = vmatprep.subr.mxu0 0.0
  %6000 = vmatpush1.msra.mxu0 0.0
  %6001 = vmatprep.subr.mxu0 0.0
  %6002 = vmatpush1.msra.mxu0 0.0
  %6003 = vmatprep.subr.mxu0 0.0
  %6004 = vmatpush1.msra.mxu0 0.0
  %6005 = vmatprep.subr.mxu0 0.0
  %6006 = vmatpush1.msra.mxu0 0.0
  %6007 = vmatprep.subr.mxu0 0.0
  %6008 = vmatpush1.msra.mxu0 0.0
  %6009 = vmatprep.subr.mxu0 0.0
  %6010 = vmatpush1.msra.mxu0 0.0
  %6011 = vmatprep.subr.mxu0 0.0
  %6012 = vmatpush1.msra.mxu0 0.0
  %6013 = vmatprep.subr.mxu0 0.0
  %6014 = vmatpush1.msra.mxu0 0.0
  %6015 = vmatprep.subr.mxu0 0.0
  %6016 = vmatpush1.msra.mxu0 0.0
  %6017 = vmatprep.subr.mxu0 0.0
  %6018 = vmatpush1.msra.mxu0 0.0
  %6019 = vmatprep.mubr.f32.mxu0 0.0
  %6020 = vmatmul.mubr.f32.gmra.mrb[0].mxu0 %v5729
  %v6021 = vpop.f32.mrb[0].mxu0
  %v6022 = vadd.f32 %v118, %v6021
  %v6023 = vpop.f32.mrb[0].mxu0
  %6024 = vdwg.mxu0
  %6025 = vmatprep.subr.mxu0 0.0
  %6026 = vmatpush1.msra.mxu0 %v80
  %6027 = vmatprep.subr.mxu0 0.0
  %6028 = vmatpush1.msra.mxu0 %v81
  %6029 = vmatprep.subr.mxu0 0.0
  %6030 = vmatpush1.msra.mxu0 %v82
  %6031 = vmatprep.subr.mxu0 0.0
  %6032 = vmatpush1.msra.mxu0 %v83
  %6033 = vmatprep.subr.mxu0 0.0
  %6034 = vmatpush1.msra.mxu0 0.0
  %6035 = vmatprep.subr.mxu0 0.0
  %6036 = vmatpush1.msra.mxu0 0.0
  %6037 = vmatprep.subr.mxu0 0.0
  %6038 = vmatpush1.msra.mxu0 0.0
  %6039 = vmatprep.subr.mxu0 0.0
  %6040 = vmatpush1.msra.mxu0 0.0
  %6041 = vmatprep.subr.mxu0 0.0
  %6042 = vmatpush1.msra.mxu0 0.0
  %6043 = vmatprep.subr.mxu0 0.0
  %6044 = vmatpush1.msra.mxu0 0.0
  %6045 = vmatprep.subr.mxu0 0.0
  %6046 = vmatpush1.msra.mxu0 0.0
  %6047 = vmatprep.subr.mxu0 0.0
  %6048 = vmatpush1.msra.mxu0 0.0
  %6049 = vmatprep.subr.mxu0 0.0
  %6050 = vmatpush1.msra.mxu0 0.0
  %6051 = vmatprep.subr.mxu0 0.0
  %6052 = vmatpush1.msra.mxu0 0.0
  %6053 = vmatprep.subr.mxu0 0.0
  %6054 = vmatpush1.msra.mxu0 0.0
  %6055 = vmatprep.subr.mxu0 0.0
  %6056 = vmatpush1.msra.mxu0 0.0
  %6057 = vmatprep.subr.mxu0 0.0
  %6058 = vmatpush1.msra.mxu0 0.0
  %6059 = vmatprep.subr.mxu0 0.0
  %6060 = vmatpush1.msra.mxu0 0.0
  %6061 = vmatprep.subr.mxu0 0.0
  %6062 = vmatpush1.msra.mxu0 0.0
  %6063 = vmatprep.subr.mxu0 0.0
  %6064 = vmatpush1.msra.mxu0 0.0
  %6065 = vmatprep.subr.mxu0 0.0
  %6066 = vmatpush1.msra.mxu0 0.0
  %6067 = vmatprep.subr.mxu0 0.0
  %6068 = vmatpush1.msra.mxu0 0.0
  %6069 = vmatprep.subr.mxu0 0.0
  %6070 = vmatpush1.msra.mxu0 0.0
  %6071 = vmatprep.subr.mxu0 0.0
  %6072 = vmatpush1.msra.mxu0 0.0
  %6073 = vmatprep.subr.mxu0 0.0
  %6074 = vmatpush1.msra.mxu0 0.0
  %6075 = vmatprep.subr.mxu0 0.0
  %6076 = vmatpush1.msra.mxu0 0.0
  %6077 = vmatprep.subr.mxu0 0.0
  %6078 = vmatpush1.msra.mxu0 0.0
  %6079 = vmatprep.subr.mxu0 0.0
  %6080 = vmatpush1.msra.mxu0 0.0
  %6081 = vmatprep.subr.mxu0 0.0
  %6082 = vmatpush1.msra.mxu0 0.0
  %6083 = vmatprep.subr.mxu0 0.0
  %6084 = vmatpush1.msra.mxu0 0.0
  %6085 = vmatprep.subr.mxu0 0.0
  %6086 = vmatpush1.msra.mxu0 0.0
  %6087 = vmatprep.subr.mxu0 0.0
  %6088 = vmatpush1.msra.mxu0 0.0
  %6089 = vmatprep.mubr.f32.mxu0 0.0
  %6090 = vmatmul.mubr.f32.gmra.mrb[0].mxu0 %v5656
  %v6091 = vpop.f32.mrb[0].mxu0
  %v6092 = vadd.f32 %v126, %v6091
  %v6093 = vpop.f32.mrb[0].mxu0
  %6094 = vdwg.mxu0
  %v6095 = vmul.f32 %v5807, %v6092
  %v6096 = vadd.f32 %v6022, %v6095
  %v6097 = vtanh.pop %v6096
  %v6098 = vsub.f32 1.0, %v5954
  %v6099 = vmul.f32 %v6098, %v6097
  %v6100 = vmul.f32 %v5954, %v5415
  %v6101 = vadd.f32 %v6099, %v6100
  %6103 = vset.pattern.permute.xlu0 0
  %6104 = vperm.xlu0 %6103, %v5420
  %v6105 = vpop.permute.xlu0 %6104
  %v6107 = vmul.f32 %v6105, %v6101
  %v6108 = vadd.f32 %v5417, %v6107
  %vm6109 = vcmp.gt.s32.totalorder %v41, 1
  %v6110 = vsel %vm6109, %v41, 1
  %v6111 = vcvt.s32.f32 %v6110
  %6113 = vset.pattern.permute.xlu0 0
  %6114 = vperm.xlu0 %6113, %v6111
  %v6115 = vpop.permute.xlu0 %6114
  %v6117 = vrcp.pop %v6115
  %v6118 = vmul.f32 %v6108, %v6117
  %v6119 = vld [vmem:[%s10] sm:$0xff]
  %v6120 = vld [vmem:[%s10 + $0x8] sm:$0xff]
  %v6121 = vld [vmem:[%s10 + $0x10] sm:$0xff]
  %v6122 = vld [vmem:[%s10 + $0x18] sm:$0xff]
  %v6123 = vld [vmem:[%s11] sm:$0x1]
  %v6125 = vlaneseq
  %v6126 = vshrl.u32 %v6125, 7
  %v6127 = vsub.s32 0, %v6126
  %v6128 = vrot.slane %v6123, %v6127
  %v6131 = vsel %vm548, %v6118, 0
  %6133 = vmatprep.subr.mxu0 0.0
  %6134 = vmatpush1.msra.mxu0 %v6119
  %6135 = vmatprep.subr.mxu0 0.0
  %6136 = vmatpush1.msra.mxu0 %v6120
  %6137 = vmatprep.subr.mxu0 0.0
  %6138 = vmatpush1.msra.mxu0 %v6121
  %6139 = vmatprep.subr.mxu0 0.0
  %6140 = vmatpush1.msra.mxu0 %v6122
  %6141 = vmatprep.subr.mxu0 0.0
  %6142 = vmatpush1.msra.mxu0 0.0
  %6143 = vmatprep.subr.mxu0 0.0
  %6144 = vmatpush1.msra.mxu0 0.0
  %6145 = vmatprep.subr.mxu0 0.0
  %6146 = vmatpush1.msra.mxu0 0.0
  %6147 = vmatprep.subr.mxu0 0.0
  %6148 = vmatpush1.msra.mxu0 0.0
  %6149 = vmatprep.subr.mxu0 0.0
  %6150 = vmatpush1.msra.mxu0 0.0
  %6151 = vmatprep.subr.mxu0 0.0
  %6152 = vmatpush1.msra.mxu0 0.0
  %6153 = vmatprep.subr.mxu0 0.0
  %6154 = vmatpush1.msra.mxu0 0.0
  %6155 = vmatprep.subr.mxu0 0.0
  %6156 = vmatpush1.msra.mxu0 0.0
  %6157 = vmatprep.subr.mxu0 0.0
  %6158 = vmatpush1.msra.mxu0 0.0
  %6159 = vmatprep.subr.mxu0 0.0
  %6160 = vmatpush1.msra.mxu0 0.0
  %6161 = vmatprep.subr.mxu0 0.0
  %6162 = vmatpush1.msra.mxu0 0.0
  %6163 = vmatprep.subr.mxu0 0.0
  %6164 = vmatpush1.msra.mxu0 0.0
  %6165 = vmatprep.subr.mxu0 0.0
  %6166 = vmatpush1.msra.mxu0 0.0
  %6167 = vmatprep.subr.mxu0 0.0
  %6168 = vmatpush1.msra.mxu0 0.0
  %6169 = vmatprep.subr.mxu0 0.0
  %6170 = vmatpush1.msra.mxu0 0.0
  %6171 = vmatprep.subr.mxu0 0.0
  %6172 = vmatpush1.msra.mxu0 0.0
  %6173 = vmatprep.subr.mxu0 0.0
  %6174 = vmatpush1.msra.mxu0 0.0
  %6175 = vmatprep.subr.mxu0 0.0
  %6176 = vmatpush1.msra.mxu0 0.0
  %6177 = vmatprep.subr.mxu0 0.0
  %6178 = vmatpush1.msra.mxu0 0.0
  %6179 = vmatprep.subr.mxu0 0.0
  %6180 = vmatpush1.msra.mxu0 0.0
  %6181 = vmatprep.subr.mxu0 0.0
  %6182 = vmatpush1.msra.mxu0 0.0
  %6183 = vmatprep.subr.mxu0 0.0
  %6184 = vmatpush1.msra.mxu0 0.0
  %6185 = vmatprep.subr.mxu0 0.0
  %6186 = vmatpush1.msra.mxu0 0.0
  %6187 = vmatprep.subr.mxu0 0.0
  %6188 = vmatpush1.msra.mxu0 0.0
  %6189 = vmatprep.subr.mxu0 0.0
  %6190 = vmatpush1.msra.mxu0 0.0
  %6191 = vmatprep.subr.mxu0 0.0
  %6192 = vmatpush1.msra.mxu0 0.0
  %6193 = vmatprep.subr.mxu0 0.0
  %6194 = vmatpush1.msra.mxu0 0.0
  %6195 = vmatprep.subr.mxu0 0.0
  %6196 = vmatpush1.msra.mxu0 0.0
  %6197 = vmatprep.mubr.f32.mxu0 0.0
  %6198 = vmatmul.mubr.f32.gmra.mrb[0].mxu0 %v6131
  %v6199 = vpop.f32.mrb[0].mxu0
  %v6200 = vadd.f32 %v6128, %v6199
  %v6201 = vpop.f32.mrb[0].mxu0
  %6202 = vdwg.mxu0
  %vm6203 = vcmask 23552
  %6204 = vst.msk [vmem:[%s12] sm:$0xff] %vm6203, %v6200
  // Predicated region
  $region50: #{tsgru_forward.1} parent=0 // pred_check
    _
  $region51: #{tsgru_forward.1} parent=0 // pred_check_branch
    %6206 = sbr.rel (0) target = $region53
  $region52: #{tsgru_forward.1} parent=0 // pred_region
    _
  $region53: #{tsgru_forward.1} parent=0 // pred_fallthru
    _
  // Predicated region
  $region54: #{tsgru_forward.1} parent=0 // pred_check
    _
  $region55: #{tsgru_forward.1} parent=0 // pred_check_branch
    %6208 = sbr.rel (0) target = $region57
  $region56: #{tsgru_forward.1} parent=0 // pred_region
    _
  $region57: #{tsgru_forward.1} parent=0 // pred_fallthru
    _

</llo_original>
